<compile_context>
chip_gen: v7x
topology: tpu7x:2x2x1
jax: 0.10.0
libtpu: 0.0.40
codegen_flags: <defaults>
</compile_context>

<pallas_src>
import math

import jax
import jax.numpy as jnp
from jax.experimental import pallas as pl
from jax.experimental.pallas import tpu as pltpu


def make_gru_kernel(T, S, L, H, B):
    def kernel(*args):
        # ---- unpack refs ----------------------------------------------------
        state_ref, hidden0_ref = args[0], args[1]
        idx = 2
        (w0_rz_ref, w0_n_ref, whh_rz0_ref, whh_n0_ref,
         b_rz0_ref, b_in0_ref, b_hn0_ref) = args[idx:idx + 7]
        idx += 7
        deep_refs = []
        for _ in range(L - 1):
            # (w_rz_stacked, wih_n, whh_n, b_rz, b_in, b_hn)
            deep_refs.append(args[idx:idx + 6])
            idx += 6
        wlin_ref, blin_ref = args[idx], args[idx + 1]
        outs_ref, hidden_out_ref = args[idx + 2], args[idx + 3]
        hs_scratch = args[idx + 4]

        # ---- hoist ALL parameter loads once (refs are mutable: loads inside
        # the unrolled loops are not guaranteed to be CSE'd) ------------------
        # Layer-0 input-side params are (1, .) rows; pre-broadcast to (B, .)
        # once so the per-timestep gi0 math only broadcasts x_t.
        w0_rz = jnp.broadcast_to(w0_rz_ref[...], (B, 2 * H))
        w0_n = jnp.broadcast_to(w0_n_ref[...], (B, H))
        b0_rz = jnp.broadcast_to(b_rz0_ref[...], (B, 2 * H))
        b0_in = jnp.broadcast_to(b_in0_ref[...], (B, H))
        whh_rz0 = whh_rz0_ref[...]
        whh_n0 = whh_n0_ref[...]
        b_hn0 = b_hn0_ref[...]

        deep = []
        for l in range(L - 1):
            w_rz_ref, wih_n_ref, whh_n_ref, b_rz_ref, b_in_ref, b_hn_ref = deep_refs[l]
            deep.append((w_rz_ref[...], wih_n_ref[...], whh_n_ref[...],
                         b_rz_ref[...], b_in_ref[...], b_hn_ref[...]))

        wlin = wlin_ref[...]
        blin = blin_ref[...]

        # Hidden state per layer, carried as plain values across the call.
        h = [hidden0_ref[l] for l in range(L)]

        for i in range(T):
            x_seq = state_ref[i]                                  # (B, S)
            for t in range(S):
                # Recurrent-only matmuls first: they depend only on h(t-1),
                # so the MXU pushes issue back-to-back and overlap the gate
                # chain below.
                gh_rz0 = jnp.dot(h[0], whh_rz0,
                                 preferred_element_type=jnp.float32)   # (B, 2H)
                gh_n = [None] * L
                gh_n[0] = jnp.dot(h[0], whh_n0,
                                  preferred_element_type=jnp.float32) + b_hn0
                for l in range(1, L):
                    _, _, whh_n_l, _, _, b_hn_l = deep[l - 1]
                    gh_n[l] = jnp.dot(h[l], whh_n_l,
                                      preferred_element_type=jnp.float32) + b_hn_l

                # ---- layer 0: input_dim == 1 -> gi is a broadcast multiply --
                x_t = x_seq[:, t:t + 1]                           # (B, 1)
                g_rz = x_t * w0_rz + b0_rz + gh_rz0               # r|z packed
                gi_n = x_t * w0_n + b0_in
                a_rz = jax.nn.sigmoid(g_rz)                       # (B, 2H)
                r = a_rz[:, :H]
                z = a_rz[:, H:]
                n = jnp.tanh(gi_n + r * gh_n[0])
                h[0] = n + z * (h[0] - n)            # == (1 - z) * n + z * h

                # ---- deeper layers: fused [x | h] @ [[Wih_rz],[Whh_rz]] -----
                for l in range(1, L):
                    w_rz_l, wih_n_l, _, b_rz_l, b_in_l, _ = deep[l - 1]
                    x_cat = jnp.concatenate([h[l - 1], h[l]], axis=-1)  # (B, 2H)
                    g_rz = jnp.dot(x_cat, w_rz_l,
                                   preferred_element_type=jnp.float32) + b_rz_l
                    gi_n = jnp.dot(h[l - 1], wih_n_l,
                                   preferred_element_type=jnp.float32) + b_in_l
                    a_rz = jax.nn.sigmoid(g_rz)
                    r = a_rz[:, :H]
                    z = a_rz[:, H:]
                    n = jnp.tanh(gi_n + r * gh_n[l])
                    h[l] = n + z * (h[l] - n)

            # One small store of hidden[-1] per outer step (instead of holding
            # T live (B,H) values + a sublane-shuffling concatenate).
            hs_scratch[pl.ds(i * B, B), :] = h[L - 1]

        # Final Linear, batched over all T outer steps: one matmul, one store.
        outs_ref[...] = (jnp.dot(hs_scratch[...], wlin,
                                 preferred_element_type=jnp.float32) + blin)

        # Final hidden writeback, exactly once.
        for l in range(L):
            hidden_out_ref[l] = h[l]

    return kernel


def gru_forward(state, hidden0, params):
    """state: (T, B, S) f32; hidden0: (L, B, H) f32; params in PyTorch layout."""
    T, B, S = state.shape
    L, _, H = hidden0.shape
    O = params["w_lin_t"].shape[1]

    # The reference forward does state[i].unsqueeze(2) -> GRU input_dim == 1.
    assert params["wih_t"][0].shape[0] == 1, "forward() forces input_dim == 1"

    flat = [state, hidden0]
    for l in range(L):
        wih = params["wih_t"][l]          # (in_dim, 3H)
        whh = params["whh_t"][l]          # (H, 3H)
        bih = params["bih"][l]            # (1, 3H)
        bhh = params["bhh"][l]            # (1, 3H)
        # Gate order in PyTorch is (r, z, n).  Pack r|z along lanes; pre-fold
        # b_ih + b_hh for r/z (b_hh of the n gate stays separate: it is
        # multiplied by r inside the cell).
        wih_rz = wih[:, :2 * H]
        whh_rz = whh[:, :2 * H]
        wih_n = wih[:, 2 * H:]
        whh_n = whh[:, 2 * H:]
        b_rz = bih[:, :2 * H] + bhh[:, :2 * H]
        b_in = bih[:, 2 * H:]
        b_hn = bhh[:, 2 * H:]
        if l == 0:
            flat += [wih_rz, wih_n, whh_rz, whh_n, b_rz, b_in, b_hn]
        else:
            # Stacked block [[wih_rz],[whh_rz]] so one (B,2H)@(2H,2H) dot
            # produces gi_rz + gh_rz already summed.
            w_rz = jnp.concatenate([wih_rz, whh_rz], axis=0)      # (2H, 2H)
            flat += [w_rz, wih_n, whh_n, b_rz, b_in, b_hn]
    flat += [params["w_lin_t"], params["b_lin"]]

    kernel = make_gru_kernel(T, S, L, H, B)

    # Advisory cost estimate for XLA's scheduler.
    cells = T * S
    mxu_flops = cells * (2 * B * H * (2 * H) + 2 * B * H * H)             # layer 0
    mxu_flops += cells * (L - 1) * (2 * B * (2 * H) * (2 * H)
                                    + 2 * (2 * B * H * H))                # l > 0
    vpu_flops = cells * L * 12 * B * H
    lin_flops = 2 * T * B * H * O
    transcendentals = cells * L * 3 * B * H
    bytes_in = sum(int(x.size) * x.dtype.itemsize for x in flat)
    bytes_out = (T * B * O + L * B * H) * 4
    cost = pl.CostEstimate(flops=int(mxu_flops + vpu_flops + lin_flops),
                           transcendentals=int(transcendentals),
                           bytes_accessed=int(bytes_in + bytes_out))

    vmem_spec = pl.BlockSpec(memory_space=pltpu.MemorySpace.VMEM)

    # Gridless call: all inputs/outputs are whole-array VMEM-resident; the
    # kernel body runs exactly once (the T/S/L loops live inside the kernel).
    outs_flat, hidden = pl.pallas_call(
        kernel,
        out_shape=(
            jax.ShapeDtypeStruct((T * B, O), jnp.float32),
            jax.ShapeDtypeStruct((L, B, H), jnp.float32),
        ),
        in_specs=[vmem_spec] * len(flat),
        out_specs=(pl.BlockSpec(memory_space=pltpu.MemorySpace.VMEM),
                   pl.BlockSpec(memory_space=pltpu.MemorySpace.VMEM)),
        scratch_shapes=[pltpu.VMEM((T * B, H), jnp.float32)],
        compiler_params=pltpu.CompilerParams(
            vmem_limit_bytes=32 * 1024 * 1024),
        cost_estimate=cost,
    )(*flat)
    return outs_flat.reshape(T, B, O), hidden


def init_params(key, input_dim, hidden_size, num_layer, output_dim):
    """Deterministic init with the same shapes/ranges as nn.GRU / nn.Linear."""
    H = hidden_size
    k = 1.0 / math.sqrt(H)
    params = {"wih_t": [], "whh_t": [], "bih": [], "bhh": []}
    for l in range(num_layer):
        in_dim = input_dim if l == 0 else H
        key, k1, k2, k3, k4 = jax.random.split(key, 5)
        params["wih_t"].append(
            jax.random.uniform(k1, (in_dim, 3 * H), jnp.float32, -k, k))
        params["whh_t"].append(
            jax.random.uniform(k2, (H, 3 * H), jnp.float32, -k, k))
        params["bih"].append(
            jax.random.uniform(k3, (1, 3 * H), jnp.float32, -k, k))
        params["bhh"].append(
            jax.random.uniform(k4, (1, 3 * H), jnp.float32, -k, k))
    key, k5, k6 = jax.random.split(key, 3)
    params["w_lin_t"] = jax.random.uniform(
        k5, (H, output_dim), jnp.float32, -k, k)
    params["b_lin"] = jax.random.uniform(
        k6, (1, output_dim), jnp.float32, -k, k)
    return params


def gru_reference(state, hidden0, params):
    """Pure-JAX reference mirroring the PyTorch forward (concatenated layout)."""
    T, B, S = state.shape
    L, _, H = hidden0.shape
    h = [hidden0[l] for l in range(L)]
    outs = []
    for i in range(T):
        x_seq = state[i]                          # (B, S)
        for t in range(S):
            inp = x_seq[:, t:t + 1]
            for l in range(L):
                gi = inp @ params["wih_t"][l] + params["bih"][l]
                gh = h[l] @ params["whh_t"][l] + params["bhh"][l]
                r = jax.nn.sigmoid(gi[:, :H] + gh[:, :H])
                z = jax.nn.sigmoid(gi[:, H:2 * H] + gh[:, H:2 * H])
                n = jnp.tanh(gi[:, 2 * H:] + r * gh[:, 2 * H:])
                h[l] = (1.0 - z) * n + z * h[l]
                inp = h[l]
        outs.append(h[-1] @ params["w_lin_t"] + params["b_lin"])
    return jnp.stack(outs, 0), jnp.stack(h, 0)


if __name__ == "__main__":
    # Small shapes consistent with the module's forward:
    T, B, S = 3, 2, 8            # outer steps, batch, sequence length
    input_dim = 1                # forced by .unsqueeze(2) in the reference
    hidden_size = 32
    num_layer = 2
    output_dim = 4

    key = jax.random.PRNGKey(0)
    key, ks = jax.random.split(key)
    state = jax.random.normal(ks, (T, B, S), jnp.float32)
    hidden0 = jnp.zeros((num_layer, B, hidden_size), jnp.float32)  # init_h_state
    params = init_params(key, input_dim, hidden_size, num_layer, output_dim)

    outs, hidden = gru_forward(state, hidden0, params)
    jax.block_until_ready((outs, hidden))

    ref_outs, ref_hidden = gru_reference(state, hidden0, params)
    assert outs.shape == (T, B, output_dim)
    assert hidden.shape == (num_layer, B, hidden_size)
    assert jnp.allclose(outs, ref_outs, atol=1e-4, rtol=1e-4)
    assert jnp.allclose(hidden, ref_hidden, atol=1e-4, rtol=1e-4)

    print("KERNEL_OK")
</pallas_src>

<mosaic_0001>
module attributes {stable_mosaic.version = 11 : i64} {
  func.func @kernel(%arg0: memref<3x2x8xf32, #tpu.memory_space<vmem>>, %arg1: memref<2x2x32xf32, #tpu.memory_space<vmem>>, %arg2: memref<1x64xf32, #tpu.memory_space<vmem>>, %arg3: memref<1x32xf32, #tpu.memory_space<vmem>>, %arg4: memref<32x64xf32, #tpu.memory_space<vmem>>, %arg5: memref<32x32xf32, #tpu.memory_space<vmem>>, %arg6: memref<1x64xf32, #tpu.memory_space<vmem>>, %arg7: memref<1x32xf32, #tpu.memory_space<vmem>>, %arg8: memref<1x32xf32, #tpu.memory_space<vmem>>, %arg9: memref<64x64xf32, #tpu.memory_space<vmem>>, %arg10: memref<32x32xf32, #tpu.memory_space<vmem>>, %arg11: memref<32x32xf32, #tpu.memory_space<vmem>>, %arg12: memref<1x64xf32, #tpu.memory_space<vmem>>, %arg13: memref<1x32xf32, #tpu.memory_space<vmem>>, %arg14: memref<1x32xf32, #tpu.memory_space<vmem>>, %arg15: memref<32x4xf32, #tpu.memory_space<vmem>>, %arg16: memref<1x4xf32, #tpu.memory_space<vmem>>, %arg17: memref<6x4xf32, #tpu.memory_space<vmem>>, %arg18: memref<2x2x32xf32, #tpu.memory_space<vmem>>, %arg19: memref<6x32xf32, #tpu.memory_space<vmem>>) attributes {dimension_semantics = [], scalar_prefetch = 0 : i64, scratch_operands = 1 : i64, tpu.core_type = #tpu.core_type<tc>} {
    %c0 = arith.constant 0 : index
    %c0_0 = arith.constant 0 : index
    %0 = vector.load %arg2[%c0, %c0_0] : memref<1x64xf32, #tpu.memory_space<vmem>>, vector<1x64xf32>
    %1 = vector.shape_cast %0 : vector<1x64xf32> to vector<1x64xf32>
    %2 = vector.broadcast %1 : vector<1x64xf32> to vector<2x64xf32>
    %c0_1 = arith.constant 0 : index
    %c0_2 = arith.constant 0 : index
    %3 = vector.load %arg3[%c0_1, %c0_2] : memref<1x32xf32, #tpu.memory_space<vmem>>, vector<1x32xf32>
    %4 = vector.shape_cast %3 : vector<1x32xf32> to vector<1x32xf32>
    %5 = vector.broadcast %4 : vector<1x32xf32> to vector<2x32xf32>
    %c0_3 = arith.constant 0 : index
    %c0_4 = arith.constant 0 : index
    %6 = vector.load %arg6[%c0_3, %c0_4] : memref<1x64xf32, #tpu.memory_space<vmem>>, vector<1x64xf32>
    %7 = vector.shape_cast %6 : vector<1x64xf32> to vector<1x64xf32>
    %8 = vector.broadcast %7 : vector<1x64xf32> to vector<2x64xf32>
    %c0_5 = arith.constant 0 : index
    %c0_6 = arith.constant 0 : index
    %9 = vector.load %arg7[%c0_5, %c0_6] : memref<1x32xf32, #tpu.memory_space<vmem>>, vector<1x32xf32>
    %10 = vector.shape_cast %9 : vector<1x32xf32> to vector<1x32xf32>
    %11 = vector.broadcast %10 : vector<1x32xf32> to vector<2x32xf32>
    %c0_7 = arith.constant 0 : index
    %c0_8 = arith.constant 0 : index
    %12 = vector.load %arg4[%c0_7, %c0_8] : memref<32x64xf32, #tpu.memory_space<vmem>>, vector<32x64xf32>
    %c0_9 = arith.constant 0 : index
    %c0_10 = arith.constant 0 : index
    %13 = vector.load %arg5[%c0_9, %c0_10] : memref<32x32xf32, #tpu.memory_space<vmem>>, vector<32x32xf32>
    %c0_11 = arith.constant 0 : index
    %c0_12 = arith.constant 0 : index
    %14 = vector.load %arg8[%c0_11, %c0_12] : memref<1x32xf32, #tpu.memory_space<vmem>>, vector<1x32xf32>
    %c0_13 = arith.constant 0 : index
    %c0_14 = arith.constant 0 : index
    %15 = vector.load %arg9[%c0_13, %c0_14] : memref<64x64xf32, #tpu.memory_space<vmem>>, vector<64x64xf32>
    %c0_15 = arith.constant 0 : index
    %c0_16 = arith.constant 0 : index
    %16 = vector.load %arg10[%c0_15, %c0_16] : memref<32x32xf32, #tpu.memory_space<vmem>>, vector<32x32xf32>
    %c0_17 = arith.constant 0 : index
    %c0_18 = arith.constant 0 : index
    %17 = vector.load %arg11[%c0_17, %c0_18] : memref<32x32xf32, #tpu.memory_space<vmem>>, vector<32x32xf32>
    %c0_19 = arith.constant 0 : index
    %c0_20 = arith.constant 0 : index
    %18 = vector.load %arg12[%c0_19, %c0_20] : memref<1x64xf32, #tpu.memory_space<vmem>>, vector<1x64xf32>
    %c0_21 = arith.constant 0 : index
    %c0_22 = arith.constant 0 : index
    %19 = vector.load %arg13[%c0_21, %c0_22] : memref<1x32xf32, #tpu.memory_space<vmem>>, vector<1x32xf32>
    %c0_23 = arith.constant 0 : index
    %c0_24 = arith.constant 0 : index
    %20 = vector.load %arg14[%c0_23, %c0_24] : memref<1x32xf32, #tpu.memory_space<vmem>>, vector<1x32xf32>
    %c0_25 = arith.constant 0 : index
    %c0_26 = arith.constant 0 : index
    %21 = vector.load %arg15[%c0_25, %c0_26] : memref<32x4xf32, #tpu.memory_space<vmem>>, vector<32x4xf32>
    %c0_27 = arith.constant 0 : index
    %c0_28 = arith.constant 0 : index
    %22 = vector.load %arg16[%c0_27, %c0_28] : memref<1x4xf32, #tpu.memory_space<vmem>>, vector<1x4xf32>
    %c0_29 = arith.constant 0 : index
    %c0_30 = arith.constant 0 : index
    %c0_31 = arith.constant 0 : index
    %23 = vector.load %arg1[%c0_29, %c0_30, %c0_31] : memref<2x2x32xf32, #tpu.memory_space<vmem>>, vector<1x2x32xf32>
    %24 = vector.shape_cast %23 : vector<1x2x32xf32> to vector<2x32xf32>
    %c1 = arith.constant 1 : index
    %c0_32 = arith.constant 0 : index
    %c0_33 = arith.constant 0 : index
    %25 = vector.load %arg1[%c1, %c0_32, %c0_33] : memref<2x2x32xf32, #tpu.memory_space<vmem>>, vector<1x2x32xf32>
    %26 = vector.shape_cast %25 : vector<1x2x32xf32> to vector<2x32xf32>
    %c0_34 = arith.constant 0 : index
    %c0_35 = arith.constant 0 : index
    %c0_36 = arith.constant 0 : index
    %27 = vector.load %arg0[%c0_34, %c0_35, %c0_36] : memref<3x2x8xf32, #tpu.memory_space<vmem>>, vector<1x2x8xf32>
    %28 = vector.shape_cast %27 : vector<1x2x8xf32> to vector<2x8xf32>
    %cst = arith.constant dense<0.000000e+00> : vector<2x64xf32>
    %29 = tpu.matmul %24, %12, %cst {dimension_numbers = #tpu.dot_dimension_numbers<[1], [0], [0], [1], [0, 0, 1, 1], [], []>} : vector<2x32xf32>, vector<32x64xf32>, vector<2x64xf32> -> vector<2x64xf32>
    %cst_37 = arith.constant dense<0.000000e+00> : vector<2x32xf32>
    %30 = tpu.matmul %24, %13, %cst_37 {dimension_numbers = #tpu.dot_dimension_numbers<[1], [0], [0], [1], [0, 0, 1, 1], [], []>} : vector<2x32xf32>, vector<32x32xf32>, vector<2x32xf32> -> vector<2x32xf32>
    %31 = vector.broadcast %14 : vector<1x32xf32> to vector<2x32xf32>
    %32 = arith.addf %30, %31 : vector<2x32xf32>
    %cst_38 = arith.constant dense<0.000000e+00> : vector<2x32xf32>
    %33 = tpu.matmul %26, %17, %cst_38 {dimension_numbers = #tpu.dot_dimension_numbers<[1], [0], [0], [1], [0, 0, 1, 1], [], []>} : vector<2x32xf32>, vector<32x32xf32>, vector<2x32xf32> -> vector<2x32xf32>
    %34 = vector.broadcast %20 : vector<1x32xf32> to vector<2x32xf32>
    %35 = arith.addf %33, %34 : vector<2x32xf32>
    %36 = vector.extract_strided_slice %28 {offsets = [0, 0], sizes = [2, 1], strides = [1, 1]} : vector<2x8xf32> to vector<2x1xf32>
    %37 = vector.broadcast %36 : vector<2x1xf32> to vector<2x64xf32>
    %38 = arith.mulf %37, %2 : vector<2x64xf32>
    %39 = arith.addf %38, %8 : vector<2x64xf32>
    %40 = arith.addf %39, %29 : vector<2x64xf32>
    %41 = vector.broadcast %36 : vector<2x1xf32> to vector<2x32xf32>
    %42 = arith.mulf %41, %5 : vector<2x32xf32>
    %43 = arith.addf %42, %11 : vector<2x32xf32>
    %44 = arith.negf %40 : vector<2x64xf32>
    %45 = math.exp %44 : vector<2x64xf32>
    %cst_39 = arith.constant 1.000000e+00 : f32
    %46 = vector.broadcast %cst_39 : f32 to vector<2x64xf32>
    %47 = arith.addf %46, %45 : vector<2x64xf32>
    %48 = arith.divf %46, %47 : vector<2x64xf32>
    %49 = vector.extract_strided_slice %48 {offsets = [0, 0], sizes = [2, 32], strides = [1, 1]} : vector<2x64xf32> to vector<2x32xf32>
    %50 = vector.extract_strided_slice %48 {offsets = [0, 32], sizes = [2, 32], strides = [1, 1]} : vector<2x64xf32> to vector<2x32xf32>
    %51 = arith.mulf %49, %32 : vector<2x32xf32>
    %52 = arith.addf %43, %51 : vector<2x32xf32>
    %53 = math.tanh %52 : vector<2x32xf32>
    %54 = arith.subf %24, %53 : vector<2x32xf32>
    %55 = arith.mulf %50, %54 : vector<2x32xf32>
    %56 = arith.addf %53, %55 : vector<2x32xf32>
    %57 = tpu.concatenate %56, %26 in 1 : vector<2x32xf32>, vector<2x32xf32> -> vector<2x64xf32>
    %cst_40 = arith.constant dense<0.000000e+00> : vector<2x64xf32>
    %58 = tpu.matmul %57, %15, %cst_40 {dimension_numbers = #tpu.dot_dimension_numbers<[1], [0], [0], [1], [0, 0, 1, 1], [], []>} : vector<2x64xf32>, vector<64x64xf32>, vector<2x64xf32> -> vector<2x64xf32>
    %59 = vector.broadcast %18 : vector<1x64xf32> to vector<2x64xf32>
    %60 = arith.addf %58, %59 : vector<2x64xf32>
    %cst_41 = arith.constant dense<0.000000e+00> : vector<2x32xf32>
    %61 = tpu.matmul %56, %16, %cst_41 {dimension_numbers = #tpu.dot_dimension_numbers<[1], [0], [0], [1], [0, 0, 1, 1], [], []>} : vector<2x32xf32>, vector<32x32xf32>, vector<2x32xf32> -> vector<2x32xf32>
    %62 = vector.broadcast %19 : vector<1x32xf32> to vector<2x32xf32>
    %63 = arith.addf %61, %62 : vector<2x32xf32>
    %64 = arith.negf %60 : vector<2x64xf32>
    %65 = math.exp %64 : vector<2x64xf32>
    %cst_42 = arith.constant 1.000000e+00 : f32
    %66 = vector.broadcast %cst_42 : f32 to vector<2x64xf32>
    %67 = arith.addf %66, %65 : vector<2x64xf32>
    %68 = arith.divf %66, %67 : vector<2x64xf32>
    %69 = vector.extract_strided_slice %68 {offsets = [0, 0], sizes = [2, 32], strides = [1, 1]} : vector<2x64xf32> to vector<2x32xf32>
    %70 = vector.extract_strided_slice %68 {offsets = [0, 32], sizes = [2, 32], strides = [1, 1]} : vector<2x64xf32> to vector<2x32xf32>
    %71 = arith.mulf %69, %35 : vector<2x32xf32>
    %72 = arith.addf %63, %71 : vector<2x32xf32>
    %73 = math.tanh %72 : vector<2x32xf32>
    %74 = arith.subf %26, %73 : vector<2x32xf32>
    %75 = arith.mulf %70, %74 : vector<2x32xf32>
    %76 = arith.addf %73, %75 : vector<2x32xf32>
    %cst_43 = arith.constant dense<0.000000e+00> : vector<2x64xf32>
    %77 = tpu.matmul %56, %12, %cst_43 {dimension_numbers = #tpu.dot_dimension_numbers<[1], [0], [0], [1], [0, 0, 1, 1], [], []>} : vector<2x32xf32>, vector<32x64xf32>, vector<2x64xf32> -> vector<2x64xf32>
    %cst_44 = arith.constant dense<0.000000e+00> : vector<2x32xf32>
    %78 = tpu.matmul %56, %13, %cst_44 {dimension_numbers = #tpu.dot_dimension_numbers<[1], [0], [0], [1], [0, 0, 1, 1], [], []>} : vector<2x32xf32>, vector<32x32xf32>, vector<2x32xf32> -> vector<2x32xf32>
    %79 = vector.broadcast %14 : vector<1x32xf32> to vector<2x32xf32>
    %80 = arith.addf %78, %79 : vector<2x32xf32>
    %cst_45 = arith.constant dense<0.000000e+00> : vector<2x32xf32>
    %81 = tpu.matmul %76, %17, %cst_45 {dimension_numbers = #tpu.dot_dimension_numbers<[1], [0], [0], [1], [0, 0, 1, 1], [], []>} : vector<2x32xf32>, vector<32x32xf32>, vector<2x32xf32> -> vector<2x32xf32>
    %82 = vector.broadcast %20 : vector<1x32xf32> to vector<2x32xf32>
    %83 = arith.addf %81, %82 : vector<2x32xf32>
    %84 = vector.extract_strided_slice %28 {offsets = [0, 1], sizes = [2, 1], strides = [1, 1]} : vector<2x8xf32> to vector<2x1xf32>
    %85 = vector.broadcast %84 : vector<2x1xf32> to vector<2x64xf32>
    %86 = arith.mulf %85, %2 : vector<2x64xf32>
    %87 = arith.addf %86, %8 : vector<2x64xf32>
    %88 = arith.addf %87, %77 : vector<2x64xf32>
    %89 = vector.broadcast %84 : vector<2x1xf32> to vector<2x32xf32>
    %90 = arith.mulf %89, %5 : vector<2x32xf32>
    %91 = arith.addf %90, %11 : vector<2x32xf32>
    %92 = arith.negf %88 : vector<2x64xf32>
    %93 = math.exp %92 : vector<2x64xf32>
    %cst_46 = arith.constant 1.000000e+00 : f32
    %94 = vector.broadcast %cst_46 : f32 to vector<2x64xf32>
    %95 = arith.addf %94, %93 : vector<2x64xf32>
    %96 = arith.divf %94, %95 : vector<2x64xf32>
    %97 = vector.extract_strided_slice %96 {offsets = [0, 0], sizes = [2, 32], strides = [1, 1]} : vector<2x64xf32> to vector<2x32xf32>
    %98 = vector.extract_strided_slice %96 {offsets = [0, 32], sizes = [2, 32], strides = [1, 1]} : vector<2x64xf32> to vector<2x32xf32>
    %99 = arith.mulf %97, %80 : vector<2x32xf32>
    %100 = arith.addf %91, %99 : vector<2x32xf32>
    %101 = math.tanh %100 : vector<2x32xf32>
    %102 = arith.subf %56, %101 : vector<2x32xf32>
    %103 = arith.mulf %98, %102 : vector<2x32xf32>
    %104 = arith.addf %101, %103 : vector<2x32xf32>
    %105 = tpu.concatenate %104, %76 in 1 : vector<2x32xf32>, vector<2x32xf32> -> vector<2x64xf32>
    %cst_47 = arith.constant dense<0.000000e+00> : vector<2x64xf32>
    %106 = tpu.matmul %105, %15, %cst_47 {dimension_numbers = #tpu.dot_dimension_numbers<[1], [0], [0], [1], [0, 0, 1, 1], [], []>} : vector<2x64xf32>, vector<64x64xf32>, vector<2x64xf32> -> vector<2x64xf32>
    %107 = vector.broadcast %18 : vector<1x64xf32> to vector<2x64xf32>
    %108 = arith.addf %106, %107 : vector<2x64xf32>
    %cst_48 = arith.constant dense<0.000000e+00> : vector<2x32xf32>
    %109 = tpu.matmul %104, %16, %cst_48 {dimension_numbers = #tpu.dot_dimension_numbers<[1], [0], [0], [1], [0, 0, 1, 1], [], []>} : vector<2x32xf32>, vector<32x32xf32>, vector<2x32xf32> -> vector<2x32xf32>
    %110 = vector.broadcast %19 : vector<1x32xf32> to vector<2x32xf32>
    %111 = arith.addf %109, %110 : vector<2x32xf32>
    %112 = arith.negf %108 : vector<2x64xf32>
    %113 = math.exp %112 : vector<2x64xf32>
    %cst_49 = arith.constant 1.000000e+00 : f32
    %114 = vector.broadcast %cst_49 : f32 to vector<2x64xf32>
    %115 = arith.addf %114, %113 : vector<2x64xf32>
    %116 = arith.divf %114, %115 : vector<2x64xf32>
    %117 = vector.extract_strided_slice %116 {offsets = [0, 0], sizes = [2, 32], strides = [1, 1]} : vector<2x64xf32> to vector<2x32xf32>
    %118 = vector.extract_strided_slice %116 {offsets = [0, 32], sizes = [2, 32], strides = [1, 1]} : vector<2x64xf32> to vector<2x32xf32>
    %119 = arith.mulf %117, %83 : vector<2x32xf32>
    %120 = arith.addf %111, %119 : vector<2x32xf32>
    %121 = math.tanh %120 : vector<2x32xf32>
    %122 = arith.subf %76, %121 : vector<2x32xf32>
    %123 = arith.mulf %118, %122 : vector<2x32xf32>
    %124 = arith.addf %121, %123 : vector<2x32xf32>
    %cst_50 = arith.constant dense<0.000000e+00> : vector<2x64xf32>
    %125 = tpu.matmul %104, %12, %cst_50 {dimension_numbers = #tpu.dot_dimension_numbers<[1], [0], [0], [1], [0, 0, 1, 1], [], []>} : vector<2x32xf32>, vector<32x64xf32>, vector<2x64xf32> -> vector<2x64xf32>
    %cst_51 = arith.constant dense<0.000000e+00> : vector<2x32xf32>
    %126 = tpu.matmul %104, %13, %cst_51 {dimension_numbers = #tpu.dot_dimension_numbers<[1], [0], [0], [1], [0, 0, 1, 1], [], []>} : vector<2x32xf32>, vector<32x32xf32>, vector<2x32xf32> -> vector<2x32xf32>
    %127 = vector.broadcast %14 : vector<1x32xf32> to vector<2x32xf32>
    %128 = arith.addf %126, %127 : vector<2x32xf32>
    %cst_52 = arith.constant dense<0.000000e+00> : vector<2x32xf32>
    %129 = tpu.matmul %124, %17, %cst_52 {dimension_numbers = #tpu.dot_dimension_numbers<[1], [0], [0], [1], [0, 0, 1, 1], [], []>} : vector<2x32xf32>, vector<32x32xf32>, vector<2x32xf32> -> vector<2x32xf32>
    %130 = vector.broadcast %20 : vector<1x32xf32> to vector<2x32xf32>
    %131 = arith.addf %129, %130 : vector<2x32xf32>
    %132 = vector.extract_strided_slice %28 {offsets = [0, 2], sizes = [2, 1], strides = [1, 1]} : vector<2x8xf32> to vector<2x1xf32>
    %133 = vector.broadcast %132 : vector<2x1xf32> to vector<2x64xf32>
    %134 = arith.mulf %133, %2 : vector<2x64xf32>
    %135 = arith.addf %134, %8 : vector<2x64xf32>
    %136 = arith.addf %135, %125 : vector<2x64xf32>
    %137 = vector.broadcast %132 : vector<2x1xf32> to vector<2x32xf32>
    %138 = arith.mulf %137, %5 : vector<2x32xf32>
    %139 = arith.addf %138, %11 : vector<2x32xf32>
    %140 = arith.negf %136 : vector<2x64xf32>
    %141 = math.exp %140 : vector<2x64xf32>
    %cst_53 = arith.constant 1.000000e+00 : f32
    %142 = vector.broadcast %cst_53 : f32 to vector<2x64xf32>
    %143 = arith.addf %142, %141 : vector<2x64xf32>
    %144 = arith.divf %142, %143 : vector<2x64xf32>
    %145 = vector.extract_strided_slice %144 {offsets = [0, 0], sizes = [2, 32], strides = [1, 1]} : vector<2x64xf32> to vector<2x32xf32>
    %146 = vector.extract_strided_slice %144 {offsets = [0, 32], sizes = [2, 32], strides = [1, 1]} : vector<2x64xf32> to vector<2x32xf32>
    %147 = arith.mulf %145, %128 : vector<2x32xf32>
    %148 = arith.addf %139, %147 : vector<2x32xf32>
    %149 = math.tanh %148 : vector<2x32xf32>
    %150 = arith.subf %104, %149 : vector<2x32xf32>
    %151 = arith.mulf %146, %150 : vector<2x32xf32>
    %152 = arith.addf %149, %151 : vector<2x32xf32>
    %153 = tpu.concatenate %152, %124 in 1 : vector<2x32xf32>, vector<2x32xf32> -> vector<2x64xf32>
    %cst_54 = arith.constant dense<0.000000e+00> : vector<2x64xf32>
    %154 = tpu.matmul %153, %15, %cst_54 {dimension_numbers = #tpu.dot_dimension_numbers<[1], [0], [0], [1], [0, 0, 1, 1], [], []>} : vector<2x64xf32>, vector<64x64xf32>, vector<2x64xf32> -> vector<2x64xf32>
    %155 = vector.broadcast %18 : vector<1x64xf32> to vector<2x64xf32>
    %156 = arith.addf %154, %155 : vector<2x64xf32>
    %cst_55 = arith.constant dense<0.000000e+00> : vector<2x32xf32>
    %157 = tpu.matmul %152, %16, %cst_55 {dimension_numbers = #tpu.dot_dimension_numbers<[1], [0], [0], [1], [0, 0, 1, 1], [], []>} : vector<2x32xf32>, vector<32x32xf32>, vector<2x32xf32> -> vector<2x32xf32>
    %158 = vector.broadcast %19 : vector<1x32xf32> to vector<2x32xf32>
    %159 = arith.addf %157, %158 : vector<2x32xf32>
    %160 = arith.negf %156 : vector<2x64xf32>
    %161 = math.exp %160 : vector<2x64xf32>
    %cst_56 = arith.constant 1.000000e+00 : f32
    %162 = vector.broadcast %cst_56 : f32 to vector<2x64xf32>
    %163 = arith.addf %162, %161 : vector<2x64xf32>
    %164 = arith.divf %162, %163 : vector<2x64xf32>
    %165 = vector.extract_strided_slice %164 {offsets = [0, 0], sizes = [2, 32], strides = [1, 1]} : vector<2x64xf32> to vector<2x32xf32>
    %166 = vector.extract_strided_slice %164 {offsets = [0, 32], sizes = [2, 32], strides = [1, 1]} : vector<2x64xf32> to vector<2x32xf32>
    %167 = arith.mulf %165, %131 : vector<2x32xf32>
    %168 = arith.addf %159, %167 : vector<2x32xf32>
    %169 = math.tanh %168 : vector<2x32xf32>
    %170 = arith.subf %124, %169 : vector<2x32xf32>
    %171 = arith.mulf %166, %170 : vector<2x32xf32>
    %172 = arith.addf %169, %171 : vector<2x32xf32>
    %cst_57 = arith.constant dense<0.000000e+00> : vector<2x64xf32>
    %173 = tpu.matmul %152, %12, %cst_57 {dimension_numbers = #tpu.dot_dimension_numbers<[1], [0], [0], [1], [0, 0, 1, 1], [], []>} : vector<2x32xf32>, vector<32x64xf32>, vector<2x64xf32> -> vector<2x64xf32>
    %cst_58 = arith.constant dense<0.000000e+00> : vector<2x32xf32>
    %174 = tpu.matmul %152, %13, %cst_58 {dimension_numbers = #tpu.dot_dimension_numbers<[1], [0], [0], [1], [0, 0, 1, 1], [], []>} : vector<2x32xf32>, vector<32x32xf32>, vector<2x32xf32> -> vector<2x32xf32>
    %175 = vector.broadcast %14 : vector<1x32xf32> to vector<2x32xf32>
    %176 = arith.addf %174, %175 : vector<2x32xf32>
    %cst_59 = arith.constant dense<0.000000e+00> : vector<2x32xf32>
    %177 = tpu.matmul %172, %17, %cst_59 {dimension_numbers = #tpu.dot_dimension_numbers<[1], [0], [0], [1], [0, 0, 1, 1], [], []>} : vector<2x32xf32>, vector<32x32xf32>, vector<2x32xf32> -> vector<2x32xf32>
    %178 = vector.broadcast %20 : vector<1x32xf32> to vector<2x32xf32>
    %179 = arith.addf %177, %178 : vector<2x32xf32>
    %180 = vector.extract_strided_slice %28 {offsets = [0, 3], sizes = [2, 1], strides = [1, 1]} : vector<2x8xf32> to vector<2x1xf32>
    %181 = vector.broadcast %180 : vector<2x1xf32> to vector<2x64xf32>
    %182 = arith.mulf %181, %2 : vector<2x64xf32>
    %183 = arith.addf %182, %8 : vector<2x64xf32>
    %184 = arith.addf %183, %173 : vector<2x64xf32>
    %185 = vector.broadcast %180 : vector<2x1xf32> to vector<2x32xf32>
    %186 = arith.mulf %185, %5 : vector<2x32xf32>
    %187 = arith.addf %186, %11 : vector<2x32xf32>
    %188 = arith.negf %184 : vector<2x64xf32>
    %189 = math.exp %188 : vector<2x64xf32>
    %cst_60 = arith.constant 1.000000e+00 : f32
    %190 = vector.broadcast %cst_60 : f32 to vector<2x64xf32>
    %191 = arith.addf %190, %189 : vector<2x64xf32>
    %192 = arith.divf %190, %191 : vector<2x64xf32>
    %193 = vector.extract_strided_slice %192 {offsets = [0, 0], sizes = [2, 32], strides = [1, 1]} : vector<2x64xf32> to vector<2x32xf32>
    %194 = vector.extract_strided_slice %192 {offsets = [0, 32], sizes = [2, 32], strides = [1, 1]} : vector<2x64xf32> to vector<2x32xf32>
    %195 = arith.mulf %193, %176 : vector<2x32xf32>
    %196 = arith.addf %187, %195 : vector<2x32xf32>
    %197 = math.tanh %196 : vector<2x32xf32>
    %198 = arith.subf %152, %197 : vector<2x32xf32>
    %199 = arith.mulf %194, %198 : vector<2x32xf32>
    %200 = arith.addf %197, %199 : vector<2x32xf32>
    %201 = tpu.concatenate %200, %172 in 1 : vector<2x32xf32>, vector<2x32xf32> -> vector<2x64xf32>
    %cst_61 = arith.constant dense<0.000000e+00> : vector<2x64xf32>
    %202 = tpu.matmul %201, %15, %cst_61 {dimension_numbers = #tpu.dot_dimension_numbers<[1], [0], [0], [1], [0, 0, 1, 1], [], []>} : vector<2x64xf32>, vector<64x64xf32>, vector<2x64xf32> -> vector<2x64xf32>
    %203 = vector.broadcast %18 : vector<1x64xf32> to vector<2x64xf32>
    %204 = arith.addf %202, %203 : vector<2x64xf32>
    %cst_62 = arith.constant dense<0.000000e+00> : vector<2x32xf32>
    %205 = tpu.matmul %200, %16, %cst_62 {dimension_numbers = #tpu.dot_dimension_numbers<[1], [0], [0], [1], [0, 0, 1, 1], [], []>} : vector<2x32xf32>, vector<32x32xf32>, vector<2x32xf32> -> vector<2x32xf32>
    %206 = vector.broadcast %19 : vector<1x32xf32> to vector<2x32xf32>
    %207 = arith.addf %205, %206 : vector<2x32xf32>
    %208 = arith.negf %204 : vector<2x64xf32>
    %209 = math.exp %208 : vector<2x64xf32>
    %cst_63 = arith.constant 1.000000e+00 : f32
    %210 = vector.broadcast %cst_63 : f32 to vector<2x64xf32>
    %211 = arith.addf %210, %209 : vector<2x64xf32>
    %212 = arith.divf %210, %211 : vector<2x64xf32>
    %213 = vector.extract_strided_slice %212 {offsets = [0, 0], sizes = [2, 32], strides = [1, 1]} : vector<2x64xf32> to vector<2x32xf32>
    %214 = vector.extract_strided_slice %212 {offsets = [0, 32], sizes = [2, 32], strides = [1, 1]} : vector<2x64xf32> to vector<2x32xf32>
    %215 = arith.mulf %213, %179 : vector<2x32xf32>
    %216 = arith.addf %207, %215 : vector<2x32xf32>
    %217 = math.tanh %216 : vector<2x32xf32>
    %218 = arith.subf %172, %217 : vector<2x32xf32>
    %219 = arith.mulf %214, %218 : vector<2x32xf32>
    %220 = arith.addf %217, %219 : vector<2x32xf32>
    %cst_64 = arith.constant dense<0.000000e+00> : vector<2x64xf32>
    %221 = tpu.matmul %200, %12, %cst_64 {dimension_numbers = #tpu.dot_dimension_numbers<[1], [0], [0], [1], [0, 0, 1, 1], [], []>} : vector<2x32xf32>, vector<32x64xf32>, vector<2x64xf32> -> vector<2x64xf32>
    %cst_65 = arith.constant dense<0.000000e+00> : vector<2x32xf32>
    %222 = tpu.matmul %200, %13, %cst_65 {dimension_numbers = #tpu.dot_dimension_numbers<[1], [0], [0], [1], [0, 0, 1, 1], [], []>} : vector<2x32xf32>, vector<32x32xf32>, vector<2x32xf32> -> vector<2x32xf32>
    %223 = vector.broadcast %14 : vector<1x32xf32> to vector<2x32xf32>
    %224 = arith.addf %222, %223 : vector<2x32xf32>
    %cst_66 = arith.constant dense<0.000000e+00> : vector<2x32xf32>
    %225 = tpu.matmul %220, %17, %cst_66 {dimension_numbers = #tpu.dot_dimension_numbers<[1], [0], [0], [1], [0, 0, 1, 1], [], []>} : vector<2x32xf32>, vector<32x32xf32>, vector<2x32xf32> -> vector<2x32xf32>
    %226 = vector.broadcast %20 : vector<1x32xf32> to vector<2x32xf32>
    %227 = arith.addf %225, %226 : vector<2x32xf32>
    %228 = vector.extract_strided_slice %28 {offsets = [0, 4], sizes = [2, 1], strides = [1, 1]} : vector<2x8xf32> to vector<2x1xf32>
    %229 = vector.broadcast %228 : vector<2x1xf32> to vector<2x64xf32>
    %230 = arith.mulf %229, %2 : vector<2x64xf32>
    %231 = arith.addf %230, %8 : vector<2x64xf32>
    %232 = arith.addf %231, %221 : vector<2x64xf32>
    %233 = vector.broadcast %228 : vector<2x1xf32> to vector<2x32xf32>
    %234 = arith.mulf %233, %5 : vector<2x32xf32>
    %235 = arith.addf %234, %11 : vector<2x32xf32>
    %236 = arith.negf %232 : vector<2x64xf32>
    %237 = math.exp %236 : vector<2x64xf32>
    %cst_67 = arith.constant 1.000000e+00 : f32
    %238 = vector.broadcast %cst_67 : f32 to vector<2x64xf32>
    %239 = arith.addf %238, %237 : vector<2x64xf32>
    %240 = arith.divf %238, %239 : vector<2x64xf32>
    %241 = vector.extract_strided_slice %240 {offsets = [0, 0], sizes = [2, 32], strides = [1, 1]} : vector<2x64xf32> to vector<2x32xf32>
    %242 = vector.extract_strided_slice %240 {offsets = [0, 32], sizes = [2, 32], strides = [1, 1]} : vector<2x64xf32> to vector<2x32xf32>
    %243 = arith.mulf %241, %224 : vector<2x32xf32>
    %244 = arith.addf %235, %243 : vector<2x32xf32>
    %245 = math.tanh %244 : vector<2x32xf32>
    %246 = arith.subf %200, %245 : vector<2x32xf32>
    %247 = arith.mulf %242, %246 : vector<2x32xf32>
    %248 = arith.addf %245, %247 : vector<2x32xf32>
    %249 = tpu.concatenate %248, %220 in 1 : vector<2x32xf32>, vector<2x32xf32> -> vector<2x64xf32>
    %cst_68 = arith.constant dense<0.000000e+00> : vector<2x64xf32>
    %250 = tpu.matmul %249, %15, %cst_68 {dimension_numbers = #tpu.dot_dimension_numbers<[1], [0], [0], [1], [0, 0, 1, 1], [], []>} : vector<2x64xf32>, vector<64x64xf32>, vector<2x64xf32> -> vector<2x64xf32>
    %251 = vector.broadcast %18 : vector<1x64xf32> to vector<2x64xf32>
    %252 = arith.addf %250, %251 : vector<2x64xf32>
    %cst_69 = arith.constant dense<0.000000e+00> : vector<2x32xf32>
    %253 = tpu.matmul %248, %16, %cst_69 {dimension_numbers = #tpu.dot_dimension_numbers<[1], [0], [0], [1], [0, 0, 1, 1], [], []>} : vector<2x32xf32>, vector<32x32xf32>, vector<2x32xf32> -> vector<2x32xf32>
    %254 = vector.broadcast %19 : vector<1x32xf32> to vector<2x32xf32>
    %255 = arith.addf %253, %254 : vector<2x32xf32>
    %256 = arith.negf %252 : vector<2x64xf32>
    %257 = math.exp %256 : vector<2x64xf32>
    %cst_70 = arith.constant 1.000000e+00 : f32
    %258 = vector.broadcast %cst_70 : f32 to vector<2x64xf32>
    %259 = arith.addf %258, %257 : vector<2x64xf32>
    %260 = arith.divf %258, %259 : vector<2x64xf32>
    %261 = vector.extract_strided_slice %260 {offsets = [0, 0], sizes = [2, 32], strides = [1, 1]} : vector<2x64xf32> to vector<2x32xf32>
    %262 = vector.extract_strided_slice %260 {offsets = [0, 32], sizes = [2, 32], strides = [1, 1]} : vector<2x64xf32> to vector<2x32xf32>
    %263 = arith.mulf %261, %227 : vector<2x32xf32>
    %264 = arith.addf %255, %263 : vector<2x32xf32>
    %265 = math.tanh %264 : vector<2x32xf32>
    %266 = arith.subf %220, %265 : vector<2x32xf32>
    %267 = arith.mulf %262, %266 : vector<2x32xf32>
    %268 = arith.addf %265, %267 : vector<2x32xf32>
    %cst_71 = arith.constant dense<0.000000e+00> : vector<2x64xf32>
    %269 = tpu.matmul %248, %12, %cst_71 {dimension_numbers = #tpu.dot_dimension_numbers<[1], [0], [0], [1], [0, 0, 1, 1], [], []>} : vector<2x32xf32>, vector<32x64xf32>, vector<2x64xf32> -> vector<2x64xf32>
    %cst_72 = arith.constant dense<0.000000e+00> : vector<2x32xf32>
    %270 = tpu.matmul %248, %13, %cst_72 {dimension_numbers = #tpu.dot_dimension_numbers<[1], [0], [0], [1], [0, 0, 1, 1], [], []>} : vector<2x32xf32>, vector<32x32xf32>, vector<2x32xf32> -> vector<2x32xf32>
    %271 = vector.broadcast %14 : vector<1x32xf32> to vector<2x32xf32>
    %272 = arith.addf %270, %271 : vector<2x32xf32>
    %cst_73 = arith.constant dense<0.000000e+00> : vector<2x32xf32>
    %273 = tpu.matmul %268, %17, %cst_73 {dimension_numbers = #tpu.dot_dimension_numbers<[1], [0], [0], [1], [0, 0, 1, 1], [], []>} : vector<2x32xf32>, vector<32x32xf32>, vector<2x32xf32> -> vector<2x32xf32>
    %274 = vector.broadcast %20 : vector<1x32xf32> to vector<2x32xf32>
    %275 = arith.addf %273, %274 : vector<2x32xf32>
    %276 = vector.extract_strided_slice %28 {offsets = [0, 5], sizes = [2, 1], strides = [1, 1]} : vector<2x8xf32> to vector<2x1xf32>
    %277 = vector.broadcast %276 : vector<2x1xf32> to vector<2x64xf32>
    %278 = arith.mulf %277, %2 : vector<2x64xf32>
    %279 = arith.addf %278, %8 : vector<2x64xf32>
    %280 = arith.addf %279, %269 : vector<2x64xf32>
    %281 = vector.broadcast %276 : vector<2x1xf32> to vector<2x32xf32>
    %282 = arith.mulf %281, %5 : vector<2x32xf32>
    %283 = arith.addf %282, %11 : vector<2x32xf32>
    %284 = arith.negf %280 : vector<2x64xf32>
    %285 = math.exp %284 : vector<2x64xf32>
    %cst_74 = arith.constant 1.000000e+00 : f32
    %286 = vector.broadcast %cst_74 : f32 to vector<2x64xf32>
    %287 = arith.addf %286, %285 : vector<2x64xf32>
    %288 = arith.divf %286, %287 : vector<2x64xf32>
    %289 = vector.extract_strided_slice %288 {offsets = [0, 0], sizes = [2, 32], strides = [1, 1]} : vector<2x64xf32> to vector<2x32xf32>
    %290 = vector.extract_strided_slice %288 {offsets = [0, 32], sizes = [2, 32], strides = [1, 1]} : vector<2x64xf32> to vector<2x32xf32>
    %291 = arith.mulf %289, %272 : vector<2x32xf32>
    %292 = arith.addf %283, %291 : vector<2x32xf32>
    %293 = math.tanh %292 : vector<2x32xf32>
    %294 = arith.subf %248, %293 : vector<2x32xf32>
    %295 = arith.mulf %290, %294 : vector<2x32xf32>
    %296 = arith.addf %293, %295 : vector<2x32xf32>
    %297 = tpu.concatenate %296, %268 in 1 : vector<2x32xf32>, vector<2x32xf32> -> vector<2x64xf32>
    %cst_75 = arith.constant dense<0.000000e+00> : vector<2x64xf32>
    %298 = tpu.matmul %297, %15, %cst_75 {dimension_numbers = #tpu.dot_dimension_numbers<[1], [0], [0], [1], [0, 0, 1, 1], [], []>} : vector<2x64xf32>, vector<64x64xf32>, vector<2x64xf32> -> vector<2x64xf32>
    %299 = vector.broadcast %18 : vector<1x64xf32> to vector<2x64xf32>
    %300 = arith.addf %298, %299 : vector<2x64xf32>
    %cst_76 = arith.constant dense<0.000000e+00> : vector<2x32xf32>
    %301 = tpu.matmul %296, %16, %cst_76 {dimension_numbers = #tpu.dot_dimension_numbers<[1], [0], [0], [1], [0, 0, 1, 1], [], []>} : vector<2x32xf32>, vector<32x32xf32>, vector<2x32xf32> -> vector<2x32xf32>
    %302 = vector.broadcast %19 : vector<1x32xf32> to vector<2x32xf32>
    %303 = arith.addf %301, %302 : vector<2x32xf32>
    %304 = arith.negf %300 : vector<2x64xf32>
    %305 = math.exp %304 : vector<2x64xf32>
    %cst_77 = arith.constant 1.000000e+00 : f32
    %306 = vector.broadcast %cst_77 : f32 to vector<2x64xf32>
    %307 = arith.addf %306, %305 : vector<2x64xf32>
    %308 = arith.divf %306, %307 : vector<2x64xf32>
    %309 = vector.extract_strided_slice %308 {offsets = [0, 0], sizes = [2, 32], strides = [1, 1]} : vector<2x64xf32> to vector<2x32xf32>
    %310 = vector.extract_strided_slice %308 {offsets = [0, 32], sizes = [2, 32], strides = [1, 1]} : vector<2x64xf32> to vector<2x32xf32>
    %311 = arith.mulf %309, %275 : vector<2x32xf32>
    %312 = arith.addf %303, %311 : vector<2x32xf32>
    %313 = math.tanh %312 : vector<2x32xf32>
    %314 = arith.subf %268, %313 : vector<2x32xf32>
    %315 = arith.mulf %310, %314 : vector<2x32xf32>
    %316 = arith.addf %313, %315 : vector<2x32xf32>
    %cst_78 = arith.constant dense<0.000000e+00> : vector<2x64xf32>
    %317 = tpu.matmul %296, %12, %cst_78 {dimension_numbers = #tpu.dot_dimension_numbers<[1], [0], [0], [1], [0, 0, 1, 1], [], []>} : vector<2x32xf32>, vector<32x64xf32>, vector<2x64xf32> -> vector<2x64xf32>
    %cst_79 = arith.constant dense<0.000000e+00> : vector<2x32xf32>
    %318 = tpu.matmul %296, %13, %cst_79 {dimension_numbers = #tpu.dot_dimension_numbers<[1], [0], [0], [1], [0, 0, 1, 1], [], []>} : vector<2x32xf32>, vector<32x32xf32>, vector<2x32xf32> -> vector<2x32xf32>
    %319 = vector.broadcast %14 : vector<1x32xf32> to vector<2x32xf32>
    %320 = arith.addf %318, %319 : vector<2x32xf32>
    %cst_80 = arith.constant dense<0.000000e+00> : vector<2x32xf32>
    %321 = tpu.matmul %316, %17, %cst_80 {dimension_numbers = #tpu.dot_dimension_numbers<[1], [0], [0], [1], [0, 0, 1, 1], [], []>} : vector<2x32xf32>, vector<32x32xf32>, vector<2x32xf32> -> vector<2x32xf32>
    %322 = vector.broadcast %20 : vector<1x32xf32> to vector<2x32xf32>
    %323 = arith.addf %321, %322 : vector<2x32xf32>
    %324 = vector.extract_strided_slice %28 {offsets = [0, 6], sizes = [2, 1], strides = [1, 1]} : vector<2x8xf32> to vector<2x1xf32>
    %325 = vector.broadcast %324 : vector<2x1xf32> to vector<2x64xf32>
    %326 = arith.mulf %325, %2 : vector<2x64xf32>
    %327 = arith.addf %326, %8 : vector<2x64xf32>
    %328 = arith.addf %327, %317 : vector<2x64xf32>
    %329 = vector.broadcast %324 : vector<2x1xf32> to vector<2x32xf32>
    %330 = arith.mulf %329, %5 : vector<2x32xf32>
    %331 = arith.addf %330, %11 : vector<2x32xf32>
    %332 = arith.negf %328 : vector<2x64xf32>
    %333 = math.exp %332 : vector<2x64xf32>
    %cst_81 = arith.constant 1.000000e+00 : f32
    %334 = vector.broadcast %cst_81 : f32 to vector<2x64xf32>
    %335 = arith.addf %334, %333 : vector<2x64xf32>
    %336 = arith.divf %334, %335 : vector<2x64xf32>
    %337 = vector.extract_strided_slice %336 {offsets = [0, 0], sizes = [2, 32], strides = [1, 1]} : vector<2x64xf32> to vector<2x32xf32>
    %338 = vector.extract_strided_slice %336 {offsets = [0, 32], sizes = [2, 32], strides = [1, 1]} : vector<2x64xf32> to vector<2x32xf32>
    %339 = arith.mulf %337, %320 : vector<2x32xf32>
    %340 = arith.addf %331, %339 : vector<2x32xf32>
    %341 = math.tanh %340 : vector<2x32xf32>
    %342 = arith.subf %296, %341 : vector<2x32xf32>
    %343 = arith.mulf %338, %342 : vector<2x32xf32>
    %344 = arith.addf %341, %343 : vector<2x32xf32>
    %345 = tpu.concatenate %344, %316 in 1 : vector<2x32xf32>, vector<2x32xf32> -> vector<2x64xf32>
    %cst_82 = arith.constant dense<0.000000e+00> : vector<2x64xf32>
    %346 = tpu.matmul %345, %15, %cst_82 {dimension_numbers = #tpu.dot_dimension_numbers<[1], [0], [0], [1], [0, 0, 1, 1], [], []>} : vector<2x64xf32>, vector<64x64xf32>, vector<2x64xf32> -> vector<2x64xf32>
    %347 = vector.broadcast %18 : vector<1x64xf32> to vector<2x64xf32>
    %348 = arith.addf %346, %347 : vector<2x64xf32>
    %cst_83 = arith.constant dense<0.000000e+00> : vector<2x32xf32>
    %349 = tpu.matmul %344, %16, %cst_83 {dimension_numbers = #tpu.dot_dimension_numbers<[1], [0], [0], [1], [0, 0, 1, 1], [], []>} : vector<2x32xf32>, vector<32x32xf32>, vector<2x32xf32> -> vector<2x32xf32>
    %350 = vector.broadcast %19 : vector<1x32xf32> to vector<2x32xf32>
    %351 = arith.addf %349, %350 : vector<2x32xf32>
    %352 = arith.negf %348 : vector<2x64xf32>
    %353 = math.exp %352 : vector<2x64xf32>
    %cst_84 = arith.constant 1.000000e+00 : f32
    %354 = vector.broadcast %cst_84 : f32 to vector<2x64xf32>
    %355 = arith.addf %354, %353 : vector<2x64xf32>
    %356 = arith.divf %354, %355 : vector<2x64xf32>
    %357 = vector.extract_strided_slice %356 {offsets = [0, 0], sizes = [2, 32], strides = [1, 1]} : vector<2x64xf32> to vector<2x32xf32>
    %358 = vector.extract_strided_slice %356 {offsets = [0, 32], sizes = [2, 32], strides = [1, 1]} : vector<2x64xf32> to vector<2x32xf32>
    %359 = arith.mulf %357, %323 : vector<2x32xf32>
    %360 = arith.addf %351, %359 : vector<2x32xf32>
    %361 = math.tanh %360 : vector<2x32xf32>
    %362 = arith.subf %316, %361 : vector<2x32xf32>
    %363 = arith.mulf %358, %362 : vector<2x32xf32>
    %364 = arith.addf %361, %363 : vector<2x32xf32>
    %cst_85 = arith.constant dense<0.000000e+00> : vector<2x64xf32>
    %365 = tpu.matmul %344, %12, %cst_85 {dimension_numbers = #tpu.dot_dimension_numbers<[1], [0], [0], [1], [0, 0, 1, 1], [], []>} : vector<2x32xf32>, vector<32x64xf32>, vector<2x64xf32> -> vector<2x64xf32>
    %cst_86 = arith.constant dense<0.000000e+00> : vector<2x32xf32>
    %366 = tpu.matmul %344, %13, %cst_86 {dimension_numbers = #tpu.dot_dimension_numbers<[1], [0], [0], [1], [0, 0, 1, 1], [], []>} : vector<2x32xf32>, vector<32x32xf32>, vector<2x32xf32> -> vector<2x32xf32>
    %367 = vector.broadcast %14 : vector<1x32xf32> to vector<2x32xf32>
    %368 = arith.addf %366, %367 : vector<2x32xf32>
    %cst_87 = arith.constant dense<0.000000e+00> : vector<2x32xf32>
    %369 = tpu.matmul %364, %17, %cst_87 {dimension_numbers = #tpu.dot_dimension_numbers<[1], [0], [0], [1], [0, 0, 1, 1], [], []>} : vector<2x32xf32>, vector<32x32xf32>, vector<2x32xf32> -> vector<2x32xf32>
    %370 = vector.broadcast %20 : vector<1x32xf32> to vector<2x32xf32>
    %371 = arith.addf %369, %370 : vector<2x32xf32>
    %372 = vector.extract_strided_slice %28 {offsets = [0, 7], sizes = [2, 1], strides = [1, 1]} : vector<2x8xf32> to vector<2x1xf32>
    %373 = vector.broadcast %372 : vector<2x1xf32> to vector<2x64xf32>
    %374 = arith.mulf %373, %2 : vector<2x64xf32>
    %375 = arith.addf %374, %8 : vector<2x64xf32>
    %376 = arith.addf %375, %365 : vector<2x64xf32>
    %377 = vector.broadcast %372 : vector<2x1xf32> to vector<2x32xf32>
    %378 = arith.mulf %377, %5 : vector<2x32xf32>
    %379 = arith.addf %378, %11 : vector<2x32xf32>
    %380 = arith.negf %376 : vector<2x64xf32>
    %381 = math.exp %380 : vector<2x64xf32>
    %cst_88 = arith.constant 1.000000e+00 : f32
    %382 = vector.broadcast %cst_88 : f32 to vector<2x64xf32>
    %383 = arith.addf %382, %381 : vector<2x64xf32>
    %384 = arith.divf %382, %383 : vector<2x64xf32>
    %385 = vector.extract_strided_slice %384 {offsets = [0, 0], sizes = [2, 32], strides = [1, 1]} : vector<2x64xf32> to vector<2x32xf32>
    %386 = vector.extract_strided_slice %384 {offsets = [0, 32], sizes = [2, 32], strides = [1, 1]} : vector<2x64xf32> to vector<2x32xf32>
    %387 = arith.mulf %385, %368 : vector<2x32xf32>
    %388 = arith.addf %379, %387 : vector<2x32xf32>
    %389 = math.tanh %388 : vector<2x32xf32>
    %390 = arith.subf %344, %389 : vector<2x32xf32>
    %391 = arith.mulf %386, %390 : vector<2x32xf32>
    %392 = arith.addf %389, %391 : vector<2x32xf32>
    %393 = tpu.concatenate %392, %364 in 1 : vector<2x32xf32>, vector<2x32xf32> -> vector<2x64xf32>
    %cst_89 = arith.constant dense<0.000000e+00> : vector<2x64xf32>
    %394 = tpu.matmul %393, %15, %cst_89 {dimension_numbers = #tpu.dot_dimension_numbers<[1], [0], [0], [1], [0, 0, 1, 1], [], []>} : vector<2x64xf32>, vector<64x64xf32>, vector<2x64xf32> -> vector<2x64xf32>
    %395 = vector.broadcast %18 : vector<1x64xf32> to vector<2x64xf32>
    %396 = arith.addf %394, %395 : vector<2x64xf32>
    %cst_90 = arith.constant dense<0.000000e+00> : vector<2x32xf32>
    %397 = tpu.matmul %392, %16, %cst_90 {dimension_numbers = #tpu.dot_dimension_numbers<[1], [0], [0], [1], [0, 0, 1, 1], [], []>} : vector<2x32xf32>, vector<32x32xf32>, vector<2x32xf32> -> vector<2x32xf32>
    %398 = vector.broadcast %19 : vector<1x32xf32> to vector<2x32xf32>
    %399 = arith.addf %397, %398 : vector<2x32xf32>
    %400 = arith.negf %396 : vector<2x64xf32>
    %401 = math.exp %400 : vector<2x64xf32>
    %cst_91 = arith.constant 1.000000e+00 : f32
    %402 = vector.broadcast %cst_91 : f32 to vector<2x64xf32>
    %403 = arith.addf %402, %401 : vector<2x64xf32>
    %404 = arith.divf %402, %403 : vector<2x64xf32>
    %405 = vector.extract_strided_slice %404 {offsets = [0, 0], sizes = [2, 32], strides = [1, 1]} : vector<2x64xf32> to vector<2x32xf32>
    %406 = vector.extract_strided_slice %404 {offsets = [0, 32], sizes = [2, 32], strides = [1, 1]} : vector<2x64xf32> to vector<2x32xf32>
    %407 = arith.mulf %405, %371 : vector<2x32xf32>
    %408 = arith.addf %399, %407 : vector<2x32xf32>
    %409 = math.tanh %408 : vector<2x32xf32>
    %410 = arith.subf %364, %409 : vector<2x32xf32>
    %411 = arith.mulf %406, %410 : vector<2x32xf32>
    %412 = arith.addf %409, %411 : vector<2x32xf32>
    %c0_92 = arith.constant 0 : index
    %c0_93 = arith.constant 0 : index
    %413 = vector.load %arg19[%c0_92, %c0_93] : memref<6x32xf32, #tpu.memory_space<vmem>>, vector<2x32xf32>
    tpu.vector_store %arg19[%c0_92, %c0_93], %412 {strides = array<i32>} : memref<6x32xf32, #tpu.memory_space<vmem>>, vector<2x32xf32>,
    %c1_94 = arith.constant 1 : index
    %c0_95 = arith.constant 0 : index
    %c0_96 = arith.constant 0 : index
    %414 = vector.load %arg0[%c1_94, %c0_95, %c0_96] : memref<3x2x8xf32, #tpu.memory_space<vmem>>, vector<1x2x8xf32>
    %415 = vector.shape_cast %414 : vector<1x2x8xf32> to vector<2x8xf32>
    %cst_97 = arith.constant dense<0.000000e+00> : vector<2x64xf32>
    %416 = tpu.matmul %392, %12, %cst_97 {dimension_numbers = #tpu.dot_dimension_numbers<[1], [0], [0], [1], [0, 0, 1, 1], [], []>} : vector<2x32xf32>, vector<32x64xf32>, vector<2x64xf32> -> vector<2x64xf32>
    %cst_98 = arith.constant dense<0.000000e+00> : vector<2x32xf32>
    %417 = tpu.matmul %392, %13, %cst_98 {dimension_numbers = #tpu.dot_dimension_numbers<[1], [0], [0], [1], [0, 0, 1, 1], [], []>} : vector<2x32xf32>, vector<32x32xf32>, vector<2x32xf32> -> vector<2x32xf32>
    %418 = vector.broadcast %14 : vector<1x32xf32> to vector<2x32xf32>
    %419 = arith.addf %417, %418 : vector<2x32xf32>
    %cst_99 = arith.constant dense<0.000000e+00> : vector<2x32xf32>
    %420 = tpu.matmul %412, %17, %cst_99 {dimension_numbers = #tpu.dot_dimension_numbers<[1], [0], [0], [1], [0, 0, 1, 1], [], []>} : vector<2x32xf32>, vector<32x32xf32>, vector<2x32xf32> -> vector<2x32xf32>
    %421 = vector.broadcast %20 : vector<1x32xf32> to vector<2x32xf32>
    %422 = arith.addf %420, %421 : vector<2x32xf32>
    %423 = vector.extract_strided_slice %415 {offsets = [0, 0], sizes = [2, 1], strides = [1, 1]} : vector<2x8xf32> to vector<2x1xf32>
    %424 = vector.broadcast %423 : vector<2x1xf32> to vector<2x64xf32>
    %425 = arith.mulf %424, %2 : vector<2x64xf32>
    %426 = arith.addf %425, %8 : vector<2x64xf32>
    %427 = arith.addf %426, %416 : vector<2x64xf32>
    %428 = vector.broadcast %423 : vector<2x1xf32> to vector<2x32xf32>
    %429 = arith.mulf %428, %5 : vector<2x32xf32>
    %430 = arith.addf %429, %11 : vector<2x32xf32>
    %431 = arith.negf %427 : vector<2x64xf32>
    %432 = math.exp %431 : vector<2x64xf32>
    %cst_100 = arith.constant 1.000000e+00 : f32
    %433 = vector.broadcast %cst_100 : f32 to vector<2x64xf32>
    %434 = arith.addf %433, %432 : vector<2x64xf32>
    %435 = arith.divf %433, %434 : vector<2x64xf32>
    %436 = vector.extract_strided_slice %435 {offsets = [0, 0], sizes = [2, 32], strides = [1, 1]} : vector<2x64xf32> to vector<2x32xf32>
    %437 = vector.extract_strided_slice %435 {offsets = [0, 32], sizes = [2, 32], strides = [1, 1]} : vector<2x64xf32> to vector<2x32xf32>
    %438 = arith.mulf %436, %419 : vector<2x32xf32>
    %439 = arith.addf %430, %438 : vector<2x32xf32>
    %440 = math.tanh %439 : vector<2x32xf32>
    %441 = arith.subf %392, %440 : vector<2x32xf32>
    %442 = arith.mulf %437, %441 : vector<2x32xf32>
    %443 = arith.addf %440, %442 : vector<2x32xf32>
    %444 = tpu.concatenate %443, %412 in 1 : vector<2x32xf32>, vector<2x32xf32> -> vector<2x64xf32>
    %cst_101 = arith.constant dense<0.000000e+00> : vector<2x64xf32>
    %445 = tpu.matmul %444, %15, %cst_101 {dimension_numbers = #tpu.dot_dimension_numbers<[1], [0], [0], [1], [0, 0, 1, 1], [], []>} : vector<2x64xf32>, vector<64x64xf32>, vector<2x64xf32> -> vector<2x64xf32>
    %446 = vector.broadcast %18 : vector<1x64xf32> to vector<2x64xf32>
    %447 = arith.addf %445, %446 : vector<2x64xf32>
    %cst_102 = arith.constant dense<0.000000e+00> : vector<2x32xf32>
    %448 = tpu.matmul %443, %16, %cst_102 {dimension_numbers = #tpu.dot_dimension_numbers<[1], [0], [0], [1], [0, 0, 1, 1], [], []>} : vector<2x32xf32>, vector<32x32xf32>, vector<2x32xf32> -> vector<2x32xf32>
    %449 = vector.broadcast %19 : vector<1x32xf32> to vector<2x32xf32>
    %450 = arith.addf %448, %449 : vector<2x32xf32>
    %451 = arith.negf %447 : vector<2x64xf32>
    %452 = math.exp %451 : vector<2x64xf32>
    %cst_103 = arith.constant 1.000000e+00 : f32
    %453 = vector.broadcast %cst_103 : f32 to vector<2x64xf32>
    %454 = arith.addf %453, %452 : vector<2x64xf32>
    %455 = arith.divf %453, %454 : vector<2x64xf32>
    %456 = vector.extract_strided_slice %455 {offsets = [0, 0], sizes = [2, 32], strides = [1, 1]} : vector<2x64xf32> to vector<2x32xf32>
    %457 = vector.extract_strided_slice %455 {offsets = [0, 32], sizes = [2, 32], strides = [1, 1]} : vector<2x64xf32> to vector<2x32xf32>
    %458 = arith.mulf %456, %422 : vector<2x32xf32>
    %459 = arith.addf %450, %458 : vector<2x32xf32>
    %460 = math.tanh %459 : vector<2x32xf32>
    %461 = arith.subf %412, %460 : vector<2x32xf32>
    %462 = arith.mulf %457, %461 : vector<2x32xf32>
    %463 = arith.addf %460, %462 : vector<2x32xf32>
    %cst_104 = arith.constant dense<0.000000e+00> : vector<2x64xf32>
    %464 = tpu.matmul %443, %12, %cst_104 {dimension_numbers = #tpu.dot_dimension_numbers<[1], [0], [0], [1], [0, 0, 1, 1], [], []>} : vector<2x32xf32>, vector<32x64xf32>, vector<2x64xf32> -> vector<2x64xf32>
    %cst_105 = arith.constant dense<0.000000e+00> : vector<2x32xf32>
    %465 = tpu.matmul %443, %13, %cst_105 {dimension_numbers = #tpu.dot_dimension_numbers<[1], [0], [0], [1], [0, 0, 1, 1], [], []>} : vector<2x32xf32>, vector<32x32xf32>, vector<2x32xf32> -> vector<2x32xf32>
    %466 = vector.broadcast %14 : vector<1x32xf32> to vector<2x32xf32>
    %467 = arith.addf %465, %466 : vector<2x32xf32>
    %cst_106 = arith.constant dense<0.000000e+00> : vector<2x32xf32>
    %468 = tpu.matmul %463, %17, %cst_106 {dimension_numbers = #tpu.dot_dimension_numbers<[1], [0], [0], [1], [0, 0, 1, 1], [], []>} : vector<2x32xf32>, vector<32x32xf32>, vector<2x32xf32> -> vector<2x32xf32>
    %469 = vector.broadcast %20 : vector<1x32xf32> to vector<2x32xf32>
    %470 = arith.addf %468, %469 : vector<2x32xf32>
    %471 = vector.extract_strided_slice %415 {offsets = [0, 1], sizes = [2, 1], strides = [1, 1]} : vector<2x8xf32> to vector<2x1xf32>
    %472 = vector.broadcast %471 : vector<2x1xf32> to vector<2x64xf32>
    %473 = arith.mulf %472, %2 : vector<2x64xf32>
    %474 = arith.addf %473, %8 : vector<2x64xf32>
    %475 = arith.addf %474, %464 : vector<2x64xf32>
    %476 = vector.broadcast %471 : vector<2x1xf32> to vector<2x32xf32>
    %477 = arith.mulf %476, %5 : vector<2x32xf32>
    %478 = arith.addf %477, %11 : vector<2x32xf32>
    %479 = arith.negf %475 : vector<2x64xf32>
    %480 = math.exp %479 : vector<2x64xf32>
    %cst_107 = arith.constant 1.000000e+00 : f32
    %481 = vector.broadcast %cst_107 : f32 to vector<2x64xf32>
    %482 = arith.addf %481, %480 : vector<2x64xf32>
    %483 = arith.divf %481, %482 : vector<2x64xf32>
    %484 = vector.extract_strided_slice %483 {offsets = [0, 0], sizes = [2, 32], strides = [1, 1]} : vector<2x64xf32> to vector<2x32xf32>
    %485 = vector.extract_strided_slice %483 {offsets = [0, 32], sizes = [2, 32], strides = [1, 1]} : vector<2x64xf32> to vector<2x32xf32>
    %486 = arith.mulf %484, %467 : vector<2x32xf32>
    %487 = arith.addf %478, %486 : vector<2x32xf32>
    %488 = math.tanh %487 : vector<2x32xf32>
    %489 = arith.subf %443, %488 : vector<2x32xf32>
    %490 = arith.mulf %485, %489 : vector<2x32xf32>
    %491 = arith.addf %488, %490 : vector<2x32xf32>
    %492 = tpu.concatenate %491, %463 in 1 : vector<2x32xf32>, vector<2x32xf32> -> vector<2x64xf32>
    %cst_108 = arith.constant dense<0.000000e+00> : vector<2x64xf32>
    %493 = tpu.matmul %492, %15, %cst_108 {dimension_numbers = #tpu.dot_dimension_numbers<[1], [0], [0], [1], [0, 0, 1, 1], [], []>} : vector<2x64xf32>, vector<64x64xf32>, vector<2x64xf32> -> vector<2x64xf32>
    %494 = vector.broadcast %18 : vector<1x64xf32> to vector<2x64xf32>
    %495 = arith.addf %493, %494 : vector<2x64xf32>
    %cst_109 = arith.constant dense<0.000000e+00> : vector<2x32xf32>
    %496 = tpu.matmul %491, %16, %cst_109 {dimension_numbers = #tpu.dot_dimension_numbers<[1], [0], [0], [1], [0, 0, 1, 1], [], []>} : vector<2x32xf32>, vector<32x32xf32>, vector<2x32xf32> -> vector<2x32xf32>
    %497 = vector.broadcast %19 : vector<1x32xf32> to vector<2x32xf32>
    %498 = arith.addf %496, %497 : vector<2x32xf32>
    %499 = arith.negf %495 : vector<2x64xf32>
    %500 = math.exp %499 : vector<2x64xf32>
    %cst_110 = arith.constant 1.000000e+00 : f32
    %501 = vector.broadcast %cst_110 : f32 to vector<2x64xf32>
    %502 = arith.addf %501, %500 : vector<2x64xf32>
    %503 = arith.divf %501, %502 : vector<2x64xf32>
    %504 = vector.extract_strided_slice %503 {offsets = [0, 0], sizes = [2, 32], strides = [1, 1]} : vector<2x64xf32> to vector<2x32xf32>
    %505 = vector.extract_strided_slice %503 {offsets = [0, 32], sizes = [2, 32], strides = [1, 1]} : vector<2x64xf32> to vector<2x32xf32>
    %506 = arith.mulf %504, %470 : vector<2x32xf32>
    %507 = arith.addf %498, %506 : vector<2x32xf32>
    %508 = math.tanh %507 : vector<2x32xf32>
    %509 = arith.subf %463, %508 : vector<2x32xf32>
    %510 = arith.mulf %505, %509 : vector<2x32xf32>
    %511 = arith.addf %508, %510 : vector<2x32xf32>
    %cst_111 = arith.constant dense<0.000000e+00> : vector<2x64xf32>
    %512 = tpu.matmul %491, %12, %cst_111 {dimension_numbers = #tpu.dot_dimension_numbers<[1], [0], [0], [1], [0, 0, 1, 1], [], []>} : vector<2x32xf32>, vector<32x64xf32>, vector<2x64xf32> -> vector<2x64xf32>
    %cst_112 = arith.constant dense<0.000000e+00> : vector<2x32xf32>
    %513 = tpu.matmul %491, %13, %cst_112 {dimension_numbers = #tpu.dot_dimension_numbers<[1], [0], [0], [1], [0, 0, 1, 1], [], []>} : vector<2x32xf32>, vector<32x32xf32>, vector<2x32xf32> -> vector<2x32xf32>
    %514 = vector.broadcast %14 : vector<1x32xf32> to vector<2x32xf32>
    %515 = arith.addf %513, %514 : vector<2x32xf32>
    %cst_113 = arith.constant dense<0.000000e+00> : vector<2x32xf32>
    %516 = tpu.matmul %511, %17, %cst_113 {dimension_numbers = #tpu.dot_dimension_numbers<[1], [0], [0], [1], [0, 0, 1, 1], [], []>} : vector<2x32xf32>, vector<32x32xf32>, vector<2x32xf32> -> vector<2x32xf32>
    %517 = vector.broadcast %20 : vector<1x32xf32> to vector<2x32xf32>
    %518 = arith.addf %516, %517 : vector<2x32xf32>
    %519 = vector.extract_strided_slice %415 {offsets = [0, 2], sizes = [2, 1], strides = [1, 1]} : vector<2x8xf32> to vector<2x1xf32>
    %520 = vector.broadcast %519 : vector<2x1xf32> to vector<2x64xf32>
    %521 = arith.mulf %520, %2 : vector<2x64xf32>
    %522 = arith.addf %521, %8 : vector<2x64xf32>
    %523 = arith.addf %522, %512 : vector<2x64xf32>
    %524 = vector.broadcast %519 : vector<2x1xf32> to vector<2x32xf32>
    %525 = arith.mulf %524, %5 : vector<2x32xf32>
    %526 = arith.addf %525, %11 : vector<2x32xf32>
    %527 = arith.negf %523 : vector<2x64xf32>
    %528 = math.exp %527 : vector<2x64xf32>
    %cst_114 = arith.constant 1.000000e+00 : f32
    %529 = vector.broadcast %cst_114 : f32 to vector<2x64xf32>
    %530 = arith.addf %529, %528 : vector<2x64xf32>
    %531 = arith.divf %529, %530 : vector<2x64xf32>
    %532 = vector.extract_strided_slice %531 {offsets = [0, 0], sizes = [2, 32], strides = [1, 1]} : vector<2x64xf32> to vector<2x32xf32>
    %533 = vector.extract_strided_slice %531 {offsets = [0, 32], sizes = [2, 32], strides = [1, 1]} : vector<2x64xf32> to vector<2x32xf32>
    %534 = arith.mulf %532, %515 : vector<2x32xf32>
    %535 = arith.addf %526, %534 : vector<2x32xf32>
    %536 = math.tanh %535 : vector<2x32xf32>
    %537 = arith.subf %491, %536 : vector<2x32xf32>
    %538 = arith.mulf %533, %537 : vector<2x32xf32>
    %539 = arith.addf %536, %538 : vector<2x32xf32>
    %540 = tpu.concatenate %539, %511 in 1 : vector<2x32xf32>, vector<2x32xf32> -> vector<2x64xf32>
    %cst_115 = arith.constant dense<0.000000e+00> : vector<2x64xf32>
    %541 = tpu.matmul %540, %15, %cst_115 {dimension_numbers = #tpu.dot_dimension_numbers<[1], [0], [0], [1], [0, 0, 1, 1], [], []>} : vector<2x64xf32>, vector<64x64xf32>, vector<2x64xf32> -> vector<2x64xf32>
    %542 = vector.broadcast %18 : vector<1x64xf32> to vector<2x64xf32>
    %543 = arith.addf %541, %542 : vector<2x64xf32>
    %cst_116 = arith.constant dense<0.000000e+00> : vector<2x32xf32>
    %544 = tpu.matmul %539, %16, %cst_116 {dimension_numbers = #tpu.dot_dimension_numbers<[1], [0], [0], [1], [0, 0, 1, 1], [], []>} : vector<2x32xf32>, vector<32x32xf32>, vector<2x32xf32> -> vector<2x32xf32>
    %545 = vector.broadcast %19 : vector<1x32xf32> to vector<2x32xf32>
    %546 = arith.addf %544, %545 : vector<2x32xf32>
    %547 = arith.negf %543 : vector<2x64xf32>
    %548 = math.exp %547 : vector<2x64xf32>
    %cst_117 = arith.constant 1.000000e+00 : f32
    %549 = vector.broadcast %cst_117 : f32 to vector<2x64xf32>
    %550 = arith.addf %549, %548 : vector<2x64xf32>
    %551 = arith.divf %549, %550 : vector<2x64xf32>
    %552 = vector.extract_strided_slice %551 {offsets = [0, 0], sizes = [2, 32], strides = [1, 1]} : vector<2x64xf32> to vector<2x32xf32>
    %553 = vector.extract_strided_slice %551 {offsets = [0, 32], sizes = [2, 32], strides = [1, 1]} : vector<2x64xf32> to vector<2x32xf32>
    %554 = arith.mulf %552, %518 : vector<2x32xf32>
    %555 = arith.addf %546, %554 : vector<2x32xf32>
    %556 = math.tanh %555 : vector<2x32xf32>
    %557 = arith.subf %511, %556 : vector<2x32xf32>
    %558 = arith.mulf %553, %557 : vector<2x32xf32>
    %559 = arith.addf %556, %558 : vector<2x32xf32>
    %cst_118 = arith.constant dense<0.000000e+00> : vector<2x64xf32>
    %560 = tpu.matmul %539, %12, %cst_118 {dimension_numbers = #tpu.dot_dimension_numbers<[1], [0], [0], [1], [0, 0, 1, 1], [], []>} : vector<2x32xf32>, vector<32x64xf32>, vector<2x64xf32> -> vector<2x64xf32>
    %cst_119 = arith.constant dense<0.000000e+00> : vector<2x32xf32>
    %561 = tpu.matmul %539, %13, %cst_119 {dimension_numbers = #tpu.dot_dimension_numbers<[1], [0], [0], [1], [0, 0, 1, 1], [], []>} : vector<2x32xf32>, vector<32x32xf32>, vector<2x32xf32> -> vector<2x32xf32>
    %562 = vector.broadcast %14 : vector<1x32xf32> to vector<2x32xf32>
    %563 = arith.addf %561, %562 : vector<2x32xf32>
    %cst_120 = arith.constant dense<0.000000e+00> : vector<2x32xf32>
    %564 = tpu.matmul %559, %17, %cst_120 {dimension_numbers = #tpu.dot_dimension_numbers<[1], [0], [0], [1], [0, 0, 1, 1], [], []>} : vector<2x32xf32>, vector<32x32xf32>, vector<2x32xf32> -> vector<2x32xf32>
    %565 = vector.broadcast %20 : vector<1x32xf32> to vector<2x32xf32>
    %566 = arith.addf %564, %565 : vector<2x32xf32>
    %567 = vector.extract_strided_slice %415 {offsets = [0, 3], sizes = [2, 1], strides = [1, 1]} : vector<2x8xf32> to vector<2x1xf32>
    %568 = vector.broadcast %567 : vector<2x1xf32> to vector<2x64xf32>
    %569 = arith.mulf %568, %2 : vector<2x64xf32>
    %570 = arith.addf %569, %8 : vector<2x64xf32>
    %571 = arith.addf %570, %560 : vector<2x64xf32>
    %572 = vector.broadcast %567 : vector<2x1xf32> to vector<2x32xf32>
    %573 = arith.mulf %572, %5 : vector<2x32xf32>
    %574 = arith.addf %573, %11 : vector<2x32xf32>
    %575 = arith.negf %571 : vector<2x64xf32>
    %576 = math.exp %575 : vector<2x64xf32>
    %cst_121 = arith.constant 1.000000e+00 : f32
    %577 = vector.broadcast %cst_121 : f32 to vector<2x64xf32>
    %578 = arith.addf %577, %576 : vector<2x64xf32>
    %579 = arith.divf %577, %578 : vector<2x64xf32>
    %580 = vector.extract_strided_slice %579 {offsets = [0, 0], sizes = [2, 32], strides = [1, 1]} : vector<2x64xf32> to vector<2x32xf32>
    %581 = vector.extract_strided_slice %579 {offsets = [0, 32], sizes = [2, 32], strides = [1, 1]} : vector<2x64xf32> to vector<2x32xf32>
    %582 = arith.mulf %580, %563 : vector<2x32xf32>
    %583 = arith.addf %574, %582 : vector<2x32xf32>
    %584 = math.tanh %583 : vector<2x32xf32>
    %585 = arith.subf %539, %584 : vector<2x32xf32>
    %586 = arith.mulf %581, %585 : vector<2x32xf32>
    %587 = arith.addf %584, %586 : vector<2x32xf32>
    %588 = tpu.concatenate %587, %559 in 1 : vector<2x32xf32>, vector<2x32xf32> -> vector<2x64xf32>
    %cst_122 = arith.constant dense<0.000000e+00> : vector<2x64xf32>
    %589 = tpu.matmul %588, %15, %cst_122 {dimension_numbers = #tpu.dot_dimension_numbers<[1], [0], [0], [1], [0, 0, 1, 1], [], []>} : vector<2x64xf32>, vector<64x64xf32>, vector<2x64xf32> -> vector<2x64xf32>
    %590 = vector.broadcast %18 : vector<1x64xf32> to vector<2x64xf32>
    %591 = arith.addf %589, %590 : vector<2x64xf32>
    %cst_123 = arith.constant dense<0.000000e+00> : vector<2x32xf32>
    %592 = tpu.matmul %587, %16, %cst_123 {dimension_numbers = #tpu.dot_dimension_numbers<[1], [0], [0], [1], [0, 0, 1, 1], [], []>} : vector<2x32xf32>, vector<32x32xf32>, vector<2x32xf32> -> vector<2x32xf32>
    %593 = vector.broadcast %19 : vector<1x32xf32> to vector<2x32xf32>
    %594 = arith.addf %592, %593 : vector<2x32xf32>
    %595 = arith.negf %591 : vector<2x64xf32>
    %596 = math.exp %595 : vector<2x64xf32>
    %cst_124 = arith.constant 1.000000e+00 : f32
    %597 = vector.broadcast %cst_124 : f32 to vector<2x64xf32>
    %598 = arith.addf %597, %596 : vector<2x64xf32>
    %599 = arith.divf %597, %598 : vector<2x64xf32>
    %600 = vector.extract_strided_slice %599 {offsets = [0, 0], sizes = [2, 32], strides = [1, 1]} : vector<2x64xf32> to vector<2x32xf32>
    %601 = vector.extract_strided_slice %599 {offsets = [0, 32], sizes = [2, 32], strides = [1, 1]} : vector<2x64xf32> to vector<2x32xf32>
    %602 = arith.mulf %600, %566 : vector<2x32xf32>
    %603 = arith.addf %594, %602 : vector<2x32xf32>
    %604 = math.tanh %603 : vector<2x32xf32>
    %605 = arith.subf %559, %604 : vector<2x32xf32>
    %606 = arith.mulf %601, %605 : vector<2x32xf32>
    %607 = arith.addf %604, %606 : vector<2x32xf32>
    %cst_125 = arith.constant dense<0.000000e+00> : vector<2x64xf32>
    %608 = tpu.matmul %587, %12, %cst_125 {dimension_numbers = #tpu.dot_dimension_numbers<[1], [0], [0], [1], [0, 0, 1, 1], [], []>} : vector<2x32xf32>, vector<32x64xf32>, vector<2x64xf32> -> vector<2x64xf32>
    %cst_126 = arith.constant dense<0.000000e+00> : vector<2x32xf32>
    %609 = tpu.matmul %587, %13, %cst_126 {dimension_numbers = #tpu.dot_dimension_numbers<[1], [0], [0], [1], [0, 0, 1, 1], [], []>} : vector<2x32xf32>, vector<32x32xf32>, vector<2x32xf32> -> vector<2x32xf32>
    %610 = vector.broadcast %14 : vector<1x32xf32> to vector<2x32xf32>
    %611 = arith.addf %609, %610 : vector<2x32xf32>
    %cst_127 = arith.constant dense<0.000000e+00> : vector<2x32xf32>
    %612 = tpu.matmul %607, %17, %cst_127 {dimension_numbers = #tpu.dot_dimension_numbers<[1], [0], [0], [1], [0, 0, 1, 1], [], []>} : vector<2x32xf32>, vector<32x32xf32>, vector<2x32xf32> -> vector<2x32xf32>
    %613 = vector.broadcast %20 : vector<1x32xf32> to vector<2x32xf32>
    %614 = arith.addf %612, %613 : vector<2x32xf32>
    %615 = vector.extract_strided_slice %415 {offsets = [0, 4], sizes = [2, 1], strides = [1, 1]} : vector<2x8xf32> to vector<2x1xf32>
    %616 = vector.broadcast %615 : vector<2x1xf32> to vector<2x64xf32>
    %617 = arith.mulf %616, %2 : vector<2x64xf32>
    %618 = arith.addf %617, %8 : vector<2x64xf32>
    %619 = arith.addf %618, %608 : vector<2x64xf32>
    %620 = vector.broadcast %615 : vector<2x1xf32> to vector<2x32xf32>
    %621 = arith.mulf %620, %5 : vector<2x32xf32>
    %622 = arith.addf %621, %11 : vector<2x32xf32>
    %623 = arith.negf %619 : vector<2x64xf32>
    %624 = math.exp %623 : vector<2x64xf32>
    %cst_128 = arith.constant 1.000000e+00 : f32
    %625 = vector.broadcast %cst_128 : f32 to vector<2x64xf32>
    %626 = arith.addf %625, %624 : vector<2x64xf32>
    %627 = arith.divf %625, %626 : vector<2x64xf32>
    %628 = vector.extract_strided_slice %627 {offsets = [0, 0], sizes = [2, 32], strides = [1, 1]} : vector<2x64xf32> to vector<2x32xf32>
    %629 = vector.extract_strided_slice %627 {offsets = [0, 32], sizes = [2, 32], strides = [1, 1]} : vector<2x64xf32> to vector<2x32xf32>
    %630 = arith.mulf %628, %611 : vector<2x32xf32>
    %631 = arith.addf %622, %630 : vector<2x32xf32>
    %632 = math.tanh %631 : vector<2x32xf32>
    %633 = arith.subf %587, %632 : vector<2x32xf32>
    %634 = arith.mulf %629, %633 : vector<2x32xf32>
    %635 = arith.addf %632, %634 : vector<2x32xf32>
    %636 = tpu.concatenate %635, %607 in 1 : vector<2x32xf32>, vector<2x32xf32> -> vector<2x64xf32>
    %cst_129 = arith.constant dense<0.000000e+00> : vector<2x64xf32>
    %637 = tpu.matmul %636, %15, %cst_129 {dimension_numbers = #tpu.dot_dimension_numbers<[1], [0], [0], [1], [0, 0, 1, 1], [], []>} : vector<2x64xf32>, vector<64x64xf32>, vector<2x64xf32> -> vector<2x64xf32>
    %638 = vector.broadcast %18 : vector<1x64xf32> to vector<2x64xf32>
    %639 = arith.addf %637, %638 : vector<2x64xf32>
    %cst_130 = arith.constant dense<0.000000e+00> : vector<2x32xf32>
    %640 = tpu.matmul %635, %16, %cst_130 {dimension_numbers = #tpu.dot_dimension_numbers<[1], [0], [0], [1], [0, 0, 1, 1], [], []>} : vector<2x32xf32>, vector<32x32xf32>, vector<2x32xf32> -> vector<2x32xf32>
    %641 = vector.broadcast %19 : vector<1x32xf32> to vector<2x32xf32>
    %642 = arith.addf %640, %641 : vector<2x32xf32>
    %643 = arith.negf %639 : vector<2x64xf32>
    %644 = math.exp %643 : vector<2x64xf32>
    %cst_131 = arith.constant 1.000000e+00 : f32
    %645 = vector.broadcast %cst_131 : f32 to vector<2x64xf32>
    %646 = arith.addf %645, %644 : vector<2x64xf32>
    %647 = arith.divf %645, %646 : vector<2x64xf32>
    %648 = vector.extract_strided_slice %647 {offsets = [0, 0], sizes = [2, 32], strides = [1, 1]} : vector<2x64xf32> to vector<2x32xf32>
    %649 = vector.extract_strided_slice %647 {offsets = [0, 32], sizes = [2, 32], strides = [1, 1]} : vector<2x64xf32> to vector<2x32xf32>
    %650 = arith.mulf %648, %614 : vector<2x32xf32>
    %651 = arith.addf %642, %650 : vector<2x32xf32>
    %652 = math.tanh %651 : vector<2x32xf32>
    %653 = arith.subf %607, %652 : vector<2x32xf32>
    %654 = arith.mulf %649, %653 : vector<2x32xf32>
    %655 = arith.addf %652, %654 : vector<2x32xf32>
    %cst_132 = arith.constant dense<0.000000e+00> : vector<2x64xf32>
    %656 = tpu.matmul %635, %12, %cst_132 {dimension_numbers = #tpu.dot_dimension_numbers<[1], [0], [0], [1], [0, 0, 1, 1], [], []>} : vector<2x32xf32>, vector<32x64xf32>, vector<2x64xf32> -> vector<2x64xf32>
    %cst_133 = arith.constant dense<0.000000e+00> : vector<2x32xf32>
    %657 = tpu.matmul %635, %13, %cst_133 {dimension_numbers = #tpu.dot_dimension_numbers<[1], [0], [0], [1], [0, 0, 1, 1], [], []>} : vector<2x32xf32>, vector<32x32xf32>, vector<2x32xf32> -> vector<2x32xf32>
    %658 = vector.broadcast %14 : vector<1x32xf32> to vector<2x32xf32>
    %659 = arith.addf %657, %658 : vector<2x32xf32>
    %cst_134 = arith.constant dense<0.000000e+00> : vector<2x32xf32>
    %660 = tpu.matmul %655, %17, %cst_134 {dimension_numbers = #tpu.dot_dimension_numbers<[1], [0], [0], [1], [0, 0, 1, 1], [], []>} : vector<2x32xf32>, vector<32x32xf32>, vector<2x32xf32> -> vector<2x32xf32>
    %661 = vector.broadcast %20 : vector<1x32xf32> to vector<2x32xf32>
    %662 = arith.addf %660, %661 : vector<2x32xf32>
    %663 = vector.extract_strided_slice %415 {offsets = [0, 5], sizes = [2, 1], strides = [1, 1]} : vector<2x8xf32> to vector<2x1xf32>
    %664 = vector.broadcast %663 : vector<2x1xf32> to vector<2x64xf32>
    %665 = arith.mulf %664, %2 : vector<2x64xf32>
    %666 = arith.addf %665, %8 : vector<2x64xf32>
    %667 = arith.addf %666, %656 : vector<2x64xf32>
    %668 = vector.broadcast %663 : vector<2x1xf32> to vector<2x32xf32>
    %669 = arith.mulf %668, %5 : vector<2x32xf32>
    %670 = arith.addf %669, %11 : vector<2x32xf32>
    %671 = arith.negf %667 : vector<2x64xf32>
    %672 = math.exp %671 : vector<2x64xf32>
    %cst_135 = arith.constant 1.000000e+00 : f32
    %673 = vector.broadcast %cst_135 : f32 to vector<2x64xf32>
    %674 = arith.addf %673, %672 : vector<2x64xf32>
    %675 = arith.divf %673, %674 : vector<2x64xf32>
    %676 = vector.extract_strided_slice %675 {offsets = [0, 0], sizes = [2, 32], strides = [1, 1]} : vector<2x64xf32> to vector<2x32xf32>
    %677 = vector.extract_strided_slice %675 {offsets = [0, 32], sizes = [2, 32], strides = [1, 1]} : vector<2x64xf32> to vector<2x32xf32>
    %678 = arith.mulf %676, %659 : vector<2x32xf32>
    %679 = arith.addf %670, %678 : vector<2x32xf32>
    %680 = math.tanh %679 : vector<2x32xf32>
    %681 = arith.subf %635, %680 : vector<2x32xf32>
    %682 = arith.mulf %677, %681 : vector<2x32xf32>
    %683 = arith.addf %680, %682 : vector<2x32xf32>
    %684 = tpu.concatenate %683, %655 in 1 : vector<2x32xf32>, vector<2x32xf32> -> vector<2x64xf32>
    %cst_136 = arith.constant dense<0.000000e+00> : vector<2x64xf32>
    %685 = tpu.matmul %684, %15, %cst_136 {dimension_numbers = #tpu.dot_dimension_numbers<[1], [0], [0], [1], [0, 0, 1, 1], [], []>} : vector<2x64xf32>, vector<64x64xf32>, vector<2x64xf32> -> vector<2x64xf32>
    %686 = vector.broadcast %18 : vector<1x64xf32> to vector<2x64xf32>
    %687 = arith.addf %685, %686 : vector<2x64xf32>
    %cst_137 = arith.constant dense<0.000000e+00> : vector<2x32xf32>
    %688 = tpu.matmul %683, %16, %cst_137 {dimension_numbers = #tpu.dot_dimension_numbers<[1], [0], [0], [1], [0, 0, 1, 1], [], []>} : vector<2x32xf32>, vector<32x32xf32>, vector<2x32xf32> -> vector<2x32xf32>
    %689 = vector.broadcast %19 : vector<1x32xf32> to vector<2x32xf32>
    %690 = arith.addf %688, %689 : vector<2x32xf32>
    %691 = arith.negf %687 : vector<2x64xf32>
    %692 = math.exp %691 : vector<2x64xf32>
    %cst_138 = arith.constant 1.000000e+00 : f32
    %693 = vector.broadcast %cst_138 : f32 to vector<2x64xf32>
    %694 = arith.addf %693, %692 : vector<2x64xf32>
    %695 = arith.divf %693, %694 : vector<2x64xf32>
    %696 = vector.extract_strided_slice %695 {offsets = [0, 0], sizes = [2, 32], strides = [1, 1]} : vector<2x64xf32> to vector<2x32xf32>
    %697 = vector.extract_strided_slice %695 {offsets = [0, 32], sizes = [2, 32], strides = [1, 1]} : vector<2x64xf32> to vector<2x32xf32>
    %698 = arith.mulf %696, %662 : vector<2x32xf32>
    %699 = arith.addf %690, %698 : vector<2x32xf32>
    %700 = math.tanh %699 : vector<2x32xf32>
    %701 = arith.subf %655, %700 : vector<2x32xf32>
    %702 = arith.mulf %697, %701 : vector<2x32xf32>
    %703 = arith.addf %700, %702 : vector<2x32xf32>
    %cst_139 = arith.constant dense<0.000000e+00> : vector<2x64xf32>
    %704 = tpu.matmul %683, %12, %cst_139 {dimension_numbers = #tpu.dot_dimension_numbers<[1], [0], [0], [1], [0, 0, 1, 1], [], []>} : vector<2x32xf32>, vector<32x64xf32>, vector<2x64xf32> -> vector<2x64xf32>
    %cst_140 = arith.constant dense<0.000000e+00> : vector<2x32xf32>
    %705 = tpu.matmul %683, %13, %cst_140 {dimension_numbers = #tpu.dot_dimension_numbers<[1], [0], [0], [1], [0, 0, 1, 1], [], []>} : vector<2x32xf32>, vector<32x32xf32>, vector<2x32xf32> -> vector<2x32xf32>
    %706 = vector.broadcast %14 : vector<1x32xf32> to vector<2x32xf32>
    %707 = arith.addf %705, %706 : vector<2x32xf32>
    %cst_141 = arith.constant dense<0.000000e+00> : vector<2x32xf32>
    %708 = tpu.matmul %703, %17, %cst_141 {dimension_numbers = #tpu.dot_dimension_numbers<[1], [0], [0], [1], [0, 0, 1, 1], [], []>} : vector<2x32xf32>, vector<32x32xf32>, vector<2x32xf32> -> vector<2x32xf32>
    %709 = vector.broadcast %20 : vector<1x32xf32> to vector<2x32xf32>
    %710 = arith.addf %708, %709 : vector<2x32xf32>
    %711 = vector.extract_strided_slice %415 {offsets = [0, 6], sizes = [2, 1], strides = [1, 1]} : vector<2x8xf32> to vector<2x1xf32>
    %712 = vector.broadcast %711 : vector<2x1xf32> to vector<2x64xf32>
    %713 = arith.mulf %712, %2 : vector<2x64xf32>
    %714 = arith.addf %713, %8 : vector<2x64xf32>
    %715 = arith.addf %714, %704 : vector<2x64xf32>
    %716 = vector.broadcast %711 : vector<2x1xf32> to vector<2x32xf32>
    %717 = arith.mulf %716, %5 : vector<2x32xf32>
    %718 = arith.addf %717, %11 : vector<2x32xf32>
    %719 = arith.negf %715 : vector<2x64xf32>
    %720 = math.exp %719 : vector<2x64xf32>
    %cst_142 = arith.constant 1.000000e+00 : f32
    %721 = vector.broadcast %cst_142 : f32 to vector<2x64xf32>
    %722 = arith.addf %721, %720 : vector<2x64xf32>
    %723 = arith.divf %721, %722 : vector<2x64xf32>
    %724 = vector.extract_strided_slice %723 {offsets = [0, 0], sizes = [2, 32], strides = [1, 1]} : vector<2x64xf32> to vector<2x32xf32>
    %725 = vector.extract_strided_slice %723 {offsets = [0, 32], sizes = [2, 32], strides = [1, 1]} : vector<2x64xf32> to vector<2x32xf32>
    %726 = arith.mulf %724, %707 : vector<2x32xf32>
    %727 = arith.addf %718, %726 : vector<2x32xf32>
    %728 = math.tanh %727 : vector<2x32xf32>
    %729 = arith.subf %683, %728 : vector<2x32xf32>
    %730 = arith.mulf %725, %729 : vector<2x32xf32>
    %731 = arith.addf %728, %730 : vector<2x32xf32>
    %732 = tpu.concatenate %731, %703 in 1 : vector<2x32xf32>, vector<2x32xf32> -> vector<2x64xf32>
    %cst_143 = arith.constant dense<0.000000e+00> : vector<2x64xf32>
    %733 = tpu.matmul %732, %15, %cst_143 {dimension_numbers = #tpu.dot_dimension_numbers<[1], [0], [0], [1], [0, 0, 1, 1], [], []>} : vector<2x64xf32>, vector<64x64xf32>, vector<2x64xf32> -> vector<2x64xf32>
    %734 = vector.broadcast %18 : vector<1x64xf32> to vector<2x64xf32>
    %735 = arith.addf %733, %734 : vector<2x64xf32>
    %cst_144 = arith.constant dense<0.000000e+00> : vector<2x32xf32>
    %736 = tpu.matmul %731, %16, %cst_144 {dimension_numbers = #tpu.dot_dimension_numbers<[1], [0], [0], [1], [0, 0, 1, 1], [], []>} : vector<2x32xf32>, vector<32x32xf32>, vector<2x32xf32> -> vector<2x32xf32>
    %737 = vector.broadcast %19 : vector<1x32xf32> to vector<2x32xf32>
    %738 = arith.addf %736, %737 : vector<2x32xf32>
    %739 = arith.negf %735 : vector<2x64xf32>
    %740 = math.exp %739 : vector<2x64xf32>
    %cst_145 = arith.constant 1.000000e+00 : f32
    %741 = vector.broadcast %cst_145 : f32 to vector<2x64xf32>
    %742 = arith.addf %741, %740 : vector<2x64xf32>
    %743 = arith.divf %741, %742 : vector<2x64xf32>
    %744 = vector.extract_strided_slice %743 {offsets = [0, 0], sizes = [2, 32], strides = [1, 1]} : vector<2x64xf32> to vector<2x32xf32>
    %745 = vector.extract_strided_slice %743 {offsets = [0, 32], sizes = [2, 32], strides = [1, 1]} : vector<2x64xf32> to vector<2x32xf32>
    %746 = arith.mulf %744, %710 : vector<2x32xf32>
    %747 = arith.addf %738, %746 : vector<2x32xf32>
    %748 = math.tanh %747 : vector<2x32xf32>
    %749 = arith.subf %703, %748 : vector<2x32xf32>
    %750 = arith.mulf %745, %749 : vector<2x32xf32>
    %751 = arith.addf %748, %750 : vector<2x32xf32>
    %cst_146 = arith.constant dense<0.000000e+00> : vector<2x64xf32>
    %752 = tpu.matmul %731, %12, %cst_146 {dimension_numbers = #tpu.dot_dimension_numbers<[1], [0], [0], [1], [0, 0, 1, 1], [], []>} : vector<2x32xf32>, vector<32x64xf32>, vector<2x64xf32> -> vector<2x64xf32>
    %cst_147 = arith.constant dense<0.000000e+00> : vector<2x32xf32>
    %753 = tpu.matmul %731, %13, %cst_147 {dimension_numbers = #tpu.dot_dimension_numbers<[1], [0], [0], [1], [0, 0, 1, 1], [], []>} : vector<2x32xf32>, vector<32x32xf32>, vector<2x32xf32> -> vector<2x32xf32>
    %754 = vector.broadcast %14 : vector<1x32xf32> to vector<2x32xf32>
    %755 = arith.addf %753, %754 : vector<2x32xf32>
    %cst_148 = arith.constant dense<0.000000e+00> : vector<2x32xf32>
    %756 = tpu.matmul %751, %17, %cst_148 {dimension_numbers = #tpu.dot_dimension_numbers<[1], [0], [0], [1], [0, 0, 1, 1], [], []>} : vector<2x32xf32>, vector<32x32xf32>, vector<2x32xf32> -> vector<2x32xf32>
    %757 = vector.broadcast %20 : vector<1x32xf32> to vector<2x32xf32>
    %758 = arith.addf %756, %757 : vector<2x32xf32>
    %759 = vector.extract_strided_slice %415 {offsets = [0, 7], sizes = [2, 1], strides = [1, 1]} : vector<2x8xf32> to vector<2x1xf32>
    %760 = vector.broadcast %759 : vector<2x1xf32> to vector<2x64xf32>
    %761 = arith.mulf %760, %2 : vector<2x64xf32>
    %762 = arith.addf %761, %8 : vector<2x64xf32>
    %763 = arith.addf %762, %752 : vector<2x64xf32>
    %764 = vector.broadcast %759 : vector<2x1xf32> to vector<2x32xf32>
    %765 = arith.mulf %764, %5 : vector<2x32xf32>
    %766 = arith.addf %765, %11 : vector<2x32xf32>
    %767 = arith.negf %763 : vector<2x64xf32>
    %768 = math.exp %767 : vector<2x64xf32>
    %cst_149 = arith.constant 1.000000e+00 : f32
    %769 = vector.broadcast %cst_149 : f32 to vector<2x64xf32>
    %770 = arith.addf %769, %768 : vector<2x64xf32>
    %771 = arith.divf %769, %770 : vector<2x64xf32>
    %772 = vector.extract_strided_slice %771 {offsets = [0, 0], sizes = [2, 32], strides = [1, 1]} : vector<2x64xf32> to vector<2x32xf32>
    %773 = vector.extract_strided_slice %771 {offsets = [0, 32], sizes = [2, 32], strides = [1, 1]} : vector<2x64xf32> to vector<2x32xf32>
    %774 = arith.mulf %772, %755 : vector<2x32xf32>
    %775 = arith.addf %766, %774 : vector<2x32xf32>
    %776 = math.tanh %775 : vector<2x32xf32>
    %777 = arith.subf %731, %776 : vector<2x32xf32>
    %778 = arith.mulf %773, %777 : vector<2x32xf32>
    %779 = arith.addf %776, %778 : vector<2x32xf32>
    %780 = tpu.concatenate %779, %751 in 1 : vector<2x32xf32>, vector<2x32xf32> -> vector<2x64xf32>
    %cst_150 = arith.constant dense<0.000000e+00> : vector<2x64xf32>
    %781 = tpu.matmul %780, %15, %cst_150 {dimension_numbers = #tpu.dot_dimension_numbers<[1], [0], [0], [1], [0, 0, 1, 1], [], []>} : vector<2x64xf32>, vector<64x64xf32>, vector<2x64xf32> -> vector<2x64xf32>
    %782 = vector.broadcast %18 : vector<1x64xf32> to vector<2x64xf32>
    %783 = arith.addf %781, %782 : vector<2x64xf32>
    %cst_151 = arith.constant dense<0.000000e+00> : vector<2x32xf32>
    %784 = tpu.matmul %779, %16, %cst_151 {dimension_numbers = #tpu.dot_dimension_numbers<[1], [0], [0], [1], [0, 0, 1, 1], [], []>} : vector<2x32xf32>, vector<32x32xf32>, vector<2x32xf32> -> vector<2x32xf32>
    %785 = vector.broadcast %19 : vector<1x32xf32> to vector<2x32xf32>
    %786 = arith.addf %784, %785 : vector<2x32xf32>
    %787 = arith.negf %783 : vector<2x64xf32>
    %788 = math.exp %787 : vector<2x64xf32>
    %cst_152 = arith.constant 1.000000e+00 : f32
    %789 = vector.broadcast %cst_152 : f32 to vector<2x64xf32>
    %790 = arith.addf %789, %788 : vector<2x64xf32>
    %791 = arith.divf %789, %790 : vector<2x64xf32>
    %792 = vector.extract_strided_slice %791 {offsets = [0, 0], sizes = [2, 32], strides = [1, 1]} : vector<2x64xf32> to vector<2x32xf32>
    %793 = vector.extract_strided_slice %791 {offsets = [0, 32], sizes = [2, 32], strides = [1, 1]} : vector<2x64xf32> to vector<2x32xf32>
    %794 = arith.mulf %792, %758 : vector<2x32xf32>
    %795 = arith.addf %786, %794 : vector<2x32xf32>
    %796 = math.tanh %795 : vector<2x32xf32>
    %797 = arith.subf %751, %796 : vector<2x32xf32>
    %798 = arith.mulf %793, %797 : vector<2x32xf32>
    %799 = arith.addf %796, %798 : vector<2x32xf32>
    %c2 = arith.constant 2 : index
    %c0_153 = arith.constant 0 : index
    %800 = vector.load %arg19[%c2, %c0_153] : memref<6x32xf32, #tpu.memory_space<vmem>>, vector<2x32xf32>
    tpu.vector_store %arg19[%c2, %c0_153], %799 {strides = array<i32>} : memref<6x32xf32, #tpu.memory_space<vmem>>, vector<2x32xf32>,
    %c2_154 = arith.constant 2 : index
    %c0_155 = arith.constant 0 : index
    %c0_156 = arith.constant 0 : index
    %801 = vector.load %arg0[%c2_154, %c0_155, %c0_156] : memref<3x2x8xf32, #tpu.memory_space<vmem>>, vector<1x2x8xf32>
    %802 = vector.shape_cast %801 : vector<1x2x8xf32> to vector<2x8xf32>
    %cst_157 = arith.constant dense<0.000000e+00> : vector<2x64xf32>
    %803 = tpu.matmul %779, %12, %cst_157 {dimension_numbers = #tpu.dot_dimension_numbers<[1], [0], [0], [1], [0, 0, 1, 1], [], []>} : vector<2x32xf32>, vector<32x64xf32>, vector<2x64xf32> -> vector<2x64xf32>
    %cst_158 = arith.constant dense<0.000000e+00> : vector<2x32xf32>
    %804 = tpu.matmul %779, %13, %cst_158 {dimension_numbers = #tpu.dot_dimension_numbers<[1], [0], [0], [1], [0, 0, 1, 1], [], []>} : vector<2x32xf32>, vector<32x32xf32>, vector<2x32xf32> -> vector<2x32xf32>
    %805 = vector.broadcast %14 : vector<1x32xf32> to vector<2x32xf32>
    %806 = arith.addf %804, %805 : vector<2x32xf32>
    %cst_159 = arith.constant dense<0.000000e+00> : vector<2x32xf32>
    %807 = tpu.matmul %799, %17, %cst_159 {dimension_numbers = #tpu.dot_dimension_numbers<[1], [0], [0], [1], [0, 0, 1, 1], [], []>} : vector<2x32xf32>, vector<32x32xf32>, vector<2x32xf32> -> vector<2x32xf32>
    %808 = vector.broadcast %20 : vector<1x32xf32> to vector<2x32xf32>
    %809 = arith.addf %807, %808 : vector<2x32xf32>
    %810 = vector.extract_strided_slice %802 {offsets = [0, 0], sizes = [2, 1], strides = [1, 1]} : vector<2x8xf32> to vector<2x1xf32>
    %811 = vector.broadcast %810 : vector<2x1xf32> to vector<2x64xf32>
    %812 = arith.mulf %811, %2 : vector<2x64xf32>
    %813 = arith.addf %812, %8 : vector<2x64xf32>
    %814 = arith.addf %813, %803 : vector<2x64xf32>
    %815 = vector.broadcast %810 : vector<2x1xf32> to vector<2x32xf32>
    %816 = arith.mulf %815, %5 : vector<2x32xf32>
    %817 = arith.addf %816, %11 : vector<2x32xf32>
    %818 = arith.negf %814 : vector<2x64xf32>
    %819 = math.exp %818 : vector<2x64xf32>
    %cst_160 = arith.constant 1.000000e+00 : f32
    %820 = vector.broadcast %cst_160 : f32 to vector<2x64xf32>
    %821 = arith.addf %820, %819 : vector<2x64xf32>
    %822 = arith.divf %820, %821 : vector<2x64xf32>
    %823 = vector.extract_strided_slice %822 {offsets = [0, 0], sizes = [2, 32], strides = [1, 1]} : vector<2x64xf32> to vector<2x32xf32>
    %824 = vector.extract_strided_slice %822 {offsets = [0, 32], sizes = [2, 32], strides = [1, 1]} : vector<2x64xf32> to vector<2x32xf32>
    %825 = arith.mulf %823, %806 : vector<2x32xf32>
    %826 = arith.addf %817, %825 : vector<2x32xf32>
    %827 = math.tanh %826 : vector<2x32xf32>
    %828 = arith.subf %779, %827 : vector<2x32xf32>
    %829 = arith.mulf %824, %828 : vector<2x32xf32>
    %830 = arith.addf %827, %829 : vector<2x32xf32>
    %831 = tpu.concatenate %830, %799 in 1 : vector<2x32xf32>, vector<2x32xf32> -> vector<2x64xf32>
    %cst_161 = arith.constant dense<0.000000e+00> : vector<2x64xf32>
    %832 = tpu.matmul %831, %15, %cst_161 {dimension_numbers = #tpu.dot_dimension_numbers<[1], [0], [0], [1], [0, 0, 1, 1], [], []>} : vector<2x64xf32>, vector<64x64xf32>, vector<2x64xf32> -> vector<2x64xf32>
    %833 = vector.broadcast %18 : vector<1x64xf32> to vector<2x64xf32>
    %834 = arith.addf %832, %833 : vector<2x64xf32>
    %cst_162 = arith.constant dense<0.000000e+00> : vector<2x32xf32>
    %835 = tpu.matmul %830, %16, %cst_162 {dimension_numbers = #tpu.dot_dimension_numbers<[1], [0], [0], [1], [0, 0, 1, 1], [], []>} : vector<2x32xf32>, vector<32x32xf32>, vector<2x32xf32> -> vector<2x32xf32>
    %836 = vector.broadcast %19 : vector<1x32xf32> to vector<2x32xf32>
    %837 = arith.addf %835, %836 : vector<2x32xf32>
    %838 = arith.negf %834 : vector<2x64xf32>
    %839 = math.exp %838 : vector<2x64xf32>
    %cst_163 = arith.constant 1.000000e+00 : f32
    %840 = vector.broadcast %cst_163 : f32 to vector<2x64xf32>
    %841 = arith.addf %840, %839 : vector<2x64xf32>
    %842 = arith.divf %840, %841 : vector<2x64xf32>
    %843 = vector.extract_strided_slice %842 {offsets = [0, 0], sizes = [2, 32], strides = [1, 1]} : vector<2x64xf32> to vector<2x32xf32>
    %844 = vector.extract_strided_slice %842 {offsets = [0, 32], sizes = [2, 32], strides = [1, 1]} : vector<2x64xf32> to vector<2x32xf32>
    %845 = arith.mulf %843, %809 : vector<2x32xf32>
    %846 = arith.addf %837, %845 : vector<2x32xf32>
    %847 = math.tanh %846 : vector<2x32xf32>
    %848 = arith.subf %799, %847 : vector<2x32xf32>
    %849 = arith.mulf %844, %848 : vector<2x32xf32>
    %850 = arith.addf %847, %849 : vector<2x32xf32>
    %cst_164 = arith.constant dense<0.000000e+00> : vector<2x64xf32>
    %851 = tpu.matmul %830, %12, %cst_164 {dimension_numbers = #tpu.dot_dimension_numbers<[1], [0], [0], [1], [0, 0, 1, 1], [], []>} : vector<2x32xf32>, vector<32x64xf32>, vector<2x64xf32> -> vector<2x64xf32>
    %cst_165 = arith.constant dense<0.000000e+00> : vector<2x32xf32>
    %852 = tpu.matmul %830, %13, %cst_165 {dimension_numbers = #tpu.dot_dimension_numbers<[1], [0], [0], [1], [0, 0, 1, 1], [], []>} : vector<2x32xf32>, vector<32x32xf32>, vector<2x32xf32> -> vector<2x32xf32>
    %853 = vector.broadcast %14 : vector<1x32xf32> to vector<2x32xf32>
    %854 = arith.addf %852, %853 : vector<2x32xf32>
    %cst_166 = arith.constant dense<0.000000e+00> : vector<2x32xf32>
    %855 = tpu.matmul %850, %17, %cst_166 {dimension_numbers = #tpu.dot_dimension_numbers<[1], [0], [0], [1], [0, 0, 1, 1], [], []>} : vector<2x32xf32>, vector<32x32xf32>, vector<2x32xf32> -> vector<2x32xf32>
    %856 = vector.broadcast %20 : vector<1x32xf32> to vector<2x32xf32>
    %857 = arith.addf %855, %856 : vector<2x32xf32>
    %858 = vector.extract_strided_slice %802 {offsets = [0, 1], sizes = [2, 1], strides = [1, 1]} : vector<2x8xf32> to vector<2x1xf32>
    %859 = vector.broadcast %858 : vector<2x1xf32> to vector<2x64xf32>
    %860 = arith.mulf %859, %2 : vector<2x64xf32>
    %861 = arith.addf %860, %8 : vector<2x64xf32>
    %862 = arith.addf %861, %851 : vector<2x64xf32>
    %863 = vector.broadcast %858 : vector<2x1xf32> to vector<2x32xf32>
    %864 = arith.mulf %863, %5 : vector<2x32xf32>
    %865 = arith.addf %864, %11 : vector<2x32xf32>
    %866 = arith.negf %862 : vector<2x64xf32>
    %867 = math.exp %866 : vector<2x64xf32>
    %cst_167 = arith.constant 1.000000e+00 : f32
    %868 = vector.broadcast %cst_167 : f32 to vector<2x64xf32>
    %869 = arith.addf %868, %867 : vector<2x64xf32>
    %870 = arith.divf %868, %869 : vector<2x64xf32>
    %871 = vector.extract_strided_slice %870 {offsets = [0, 0], sizes = [2, 32], strides = [1, 1]} : vector<2x64xf32> to vector<2x32xf32>
    %872 = vector.extract_strided_slice %870 {offsets = [0, 32], sizes = [2, 32], strides = [1, 1]} : vector<2x64xf32> to vector<2x32xf32>
    %873 = arith.mulf %871, %854 : vector<2x32xf32>
    %874 = arith.addf %865, %873 : vector<2x32xf32>
    %875 = math.tanh %874 : vector<2x32xf32>
    %876 = arith.subf %830, %875 : vector<2x32xf32>
    %877 = arith.mulf %872, %876 : vector<2x32xf32>
    %878 = arith.addf %875, %877 : vector<2x32xf32>
    %879 = tpu.concatenate %878, %850 in 1 : vector<2x32xf32>, vector<2x32xf32> -> vector<2x64xf32>
    %cst_168 = arith.constant dense<0.000000e+00> : vector<2x64xf32>
    %880 = tpu.matmul %879, %15, %cst_168 {dimension_numbers = #tpu.dot_dimension_numbers<[1], [0], [0], [1], [0, 0, 1, 1], [], []>} : vector<2x64xf32>, vector<64x64xf32>, vector<2x64xf32> -> vector<2x64xf32>
    %881 = vector.broadcast %18 : vector<1x64xf32> to vector<2x64xf32>
    %882 = arith.addf %880, %881 : vector<2x64xf32>
    %cst_169 = arith.constant dense<0.000000e+00> : vector<2x32xf32>
    %883 = tpu.matmul %878, %16, %cst_169 {dimension_numbers = #tpu.dot_dimension_numbers<[1], [0], [0], [1], [0, 0, 1, 1], [], []>} : vector<2x32xf32>, vector<32x32xf32>, vector<2x32xf32> -> vector<2x32xf32>
    %884 = vector.broadcast %19 : vector<1x32xf32> to vector<2x32xf32>
    %885 = arith.addf %883, %884 : vector<2x32xf32>
    %886 = arith.negf %882 : vector<2x64xf32>
    %887 = math.exp %886 : vector<2x64xf32>
    %cst_170 = arith.constant 1.000000e+00 : f32
    %888 = vector.broadcast %cst_170 : f32 to vector<2x64xf32>
    %889 = arith.addf %888, %887 : vector<2x64xf32>
    %890 = arith.divf %888, %889 : vector<2x64xf32>
    %891 = vector.extract_strided_slice %890 {offsets = [0, 0], sizes = [2, 32], strides = [1, 1]} : vector<2x64xf32> to vector<2x32xf32>
    %892 = vector.extract_strided_slice %890 {offsets = [0, 32], sizes = [2, 32], strides = [1, 1]} : vector<2x64xf32> to vector<2x32xf32>
    %893 = arith.mulf %891, %857 : vector<2x32xf32>
    %894 = arith.addf %885, %893 : vector<2x32xf32>
    %895 = math.tanh %894 : vector<2x32xf32>
    %896 = arith.subf %850, %895 : vector<2x32xf32>
    %897 = arith.mulf %892, %896 : vector<2x32xf32>
    %898 = arith.addf %895, %897 : vector<2x32xf32>
    %cst_171 = arith.constant dense<0.000000e+00> : vector<2x64xf32>
    %899 = tpu.matmul %878, %12, %cst_171 {dimension_numbers = #tpu.dot_dimension_numbers<[1], [0], [0], [1], [0, 0, 1, 1], [], []>} : vector<2x32xf32>, vector<32x64xf32>, vector<2x64xf32> -> vector<2x64xf32>
    %cst_172 = arith.constant dense<0.000000e+00> : vector<2x32xf32>
    %900 = tpu.matmul %878, %13, %cst_172 {dimension_numbers = #tpu.dot_dimension_numbers<[1], [0], [0], [1], [0, 0, 1, 1], [], []>} : vector<2x32xf32>, vector<32x32xf32>, vector<2x32xf32> -> vector<2x32xf32>
    %901 = vector.broadcast %14 : vector<1x32xf32> to vector<2x32xf32>
    %902 = arith.addf %900, %901 : vector<2x32xf32>
    %cst_173 = arith.constant dense<0.000000e+00> : vector<2x32xf32>
    %903 = tpu.matmul %898, %17, %cst_173 {dimension_numbers = #tpu.dot_dimension_numbers<[1], [0], [0], [1], [0, 0, 1, 1], [], []>} : vector<2x32xf32>, vector<32x32xf32>, vector<2x32xf32> -> vector<2x32xf32>
    %904 = vector.broadcast %20 : vector<1x32xf32> to vector<2x32xf32>
    %905 = arith.addf %903, %904 : vector<2x32xf32>
    %906 = vector.extract_strided_slice %802 {offsets = [0, 2], sizes = [2, 1], strides = [1, 1]} : vector<2x8xf32> to vector<2x1xf32>
    %907 = vector.broadcast %906 : vector<2x1xf32> to vector<2x64xf32>
    %908 = arith.mulf %907, %2 : vector<2x64xf32>
    %909 = arith.addf %908, %8 : vector<2x64xf32>
    %910 = arith.addf %909, %899 : vector<2x64xf32>
    %911 = vector.broadcast %906 : vector<2x1xf32> to vector<2x32xf32>
    %912 = arith.mulf %911, %5 : vector<2x32xf32>
    %913 = arith.addf %912, %11 : vector<2x32xf32>
    %914 = arith.negf %910 : vector<2x64xf32>
    %915 = math.exp %914 : vector<2x64xf32>
    %cst_174 = arith.constant 1.000000e+00 : f32
    %916 = vector.broadcast %cst_174 : f32 to vector<2x64xf32>
    %917 = arith.addf %916, %915 : vector<2x64xf32>
    %918 = arith.divf %916, %917 : vector<2x64xf32>
    %919 = vector.extract_strided_slice %918 {offsets = [0, 0], sizes = [2, 32], strides = [1, 1]} : vector<2x64xf32> to vector<2x32xf32>
    %920 = vector.extract_strided_slice %918 {offsets = [0, 32], sizes = [2, 32], strides = [1, 1]} : vector<2x64xf32> to vector<2x32xf32>
    %921 = arith.mulf %919, %902 : vector<2x32xf32>
    %922 = arith.addf %913, %921 : vector<2x32xf32>
    %923 = math.tanh %922 : vector<2x32xf32>
    %924 = arith.subf %878, %923 : vector<2x32xf32>
    %925 = arith.mulf %920, %924 : vector<2x32xf32>
    %926 = arith.addf %923, %925 : vector<2x32xf32>
    %927 = tpu.concatenate %926, %898 in 1 : vector<2x32xf32>, vector<2x32xf32> -> vector<2x64xf32>
    %cst_175 = arith.constant dense<0.000000e+00> : vector<2x64xf32>
    %928 = tpu.matmul %927, %15, %cst_175 {dimension_numbers = #tpu.dot_dimension_numbers<[1], [0], [0], [1], [0, 0, 1, 1], [], []>} : vector<2x64xf32>, vector<64x64xf32>, vector<2x64xf32> -> vector<2x64xf32>
    %929 = vector.broadcast %18 : vector<1x64xf32> to vector<2x64xf32>
    %930 = arith.addf %928, %929 : vector<2x64xf32>
    %cst_176 = arith.constant dense<0.000000e+00> : vector<2x32xf32>
    %931 = tpu.matmul %926, %16, %cst_176 {dimension_numbers = #tpu.dot_dimension_numbers<[1], [0], [0], [1], [0, 0, 1, 1], [], []>} : vector<2x32xf32>, vector<32x32xf32>, vector<2x32xf32> -> vector<2x32xf32>
    %932 = vector.broadcast %19 : vector<1x32xf32> to vector<2x32xf32>
    %933 = arith.addf %931, %932 : vector<2x32xf32>
    %934 = arith.negf %930 : vector<2x64xf32>
    %935 = math.exp %934 : vector<2x64xf32>
    %cst_177 = arith.constant 1.000000e+00 : f32
    %936 = vector.broadcast %cst_177 : f32 to vector<2x64xf32>
    %937 = arith.addf %936, %935 : vector<2x64xf32>
    %938 = arith.divf %936, %937 : vector<2x64xf32>
    %939 = vector.extract_strided_slice %938 {offsets = [0, 0], sizes = [2, 32], strides = [1, 1]} : vector<2x64xf32> to vector<2x32xf32>
    %940 = vector.extract_strided_slice %938 {offsets = [0, 32], sizes = [2, 32], strides = [1, 1]} : vector<2x64xf32> to vector<2x32xf32>
    %941 = arith.mulf %939, %905 : vector<2x32xf32>
    %942 = arith.addf %933, %941 : vector<2x32xf32>
    %943 = math.tanh %942 : vector<2x32xf32>
    %944 = arith.subf %898, %943 : vector<2x32xf32>
    %945 = arith.mulf %940, %944 : vector<2x32xf32>
    %946 = arith.addf %943, %945 : vector<2x32xf32>
    %cst_178 = arith.constant dense<0.000000e+00> : vector<2x64xf32>
    %947 = tpu.matmul %926, %12, %cst_178 {dimension_numbers = #tpu.dot_dimension_numbers<[1], [0], [0], [1], [0, 0, 1, 1], [], []>} : vector<2x32xf32>, vector<32x64xf32>, vector<2x64xf32> -> vector<2x64xf32>
    %cst_179 = arith.constant dense<0.000000e+00> : vector<2x32xf32>
    %948 = tpu.matmul %926, %13, %cst_179 {dimension_numbers = #tpu.dot_dimension_numbers<[1], [0], [0], [1], [0, 0, 1, 1], [], []>} : vector<2x32xf32>, vector<32x32xf32>, vector<2x32xf32> -> vector<2x32xf32>
    %949 = vector.broadcast %14 : vector<1x32xf32> to vector<2x32xf32>
    %950 = arith.addf %948, %949 : vector<2x32xf32>
    %cst_180 = arith.constant dense<0.000000e+00> : vector<2x32xf32>
    %951 = tpu.matmul %946, %17, %cst_180 {dimension_numbers = #tpu.dot_dimension_numbers<[1], [0], [0], [1], [0, 0, 1, 1], [], []>} : vector<2x32xf32>, vector<32x32xf32>, vector<2x32xf32> -> vector<2x32xf32>
    %952 = vector.broadcast %20 : vector<1x32xf32> to vector<2x32xf32>
    %953 = arith.addf %951, %952 : vector<2x32xf32>
    %954 = vector.extract_strided_slice %802 {offsets = [0, 3], sizes = [2, 1], strides = [1, 1]} : vector<2x8xf32> to vector<2x1xf32>
    %955 = vector.broadcast %954 : vector<2x1xf32> to vector<2x64xf32>
    %956 = arith.mulf %955, %2 : vector<2x64xf32>
    %957 = arith.addf %956, %8 : vector<2x64xf32>
    %958 = arith.addf %957, %947 : vector<2x64xf32>
    %959 = vector.broadcast %954 : vector<2x1xf32> to vector<2x32xf32>
    %960 = arith.mulf %959, %5 : vector<2x32xf32>
    %961 = arith.addf %960, %11 : vector<2x32xf32>
    %962 = arith.negf %958 : vector<2x64xf32>
    %963 = math.exp %962 : vector<2x64xf32>
    %cst_181 = arith.constant 1.000000e+00 : f32
    %964 = vector.broadcast %cst_181 : f32 to vector<2x64xf32>
    %965 = arith.addf %964, %963 : vector<2x64xf32>
    %966 = arith.divf %964, %965 : vector<2x64xf32>
    %967 = vector.extract_strided_slice %966 {offsets = [0, 0], sizes = [2, 32], strides = [1, 1]} : vector<2x64xf32> to vector<2x32xf32>
    %968 = vector.extract_strided_slice %966 {offsets = [0, 32], sizes = [2, 32], strides = [1, 1]} : vector<2x64xf32> to vector<2x32xf32>
    %969 = arith.mulf %967, %950 : vector<2x32xf32>
    %970 = arith.addf %961, %969 : vector<2x32xf32>
    %971 = math.tanh %970 : vector<2x32xf32>
    %972 = arith.subf %926, %971 : vector<2x32xf32>
    %973 = arith.mulf %968, %972 : vector<2x32xf32>
    %974 = arith.addf %971, %973 : vector<2x32xf32>
    %975 = tpu.concatenate %974, %946 in 1 : vector<2x32xf32>, vector<2x32xf32> -> vector<2x64xf32>
    %cst_182 = arith.constant dense<0.000000e+00> : vector<2x64xf32>
    %976 = tpu.matmul %975, %15, %cst_182 {dimension_numbers = #tpu.dot_dimension_numbers<[1], [0], [0], [1], [0, 0, 1, 1], [], []>} : vector<2x64xf32>, vector<64x64xf32>, vector<2x64xf32> -> vector<2x64xf32>
    %977 = vector.broadcast %18 : vector<1x64xf32> to vector<2x64xf32>
    %978 = arith.addf %976, %977 : vector<2x64xf32>
    %cst_183 = arith.constant dense<0.000000e+00> : vector<2x32xf32>
    %979 = tpu.matmul %974, %16, %cst_183 {dimension_numbers = #tpu.dot_dimension_numbers<[1], [0], [0], [1], [0, 0, 1, 1], [], []>} : vector<2x32xf32>, vector<32x32xf32>, vector<2x32xf32> -> vector<2x32xf32>
    %980 = vector.broadcast %19 : vector<1x32xf32> to vector<2x32xf32>
    %981 = arith.addf %979, %980 : vector<2x32xf32>
    %982 = arith.negf %978 : vector<2x64xf32>
    %983 = math.exp %982 : vector<2x64xf32>
    %cst_184 = arith.constant 1.000000e+00 : f32
    %984 = vector.broadcast %cst_184 : f32 to vector<2x64xf32>
    %985 = arith.addf %984, %983 : vector<2x64xf32>
    %986 = arith.divf %984, %985 : vector<2x64xf32>
    %987 = vector.extract_strided_slice %986 {offsets = [0, 0], sizes = [2, 32], strides = [1, 1]} : vector<2x64xf32> to vector<2x32xf32>
    %988 = vector.extract_strided_slice %986 {offsets = [0, 32], sizes = [2, 32], strides = [1, 1]} : vector<2x64xf32> to vector<2x32xf32>
    %989 = arith.mulf %987, %953 : vector<2x32xf32>
    %990 = arith.addf %981, %989 : vector<2x32xf32>
    %991 = math.tanh %990 : vector<2x32xf32>
    %992 = arith.subf %946, %991 : vector<2x32xf32>
    %993 = arith.mulf %988, %992 : vector<2x32xf32>
    %994 = arith.addf %991, %993 : vector<2x32xf32>
    %cst_185 = arith.constant dense<0.000000e+00> : vector<2x64xf32>
    %995 = tpu.matmul %974, %12, %cst_185 {dimension_numbers = #tpu.dot_dimension_numbers<[1], [0], [0], [1], [0, 0, 1, 1], [], []>} : vector<2x32xf32>, vector<32x64xf32>, vector<2x64xf32> -> vector<2x64xf32>
    %cst_186 = arith.constant dense<0.000000e+00> : vector<2x32xf32>
    %996 = tpu.matmul %974, %13, %cst_186 {dimension_numbers = #tpu.dot_dimension_numbers<[1], [0], [0], [1], [0, 0, 1, 1], [], []>} : vector<2x32xf32>, vector<32x32xf32>, vector<2x32xf32> -> vector<2x32xf32>
    %997 = vector.broadcast %14 : vector<1x32xf32> to vector<2x32xf32>
    %998 = arith.addf %996, %997 : vector<2x32xf32>
    %cst_187 = arith.constant dense<0.000000e+00> : vector<2x32xf32>
    %999 = tpu.matmul %994, %17, %cst_187 {dimension_numbers = #tpu.dot_dimension_numbers<[1], [0], [0], [1], [0, 0, 1, 1], [], []>} : vector<2x32xf32>, vector<32x32xf32>, vector<2x32xf32> -> vector<2x32xf32>
    %1000 = vector.broadcast %20 : vector<1x32xf32> to vector<2x32xf32>
    %1001 = arith.addf %999, %1000 : vector<2x32xf32>
    %1002 = vector.extract_strided_slice %802 {offsets = [0, 4], sizes = [2, 1], strides = [1, 1]} : vector<2x8xf32> to vector<2x1xf32>
    %1003 = vector.broadcast %1002 : vector<2x1xf32> to vector<2x64xf32>
    %1004 = arith.mulf %1003, %2 : vector<2x64xf32>
    %1005 = arith.addf %1004, %8 : vector<2x64xf32>
    %1006 = arith.addf %1005, %995 : vector<2x64xf32>
    %1007 = vector.broadcast %1002 : vector<2x1xf32> to vector<2x32xf32>
    %1008 = arith.mulf %1007, %5 : vector<2x32xf32>
    %1009 = arith.addf %1008, %11 : vector<2x32xf32>
    %1010 = arith.negf %1006 : vector<2x64xf32>
    %1011 = math.exp %1010 : vector<2x64xf32>
    %cst_188 = arith.constant 1.000000e+00 : f32
    %1012 = vector.broadcast %cst_188 : f32 to vector<2x64xf32>
    %1013 = arith.addf %1012, %1011 : vector<2x64xf32>
    %1014 = arith.divf %1012, %1013 : vector<2x64xf32>
    %1015 = vector.extract_strided_slice %1014 {offsets = [0, 0], sizes = [2, 32], strides = [1, 1]} : vector<2x64xf32> to vector<2x32xf32>
    %1016 = vector.extract_strided_slice %1014 {offsets = [0, 32], sizes = [2, 32], strides = [1, 1]} : vector<2x64xf32> to vector<2x32xf32>
    %1017 = arith.mulf %1015, %998 : vector<2x32xf32>
    %1018 = arith.addf %1009, %1017 : vector<2x32xf32>
    %1019 = math.tanh %1018 : vector<2x32xf32>
    %1020 = arith.subf %974, %1019 : vector<2x32xf32>
    %1021 = arith.mulf %1016, %1020 : vector<2x32xf32>
    %1022 = arith.addf %1019, %1021 : vector<2x32xf32>
    %1023 = tpu.concatenate %1022, %994 in 1 : vector<2x32xf32>, vector<2x32xf32> -> vector<2x64xf32>
    %cst_189 = arith.constant dense<0.000000e+00> : vector<2x64xf32>
    %1024 = tpu.matmul %1023, %15, %cst_189 {dimension_numbers = #tpu.dot_dimension_numbers<[1], [0], [0], [1], [0, 0, 1, 1], [], []>} : vector<2x64xf32>, vector<64x64xf32>, vector<2x64xf32> -> vector<2x64xf32>
    %1025 = vector.broadcast %18 : vector<1x64xf32> to vector<2x64xf32>
    %1026 = arith.addf %1024, %1025 : vector<2x64xf32>
    %cst_190 = arith.constant dense<0.000000e+00> : vector<2x32xf32>
    %1027 = tpu.matmul %1022, %16, %cst_190 {dimension_numbers = #tpu.dot_dimension_numbers<[1], [0], [0], [1], [0, 0, 1, 1], [], []>} : vector<2x32xf32>, vector<32x32xf32>, vector<2x32xf32> -> vector<2x32xf32>
    %1028 = vector.broadcast %19 : vector<1x32xf32> to vector<2x32xf32>
    %1029 = arith.addf %1027, %1028 : vector<2x32xf32>
    %1030 = arith.negf %1026 : vector<2x64xf32>
    %1031 = math.exp %1030 : vector<2x64xf32>
    %cst_191 = arith.constant 1.000000e+00 : f32
    %1032 = vector.broadcast %cst_191 : f32 to vector<2x64xf32>
    %1033 = arith.addf %1032, %1031 : vector<2x64xf32>
    %1034 = arith.divf %1032, %1033 : vector<2x64xf32>
    %1035 = vector.extract_strided_slice %1034 {offsets = [0, 0], sizes = [2, 32], strides = [1, 1]} : vector<2x64xf32> to vector<2x32xf32>
    %1036 = vector.extract_strided_slice %1034 {offsets = [0, 32], sizes = [2, 32], strides = [1, 1]} : vector<2x64xf32> to vector<2x32xf32>
    %1037 = arith.mulf %1035, %1001 : vector<2x32xf32>
    %1038 = arith.addf %1029, %1037 : vector<2x32xf32>
    %1039 = math.tanh %1038 : vector<2x32xf32>
    %1040 = arith.subf %994, %1039 : vector<2x32xf32>
    %1041 = arith.mulf %1036, %1040 : vector<2x32xf32>
    %1042 = arith.addf %1039, %1041 : vector<2x32xf32>
    %cst_192 = arith.constant dense<0.000000e+00> : vector<2x64xf32>
    %1043 = tpu.matmul %1022, %12, %cst_192 {dimension_numbers = #tpu.dot_dimension_numbers<[1], [0], [0], [1], [0, 0, 1, 1], [], []>} : vector<2x32xf32>, vector<32x64xf32>, vector<2x64xf32> -> vector<2x64xf32>
    %cst_193 = arith.constant dense<0.000000e+00> : vector<2x32xf32>
    %1044 = tpu.matmul %1022, %13, %cst_193 {dimension_numbers = #tpu.dot_dimension_numbers<[1], [0], [0], [1], [0, 0, 1, 1], [], []>} : vector<2x32xf32>, vector<32x32xf32>, vector<2x32xf32> -> vector<2x32xf32>
    %1045 = vector.broadcast %14 : vector<1x32xf32> to vector<2x32xf32>
    %1046 = arith.addf %1044, %1045 : vector<2x32xf32>
    %cst_194 = arith.constant dense<0.000000e+00> : vector<2x32xf32>
    %1047 = tpu.matmul %1042, %17, %cst_194 {dimension_numbers = #tpu.dot_dimension_numbers<[1], [0], [0], [1], [0, 0, 1, 1], [], []>} : vector<2x32xf32>, vector<32x32xf32>, vector<2x32xf32> -> vector<2x32xf32>
    %1048 = vector.broadcast %20 : vector<1x32xf32> to vector<2x32xf32>
    %1049 = arith.addf %1047, %1048 : vector<2x32xf32>
    %1050 = vector.extract_strided_slice %802 {offsets = [0, 5], sizes = [2, 1], strides = [1, 1]} : vector<2x8xf32> to vector<2x1xf32>
    %1051 = vector.broadcast %1050 : vector<2x1xf32> to vector<2x64xf32>
    %1052 = arith.mulf %1051, %2 : vector<2x64xf32>
    %1053 = arith.addf %1052, %8 : vector<2x64xf32>
    %1054 = arith.addf %1053, %1043 : vector<2x64xf32>
    %1055 = vector.broadcast %1050 : vector<2x1xf32> to vector<2x32xf32>
    %1056 = arith.mulf %1055, %5 : vector<2x32xf32>
    %1057 = arith.addf %1056, %11 : vector<2x32xf32>
    %1058 = arith.negf %1054 : vector<2x64xf32>
    %1059 = math.exp %1058 : vector<2x64xf32>
    %cst_195 = arith.constant 1.000000e+00 : f32
    %1060 = vector.broadcast %cst_195 : f32 to vector<2x64xf32>
    %1061 = arith.addf %1060, %1059 : vector<2x64xf32>
    %1062 = arith.divf %1060, %1061 : vector<2x64xf32>
    %1063 = vector.extract_strided_slice %1062 {offsets = [0, 0], sizes = [2, 32], strides = [1, 1]} : vector<2x64xf32> to vector<2x32xf32>
    %1064 = vector.extract_strided_slice %1062 {offsets = [0, 32], sizes = [2, 32], strides = [1, 1]} : vector<2x64xf32> to vector<2x32xf32>
    %1065 = arith.mulf %1063, %1046 : vector<2x32xf32>
    %1066 = arith.addf %1057, %1065 : vector<2x32xf32>
    %1067 = math.tanh %1066 : vector<2x32xf32>
    %1068 = arith.subf %1022, %1067 : vector<2x32xf32>
    %1069 = arith.mulf %1064, %1068 : vector<2x32xf32>
    %1070 = arith.addf %1067, %1069 : vector<2x32xf32>
    %1071 = tpu.concatenate %1070, %1042 in 1 : vector<2x32xf32>, vector<2x32xf32> -> vector<2x64xf32>
    %cst_196 = arith.constant dense<0.000000e+00> : vector<2x64xf32>
    %1072 = tpu.matmul %1071, %15, %cst_196 {dimension_numbers = #tpu.dot_dimension_numbers<[1], [0], [0], [1], [0, 0, 1, 1], [], []>} : vector<2x64xf32>, vector<64x64xf32>, vector<2x64xf32> -> vector<2x64xf32>
    %1073 = vector.broadcast %18 : vector<1x64xf32> to vector<2x64xf32>
    %1074 = arith.addf %1072, %1073 : vector<2x64xf32>
    %cst_197 = arith.constant dense<0.000000e+00> : vector<2x32xf32>
    %1075 = tpu.matmul %1070, %16, %cst_197 {dimension_numbers = #tpu.dot_dimension_numbers<[1], [0], [0], [1], [0, 0, 1, 1], [], []>} : vector<2x32xf32>, vector<32x32xf32>, vector<2x32xf32> -> vector<2x32xf32>
    %1076 = vector.broadcast %19 : vector<1x32xf32> to vector<2x32xf32>
    %1077 = arith.addf %1075, %1076 : vector<2x32xf32>
    %1078 = arith.negf %1074 : vector<2x64xf32>
    %1079 = math.exp %1078 : vector<2x64xf32>
    %cst_198 = arith.constant 1.000000e+00 : f32
    %1080 = vector.broadcast %cst_198 : f32 to vector<2x64xf32>
    %1081 = arith.addf %1080, %1079 : vector<2x64xf32>
    %1082 = arith.divf %1080, %1081 : vector<2x64xf32>
    %1083 = vector.extract_strided_slice %1082 {offsets = [0, 0], sizes = [2, 32], strides = [1, 1]} : vector<2x64xf32> to vector<2x32xf32>
    %1084 = vector.extract_strided_slice %1082 {offsets = [0, 32], sizes = [2, 32], strides = [1, 1]} : vector<2x64xf32> to vector<2x32xf32>
    %1085 = arith.mulf %1083, %1049 : vector<2x32xf32>
    %1086 = arith.addf %1077, %1085 : vector<2x32xf32>
    %1087 = math.tanh %1086 : vector<2x32xf32>
    %1088 = arith.subf %1042, %1087 : vector<2x32xf32>
    %1089 = arith.mulf %1084, %1088 : vector<2x32xf32>
    %1090 = arith.addf %1087, %1089 : vector<2x32xf32>
    %cst_199 = arith.constant dense<0.000000e+00> : vector<2x64xf32>
    %1091 = tpu.matmul %1070, %12, %cst_199 {dimension_numbers = #tpu.dot_dimension_numbers<[1], [0], [0], [1], [0, 0, 1, 1], [], []>} : vector<2x32xf32>, vector<32x64xf32>, vector<2x64xf32> -> vector<2x64xf32>
    %cst_200 = arith.constant dense<0.000000e+00> : vector<2x32xf32>
    %1092 = tpu.matmul %1070, %13, %cst_200 {dimension_numbers = #tpu.dot_dimension_numbers<[1], [0], [0], [1], [0, 0, 1, 1], [], []>} : vector<2x32xf32>, vector<32x32xf32>, vector<2x32xf32> -> vector<2x32xf32>
    %1093 = vector.broadcast %14 : vector<1x32xf32> to vector<2x32xf32>
    %1094 = arith.addf %1092, %1093 : vector<2x32xf32>
    %cst_201 = arith.constant dense<0.000000e+00> : vector<2x32xf32>
    %1095 = tpu.matmul %1090, %17, %cst_201 {dimension_numbers = #tpu.dot_dimension_numbers<[1], [0], [0], [1], [0, 0, 1, 1], [], []>} : vector<2x32xf32>, vector<32x32xf32>, vector<2x32xf32> -> vector<2x32xf32>
    %1096 = vector.broadcast %20 : vector<1x32xf32> to vector<2x32xf32>
    %1097 = arith.addf %1095, %1096 : vector<2x32xf32>
    %1098 = vector.extract_strided_slice %802 {offsets = [0, 6], sizes = [2, 1], strides = [1, 1]} : vector<2x8xf32> to vector<2x1xf32>
    %1099 = vector.broadcast %1098 : vector<2x1xf32> to vector<2x64xf32>
    %1100 = arith.mulf %1099, %2 : vector<2x64xf32>
    %1101 = arith.addf %1100, %8 : vector<2x64xf32>
    %1102 = arith.addf %1101, %1091 : vector<2x64xf32>
    %1103 = vector.broadcast %1098 : vector<2x1xf32> to vector<2x32xf32>
    %1104 = arith.mulf %1103, %5 : vector<2x32xf32>
    %1105 = arith.addf %1104, %11 : vector<2x32xf32>
    %1106 = arith.negf %1102 : vector<2x64xf32>
    %1107 = math.exp %1106 : vector<2x64xf32>
    %cst_202 = arith.constant 1.000000e+00 : f32
    %1108 = vector.broadcast %cst_202 : f32 to vector<2x64xf32>
    %1109 = arith.addf %1108, %1107 : vector<2x64xf32>
    %1110 = arith.divf %1108, %1109 : vector<2x64xf32>
    %1111 = vector.extract_strided_slice %1110 {offsets = [0, 0], sizes = [2, 32], strides = [1, 1]} : vector<2x64xf32> to vector<2x32xf32>
    %1112 = vector.extract_strided_slice %1110 {offsets = [0, 32], sizes = [2, 32], strides = [1, 1]} : vector<2x64xf32> to vector<2x32xf32>
    %1113 = arith.mulf %1111, %1094 : vector<2x32xf32>
    %1114 = arith.addf %1105, %1113 : vector<2x32xf32>
    %1115 = math.tanh %1114 : vector<2x32xf32>
    %1116 = arith.subf %1070, %1115 : vector<2x32xf32>
    %1117 = arith.mulf %1112, %1116 : vector<2x32xf32>
    %1118 = arith.addf %1115, %1117 : vector<2x32xf32>
    %1119 = tpu.concatenate %1118, %1090 in 1 : vector<2x32xf32>, vector<2x32xf32> -> vector<2x64xf32>
    %cst_203 = arith.constant dense<0.000000e+00> : vector<2x64xf32>
    %1120 = tpu.matmul %1119, %15, %cst_203 {dimension_numbers = #tpu.dot_dimension_numbers<[1], [0], [0], [1], [0, 0, 1, 1], [], []>} : vector<2x64xf32>, vector<64x64xf32>, vector<2x64xf32> -> vector<2x64xf32>
    %1121 = vector.broadcast %18 : vector<1x64xf32> to vector<2x64xf32>
    %1122 = arith.addf %1120, %1121 : vector<2x64xf32>
    %cst_204 = arith.constant dense<0.000000e+00> : vector<2x32xf32>
    %1123 = tpu.matmul %1118, %16, %cst_204 {dimension_numbers = #tpu.dot_dimension_numbers<[1], [0], [0], [1], [0, 0, 1, 1], [], []>} : vector<2x32xf32>, vector<32x32xf32>, vector<2x32xf32> -> vector<2x32xf32>
    %1124 = vector.broadcast %19 : vector<1x32xf32> to vector<2x32xf32>
    %1125 = arith.addf %1123, %1124 : vector<2x32xf32>
    %1126 = arith.negf %1122 : vector<2x64xf32>
    %1127 = math.exp %1126 : vector<2x64xf32>
    %cst_205 = arith.constant 1.000000e+00 : f32
    %1128 = vector.broadcast %cst_205 : f32 to vector<2x64xf32>
    %1129 = arith.addf %1128, %1127 : vector<2x64xf32>
    %1130 = arith.divf %1128, %1129 : vector<2x64xf32>
    %1131 = vector.extract_strided_slice %1130 {offsets = [0, 0], sizes = [2, 32], strides = [1, 1]} : vector<2x64xf32> to vector<2x32xf32>
    %1132 = vector.extract_strided_slice %1130 {offsets = [0, 32], sizes = [2, 32], strides = [1, 1]} : vector<2x64xf32> to vector<2x32xf32>
    %1133 = arith.mulf %1131, %1097 : vector<2x32xf32>
    %1134 = arith.addf %1125, %1133 : vector<2x32xf32>
    %1135 = math.tanh %1134 : vector<2x32xf32>
    %1136 = arith.subf %1090, %1135 : vector<2x32xf32>
    %1137 = arith.mulf %1132, %1136 : vector<2x32xf32>
    %1138 = arith.addf %1135, %1137 : vector<2x32xf32>
    %cst_206 = arith.constant dense<0.000000e+00> : vector<2x64xf32>
    %1139 = tpu.matmul %1118, %12, %cst_206 {dimension_numbers = #tpu.dot_dimension_numbers<[1], [0], [0], [1], [0, 0, 1, 1], [], []>} : vector<2x32xf32>, vector<32x64xf32>, vector<2x64xf32> -> vector<2x64xf32>
    %cst_207 = arith.constant dense<0.000000e+00> : vector<2x32xf32>
    %1140 = tpu.matmul %1118, %13, %cst_207 {dimension_numbers = #tpu.dot_dimension_numbers<[1], [0], [0], [1], [0, 0, 1, 1], [], []>} : vector<2x32xf32>, vector<32x32xf32>, vector<2x32xf32> -> vector<2x32xf32>
    %1141 = vector.broadcast %14 : vector<1x32xf32> to vector<2x32xf32>
    %1142 = arith.addf %1140, %1141 : vector<2x32xf32>
    %cst_208 = arith.constant dense<0.000000e+00> : vector<2x32xf32>
    %1143 = tpu.matmul %1138, %17, %cst_208 {dimension_numbers = #tpu.dot_dimension_numbers<[1], [0], [0], [1], [0, 0, 1, 1], [], []>} : vector<2x32xf32>, vector<32x32xf32>, vector<2x32xf32> -> vector<2x32xf32>
    %1144 = vector.broadcast %20 : vector<1x32xf32> to vector<2x32xf32>
    %1145 = arith.addf %1143, %1144 : vector<2x32xf32>
    %1146 = vector.extract_strided_slice %802 {offsets = [0, 7], sizes = [2, 1], strides = [1, 1]} : vector<2x8xf32> to vector<2x1xf32>
    %1147 = vector.broadcast %1146 : vector<2x1xf32> to vector<2x64xf32>
    %1148 = arith.mulf %1147, %2 : vector<2x64xf32>
    %1149 = arith.addf %1148, %8 : vector<2x64xf32>
    %1150 = arith.addf %1149, %1139 : vector<2x64xf32>
    %1151 = vector.broadcast %1146 : vector<2x1xf32> to vector<2x32xf32>
    %1152 = arith.mulf %1151, %5 : vector<2x32xf32>
    %1153 = arith.addf %1152, %11 : vector<2x32xf32>
    %1154 = arith.negf %1150 : vector<2x64xf32>
    %1155 = math.exp %1154 : vector<2x64xf32>
    %cst_209 = arith.constant 1.000000e+00 : f32
    %1156 = vector.broadcast %cst_209 : f32 to vector<2x64xf32>
    %1157 = arith.addf %1156, %1155 : vector<2x64xf32>
    %1158 = arith.divf %1156, %1157 : vector<2x64xf32>
    %1159 = vector.extract_strided_slice %1158 {offsets = [0, 0], sizes = [2, 32], strides = [1, 1]} : vector<2x64xf32> to vector<2x32xf32>
    %1160 = vector.extract_strided_slice %1158 {offsets = [0, 32], sizes = [2, 32], strides = [1, 1]} : vector<2x64xf32> to vector<2x32xf32>
    %1161 = arith.mulf %1159, %1142 : vector<2x32xf32>
    %1162 = arith.addf %1153, %1161 : vector<2x32xf32>
    %1163 = math.tanh %1162 : vector<2x32xf32>
    %1164 = arith.subf %1118, %1163 : vector<2x32xf32>
    %1165 = arith.mulf %1160, %1164 : vector<2x32xf32>
    %1166 = arith.addf %1163, %1165 : vector<2x32xf32>
    %1167 = tpu.concatenate %1166, %1138 in 1 : vector<2x32xf32>, vector<2x32xf32> -> vector<2x64xf32>
    %cst_210 = arith.constant dense<0.000000e+00> : vector<2x64xf32>
    %1168 = tpu.matmul %1167, %15, %cst_210 {dimension_numbers = #tpu.dot_dimension_numbers<[1], [0], [0], [1], [0, 0, 1, 1], [], []>} : vector<2x64xf32>, vector<64x64xf32>, vector<2x64xf32> -> vector<2x64xf32>
    %1169 = vector.broadcast %18 : vector<1x64xf32> to vector<2x64xf32>
    %1170 = arith.addf %1168, %1169 : vector<2x64xf32>
    %cst_211 = arith.constant dense<0.000000e+00> : vector<2x32xf32>
    %1171 = tpu.matmul %1166, %16, %cst_211 {dimension_numbers = #tpu.dot_dimension_numbers<[1], [0], [0], [1], [0, 0, 1, 1], [], []>} : vector<2x32xf32>, vector<32x32xf32>, vector<2x32xf32> -> vector<2x32xf32>
    %1172 = vector.broadcast %19 : vector<1x32xf32> to vector<2x32xf32>
    %1173 = arith.addf %1171, %1172 : vector<2x32xf32>
    %1174 = arith.negf %1170 : vector<2x64xf32>
    %1175 = math.exp %1174 : vector<2x64xf32>
    %cst_212 = arith.constant 1.000000e+00 : f32
    %1176 = vector.broadcast %cst_212 : f32 to vector<2x64xf32>
    %1177 = arith.addf %1176, %1175 : vector<2x64xf32>
    %1178 = arith.divf %1176, %1177 : vector<2x64xf32>
    %1179 = vector.extract_strided_slice %1178 {offsets = [0, 0], sizes = [2, 32], strides = [1, 1]} : vector<2x64xf32> to vector<2x32xf32>
    %1180 = vector.extract_strided_slice %1178 {offsets = [0, 32], sizes = [2, 32], strides = [1, 1]} : vector<2x64xf32> to vector<2x32xf32>
    %1181 = arith.mulf %1179, %1145 : vector<2x32xf32>
    %1182 = arith.addf %1173, %1181 : vector<2x32xf32>
    %1183 = math.tanh %1182 : vector<2x32xf32>
    %1184 = arith.subf %1138, %1183 : vector<2x32xf32>
    %1185 = arith.mulf %1180, %1184 : vector<2x32xf32>
    %1186 = arith.addf %1183, %1185 : vector<2x32xf32>
    %c4 = arith.constant 4 : index
    %c0_213 = arith.constant 0 : index
    %1187 = vector.load %arg19[%c4, %c0_213] : memref<6x32xf32, #tpu.memory_space<vmem>>, vector<2x32xf32>
    tpu.vector_store %arg19[%c4, %c0_213], %1186 {strides = array<i32>} : memref<6x32xf32, #tpu.memory_space<vmem>>, vector<2x32xf32>,
    %c0_214 = arith.constant 0 : index
    %c0_215 = arith.constant 0 : index
    %1188 = vector.load %arg19[%c0_214, %c0_215] : memref<6x32xf32, #tpu.memory_space<vmem>>, vector<6x32xf32>
    %cst_216 = arith.constant dense<0.000000e+00> : vector<6x4xf32>
    %1189 = tpu.matmul %1188, %21, %cst_216 {dimension_numbers = #tpu.dot_dimension_numbers<[1], [0], [0], [1], [0, 0, 1, 1], [], []>} : vector<6x32xf32>, vector<32x4xf32>, vector<6x4xf32> -> vector<6x4xf32>
    %1190 = vector.broadcast %22 : vector<1x4xf32> to vector<6x4xf32>
    %1191 = arith.addf %1189, %1190 : vector<6x4xf32>
    %c0_217 = arith.constant 0 : index
    %c0_218 = arith.constant 0 : index
    %1192 = vector.load %arg17[%c0_217, %c0_218] : memref<6x4xf32, #tpu.memory_space<vmem>>, vector<6x4xf32>
    tpu.vector_store %arg17[%c0_217, %c0_218], %1191 {strides = array<i32>} : memref<6x4xf32, #tpu.memory_space<vmem>>, vector<6x4xf32>,
    %c0_219 = arith.constant 0 : index
    %c0_220 = arith.constant 0 : index
    %c0_221 = arith.constant 0 : index
    %1193 = vector.load %arg18[%c0_219, %c0_220, %c0_221] : memref<2x2x32xf32, #tpu.memory_space<vmem>>, vector<1x2x32xf32>
    %1194 = vector.shape_cast %1193 : vector<1x2x32xf32> to vector<2x32xf32>
    %1195 = vector.shape_cast %1166 : vector<2x32xf32> to vector<1x2x32xf32>
    tpu.vector_store %arg18[%c0_219, %c0_220, %c0_221], %1195 {strides = array<i32>} : memref<2x2x32xf32, #tpu.memory_space<vmem>>, vector<1x2x32xf32>,
    %c1_222 = arith.constant 1 : index
    %c0_223 = arith.constant 0 : index
    %c0_224 = arith.constant 0 : index
    %1196 = vector.load %arg18[%c1_222, %c0_223, %c0_224] : memref<2x2x32xf32, #tpu.memory_space<vmem>>, vector<1x2x32xf32>
    %1197 = vector.shape_cast %1196 : vector<1x2x32xf32> to vector<2x32xf32>
    %1198 = vector.shape_cast %1186 : vector<2x32xf32> to vector<1x2x32xf32>
    tpu.vector_store %arg18[%c1_222, %c0_223, %c0_224], %1198 {strides = array<i32>} : memref<2x2x32xf32, #tpu.memory_space<vmem>>, vector<1x2x32xf32>,
    return
  }
}

</mosaic_0001>

<llo_original>
// kernel: tpu_custom_call.1
$region0: #{tpu_custom_call.1}
  #allocation0 [shape = 'u32[]', space=smem, size = 0x4, offset = 0x4, fixed_abs, tag = 'smem constant byte address 0x4 - core index']
  #allocation1 [shape = 'u32[144,128]{1,0:T(1,128)}', space=vmem, size = 0x12000, scoped, tag = 'internal scratch']
  #allocation2 [shape = 'f32[6,32]{1,0:T(8,128)}', space=vmem, size = 0x1000, scoped, tag = 'scratch operand']
  %s0 = inlined_call_operand.vmem [shape: f32[3,2,8], index: 0, kind: input, shape index: {}]
  %s1 = inlined_call_operand.hbm [shape: f32[2,2,32], index: 1, kind: input, shape index: {}]
  %s2 = inlined_call_operand.hbm [shape: f32[1,64], index: 2, kind: input, shape index: {}]
  %s3 = inlined_call_operand.hbm [shape: f32[1,32], index: 3, kind: input, shape index: {}]
  %s4 = inlined_call_operand.hbm [shape: f32[32,64], index: 4, kind: input, shape index: {}]
  %s5 = inlined_call_operand.hbm [shape: f32[32,32], index: 5, kind: input, shape index: {}]
  %s6 = inlined_call_operand.hbm [shape: f32[1,64], index: 6, kind: input, shape index: {}]
  %s7 = inlined_call_operand.hbm [shape: f32[1,32], index: 7, kind: input, shape index: {}]
  %s8 = inlined_call_operand.hbm [shape: f32[1,32], index: 8, kind: input, shape index: {}]
  %s9 = inlined_call_operand.vmem [shape: f32[64,64], index: 9, kind: input, shape index: {}]
  %s10 = inlined_call_operand.hbm [shape: f32[32,32], index: 10, kind: input, shape index: {}]
  %s11 = inlined_call_operand.hbm [shape: f32[32,32], index: 11, kind: input, shape index: {}]
  %s12 = inlined_call_operand.vmem [shape: f32[1,64], index: 12, kind: input, shape index: {}]
  %s13 = inlined_call_operand.vmem [shape: f32[1,32], index: 13, kind: input, shape index: {}]
  %s14 = inlined_call_operand.vmem [shape: f32[1,32], index: 14, kind: input, shape index: {}]
  %s15 = inlined_call_operand.vmem [shape: f32[32,4], index: 15, kind: input, shape index: {}]
  %s16 = inlined_call_operand.vmem [shape: f32[1,4], index: 16, kind: input, shape index: {}]
  %s17 = inlined_call_operand.vmem [shape: f32[6,4], index: 17, kind: output, shape index: {0}]
  %s18 = inlined_call_operand.hbm [shape: f32[2,2,32], index: 18, kind: output, shape index: {1}]
  %19 = xla_tuple %s17, %s18
  %s20 = sld [smem:[#allocation0]]
  $region126: #{tpu_custom_call.1} parent=0
    _
  %s22 = ssub.s32 1, %s20
  %s23 = scalar_select 0, %s22, %s20
  $region1: #{tpu_custom_call.1} parent=0
    #allocation3 [shape = 'u8[2048]{0}', space=vmem, size = 0x800, scoped, tag = 'input window, operand 1, single buffered']
    #allocation4 [shape = 's32[1]{0}', space=sflag, size = 0x4, scoped, tag = 'scoped memory for tpu_custom_call.1']
    #allocation5 [shape = 's32[1]{0}', space=sflag, size = 0x4, scoped, tag = 'scoped memory for tpu_custom_call.1']
    #allocation6 [shape = 'u8[512]{0}', space=vmem, size = 0x400, scoped, tag = 'input window, operand 2, single buffered']
    #allocation7 [shape = 's32[1]{0}', space=sflag, size = 0x4, scoped, tag = 'scoped memory for tpu_custom_call.1']
    #allocation8 [shape = 'u8[512]{0}', space=vmem, size = 0x400, scoped, tag = 'input window, operand 3, single buffered']
    #allocation9 [shape = 'u8[16384]{0}', space=vmem, size = 0x4000, scoped, tag = 'input window, operand 4, single buffered']
    #allocation10 [shape = 's32[1]{0}', space=sflag, size = 0x4, scoped, tag = 'scoped memory for tpu_custom_call.1']
    #allocation11 [shape = 'u8[16384]{0}', space=vmem, size = 0x4000, scoped, tag = 'input window, operand 5, single buffered']
    #allocation12 [shape = 'u8[512]{0}', space=vmem, size = 0x400, scoped, tag = 'input window, operand 6, single buffered']
    #allocation13 [shape = 's32[1]{0}', space=sflag, size = 0x4, scoped, tag = 'scoped memory for tpu_custom_call.1']
    #allocation14 [shape = 'u8[512]{0}', space=vmem, size = 0x400, scoped, tag = 'input window, operand 7, single buffered']
    #allocation15 [shape = 'u8[512]{0}', space=vmem, size = 0x400, scoped, tag = 'input window, operand 8, single buffered']
    #allocation16 [shape = 's32[1]{0}', space=sflag, size = 0x4, scoped, tag = 'scoped memory for tpu_custom_call.1']
    #allocation17 [shape = 'u8[16384]{0}', space=vmem, size = 0x4000, scoped, tag = 'input window, operand 10, single buffered']
    #allocation18 [shape = 'u8[16384]{0}', space=vmem, size = 0x4000, scoped, tag = 'input window, operand 11, single buffered']
    #allocation19 [shape = 's32[1]{0}', space=sflag, size = 0x4, scoped, tag = 'scoped memory for tpu_custom_call.1']
    #allocation20 [shape = 'u8[2048]{0}', space=vmem, size = 0x800, scoped, tag = 'output window, operand 1, single buffered']
    %24 = vsyncpa [#allocation4], 0
    %25 = vsyncpa [#allocation7], 0
    %26 = vsyncpa [#allocation10], 0
    %27 = vsyncpa [#allocation13], 0
    %28 = vsyncpa [#allocation16], 0
    %29 = vsyncpa [#allocation19], 0
    %30 = vsyncpa [#allocation5], 0
    // Predicated region
    $region2: #{tpu_custom_call.1} parent=1 // pred_check
      _
    $region3: #{tpu_custom_call.1} parent=1 // pred_check_branch
      %32 = sbr.rel (0) target = $region5
    $region4: #{tpu_custom_call.1} parent=1 // pred_region
      _
    $region5: #{tpu_custom_call.1} parent=1 // pred_fallthru
      _
    // Predicated region
    $region6: #{tpu_custom_call.1} parent=1 // pred_check
      _
    $region7: #{tpu_custom_call.1} parent=1 // pred_check_branch
      %34 = sbr.rel (0) target = $region9
    $region8: #{tpu_custom_call.1} parent=1 // pred_region
      %s36 = ssub.s32 64, 64
      %37 = vsyncadd [#allocation4], %s36
      %s38 = sshll.u32 [#allocation3], 4
      %s39 = int_to_ptr.vmem [resolvable:$true] %s38
      %44 = dma.hbm_to_vmem [thread:$0]  %s1, 64, %s39, [#allocation4], 32, 32, 2
    $region9: #{tpu_custom_call.1} parent=1 // pred_fallthru
      _
    // Predicated region
    $region10: #{tpu_custom_call.1} parent=1 // pred_check
      _
    $region11: #{tpu_custom_call.1} parent=1 // pred_check_branch
      %46 = sbr.rel (0) target = $region13
    $region12: #{tpu_custom_call.1} parent=1 // pred_region
      %s48 = ssub.s32 16, 16
      %49 = vsyncadd [#allocation7], %s48
      %s51 = sshll.u32 [#allocation6], 4
      %s52 = int_to_ptr.vmem [resolvable:$true] %s51
      %54 = dma.hbm_to_vmem [thread:$0]  %s2, 16, %s52, [#allocation7]
    $region13: #{tpu_custom_call.1} parent=1 // pred_fallthru
      _
    // Predicated region
    $region14: #{tpu_custom_call.1} parent=1 // pred_check
      _
    $region15: #{tpu_custom_call.1} parent=1 // pred_check_branch
      %56 = sbr.rel (0) target = $region17
    $region16: #{tpu_custom_call.1} parent=1 // pred_region
      %s58 = ssub.s32 16, 16
      %59 = vsyncadd [#allocation7], %s58
      %s61 = sshll.u32 [#allocation8], 4
      %s62 = int_to_ptr.vmem [resolvable:$true] %s61
      %64 = dma.hbm_to_vmem [thread:$0]  %s3, 16, %s62, [#allocation7]
    $region17: #{tpu_custom_call.1} parent=1 // pred_fallthru
      _
    // Predicated region
    $region18: #{tpu_custom_call.1} parent=1 // pred_check
      _
    $region19: #{tpu_custom_call.1} parent=1 // pred_check_branch
      %66 = sbr.rel (0) target = $region21
    $region20: #{tpu_custom_call.1} parent=1 // pred_region
      %s68 = ssub.s32 512, 512
      %69 = vsyncadd [#allocation10], %s68
      %s70 = sshll.u32 [#allocation9], 4
      %s71 = int_to_ptr.vmem [resolvable:$true] %s70
      %76 = dma.hbm_to_vmem [thread:$0]  %s4, 512, %s71, [#allocation10], 128, 128, 8
    $region21: #{tpu_custom_call.1} parent=1 // pred_fallthru
      _
    // Predicated region
    $region22: #{tpu_custom_call.1} parent=1 // pred_check
      _
    $region23: #{tpu_custom_call.1} parent=1 // pred_check_branch
      %78 = sbr.rel (0) target = $region25
    $region24: #{tpu_custom_call.1} parent=1 // pred_region
      %s80 = ssub.s32 512, 512
      %81 = vsyncadd [#allocation10], %s80
      %s82 = sshll.u32 [#allocation11], 4
      %s83 = int_to_ptr.vmem [resolvable:$true] %s82
      %88 = dma.hbm_to_vmem [thread:$0]  %s5, 512, %s83, [#allocation10], 128, 128, 8
    $region25: #{tpu_custom_call.1} parent=1 // pred_fallthru
      _
    // Predicated region
    $region26: #{tpu_custom_call.1} parent=1 // pred_check
      _
    $region27: #{tpu_custom_call.1} parent=1 // pred_check_branch
      %90 = sbr.rel (0) target = $region29
    $region28: #{tpu_custom_call.1} parent=1 // pred_region
      %s92 = ssub.s32 16, 16
      %93 = vsyncadd [#allocation13], %s92
      %s95 = sshll.u32 [#allocation12], 4
      %s96 = int_to_ptr.vmem [resolvable:$true] %s95
      %98 = dma.hbm_to_vmem [thread:$0]  %s6, 16, %s96, [#allocation13]
    $region29: #{tpu_custom_call.1} parent=1 // pred_fallthru
      _
    // Predicated region
    $region30: #{tpu_custom_call.1} parent=1 // pred_check
      _
    $region31: #{tpu_custom_call.1} parent=1 // pred_check_branch
      %100 = sbr.rel (0) target = $region33
    $region32: #{tpu_custom_call.1} parent=1 // pred_region
      %s102 = ssub.s32 16, 16
      %103 = vsyncadd [#allocation13], %s102
      %s105 = sshll.u32 [#allocation14], 4
      %s106 = int_to_ptr.vmem [resolvable:$true] %s105
      %108 = dma.hbm_to_vmem [thread:$0]  %s7, 16, %s106, [#allocation13]
    $region33: #{tpu_custom_call.1} parent=1 // pred_fallthru
      _
    // Predicated region
    $region34: #{tpu_custom_call.1} parent=1 // pred_check
      _
    $region35: #{tpu_custom_call.1} parent=1 // pred_check_branch
      %110 = sbr.rel (0) target = $region37
    $region36: #{tpu_custom_call.1} parent=1 // pred_region
      %s112 = ssub.s32 16, 16
      %113 = vsyncadd [#allocation16], %s112
      %s115 = sshll.u32 [#allocation15], 4
      %s116 = int_to_ptr.vmem [resolvable:$true] %s115
      %118 = dma.hbm_to_vmem [thread:$0]  %s8, 16, %s116, [#allocation16]
    $region37: #{tpu_custom_call.1} parent=1 // pred_fallthru
      _
    // Predicated region
    $region38: #{tpu_custom_call.1} parent=1 // pred_check
      _
    $region39: #{tpu_custom_call.1} parent=1 // pred_check_branch
      %120 = sbr.rel (0) target = $region41
    $region40: #{tpu_custom_call.1} parent=1 // pred_region
      _
    $region41: #{tpu_custom_call.1} parent=1 // pred_fallthru
      _
    // Predicated region
    $region42: #{tpu_custom_call.1} parent=1 // pred_check
      _
    $region43: #{tpu_custom_call.1} parent=1 // pred_check_branch
      %122 = sbr.rel (0) target = $region45
    $region44: #{tpu_custom_call.1} parent=1 // pred_region
      %s124 = ssub.s32 512, 512
      %125 = vsyncadd [#allocation16], %s124
      %s126 = sshll.u32 [#allocation17], 4
      %s127 = int_to_ptr.vmem [resolvable:$true] %s126
      %132 = dma.hbm_to_vmem [thread:$0]  %s10, 512, %s127, [#allocation16], 128, 128, 8
    $region45: #{tpu_custom_call.1} parent=1 // pred_fallthru
      _
    // Predicated region
    $region46: #{tpu_custom_call.1} parent=1 // pred_check
      _
    $region47: #{tpu_custom_call.1} parent=1 // pred_check_branch
      %134 = sbr.rel (0) target = $region49
    $region48: #{tpu_custom_call.1} parent=1 // pred_region
      %s136 = ssub.s32 512, 512
      %137 = vsyncadd [#allocation19], %s136
      %s138 = sshll.u32 [#allocation18], 4
      %s139 = int_to_ptr.vmem [resolvable:$true] %s138
      %144 = dma.hbm_to_vmem [thread:$0]  %s11, 512, %s139, [#allocation19], 128, 128, 8
    $region49: #{tpu_custom_call.1} parent=1 // pred_fallthru
      _
    // Predicated region
    $region50: #{tpu_custom_call.1} parent=1 // pred_check
      _
    $region51: #{tpu_custom_call.1} parent=1 // pred_check_branch
      %146 = sbr.rel (0) target = $region53
    $region52: #{tpu_custom_call.1} parent=1 // pred_region
      _
    $region53: #{tpu_custom_call.1} parent=1 // pred_fallthru
      _
    // Predicated region
    $region54: #{tpu_custom_call.1} parent=1 // pred_check
      _
    $region55: #{tpu_custom_call.1} parent=1 // pred_check_branch
      %148 = sbr.rel (0) target = $region57
    $region56: #{tpu_custom_call.1} parent=1 // pred_region
      _
    $region57: #{tpu_custom_call.1} parent=1 // pred_fallthru
      _
    // Predicated region
    $region58: #{tpu_custom_call.1} parent=1 // pred_check
      _
    $region59: #{tpu_custom_call.1} parent=1 // pred_check_branch
      %150 = sbr.rel (0) target = $region61
    $region60: #{tpu_custom_call.1} parent=1 // pred_region
      _
    $region61: #{tpu_custom_call.1} parent=1 // pred_fallthru
      _
    // Predicated region
    $region62: #{tpu_custom_call.1} parent=1 // pred_check
      _
    $region63: #{tpu_custom_call.1} parent=1 // pred_check_branch
      %152 = sbr.rel (0) target = $region65
    $region64: #{tpu_custom_call.1} parent=1 // pred_region
      _
    $region65: #{tpu_custom_call.1} parent=1 // pred_fallthru
      _
    // Predicated region
    $region66: #{tpu_custom_call.1} parent=1 // pred_check
      _
    $region67: #{tpu_custom_call.1} parent=1 // pred_check_branch
      %154 = sbr.rel (0) target = $region69
    $region68: #{tpu_custom_call.1} parent=1 // pred_region
      _
    $region69: #{tpu_custom_call.1} parent=1 // pred_fallthru
      _
    // Predicated region
    $region70: #{tpu_custom_call.1} parent=1 // pred_check
      _
    $region71: #{tpu_custom_call.1} parent=1 // pred_check_branch
      %156 = sbr.rel (0) target = $region73
    $region72: #{tpu_custom_call.1} parent=1 // pred_region
      %157 = dma.done [#allocation4], 64
    $region73: #{tpu_custom_call.1} parent=1 // pred_fallthru
      _
    // Predicated region
    $region74: #{tpu_custom_call.1} parent=1 // pred_check
      _
    $region75: #{tpu_custom_call.1} parent=1 // pred_check_branch
      %159 = sbr.rel (0) target = $region77
    $region76: #{tpu_custom_call.1} parent=1 // pred_region
      %160 = dma.done [#allocation7], 16
    $region77: #{tpu_custom_call.1} parent=1 // pred_fallthru
      _
    // Predicated region
    $region78: #{tpu_custom_call.1} parent=1 // pred_check
      _
    $region79: #{tpu_custom_call.1} parent=1 // pred_check_branch
      %162 = sbr.rel (0) target = $region81
    $region80: #{tpu_custom_call.1} parent=1 // pred_region
      %163 = dma.done [#allocation7], 16
    $region81: #{tpu_custom_call.1} parent=1 // pred_fallthru
      _
    // Predicated region
    $region82: #{tpu_custom_call.1} parent=1 // pred_check
      _
    $region83: #{tpu_custom_call.1} parent=1 // pred_check_branch
      %165 = sbr.rel (0) target = $region85
    $region84: #{tpu_custom_call.1} parent=1 // pred_region
      %166 = dma.done [#allocation10], 512
    $region85: #{tpu_custom_call.1} parent=1 // pred_fallthru
      _
    // Predicated region
    $region86: #{tpu_custom_call.1} parent=1 // pred_check
      _
    $region87: #{tpu_custom_call.1} parent=1 // pred_check_branch
      %168 = sbr.rel (0) target = $region89
    $region88: #{tpu_custom_call.1} parent=1 // pred_region
      %169 = dma.done [#allocation10], 512
    $region89: #{tpu_custom_call.1} parent=1 // pred_fallthru
      _
    // Predicated region
    $region90: #{tpu_custom_call.1} parent=1 // pred_check
      _
    $region91: #{tpu_custom_call.1} parent=1 // pred_check_branch
      %171 = sbr.rel (0) target = $region93
    $region92: #{tpu_custom_call.1} parent=1 // pred_region
      %172 = dma.done [#allocation13], 16
    $region93: #{tpu_custom_call.1} parent=1 // pred_fallthru
      _
    // Predicated region
    $region94: #{tpu_custom_call.1} parent=1 // pred_check
      _
    $region95: #{tpu_custom_call.1} parent=1 // pred_check_branch
      %174 = sbr.rel (0) target = $region97
    $region96: #{tpu_custom_call.1} parent=1 // pred_region
      %175 = dma.done [#allocation13], 16
    $region97: #{tpu_custom_call.1} parent=1 // pred_fallthru
      _
    // Predicated region
    $region98: #{tpu_custom_call.1} parent=1 // pred_check
      _
    $region99: #{tpu_custom_call.1} parent=1 // pred_check_branch
      %177 = sbr.rel (0) target = $region101
    $region100: #{tpu_custom_call.1} parent=1 // pred_region
      %178 = dma.done [#allocation16], 16
    $region101: #{tpu_custom_call.1} parent=1 // pred_fallthru
      _
    // Predicated region
    $region102: #{tpu_custom_call.1} parent=1 // pred_check
      _
    $region103: #{tpu_custom_call.1} parent=1 // pred_check_branch
      %180 = sbr.rel (0) target = $region105
    $region104: #{tpu_custom_call.1} parent=1 // pred_region
      %181 = dma.done [#allocation16], 512
    $region105: #{tpu_custom_call.1} parent=1 // pred_fallthru
      _
    // Predicated region
    $region106: #{tpu_custom_call.1} parent=1 // pred_check
      _
    $region107: #{tpu_custom_call.1} parent=1 // pred_check_branch
      %183 = sbr.rel (0) target = $region109
    $region108: #{tpu_custom_call.1} parent=1 // pred_region
      %184 = dma.done [#allocation19], 512
    $region109: #{tpu_custom_call.1} parent=1 // pred_fallthru
      _
    %v185 = vld [vmem:[#allocation6] sm:$0x1]
    %v187 = vlaneseq
    %v188 = vshrl.u32 %v187, 7
    %v189 = vsub.s32 0, %v188
    %v190 = vrot.slane %v185, %v189
    %v192 = vld [vmem:[#allocation8] sm:$0x1]
    %v194 = vlaneseq
    %v195 = vshrl.u32 %v194, 7
    %v196 = vsub.s32 0, %v195
    %v197 = vrot.slane %v192, %v196
    %v199 = vld [vmem:[#allocation12] sm:$0x1]
    %v201 = vlaneseq
    %v202 = vshrl.u32 %v201, 7
    %v203 = vsub.s32 0, %v202
    %v204 = vrot.slane %v199, %v203
    %v206 = vld [vmem:[#allocation14] sm:$0x1]
    %v208 = vlaneseq
    %v209 = vshrl.u32 %v208, 7
    %v210 = vsub.s32 0, %v209
    %v211 = vrot.slane %v206, %v210
    %v213 = vld [vmem:[#allocation9] sm:$0xff]
    %v214 = vld [vmem:[#allocation9 + $0x8] sm:$0xff]
    %v215 = vld [vmem:[#allocation9 + $0x10] sm:$0xff]
    %v216 = vld [vmem:[#allocation9 + $0x18] sm:$0xff]
    %v217 = vld [vmem:[#allocation11] sm:$0xff]
    %v218 = vld [vmem:[#allocation11 + $0x8] sm:$0xff]
    %v219 = vld [vmem:[#allocation11 + $0x10] sm:$0xff]
    %v220 = vld [vmem:[#allocation11 + $0x18] sm:$0xff]
    %v221 = vld [vmem:[#allocation15] sm:$0x1]
    %v222 = vld [vmem:[%s9] sm:$0xff]
    %v223 = vld [vmem:[%s9 + $0x8] sm:$0xff]
    %v224 = vld [vmem:[%s9 + $0x10] sm:$0xff]
    %v225 = vld [vmem:[%s9 + $0x18] sm:$0xff]
    %v226 = vld [vmem:[%s9 + $0x20] sm:$0xff]
    %v227 = vld [vmem:[%s9 + $0x28] sm:$0xff]
    %v228 = vld [vmem:[%s9 + $0x30] sm:$0xff]
    %v229 = vld [vmem:[%s9 + $0x38] sm:$0xff]
    %v230 = vld [vmem:[#allocation17] sm:$0xff]
    %v231 = vld [vmem:[#allocation17 + $0x8] sm:$0xff]
    %v232 = vld [vmem:[#allocation17 + $0x10] sm:$0xff]
    %v233 = vld [vmem:[#allocation17 + $0x18] sm:$0xff]
    %v234 = vld [vmem:[#allocation18] sm:$0xff]
    %v235 = vld [vmem:[#allocation18 + $0x8] sm:$0xff]
    %v236 = vld [vmem:[#allocation18 + $0x10] sm:$0xff]
    %v237 = vld [vmem:[#allocation18 + $0x18] sm:$0xff]
    %v238 = vld [vmem:[%s12] sm:$0x1]
    %v239 = vld [vmem:[%s13] sm:$0x1]
    %v240 = vld [vmem:[%s14] sm:$0x1]
    %v241 = vld [vmem:[%s15] sm:$0xff]
    %v242 = vld [vmem:[%s15 + $0x8] sm:$0xff]
    %v243 = vld [vmem:[%s15 + $0x10] sm:$0xff]
    %v244 = vld [vmem:[%s15 + $0x18] sm:$0xff]
    %v245 = vld [vmem:[%s16] sm:$0x1]
    %v246 = vld [vmem:[#allocation3] sm:$0x3]
    %s247 = scalar_lea.vmem [#allocation3], 2
    %v248 = vld [vmem:[%s247] sm:$0x3]
    %v249 = vld [vmem:[%s0] sm:$0x3]
    %vm250 = vcmask 261120
    %v252 = vsel %vm250, %v246, 0
    %254 = vmatprep.subr.mxu0 0.0
    %255 = vmatpush1.msra.mxu0 %v213
    %256 = vmatprep.subr.mxu0 0.0
    %257 = vmatpush1.msra.mxu0 %v214
    %258 = vmatprep.subr.mxu0 0.0
    %259 = vmatpush1.msra.mxu0 %v215
    %260 = vmatprep.subr.mxu0 0.0
    %261 = vmatpush1.msra.mxu0 %v216
    %262 = vmatprep.subr.mxu0 0.0
    %263 = vmatpush1.msra.mxu0 0.0
    %264 = vmatprep.subr.mxu0 0.0
    %265 = vmatpush1.msra.mxu0 0.0
    %266 = vmatprep.subr.mxu0 0.0
    %267 = vmatpush1.msra.mxu0 0.0
    %268 = vmatprep.subr.mxu0 0.0
    %269 = vmatpush1.msra.mxu0 0.0
    %270 = vmatprep.subr.mxu0 0.0
    %271 = vmatpush1.msra.mxu0 0.0
    %272 = vmatprep.subr.mxu0 0.0
    %273 = vmatpush1.msra.mxu0 0.0
    %274 = vmatprep.subr.mxu0 0.0
    %275 = vmatpush1.msra.mxu0 0.0
    %276 = vmatprep.subr.mxu0 0.0
    %277 = vmatpush1.msra.mxu0 0.0
    %278 = vmatprep.subr.mxu0 0.0
    %279 = vmatpush1.msra.mxu0 0.0
    %280 = vmatprep.subr.mxu0 0.0
    %281 = vmatpush1.msra.mxu0 0.0
    %282 = vmatprep.subr.mxu0 0.0
    %283 = vmatpush1.msra.mxu0 0.0
    %284 = vmatprep.subr.mxu0 0.0
    %285 = vmatpush1.msra.mxu0 0.0
    %286 = vmatprep.subr.mxu0 0.0
    %287 = vmatpush1.msra.mxu0 0.0
    %288 = vmatprep.subr.mxu0 0.0
    %289 = vmatpush1.msra.mxu0 0.0
    %290 = vmatprep.subr.mxu0 0.0
    %291 = vmatpush1.msra.mxu0 0.0
    %292 = vmatprep.subr.mxu0 0.0
    %293 = vmatpush1.msra.mxu0 0.0
    %294 = vmatprep.subr.mxu0 0.0
    %295 = vmatpush1.msra.mxu0 0.0
    %296 = vmatprep.subr.mxu0 0.0
    %297 = vmatpush1.msra.mxu0 0.0
    %298 = vmatprep.subr.mxu0 0.0
    %299 = vmatpush1.msra.mxu0 0.0
    %300 = vmatprep.subr.mxu0 0.0
    %301 = vmatpush1.msra.mxu0 0.0
    %302 = vmatprep.subr.mxu0 0.0
    %303 = vmatpush1.msra.mxu0 0.0
    %304 = vmatprep.subr.mxu0 0.0
    %305 = vmatpush1.msra.mxu0 0.0
    %306 = vmatprep.subr.mxu0 0.0
    %307 = vmatpush1.msra.mxu0 0.0
    %308 = vmatprep.subr.mxu0 0.0
    %309 = vmatpush1.msra.mxu0 0.0
    %310 = vmatprep.subr.mxu0 0.0
    %311 = vmatpush1.msra.mxu0 0.0
    %312 = vmatprep.subr.mxu0 0.0
    %313 = vmatpush1.msra.mxu0 0.0
    %314 = vmatprep.subr.mxu0 0.0
    %315 = vmatpush1.msra.mxu0 0.0
    %316 = vmatprep.subr.mxu0 0.0
    %317 = vmatpush1.msra.mxu0 0.0
    %318 = vmatprep.mubr.f32.mxu0 0.0
    %319 = vmatmul.mubr.f32.gmra.mrb[0].mxu0 %v252
    %v320 = vpop.f32.mrb[0].mxu0
    %v321 = vadd.f32 0.0, %v320
    %v322 = vpop.f32.mrb[0].mxu0
    %323 = vdwg.mxu0
    %v325 = vlaneseq
    %v326 = vshrl.u32 %v325, 7
    %v327 = vsub.s32 0, %v326
    %v328 = vrot.slane %v221, %v327
    %330 = vmatprep.subr.mxu0 0.0
    %331 = vmatpush1.msra.mxu0 %v217
    %332 = vmatprep.subr.mxu0 0.0
    %333 = vmatpush1.msra.mxu0 %v218
    %334 = vmatprep.subr.mxu0 0.0
    %335 = vmatpush1.msra.mxu0 %v219
    %336 = vmatprep.subr.mxu0 0.0
    %337 = vmatpush1.msra.mxu0 %v220
    %338 = vmatprep.subr.mxu0 0.0
    %339 = vmatpush1.msra.mxu0 0.0
    %340 = vmatprep.subr.mxu0 0.0
    %341 = vmatpush1.msra.mxu0 0.0
    %342 = vmatprep.subr.mxu0 0.0
    %343 = vmatpush1.msra.mxu0 0.0
    %344 = vmatprep.subr.mxu0 0.0
    %345 = vmatpush1.msra.mxu0 0.0
    %346 = vmatprep.subr.mxu0 0.0
    %347 = vmatpush1.msra.mxu0 0.0
    %348 = vmatprep.subr.mxu0 0.0
    %349 = vmatpush1.msra.mxu0 0.0
    %350 = vmatprep.subr.mxu0 0.0
    %351 = vmatpush1.msra.mxu0 0.0
    %352 = vmatprep.subr.mxu0 0.0
    %353 = vmatpush1.msra.mxu0 0.0
    %354 = vmatprep.subr.mxu0 0.0
    %355 = vmatpush1.msra.mxu0 0.0
    %356 = vmatprep.subr.mxu0 0.0
    %357 = vmatpush1.msra.mxu0 0.0
    %358 = vmatprep.subr.mxu0 0.0
    %359 = vmatpush1.msra.mxu0 0.0
    %360 = vmatprep.subr.mxu0 0.0
    %361 = vmatpush1.msra.mxu0 0.0
    %362 = vmatprep.subr.mxu0 0.0
    %363 = vmatpush1.msra.mxu0 0.0
    %364 = vmatprep.subr.mxu0 0.0
    %365 = vmatpush1.msra.mxu0 0.0
    %366 = vmatprep.subr.mxu0 0.0
    %367 = vmatpush1.msra.mxu0 0.0
    %368 = vmatprep.subr.mxu0 0.0
    %369 = vmatpush1.msra.mxu0 0.0
    %370 = vmatprep.subr.mxu0 0.0
    %371 = vmatpush1.msra.mxu0 0.0
    %372 = vmatprep.subr.mxu0 0.0
    %373 = vmatpush1.msra.mxu0 0.0
    %374 = vmatprep.subr.mxu0 0.0
    %375 = vmatpush1.msra.mxu0 0.0
    %376 = vmatprep.subr.mxu0 0.0
    %377 = vmatpush1.msra.mxu0 0.0
    %378 = vmatprep.subr.mxu0 0.0
    %379 = vmatpush1.msra.mxu0 0.0
    %380 = vmatprep.subr.mxu0 0.0
    %381 = vmatpush1.msra.mxu0 0.0
    %382 = vmatprep.subr.mxu0 0.0
    %383 = vmatpush1.msra.mxu0 0.0
    %384 = vmatprep.subr.mxu0 0.0
    %385 = vmatpush1.msra.mxu0 0.0
    %386 = vmatprep.subr.mxu0 0.0
    %387 = vmatpush1.msra.mxu0 0.0
    %388 = vmatprep.subr.mxu0 0.0
    %389 = vmatpush1.msra.mxu0 0.0
    %390 = vmatprep.subr.mxu0 0.0
    %391 = vmatpush1.msra.mxu0 0.0
    %392 = vmatprep.subr.mxu0 0.0
    %393 = vmatpush1.msra.mxu0 0.0
    %394 = vmatprep.mubr.f32.mxu0 0.0
    %395 = vmatmul.mubr.f32.gmra.mrb[0].mxu0 %v252
    %v396 = vpop.f32.mrb[0].mxu0
    %v397 = vadd.f32 %v328, %v396
    %v398 = vpop.f32.mrb[0].mxu0
    %399 = vdwg.mxu0
    %v401 = vlaneseq
    %v402 = vshrl.u32 %v401, 7
    %v403 = vsub.s32 0, %v402
    %v404 = vrot.slane %v240, %v403
    %v407 = vsel %vm250, %v248, 0
    %409 = vmatprep.subr.mxu0 0.0
    %410 = vmatpush1.msra.mxu0 %v234
    %411 = vmatprep.subr.mxu0 0.0
    %412 = vmatpush1.msra.mxu0 %v235
    %413 = vmatprep.subr.mxu0 0.0
    %414 = vmatpush1.msra.mxu0 %v236
    %415 = vmatprep.subr.mxu0 0.0
    %416 = vmatpush1.msra.mxu0 %v237
    %417 = vmatprep.subr.mxu0 0.0
    %418 = vmatpush1.msra.mxu0 0.0
    %419 = vmatprep.subr.mxu0 0.0
    %420 = vmatpush1.msra.mxu0 0.0
    %421 = vmatprep.subr.mxu0 0.0
    %422 = vmatpush1.msra.mxu0 0.0
    %423 = vmatprep.subr.mxu0 0.0
    %424 = vmatpush1.msra.mxu0 0.0
    %425 = vmatprep.subr.mxu0 0.0
    %426 = vmatpush1.msra.mxu0 0.0
    %427 = vmatprep.subr.mxu0 0.0
    %428 = vmatpush1.msra.mxu0 0.0
    %429 = vmatprep.subr.mxu0 0.0
    %430 = vmatpush1.msra.mxu0 0.0
    %431 = vmatprep.subr.mxu0 0.0
    %432 = vmatpush1.msra.mxu0 0.0
    %433 = vmatprep.subr.mxu0 0.0
    %434 = vmatpush1.msra.mxu0 0.0
    %435 = vmatprep.subr.mxu0 0.0
    %436 = vmatpush1.msra.mxu0 0.0
    %437 = vmatprep.subr.mxu0 0.0
    %438 = vmatpush1.msra.mxu0 0.0
    %439 = vmatprep.subr.mxu0 0.0
    %440 = vmatpush1.msra.mxu0 0.0
    %441 = vmatprep.subr.mxu0 0.0
    %442 = vmatpush1.msra.mxu0 0.0
    %443 = vmatprep.subr.mxu0 0.0
    %444 = vmatpush1.msra.mxu0 0.0
    %445 = vmatprep.subr.mxu0 0.0
    %446 = vmatpush1.msra.mxu0 0.0
    %447 = vmatprep.subr.mxu0 0.0
    %448 = vmatpush1.msra.mxu0 0.0
    %449 = vmatprep.subr.mxu0 0.0
    %450 = vmatpush1.msra.mxu0 0.0
    %451 = vmatprep.subr.mxu0 0.0
    %452 = vmatpush1.msra.mxu0 0.0
    %453 = vmatprep.subr.mxu0 0.0
    %454 = vmatpush1.msra.mxu0 0.0
    %455 = vmatprep.subr.mxu0 0.0
    %456 = vmatpush1.msra.mxu0 0.0
    %457 = vmatprep.subr.mxu0 0.0
    %458 = vmatpush1.msra.mxu0 0.0
    %459 = vmatprep.subr.mxu0 0.0
    %460 = vmatpush1.msra.mxu0 0.0
    %461 = vmatprep.subr.mxu0 0.0
    %462 = vmatpush1.msra.mxu0 0.0
    %463 = vmatprep.subr.mxu0 0.0
    %464 = vmatpush1.msra.mxu0 0.0
    %465 = vmatprep.subr.mxu0 0.0
    %466 = vmatpush1.msra.mxu0 0.0
    %467 = vmatprep.subr.mxu0 0.0
    %468 = vmatpush1.msra.mxu0 0.0
    %469 = vmatprep.subr.mxu0 0.0
    %470 = vmatpush1.msra.mxu0 0.0
    %471 = vmatprep.subr.mxu0 0.0
    %472 = vmatpush1.msra.mxu0 0.0
    %473 = vmatprep.mubr.f32.mxu0 0.0
    %474 = vmatmul.mubr.f32.gmra.mrb[0].mxu0 %v407
    %v475 = vpop.f32.mrb[0].mxu0
    %v476 = vadd.f32 %v404, %v475
    %v477 = vpop.f32.mrb[0].mxu0
    %478 = vdwg.mxu0
    %480 = vset.pattern.permute.xlu0 0
    %481 = vperm.xlu0 %480, %v249
    %v482 = vpop.permute.xlu0 %481
    %v484 = vmul.f32 %v482, %v190
    %v485 = vadd.f32 %v484, %v204
    %v486 = vadd.f32 %v485, %v321
    %v487 = vmul.f32 %v482, %v197
    %v488 = vadd.f32 %v487, %v211
    %v489 = vxor.u32 %v486, 2147483648
    %v490 = vmul.f32 %v489, 1.442695
    %v491 = vpow.pop %v490
    %v492 = vadd.f32 %v491, 1.0
    %v493 = vrcp.pop %v492
    %v494 = vmul.f32 1.0, %v493
    %v495 = vmul.f32 %v494, %v397
    %v496 = vadd.f32 %v488, %v495
    %v497 = vtanh.pop %v496
    %v498 = vsub.f32 %v246, %v497
    %500 = vrot.lane.b32.xlu0 %v498, 32
    %v501 = vpop.permute.xlu0 %500
    %v503 = vmul.f32 %v494, %v501
    %505 = vrot.lane.b32.xlu0 %v503, 96
    %v506 = vpop.permute.xlu0 %505
    %v508 = vadd.f32 %v497, %v506
    %509 = vrot.lane.b32.xlu0 %v248, 32
    %v510 = vpop.permute.xlu0 %509
    %v512 = vsel %vm250, %v508, %v510
    %v514 = vlaneseq
    %v515 = vshrl.u32 %v514, 7
    %v516 = vsub.s32 0, %v515
    %v517 = vrot.slane %v238, %v516
    %vm519 = vcmask 523264
    %v521 = vsel %vm519, %v512, 0
    %523 = vmatprep.subr.mxu0 0.0
    %524 = vmatpush1.msra.mxu0 %v222
    %525 = vmatprep.subr.mxu0 0.0
    %526 = vmatpush1.msra.mxu0 %v223
    %527 = vmatprep.subr.mxu0 0.0
    %528 = vmatpush1.msra.mxu0 %v224
    %529 = vmatprep.subr.mxu0 0.0
    %530 = vmatpush1.msra.mxu0 %v225
    %531 = vmatprep.subr.mxu0 0.0
    %532 = vmatpush1.msra.mxu0 %v226
    %533 = vmatprep.subr.mxu0 0.0
    %534 = vmatpush1.msra.mxu0 %v227
    %535 = vmatprep.subr.mxu0 0.0
    %536 = vmatpush1.msra.mxu0 %v228
    %537 = vmatprep.subr.mxu0 0.0
    %538 = vmatpush1.msra.mxu0 %v229
    %539 = vmatprep.subr.mxu0 0.0
    %540 = vmatpush1.msra.mxu0 0.0
    %541 = vmatprep.subr.mxu0 0.0
    %542 = vmatpush1.msra.mxu0 0.0
    %543 = vmatprep.subr.mxu0 0.0
    %544 = vmatpush1.msra.mxu0 0.0
    %545 = vmatprep.subr.mxu0 0.0
    %546 = vmatpush1.msra.mxu0 0.0
    %547 = vmatprep.subr.mxu0 0.0
    %548 = vmatpush1.msra.mxu0 0.0
    %549 = vmatprep.subr.mxu0 0.0
    %550 = vmatpush1.msra.mxu0 0.0
    %551 = vmatprep.subr.mxu0 0.0
    %552 = vmatpush1.msra.mxu0 0.0
    %553 = vmatprep.subr.mxu0 0.0
    %554 = vmatpush1.msra.mxu0 0.0
    %555 = vmatprep.subr.mxu0 0.0
    %556 = vmatpush1.msra.mxu0 0.0
    %557 = vmatprep.subr.mxu0 0.0
    %558 = vmatpush1.msra.mxu0 0.0
    %559 = vmatprep.subr.mxu0 0.0
    %560 = vmatpush1.msra.mxu0 0.0
    %561 = vmatprep.subr.mxu0 0.0
    %562 = vmatpush1.msra.mxu0 0.0
    %563 = vmatprep.subr.mxu0 0.0
    %564 = vmatpush1.msra.mxu0 0.0
    %565 = vmatprep.subr.mxu0 0.0
    %566 = vmatpush1.msra.mxu0 0.0
    %567 = vmatprep.subr.mxu0 0.0
    %568 = vmatpush1.msra.mxu0 0.0
    %569 = vmatprep.subr.mxu0 0.0
    %570 = vmatpush1.msra.mxu0 0.0
    %571 = vmatprep.subr.mxu0 0.0
    %572 = vmatpush1.msra.mxu0 0.0
    %573 = vmatprep.subr.mxu0 0.0
    %574 = vmatpush1.msra.mxu0 0.0
    %575 = vmatprep.subr.mxu0 0.0
    %576 = vmatpush1.msra.mxu0 0.0
    %577 = vmatprep.subr.mxu0 0.0
    %578 = vmatpush1.msra.mxu0 0.0
    %579 = vmatprep.subr.mxu0 0.0
    %580 = vmatpush1.msra.mxu0 0.0
    %581 = vmatprep.subr.mxu0 0.0
    %582 = vmatpush1.msra.mxu0 0.0
    %583 = vmatprep.subr.mxu0 0.0
    %584 = vmatpush1.msra.mxu0 0.0
    %585 = vmatprep.subr.mxu0 0.0
    %586 = vmatpush1.msra.mxu0 0.0
    %587 = vmatprep.mubr.f32.mxu0 0.0
    %588 = vmatmul.mubr.f32.gmra.mrb[0].mxu0 %v521
    %v589 = vpop.f32.mrb[0].mxu0
    %v590 = vadd.f32 %v517, %v589
    %v591 = vpop.f32.mrb[0].mxu0
    %592 = vdwg.mxu0
    %v594 = vlaneseq
    %v595 = vshrl.u32 %v594, 7
    %v596 = vsub.s32 0, %v595
    %v597 = vrot.slane %v239, %v596
    %v600 = vsel %vm250, %v508, 0
    %602 = vmatprep.subr.mxu0 0.0
    %603 = vmatpush1.msra.mxu0 %v230
    %604 = vmatprep.subr.mxu0 0.0
    %605 = vmatpush1.msra.mxu0 %v231
    %606 = vmatprep.subr.mxu0 0.0
    %607 = vmatpush1.msra.mxu0 %v232
    %608 = vmatprep.subr.mxu0 0.0
    %609 = vmatpush1.msra.mxu0 %v233
    %610 = vmatprep.subr.mxu0 0.0
    %611 = vmatpush1.msra.mxu0 0.0
    %612 = vmatprep.subr.mxu0 0.0
    %613 = vmatpush1.msra.mxu0 0.0
    %614 = vmatprep.subr.mxu0 0.0
    %615 = vmatpush1.msra.mxu0 0.0
    %616 = vmatprep.subr.mxu0 0.0
    %617 = vmatpush1.msra.mxu0 0.0
    %618 = vmatprep.subr.mxu0 0.0
    %619 = vmatpush1.msra.mxu0 0.0
    %620 = vmatprep.subr.mxu0 0.0
    %621 = vmatpush1.msra.mxu0 0.0
    %622 = vmatprep.subr.mxu0 0.0
    %623 = vmatpush1.msra.mxu0 0.0
    %624 = vmatprep.subr.mxu0 0.0
    %625 = vmatpush1.msra.mxu0 0.0
    %626 = vmatprep.subr.mxu0 0.0
    %627 = vmatpush1.msra.mxu0 0.0
    %628 = vmatprep.subr.mxu0 0.0
    %629 = vmatpush1.msra.mxu0 0.0
    %630 = vmatprep.subr.mxu0 0.0
    %631 = vmatpush1.msra.mxu0 0.0
    %632 = vmatprep.subr.mxu0 0.0
    %633 = vmatpush1.msra.mxu0 0.0
    %634 = vmatprep.subr.mxu0 0.0
    %635 = vmatpush1.msra.mxu0 0.0
    %636 = vmatprep.subr.mxu0 0.0
    %637 = vmatpush1.msra.mxu0 0.0
    %638 = vmatprep.subr.mxu0 0.0
    %639 = vmatpush1.msra.mxu0 0.0
    %640 = vmatprep.subr.mxu0 0.0
    %641 = vmatpush1.msra.mxu0 0.0
    %642 = vmatprep.subr.mxu0 0.0
    %643 = vmatpush1.msra.mxu0 0.0
    %644 = vmatprep.subr.mxu0 0.0
    %645 = vmatpush1.msra.mxu0 0.0
    %646 = vmatprep.subr.mxu0 0.0
    %647 = vmatpush1.msra.mxu0 0.0
    %648 = vmatprep.subr.mxu0 0.0
    %649 = vmatpush1.msra.mxu0 0.0
    %650 = vmatprep.subr.mxu0 0.0
    %651 = vmatpush1.msra.mxu0 0.0
    %652 = vmatprep.subr.mxu0 0.0
    %653 = vmatpush1.msra.mxu0 0.0
    %654 = vmatprep.subr.mxu0 0.0
    %655 = vmatpush1.msra.mxu0 0.0
    %656 = vmatprep.subr.mxu0 0.0
    %657 = vmatpush1.msra.mxu0 0.0
    %658 = vmatprep.subr.mxu0 0.0
    %659 = vmatpush1.msra.mxu0 0.0
    %660 = vmatprep.subr.mxu0 0.0
    %661 = vmatpush1.msra.mxu0 0.0
    %662 = vmatprep.subr.mxu0 0.0
    %663 = vmatpush1.msra.mxu0 0.0
    %664 = vmatprep.subr.mxu0 0.0
    %665 = vmatpush1.msra.mxu0 0.0
    %666 = vmatprep.mubr.f32.mxu0 0.0
    %667 = vmatmul.mubr.f32.gmra.mrb[0].mxu0 %v600
    %v668 = vpop.f32.mrb[0].mxu0
    %v669 = vadd.f32 %v597, %v668
    %v670 = vpop.f32.mrb[0].mxu0
    %671 = vdwg.mxu0
    %v672 = vxor.u32 %v590, 2147483648
    %v673 = vmul.f32 %v672, 1.442695
    %v674 = vpow.pop %v673
    %v675 = vadd.f32 %v674, 1.0
    %v676 = vrcp.pop %v675
    %v677 = vmul.f32 1.0, %v676
    %v678 = vmul.f32 %v677, %v476
    %v679 = vadd.f32 %v669, %v678
    %v680 = vtanh.pop %v679
    %v681 = vsub.f32 %v248, %v680
    %683 = vrot.lane.b32.xlu0 %v681, 32
    %v684 = vpop.permute.xlu0 %683
    %v686 = vmul.f32 %v677, %v684
    %688 = vrot.lane.b32.xlu0 %v686, 96
    %v689 = vpop.permute.xlu0 %688
    %v691 = vadd.f32 %v680, %v689
    %692 = vmatprep.subr.mxu0 0.0
    %693 = vmatpush1.msra.mxu0 %v213
    %694 = vmatprep.subr.mxu0 0.0
    %695 = vmatpush1.msra.mxu0 %v214
    %696 = vmatprep.subr.mxu0 0.0
    %697 = vmatpush1.msra.mxu0 %v215
    %698 = vmatprep.subr.mxu0 0.0
    %699 = vmatpush1.msra.mxu0 %v216
    %700 = vmatprep.subr.mxu0 0.0
    %701 = vmatpush1.msra.mxu0 0.0
    %702 = vmatprep.subr.mxu0 0.0
    %703 = vmatpush1.msra.mxu0 0.0
    %704 = vmatprep.subr.mxu0 0.0
    %705 = vmatpush1.msra.mxu0 0.0
    %706 = vmatprep.subr.mxu0 0.0
    %707 = vmatpush1.msra.mxu0 0.0
    %708 = vmatprep.subr.mxu0 0.0
    %709 = vmatpush1.msra.mxu0 0.0
    %710 = vmatprep.subr.mxu0 0.0
    %711 = vmatpush1.msra.mxu0 0.0
    %712 = vmatprep.subr.mxu0 0.0
    %713 = vmatpush1.msra.mxu0 0.0
    %714 = vmatprep.subr.mxu0 0.0
    %715 = vmatpush1.msra.mxu0 0.0
    %716 = vmatprep.subr.mxu0 0.0
    %717 = vmatpush1.msra.mxu0 0.0
    %718 = vmatprep.subr.mxu0 0.0
    %719 = vmatpush1.msra.mxu0 0.0
    %720 = vmatprep.subr.mxu0 0.0
    %721 = vmatpush1.msra.mxu0 0.0
    %722 = vmatprep.subr.mxu0 0.0
    %723 = vmatpush1.msra.mxu0 0.0
    %724 = vmatprep.subr.mxu0 0.0
    %725 = vmatpush1.msra.mxu0 0.0
    %726 = vmatprep.subr.mxu0 0.0
    %727 = vmatpush1.msra.mxu0 0.0
    %728 = vmatprep.subr.mxu0 0.0
    %729 = vmatpush1.msra.mxu0 0.0
    %730 = vmatprep.subr.mxu0 0.0
    %731 = vmatpush1.msra.mxu0 0.0
    %732 = vmatprep.subr.mxu0 0.0
    %733 = vmatpush1.msra.mxu0 0.0
    %734 = vmatprep.subr.mxu0 0.0
    %735 = vmatpush1.msra.mxu0 0.0
    %736 = vmatprep.subr.mxu0 0.0
    %737 = vmatpush1.msra.mxu0 0.0
    %738 = vmatprep.subr.mxu0 0.0
    %739 = vmatpush1.msra.mxu0 0.0
    %740 = vmatprep.subr.mxu0 0.0
    %741 = vmatpush1.msra.mxu0 0.0
    %742 = vmatprep.subr.mxu0 0.0
    %743 = vmatpush1.msra.mxu0 0.0
    %744 = vmatprep.subr.mxu0 0.0
    %745 = vmatpush1.msra.mxu0 0.0
    %746 = vmatprep.subr.mxu0 0.0
    %747 = vmatpush1.msra.mxu0 0.0
    %748 = vmatprep.subr.mxu0 0.0
    %749 = vmatpush1.msra.mxu0 0.0
    %750 = vmatprep.subr.mxu0 0.0
    %751 = vmatpush1.msra.mxu0 0.0
    %752 = vmatprep.subr.mxu0 0.0
    %753 = vmatpush1.msra.mxu0 0.0
    %754 = vmatprep.subr.mxu0 0.0
    %755 = vmatpush1.msra.mxu0 0.0
    %756 = vmatprep.mubr.f32.mxu0 0.0
    %757 = vmatmul.mubr.f32.gmra.mrb[0].mxu0 %v600
    %v758 = vpop.f32.mrb[0].mxu0
    %v759 = vadd.f32 0.0, %v758
    %v760 = vpop.f32.mrb[0].mxu0
    %761 = vdwg.mxu0
    %762 = vmatprep.subr.mxu0 0.0
    %763 = vmatpush1.msra.mxu0 %v217
    %764 = vmatprep.subr.mxu0 0.0
    %765 = vmatpush1.msra.mxu0 %v218
    %766 = vmatprep.subr.mxu0 0.0
    %767 = vmatpush1.msra.mxu0 %v219
    %768 = vmatprep.subr.mxu0 0.0
    %769 = vmatpush1.msra.mxu0 %v220
    %770 = vmatprep.subr.mxu0 0.0
    %771 = vmatpush1.msra.mxu0 0.0
    %772 = vmatprep.subr.mxu0 0.0
    %773 = vmatpush1.msra.mxu0 0.0
    %774 = vmatprep.subr.mxu0 0.0
    %775 = vmatpush1.msra.mxu0 0.0
    %776 = vmatprep.subr.mxu0 0.0
    %777 = vmatpush1.msra.mxu0 0.0
    %778 = vmatprep.subr.mxu0 0.0
    %779 = vmatpush1.msra.mxu0 0.0
    %780 = vmatprep.subr.mxu0 0.0
    %781 = vmatpush1.msra.mxu0 0.0
    %782 = vmatprep.subr.mxu0 0.0
    %783 = vmatpush1.msra.mxu0 0.0
    %784 = vmatprep.subr.mxu0 0.0
    %785 = vmatpush1.msra.mxu0 0.0
    %786 = vmatprep.subr.mxu0 0.0
    %787 = vmatpush1.msra.mxu0 0.0
    %788 = vmatprep.subr.mxu0 0.0
    %789 = vmatpush1.msra.mxu0 0.0
    %790 = vmatprep.subr.mxu0 0.0
    %791 = vmatpush1.msra.mxu0 0.0
    %792 = vmatprep.subr.mxu0 0.0
    %793 = vmatpush1.msra.mxu0 0.0
    %794 = vmatprep.subr.mxu0 0.0
    %795 = vmatpush1.msra.mxu0 0.0
    %796 = vmatprep.subr.mxu0 0.0
    %797 = vmatpush1.msra.mxu0 0.0
    %798 = vmatprep.subr.mxu0 0.0
    %799 = vmatpush1.msra.mxu0 0.0
    %800 = vmatprep.subr.mxu0 0.0
    %801 = vmatpush1.msra.mxu0 0.0
    %802 = vmatprep.subr.mxu0 0.0
    %803 = vmatpush1.msra.mxu0 0.0
    %804 = vmatprep.subr.mxu0 0.0
    %805 = vmatpush1.msra.mxu0 0.0
    %806 = vmatprep.subr.mxu0 0.0
    %807 = vmatpush1.msra.mxu0 0.0
    %808 = vmatprep.subr.mxu0 0.0
    %809 = vmatpush1.msra.mxu0 0.0
    %810 = vmatprep.subr.mxu0 0.0
    %811 = vmatpush1.msra.mxu0 0.0
    %812 = vmatprep.subr.mxu0 0.0
    %813 = vmatpush1.msra.mxu0 0.0
    %814 = vmatprep.subr.mxu0 0.0
    %815 = vmatpush1.msra.mxu0 0.0
    %816 = vmatprep.subr.mxu0 0.0
    %817 = vmatpush1.msra.mxu0 0.0
    %818 = vmatprep.subr.mxu0 0.0
    %819 = vmatpush1.msra.mxu0 0.0
    %820 = vmatprep.subr.mxu0 0.0
    %821 = vmatpush1.msra.mxu0 0.0
    %822 = vmatprep.subr.mxu0 0.0
    %823 = vmatpush1.msra.mxu0 0.0
    %824 = vmatprep.subr.mxu0 0.0
    %825 = vmatpush1.msra.mxu0 0.0
    %826 = vmatprep.mubr.f32.mxu0 0.0
    %827 = vmatmul.mubr.f32.gmra.mrb[0].mxu0 %v600
    %v828 = vpop.f32.mrb[0].mxu0
    %v829 = vadd.f32 %v328, %v828
    %v830 = vpop.f32.mrb[0].mxu0
    %831 = vdwg.mxu0
    %v833 = vsel %vm250, %v691, 0
    %835 = vmatprep.subr.mxu0 0.0
    %836 = vmatpush1.msra.mxu0 %v234
    %837 = vmatprep.subr.mxu0 0.0
    %838 = vmatpush1.msra.mxu0 %v235
    %839 = vmatprep.subr.mxu0 0.0
    %840 = vmatpush1.msra.mxu0 %v236
    %841 = vmatprep.subr.mxu0 0.0
    %842 = vmatpush1.msra.mxu0 %v237
    %843 = vmatprep.subr.mxu0 0.0
    %844 = vmatpush1.msra.mxu0 0.0
    %845 = vmatprep.subr.mxu0 0.0
    %846 = vmatpush1.msra.mxu0 0.0
    %847 = vmatprep.subr.mxu0 0.0
    %848 = vmatpush1.msra.mxu0 0.0
    %849 = vmatprep.subr.mxu0 0.0
    %850 = vmatpush1.msra.mxu0 0.0
    %851 = vmatprep.subr.mxu0 0.0
    %852 = vmatpush1.msra.mxu0 0.0
    %853 = vmatprep.subr.mxu0 0.0
    %854 = vmatpush1.msra.mxu0 0.0
    %855 = vmatprep.subr.mxu0 0.0
    %856 = vmatpush1.msra.mxu0 0.0
    %857 = vmatprep.subr.mxu0 0.0
    %858 = vmatpush1.msra.mxu0 0.0
    %859 = vmatprep.subr.mxu0 0.0
    %860 = vmatpush1.msra.mxu0 0.0
    %861 = vmatprep.subr.mxu0 0.0
    %862 = vmatpush1.msra.mxu0 0.0
    %863 = vmatprep.subr.mxu0 0.0
    %864 = vmatpush1.msra.mxu0 0.0
    %865 = vmatprep.subr.mxu0 0.0
    %866 = vmatpush1.msra.mxu0 0.0
    %867 = vmatprep.subr.mxu0 0.0
    %868 = vmatpush1.msra.mxu0 0.0
    %869 = vmatprep.subr.mxu0 0.0
    %870 = vmatpush1.msra.mxu0 0.0
    %871 = vmatprep.subr.mxu0 0.0
    %872 = vmatpush1.msra.mxu0 0.0
    %873 = vmatprep.subr.mxu0 0.0
    %874 = vmatpush1.msra.mxu0 0.0
    %875 = vmatprep.subr.mxu0 0.0
    %876 = vmatpush1.msra.mxu0 0.0
    %877 = vmatprep.subr.mxu0 0.0
    %878 = vmatpush1.msra.mxu0 0.0
    %879 = vmatprep.subr.mxu0 0.0
    %880 = vmatpush1.msra.mxu0 0.0
    %881 = vmatprep.subr.mxu0 0.0
    %882 = vmatpush1.msra.mxu0 0.0
    %883 = vmatprep.subr.mxu0 0.0
    %884 = vmatpush1.msra.mxu0 0.0
    %885 = vmatprep.subr.mxu0 0.0
    %886 = vmatpush1.msra.mxu0 0.0
    %887 = vmatprep.subr.mxu0 0.0
    %888 = vmatpush1.msra.mxu0 0.0
    %889 = vmatprep.subr.mxu0 0.0
    %890 = vmatpush1.msra.mxu0 0.0
    %891 = vmatprep.subr.mxu0 0.0
    %892 = vmatpush1.msra.mxu0 0.0
    %893 = vmatprep.subr.mxu0 0.0
    %894 = vmatpush1.msra.mxu0 0.0
    %895 = vmatprep.subr.mxu0 0.0
    %896 = vmatpush1.msra.mxu0 0.0
    %897 = vmatprep.subr.mxu0 0.0
    %898 = vmatpush1.msra.mxu0 0.0
    %899 = vmatprep.mubr.f32.mxu0 0.0
    %900 = vmatmul.mubr.f32.gmra.mrb[0].mxu0 %v833
    %v901 = vpop.f32.mrb[0].mxu0
    %v902 = vadd.f32 %v404, %v901
    %v903 = vpop.f32.mrb[0].mxu0
    %904 = vdwg.mxu0
    %905 = vset.pattern.permute.xlu0 1
    %906 = vperm.xlu0 %905, %v249
    %v907 = vpop.permute.xlu0 %906
    %v909 = vmul.f32 %v907, %v190
    %v910 = vadd.f32 %v909, %v204
    %v911 = vadd.f32 %v910, %v759
    %v912 = vmul.f32 %v907, %v197
    %v913 = vadd.f32 %v912, %v211
    %v914 = vxor.u32 %v911, 2147483648
    %v915 = vmul.f32 %v914, 1.442695
    %v916 = vpow.pop %v915
    %v917 = vadd.f32 %v916, 1.0
    %v918 = vrcp.pop %v917
    %v919 = vmul.f32 1.0, %v918
    %v920 = vmul.f32 %v919, %v829
    %v921 = vadd.f32 %v913, %v920
    %v922 = vtanh.pop %v921
    %v923 = vsub.f32 %v508, %v922
    %925 = vrot.lane.b32.xlu0 %v923, 32
    %v926 = vpop.permute.xlu0 %925
    %v928 = vmul.f32 %v919, %v926
    %930 = vrot.lane.b32.xlu0 %v928, 96
    %v931 = vpop.permute.xlu0 %930
    %v933 = vadd.f32 %v922, %v931
    %934 = vrot.lane.b32.xlu0 %v691, 32
    %v935 = vpop.permute.xlu0 %934
    %v937 = vsel %vm250, %v933, %v935
    %v939 = vsel %vm519, %v937, 0
    %941 = vmatprep.subr.mxu0 0.0
    %942 = vmatpush1.msra.mxu0 %v222
    %943 = vmatprep.subr.mxu0 0.0
    %944 = vmatpush1.msra.mxu0 %v223
    %945 = vmatprep.subr.mxu0 0.0
    %946 = vmatpush1.msra.mxu0 %v224
    %947 = vmatprep.subr.mxu0 0.0
    %948 = vmatpush1.msra.mxu0 %v225
    %949 = vmatprep.subr.mxu0 0.0
    %950 = vmatpush1.msra.mxu0 %v226
    %951 = vmatprep.subr.mxu0 0.0
    %952 = vmatpush1.msra.mxu0 %v227
    %953 = vmatprep.subr.mxu0 0.0
    %954 = vmatpush1.msra.mxu0 %v228
    %955 = vmatprep.subr.mxu0 0.0
    %956 = vmatpush1.msra.mxu0 %v229
    %957 = vmatprep.subr.mxu0 0.0
    %958 = vmatpush1.msra.mxu0 0.0
    %959 = vmatprep.subr.mxu0 0.0
    %960 = vmatpush1.msra.mxu0 0.0
    %961 = vmatprep.subr.mxu0 0.0
    %962 = vmatpush1.msra.mxu0 0.0
    %963 = vmatprep.subr.mxu0 0.0
    %964 = vmatpush1.msra.mxu0 0.0
    %965 = vmatprep.subr.mxu0 0.0
    %966 = vmatpush1.msra.mxu0 0.0
    %967 = vmatprep.subr.mxu0 0.0
    %968 = vmatpush1.msra.mxu0 0.0
    %969 = vmatprep.subr.mxu0 0.0
    %970 = vmatpush1.msra.mxu0 0.0
    %971 = vmatprep.subr.mxu0 0.0
    %972 = vmatpush1.msra.mxu0 0.0
    %973 = vmatprep.subr.mxu0 0.0
    %974 = vmatpush1.msra.mxu0 0.0
    %975 = vmatprep.subr.mxu0 0.0
    %976 = vmatpush1.msra.mxu0 0.0
    %977 = vmatprep.subr.mxu0 0.0
    %978 = vmatpush1.msra.mxu0 0.0
    %979 = vmatprep.subr.mxu0 0.0
    %980 = vmatpush1.msra.mxu0 0.0
    %981 = vmatprep.subr.mxu0 0.0
    %982 = vmatpush1.msra.mxu0 0.0
    %983 = vmatprep.subr.mxu0 0.0
    %984 = vmatpush1.msra.mxu0 0.0
    %985 = vmatprep.subr.mxu0 0.0
    %986 = vmatpush1.msra.mxu0 0.0
    %987 = vmatprep.subr.mxu0 0.0
    %988 = vmatpush1.msra.mxu0 0.0
    %989 = vmatprep.subr.mxu0 0.0
    %990 = vmatpush1.msra.mxu0 0.0
    %991 = vmatprep.subr.mxu0 0.0
    %992 = vmatpush1.msra.mxu0 0.0
    %993 = vmatprep.subr.mxu0 0.0
    %994 = vmatpush1.msra.mxu0 0.0
    %995 = vmatprep.subr.mxu0 0.0
    %996 = vmatpush1.msra.mxu0 0.0
    %997 = vmatprep.subr.mxu0 0.0
    %998 = vmatpush1.msra.mxu0 0.0
    %999 = vmatprep.subr.mxu0 0.0
    %1000 = vmatpush1.msra.mxu0 0.0
    %1001 = vmatprep.subr.mxu0 0.0
    %1002 = vmatpush1.msra.mxu0 0.0
    %1003 = vmatprep.subr.mxu0 0.0
    %1004 = vmatpush1.msra.mxu0 0.0
    %1005 = vmatprep.mubr.f32.mxu0 0.0
    %1006 = vmatmul.mubr.f32.gmra.mrb[0].mxu0 %v939
    %v1007 = vpop.f32.mrb[0].mxu0
    %v1008 = vadd.f32 %v517, %v1007
    %v1009 = vpop.f32.mrb[0].mxu0
    %1010 = vdwg.mxu0
    %v1012 = vsel %vm250, %v933, 0
    %1014 = vmatprep.subr.mxu0 0.0
    %1015 = vmatpush1.msra.mxu0 %v230
    %1016 = vmatprep.subr.mxu0 0.0
    %1017 = vmatpush1.msra.mxu0 %v231
    %1018 = vmatprep.subr.mxu0 0.0
    %1019 = vmatpush1.msra.mxu0 %v232
    %1020 = vmatprep.subr.mxu0 0.0
    %1021 = vmatpush1.msra.mxu0 %v233
    %1022 = vmatprep.subr.mxu0 0.0
    %1023 = vmatpush1.msra.mxu0 0.0
    %1024 = vmatprep.subr.mxu0 0.0
    %1025 = vmatpush1.msra.mxu0 0.0
    %1026 = vmatprep.subr.mxu0 0.0
    %1027 = vmatpush1.msra.mxu0 0.0
    %1028 = vmatprep.subr.mxu0 0.0
    %1029 = vmatpush1.msra.mxu0 0.0
    %1030 = vmatprep.subr.mxu0 0.0
    %1031 = vmatpush1.msra.mxu0 0.0
    %1032 = vmatprep.subr.mxu0 0.0
    %1033 = vmatpush1.msra.mxu0 0.0
    %1034 = vmatprep.subr.mxu0 0.0
    %1035 = vmatpush1.msra.mxu0 0.0
    %1036 = vmatprep.subr.mxu0 0.0
    %1037 = vmatpush1.msra.mxu0 0.0
    %1038 = vmatprep.subr.mxu0 0.0
    %1039 = vmatpush1.msra.mxu0 0.0
    %1040 = vmatprep.subr.mxu0 0.0
    %1041 = vmatpush1.msra.mxu0 0.0
    %1042 = vmatprep.subr.mxu0 0.0
    %1043 = vmatpush1.msra.mxu0 0.0
    %1044 = vmatprep.subr.mxu0 0.0
    %1045 = vmatpush1.msra.mxu0 0.0
    %1046 = vmatprep.subr.mxu0 0.0
    %1047 = vmatpush1.msra.mxu0 0.0
    %1048 = vmatprep.subr.mxu0 0.0
    %1049 = vmatpush1.msra.mxu0 0.0
    %1050 = vmatprep.subr.mxu0 0.0
    %1051 = vmatpush1.msra.mxu0 0.0
    %1052 = vmatprep.subr.mxu0 0.0
    %1053 = vmatpush1.msra.mxu0 0.0
    %1054 = vmatprep.subr.mxu0 0.0
    %1055 = vmatpush1.msra.mxu0 0.0
    %1056 = vmatprep.subr.mxu0 0.0
    %1057 = vmatpush1.msra.mxu0 0.0
    %1058 = vmatprep.subr.mxu0 0.0
    %1059 = vmatpush1.msra.mxu0 0.0
    %1060 = vmatprep.subr.mxu0 0.0
    %1061 = vmatpush1.msra.mxu0 0.0
    %1062 = vmatprep.subr.mxu0 0.0
    %1063 = vmatpush1.msra.mxu0 0.0
    %1064 = vmatprep.subr.mxu0 0.0
    %1065 = vmatpush1.msra.mxu0 0.0
    %1066 = vmatprep.subr.mxu0 0.0
    %1067 = vmatpush1.msra.mxu0 0.0
    %1068 = vmatprep.subr.mxu0 0.0
    %1069 = vmatpush1.msra.mxu0 0.0
    %1070 = vmatprep.subr.mxu0 0.0
    %1071 = vmatpush1.msra.mxu0 0.0
    %1072 = vmatprep.subr.mxu0 0.0
    %1073 = vmatpush1.msra.mxu0 0.0
    %1074 = vmatprep.subr.mxu0 0.0
    %1075 = vmatpush1.msra.mxu0 0.0
    %1076 = vmatprep.subr.mxu0 0.0
    %1077 = vmatpush1.msra.mxu0 0.0
    %1078 = vmatprep.mubr.f32.mxu0 0.0
    %1079 = vmatmul.mubr.f32.gmra.mrb[0].mxu0 %v1012
    %v1080 = vpop.f32.mrb[0].mxu0
    %v1081 = vadd.f32 %v597, %v1080
    %v1082 = vpop.f32.mrb[0].mxu0
    %1083 = vdwg.mxu0
    %v1084 = vxor.u32 %v1008, 2147483648
    %v1085 = vmul.f32 %v1084, 1.442695
    %v1086 = vpow.pop %v1085
    %v1087 = vadd.f32 %v1086, 1.0
    %v1088 = vrcp.pop %v1087
    %v1089 = vmul.f32 1.0, %v1088
    %v1090 = vmul.f32 %v1089, %v902
    %v1091 = vadd.f32 %v1081, %v1090
    %v1092 = vtanh.pop %v1091
    %v1093 = vsub.f32 %v691, %v1092
    %1095 = vrot.lane.b32.xlu0 %v1093, 32
    %v1096 = vpop.permute.xlu0 %1095
    %v1098 = vmul.f32 %v1089, %v1096
    %1100 = vrot.lane.b32.xlu0 %v1098, 96
    %v1101 = vpop.permute.xlu0 %1100
    %v1103 = vadd.f32 %v1092, %v1101
    %1104 = vmatprep.subr.mxu0 0.0
    %1105 = vmatpush1.msra.mxu0 %v213
    %1106 = vmatprep.subr.mxu0 0.0
    %1107 = vmatpush1.msra.mxu0 %v214
    %1108 = vmatprep.subr.mxu0 0.0
    %1109 = vmatpush1.msra.mxu0 %v215
    %1110 = vmatprep.subr.mxu0 0.0
    %1111 = vmatpush1.msra.mxu0 %v216
    %1112 = vmatprep.subr.mxu0 0.0
    %1113 = vmatpush1.msra.mxu0 0.0
    %1114 = vmatprep.subr.mxu0 0.0
    %1115 = vmatpush1.msra.mxu0 0.0
    %1116 = vmatprep.subr.mxu0 0.0
    %1117 = vmatpush1.msra.mxu0 0.0
    %1118 = vmatprep.subr.mxu0 0.0
    %1119 = vmatpush1.msra.mxu0 0.0
    %1120 = vmatprep.subr.mxu0 0.0
    %1121 = vmatpush1.msra.mxu0 0.0
    %1122 = vmatprep.subr.mxu0 0.0
    %1123 = vmatpush1.msra.mxu0 0.0
    %1124 = vmatprep.subr.mxu0 0.0
    %1125 = vmatpush1.msra.mxu0 0.0
    %1126 = vmatprep.subr.mxu0 0.0
    %1127 = vmatpush1.msra.mxu0 0.0
    %1128 = vmatprep.subr.mxu0 0.0
    %1129 = vmatpush1.msra.mxu0 0.0
    %1130 = vmatprep.subr.mxu0 0.0
    %1131 = vmatpush1.msra.mxu0 0.0
    %1132 = vmatprep.subr.mxu0 0.0
    %1133 = vmatpush1.msra.mxu0 0.0
    %1134 = vmatprep.subr.mxu0 0.0
    %1135 = vmatpush1.msra.mxu0 0.0
    %1136 = vmatprep.subr.mxu0 0.0
    %1137 = vmatpush1.msra.mxu0 0.0
    %1138 = vmatprep.subr.mxu0 0.0
    %1139 = vmatpush1.msra.mxu0 0.0
    %1140 = vmatprep.subr.mxu0 0.0
    %1141 = vmatpush1.msra.mxu0 0.0
    %1142 = vmatprep.subr.mxu0 0.0
    %1143 = vmatpush1.msra.mxu0 0.0
    %1144 = vmatprep.subr.mxu0 0.0
    %1145 = vmatpush1.msra.mxu0 0.0
    %1146 = vmatprep.subr.mxu0 0.0
    %1147 = vmatpush1.msra.mxu0 0.0
    %1148 = vmatprep.subr.mxu0 0.0
    %1149 = vmatpush1.msra.mxu0 0.0
    %1150 = vmatprep.subr.mxu0 0.0
    %1151 = vmatpush1.msra.mxu0 0.0
    %1152 = vmatprep.subr.mxu0 0.0
    %1153 = vmatpush1.msra.mxu0 0.0
    %1154 = vmatprep.subr.mxu0 0.0
    %1155 = vmatpush1.msra.mxu0 0.0
    %1156 = vmatprep.subr.mxu0 0.0
    %1157 = vmatpush1.msra.mxu0 0.0
    %1158 = vmatprep.subr.mxu0 0.0
    %1159 = vmatpush1.msra.mxu0 0.0
    %1160 = vmatprep.subr.mxu0 0.0
    %1161 = vmatpush1.msra.mxu0 0.0
    %1162 = vmatprep.subr.mxu0 0.0
    %1163 = vmatpush1.msra.mxu0 0.0
    %1164 = vmatprep.subr.mxu0 0.0
    %1165 = vmatpush1.msra.mxu0 0.0
    %1166 = vmatprep.subr.mxu0 0.0
    %1167 = vmatpush1.msra.mxu0 0.0
    %1168 = vmatprep.mubr.f32.mxu0 0.0
    %1169 = vmatmul.mubr.f32.gmra.mrb[0].mxu0 %v1012
    %v1170 = vpop.f32.mrb[0].mxu0
    %v1171 = vadd.f32 0.0, %v1170
    %v1172 = vpop.f32.mrb[0].mxu0
    %1173 = vdwg.mxu0
    %1174 = vmatprep.subr.mxu0 0.0
    %1175 = vmatpush1.msra.mxu0 %v217
    %1176 = vmatprep.subr.mxu0 0.0
    %1177 = vmatpush1.msra.mxu0 %v218
    %1178 = vmatprep.subr.mxu0 0.0
    %1179 = vmatpush1.msra.mxu0 %v219
    %1180 = vmatprep.subr.mxu0 0.0
    %1181 = vmatpush1.msra.mxu0 %v220
    %1182 = vmatprep.subr.mxu0 0.0
    %1183 = vmatpush1.msra.mxu0 0.0
    %1184 = vmatprep.subr.mxu0 0.0
    %1185 = vmatpush1.msra.mxu0 0.0
    %1186 = vmatprep.subr.mxu0 0.0
    %1187 = vmatpush1.msra.mxu0 0.0
    %1188 = vmatprep.subr.mxu0 0.0
    %1189 = vmatpush1.msra.mxu0 0.0
    %1190 = vmatprep.subr.mxu0 0.0
    %1191 = vmatpush1.msra.mxu0 0.0
    %1192 = vmatprep.subr.mxu0 0.0
    %1193 = vmatpush1.msra.mxu0 0.0
    %1194 = vmatprep.subr.mxu0 0.0
    %1195 = vmatpush1.msra.mxu0 0.0
    %1196 = vmatprep.subr.mxu0 0.0
    %1197 = vmatpush1.msra.mxu0 0.0
    %1198 = vmatprep.subr.mxu0 0.0
    %1199 = vmatpush1.msra.mxu0 0.0
    %1200 = vmatprep.subr.mxu0 0.0
    %1201 = vmatpush1.msra.mxu0 0.0
    %1202 = vmatprep.subr.mxu0 0.0
    %1203 = vmatpush1.msra.mxu0 0.0
    %1204 = vmatprep.subr.mxu0 0.0
    %1205 = vmatpush1.msra.mxu0 0.0
    %1206 = vmatprep.subr.mxu0 0.0
    %1207 = vmatpush1.msra.mxu0 0.0
    %1208 = vmatprep.subr.mxu0 0.0
    %1209 = vmatpush1.msra.mxu0 0.0
    %1210 = vmatprep.subr.mxu0 0.0
    %1211 = vmatpush1.msra.mxu0 0.0
    %1212 = vmatprep.subr.mxu0 0.0
    %1213 = vmatpush1.msra.mxu0 0.0
    %1214 = vmatprep.subr.mxu0 0.0
    %1215 = vmatpush1.msra.mxu0 0.0
    %1216 = vmatprep.subr.mxu0 0.0
    %1217 = vmatpush1.msra.mxu0 0.0
    %1218 = vmatprep.subr.mxu0 0.0
    %1219 = vmatpush1.msra.mxu0 0.0
    %1220 = vmatprep.subr.mxu0 0.0
    %1221 = vmatpush1.msra.mxu0 0.0
    %1222 = vmatprep.subr.mxu0 0.0
    %1223 = vmatpush1.msra.mxu0 0.0
    %1224 = vmatprep.subr.mxu0 0.0
    %1225 = vmatpush1.msra.mxu0 0.0
    %1226 = vmatprep.subr.mxu0 0.0
    %1227 = vmatpush1.msra.mxu0 0.0
    %1228 = vmatprep.subr.mxu0 0.0
    %1229 = vmatpush1.msra.mxu0 0.0
    %1230 = vmatprep.subr.mxu0 0.0
    %1231 = vmatpush1.msra.mxu0 0.0
    %1232 = vmatprep.subr.mxu0 0.0
    %1233 = vmatpush1.msra.mxu0 0.0
    %1234 = vmatprep.subr.mxu0 0.0
    %1235 = vmatpush1.msra.mxu0 0.0
    %1236 = vmatprep.subr.mxu0 0.0
    %1237 = vmatpush1.msra.mxu0 0.0
    %1238 = vmatprep.mubr.f32.mxu0 0.0
    %1239 = vmatmul.mubr.f32.gmra.mrb[0].mxu0 %v1012
    %v1240 = vpop.f32.mrb[0].mxu0
    %v1241 = vadd.f32 %v328, %v1240
    %v1242 = vpop.f32.mrb[0].mxu0
    %1243 = vdwg.mxu0
    %v1245 = vsel %vm250, %v1103, 0
    %1247 = vmatprep.subr.mxu0 0.0
    %1248 = vmatpush1.msra.mxu0 %v234
    %1249 = vmatprep.subr.mxu0 0.0
    %1250 = vmatpush1.msra.mxu0 %v235
    %1251 = vmatprep.subr.mxu0 0.0
    %1252 = vmatpush1.msra.mxu0 %v236
    %1253 = vmatprep.subr.mxu0 0.0
    %1254 = vmatpush1.msra.mxu0 %v237
    %1255 = vmatprep.subr.mxu0 0.0
    %1256 = vmatpush1.msra.mxu0 0.0
    %1257 = vmatprep.subr.mxu0 0.0
    %1258 = vmatpush1.msra.mxu0 0.0
    %1259 = vmatprep.subr.mxu0 0.0
    %1260 = vmatpush1.msra.mxu0 0.0
    %1261 = vmatprep.subr.mxu0 0.0
    %1262 = vmatpush1.msra.mxu0 0.0
    %1263 = vmatprep.subr.mxu0 0.0
    %1264 = vmatpush1.msra.mxu0 0.0
    %1265 = vmatprep.subr.mxu0 0.0
    %1266 = vmatpush1.msra.mxu0 0.0
    %1267 = vmatprep.subr.mxu0 0.0
    %1268 = vmatpush1.msra.mxu0 0.0
    %1269 = vmatprep.subr.mxu0 0.0
    %1270 = vmatpush1.msra.mxu0 0.0
    %1271 = vmatprep.subr.mxu0 0.0
    %1272 = vmatpush1.msra.mxu0 0.0
    %1273 = vmatprep.subr.mxu0 0.0
    %1274 = vmatpush1.msra.mxu0 0.0
    %1275 = vmatprep.subr.mxu0 0.0
    %1276 = vmatpush1.msra.mxu0 0.0
    %1277 = vmatprep.subr.mxu0 0.0
    %1278 = vmatpush1.msra.mxu0 0.0
    %1279 = vmatprep.subr.mxu0 0.0
    %1280 = vmatpush1.msra.mxu0 0.0
    %1281 = vmatprep.subr.mxu0 0.0
    %1282 = vmatpush1.msra.mxu0 0.0
    %1283 = vmatprep.subr.mxu0 0.0
    %1284 = vmatpush1.msra.mxu0 0.0
    %1285 = vmatprep.subr.mxu0 0.0
    %1286 = vmatpush1.msra.mxu0 0.0
    %1287 = vmatprep.subr.mxu0 0.0
    %1288 = vmatpush1.msra.mxu0 0.0
    %1289 = vmatprep.subr.mxu0 0.0
    %1290 = vmatpush1.msra.mxu0 0.0
    %1291 = vmatprep.subr.mxu0 0.0
    %1292 = vmatpush1.msra.mxu0 0.0
    %1293 = vmatprep.subr.mxu0 0.0
    %1294 = vmatpush1.msra.mxu0 0.0
    %1295 = vmatprep.subr.mxu0 0.0
    %1296 = vmatpush1.msra.mxu0 0.0
    %1297 = vmatprep.subr.mxu0 0.0
    %1298 = vmatpush1.msra.mxu0 0.0
    %1299 = vmatprep.subr.mxu0 0.0
    %1300 = vmatpush1.msra.mxu0 0.0
    %1301 = vmatprep.subr.mxu0 0.0
    %1302 = vmatpush1.msra.mxu0 0.0
    %1303 = vmatprep.subr.mxu0 0.0
    %1304 = vmatpush1.msra.mxu0 0.0
    %1305 = vmatprep.subr.mxu0 0.0
    %1306 = vmatpush1.msra.mxu0 0.0
    %1307 = vmatprep.subr.mxu0 0.0
    %1308 = vmatpush1.msra.mxu0 0.0
    %1309 = vmatprep.subr.mxu0 0.0
    %1310 = vmatpush1.msra.mxu0 0.0
    %1311 = vmatprep.mubr.f32.mxu0 0.0
    %1312 = vmatmul.mubr.f32.gmra.mrb[0].mxu0 %v1245
    %v1313 = vpop.f32.mrb[0].mxu0
    %v1314 = vadd.f32 %v404, %v1313
    %v1315 = vpop.f32.mrb[0].mxu0
    %1316 = vdwg.mxu0
    %1317 = vset.pattern.permute.xlu0 2
    %1318 = vperm.xlu0 %1317, %v249
    %v1319 = vpop.permute.xlu0 %1318
    %v1321 = vmul.f32 %v1319, %v190
    %v1322 = vadd.f32 %v1321, %v204
    %v1323 = vadd.f32 %v1322, %v1171
    %v1324 = vmul.f32 %v1319, %v197
    %v1325 = vadd.f32 %v1324, %v211
    %v1326 = vxor.u32 %v1323, 2147483648
    %v1327 = vmul.f32 %v1326, 1.442695
    %v1328 = vpow.pop %v1327
    %v1329 = vadd.f32 %v1328, 1.0
    %v1330 = vrcp.pop %v1329
    %v1331 = vmul.f32 1.0, %v1330
    %v1332 = vmul.f32 %v1331, %v1241
    %v1333 = vadd.f32 %v1325, %v1332
    %v1334 = vtanh.pop %v1333
    %v1335 = vsub.f32 %v933, %v1334
    %1337 = vrot.lane.b32.xlu0 %v1335, 32
    %v1338 = vpop.permute.xlu0 %1337
    %v1340 = vmul.f32 %v1331, %v1338
    %1342 = vrot.lane.b32.xlu0 %v1340, 96
    %v1343 = vpop.permute.xlu0 %1342
    %v1345 = vadd.f32 %v1334, %v1343
    %1346 = vrot.lane.b32.xlu0 %v1103, 32
    %v1347 = vpop.permute.xlu0 %1346
    %v1349 = vsel %vm250, %v1345, %v1347
    %v1351 = vsel %vm519, %v1349, 0
    %1353 = vmatprep.subr.mxu0 0.0
    %1354 = vmatpush1.msra.mxu0 %v222
    %1355 = vmatprep.subr.mxu0 0.0
    %1356 = vmatpush1.msra.mxu0 %v223
    %1357 = vmatprep.subr.mxu0 0.0
    %1358 = vmatpush1.msra.mxu0 %v224
    %1359 = vmatprep.subr.mxu0 0.0
    %1360 = vmatpush1.msra.mxu0 %v225
    %1361 = vmatprep.subr.mxu0 0.0
    %1362 = vmatpush1.msra.mxu0 %v226
    %1363 = vmatprep.subr.mxu0 0.0
    %1364 = vmatpush1.msra.mxu0 %v227
    %1365 = vmatprep.subr.mxu0 0.0
    %1366 = vmatpush1.msra.mxu0 %v228
    %1367 = vmatprep.subr.mxu0 0.0
    %1368 = vmatpush1.msra.mxu0 %v229
    %1369 = vmatprep.subr.mxu0 0.0
    %1370 = vmatpush1.msra.mxu0 0.0
    %1371 = vmatprep.subr.mxu0 0.0
    %1372 = vmatpush1.msra.mxu0 0.0
    %1373 = vmatprep.subr.mxu0 0.0
    %1374 = vmatpush1.msra.mxu0 0.0
    %1375 = vmatprep.subr.mxu0 0.0
    %1376 = vmatpush1.msra.mxu0 0.0
    %1377 = vmatprep.subr.mxu0 0.0
    %1378 = vmatpush1.msra.mxu0 0.0
    %1379 = vmatprep.subr.mxu0 0.0
    %1380 = vmatpush1.msra.mxu0 0.0
    %1381 = vmatprep.subr.mxu0 0.0
    %1382 = vmatpush1.msra.mxu0 0.0
    %1383 = vmatprep.subr.mxu0 0.0
    %1384 = vmatpush1.msra.mxu0 0.0
    %1385 = vmatprep.subr.mxu0 0.0
    %1386 = vmatpush1.msra.mxu0 0.0
    %1387 = vmatprep.subr.mxu0 0.0
    %1388 = vmatpush1.msra.mxu0 0.0
    %1389 = vmatprep.subr.mxu0 0.0
    %1390 = vmatpush1.msra.mxu0 0.0
    %1391 = vmatprep.subr.mxu0 0.0
    %1392 = vmatpush1.msra.mxu0 0.0
    %1393 = vmatprep.subr.mxu0 0.0
    %1394 = vmatpush1.msra.mxu0 0.0
    %1395 = vmatprep.subr.mxu0 0.0
    %1396 = vmatpush1.msra.mxu0 0.0
    %1397 = vmatprep.subr.mxu0 0.0
    %1398 = vmatpush1.msra.mxu0 0.0
    %1399 = vmatprep.subr.mxu0 0.0
    %1400 = vmatpush1.msra.mxu0 0.0
    %1401 = vmatprep.subr.mxu0 0.0
    %1402 = vmatpush1.msra.mxu0 0.0
    %1403 = vmatprep.subr.mxu0 0.0
    %1404 = vmatpush1.msra.mxu0 0.0
    %1405 = vmatprep.subr.mxu0 0.0
    %1406 = vmatpush1.msra.mxu0 0.0
    %1407 = vmatprep.subr.mxu0 0.0
    %1408 = vmatpush1.msra.mxu0 0.0
    %1409 = vmatprep.subr.mxu0 0.0
    %1410 = vmatpush1.msra.mxu0 0.0
    %1411 = vmatprep.subr.mxu0 0.0
    %1412 = vmatpush1.msra.mxu0 0.0
    %1413 = vmatprep.subr.mxu0 0.0
    %1414 = vmatpush1.msra.mxu0 0.0
    %1415 = vmatprep.subr.mxu0 0.0
    %1416 = vmatpush1.msra.mxu0 0.0
    %1417 = vmatprep.mubr.f32.mxu0 0.0
    %1418 = vmatmul.mubr.f32.gmra.mrb[0].mxu0 %v1351
    %v1419 = vpop.f32.mrb[0].mxu0
    %v1420 = vadd.f32 %v517, %v1419
    %v1421 = vpop.f32.mrb[0].mxu0
    %1422 = vdwg.mxu0
    %v1424 = vsel %vm250, %v1345, 0
    %1426 = vmatprep.subr.mxu0 0.0
    %1427 = vmatpush1.msra.mxu0 %v230
    %1428 = vmatprep.subr.mxu0 0.0
    %1429 = vmatpush1.msra.mxu0 %v231
    %1430 = vmatprep.subr.mxu0 0.0
    %1431 = vmatpush1.msra.mxu0 %v232
    %1432 = vmatprep.subr.mxu0 0.0
    %1433 = vmatpush1.msra.mxu0 %v233
    %1434 = vmatprep.subr.mxu0 0.0
    %1435 = vmatpush1.msra.mxu0 0.0
    %1436 = vmatprep.subr.mxu0 0.0
    %1437 = vmatpush1.msra.mxu0 0.0
    %1438 = vmatprep.subr.mxu0 0.0
    %1439 = vmatpush1.msra.mxu0 0.0
    %1440 = vmatprep.subr.mxu0 0.0
    %1441 = vmatpush1.msra.mxu0 0.0
    %1442 = vmatprep.subr.mxu0 0.0
    %1443 = vmatpush1.msra.mxu0 0.0
    %1444 = vmatprep.subr.mxu0 0.0
    %1445 = vmatpush1.msra.mxu0 0.0
    %1446 = vmatprep.subr.mxu0 0.0
    %1447 = vmatpush1.msra.mxu0 0.0
    %1448 = vmatprep.subr.mxu0 0.0
    %1449 = vmatpush1.msra.mxu0 0.0
    %1450 = vmatprep.subr.mxu0 0.0
    %1451 = vmatpush1.msra.mxu0 0.0
    %1452 = vmatprep.subr.mxu0 0.0
    %1453 = vmatpush1.msra.mxu0 0.0
    %1454 = vmatprep.subr.mxu0 0.0
    %1455 = vmatpush1.msra.mxu0 0.0
    %1456 = vmatprep.subr.mxu0 0.0
    %1457 = vmatpush1.msra.mxu0 0.0
    %1458 = vmatprep.subr.mxu0 0.0
    %1459 = vmatpush1.msra.mxu0 0.0
    %1460 = vmatprep.subr.mxu0 0.0
    %1461 = vmatpush1.msra.mxu0 0.0
    %1462 = vmatprep.subr.mxu0 0.0
    %1463 = vmatpush1.msra.mxu0 0.0
    %1464 = vmatprep.subr.mxu0 0.0
    %1465 = vmatpush1.msra.mxu0 0.0
    %1466 = vmatprep.subr.mxu0 0.0
    %1467 = vmatpush1.msra.mxu0 0.0
    %1468 = vmatprep.subr.mxu0 0.0
    %1469 = vmatpush1.msra.mxu0 0.0
    %1470 = vmatprep.subr.mxu0 0.0
    %1471 = vmatpush1.msra.mxu0 0.0
    %1472 = vmatprep.subr.mxu0 0.0
    %1473 = vmatpush1.msra.mxu0 0.0
    %1474 = vmatprep.subr.mxu0 0.0
    %1475 = vmatpush1.msra.mxu0 0.0
    %1476 = vmatprep.subr.mxu0 0.0
    %1477 = vmatpush1.msra.mxu0 0.0
    %1478 = vmatprep.subr.mxu0 0.0
    %1479 = vmatpush1.msra.mxu0 0.0
    %1480 = vmatprep.subr.mxu0 0.0
    %1481 = vmatpush1.msra.mxu0 0.0
    %1482 = vmatprep.subr.mxu0 0.0
    %1483 = vmatpush1.msra.mxu0 0.0
    %1484 = vmatprep.subr.mxu0 0.0
    %1485 = vmatpush1.msra.mxu0 0.0
    %1486 = vmatprep.subr.mxu0 0.0
    %1487 = vmatpush1.msra.mxu0 0.0
    %1488 = vmatprep.subr.mxu0 0.0
    %1489 = vmatpush1.msra.mxu0 0.0
    %1490 = vmatprep.mubr.f32.mxu0 0.0
    %1491 = vmatmul.mubr.f32.gmra.mrb[0].mxu0 %v1424
    %v1492 = vpop.f32.mrb[0].mxu0
    %v1493 = vadd.f32 %v597, %v1492
    %v1494 = vpop.f32.mrb[0].mxu0
    %1495 = vdwg.mxu0
    %v1496 = vxor.u32 %v1420, 2147483648
    %v1497 = vmul.f32 %v1496, 1.442695
    %v1498 = vpow.pop %v1497
    %v1499 = vadd.f32 %v1498, 1.0
    %v1500 = vrcp.pop %v1499
    %v1501 = vmul.f32 1.0, %v1500
    %v1502 = vmul.f32 %v1501, %v1314
    %v1503 = vadd.f32 %v1493, %v1502
    %v1504 = vtanh.pop %v1503
    %v1505 = vsub.f32 %v1103, %v1504
    %1507 = vrot.lane.b32.xlu0 %v1505, 32
    %v1508 = vpop.permute.xlu0 %1507
    %v1510 = vmul.f32 %v1501, %v1508
    %1512 = vrot.lane.b32.xlu0 %v1510, 96
    %v1513 = vpop.permute.xlu0 %1512
    %v1515 = vadd.f32 %v1504, %v1513
    %1516 = vmatprep.subr.mxu0 0.0
    %1517 = vmatpush1.msra.mxu0 %v213
    %1518 = vmatprep.subr.mxu0 0.0
    %1519 = vmatpush1.msra.mxu0 %v214
    %1520 = vmatprep.subr.mxu0 0.0
    %1521 = vmatpush1.msra.mxu0 %v215
    %1522 = vmatprep.subr.mxu0 0.0
    %1523 = vmatpush1.msra.mxu0 %v216
    %1524 = vmatprep.subr.mxu0 0.0
    %1525 = vmatpush1.msra.mxu0 0.0
    %1526 = vmatprep.subr.mxu0 0.0
    %1527 = vmatpush1.msra.mxu0 0.0
    %1528 = vmatprep.subr.mxu0 0.0
    %1529 = vmatpush1.msra.mxu0 0.0
    %1530 = vmatprep.subr.mxu0 0.0
    %1531 = vmatpush1.msra.mxu0 0.0
    %1532 = vmatprep.subr.mxu0 0.0
    %1533 = vmatpush1.msra.mxu0 0.0
    %1534 = vmatprep.subr.mxu0 0.0
    %1535 = vmatpush1.msra.mxu0 0.0
    %1536 = vmatprep.subr.mxu0 0.0
    %1537 = vmatpush1.msra.mxu0 0.0
    %1538 = vmatprep.subr.mxu0 0.0
    %1539 = vmatpush1.msra.mxu0 0.0
    %1540 = vmatprep.subr.mxu0 0.0
    %1541 = vmatpush1.msra.mxu0 0.0
    %1542 = vmatprep.subr.mxu0 0.0
    %1543 = vmatpush1.msra.mxu0 0.0
    %1544 = vmatprep.subr.mxu0 0.0
    %1545 = vmatpush1.msra.mxu0 0.0
    %1546 = vmatprep.subr.mxu0 0.0
    %1547 = vmatpush1.msra.mxu0 0.0
    %1548 = vmatprep.subr.mxu0 0.0
    %1549 = vmatpush1.msra.mxu0 0.0
    %1550 = vmatprep.subr.mxu0 0.0
    %1551 = vmatpush1.msra.mxu0 0.0
    %1552 = vmatprep.subr.mxu0 0.0
    %1553 = vmatpush1.msra.mxu0 0.0
    %1554 = vmatprep.subr.mxu0 0.0
    %1555 = vmatpush1.msra.mxu0 0.0
    %1556 = vmatprep.subr.mxu0 0.0
    %1557 = vmatpush1.msra.mxu0 0.0
    %1558 = vmatprep.subr.mxu0 0.0
    %1559 = vmatpush1.msra.mxu0 0.0
    %1560 = vmatprep.subr.mxu0 0.0
    %1561 = vmatpush1.msra.mxu0 0.0
    %1562 = vmatprep.subr.mxu0 0.0
    %1563 = vmatpush1.msra.mxu0 0.0
    %1564 = vmatprep.subr.mxu0 0.0
    %1565 = vmatpush1.msra.mxu0 0.0
    %1566 = vmatprep.subr.mxu0 0.0
    %1567 = vmatpush1.msra.mxu0 0.0
    %1568 = vmatprep.subr.mxu0 0.0
    %1569 = vmatpush1.msra.mxu0 0.0
    %1570 = vmatprep.subr.mxu0 0.0
    %1571 = vmatpush1.msra.mxu0 0.0
    %1572 = vmatprep.subr.mxu0 0.0
    %1573 = vmatpush1.msra.mxu0 0.0
    %1574 = vmatprep.subr.mxu0 0.0
    %1575 = vmatpush1.msra.mxu0 0.0
    %1576 = vmatprep.subr.mxu0 0.0
    %1577 = vmatpush1.msra.mxu0 0.0
    %1578 = vmatprep.subr.mxu0 0.0
    %1579 = vmatpush1.msra.mxu0 0.0
    %1580 = vmatprep.mubr.f32.mxu0 0.0
    %1581 = vmatmul.mubr.f32.gmra.mrb[0].mxu0 %v1424
    %v1582 = vpop.f32.mrb[0].mxu0
    %v1583 = vadd.f32 0.0, %v1582
    %v1584 = vpop.f32.mrb[0].mxu0
    %1585 = vdwg.mxu0
    %1586 = vmatprep.subr.mxu0 0.0
    %1587 = vmatpush1.msra.mxu0 %v217
    %1588 = vmatprep.subr.mxu0 0.0
    %1589 = vmatpush1.msra.mxu0 %v218
    %1590 = vmatprep.subr.mxu0 0.0
    %1591 = vmatpush1.msra.mxu0 %v219
    %1592 = vmatprep.subr.mxu0 0.0
    %1593 = vmatpush1.msra.mxu0 %v220
    %1594 = vmatprep.subr.mxu0 0.0
    %1595 = vmatpush1.msra.mxu0 0.0
    %1596 = vmatprep.subr.mxu0 0.0
    %1597 = vmatpush1.msra.mxu0 0.0
    %1598 = vmatprep.subr.mxu0 0.0
    %1599 = vmatpush1.msra.mxu0 0.0
    %1600 = vmatprep.subr.mxu0 0.0
    %1601 = vmatpush1.msra.mxu0 0.0
    %1602 = vmatprep.subr.mxu0 0.0
    %1603 = vmatpush1.msra.mxu0 0.0
    %1604 = vmatprep.subr.mxu0 0.0
    %1605 = vmatpush1.msra.mxu0 0.0
    %1606 = vmatprep.subr.mxu0 0.0
    %1607 = vmatpush1.msra.mxu0 0.0
    %1608 = vmatprep.subr.mxu0 0.0
    %1609 = vmatpush1.msra.mxu0 0.0
    %1610 = vmatprep.subr.mxu0 0.0
    %1611 = vmatpush1.msra.mxu0 0.0
    %1612 = vmatprep.subr.mxu0 0.0
    %1613 = vmatpush1.msra.mxu0 0.0
    %1614 = vmatprep.subr.mxu0 0.0
    %1615 = vmatpush1.msra.mxu0 0.0
    %1616 = vmatprep.subr.mxu0 0.0
    %1617 = vmatpush1.msra.mxu0 0.0
    %1618 = vmatprep.subr.mxu0 0.0
    %1619 = vmatpush1.msra.mxu0 0.0
    %1620 = vmatprep.subr.mxu0 0.0
    %1621 = vmatpush1.msra.mxu0 0.0
    %1622 = vmatprep.subr.mxu0 0.0
    %1623 = vmatpush1.msra.mxu0 0.0
    %1624 = vmatprep.subr.mxu0 0.0
    %1625 = vmatpush1.msra.mxu0 0.0
    %1626 = vmatprep.subr.mxu0 0.0
    %1627 = vmatpush1.msra.mxu0 0.0
    %1628 = vmatprep.subr.mxu0 0.0
    %1629 = vmatpush1.msra.mxu0 0.0
    %1630 = vmatprep.subr.mxu0 0.0
    %1631 = vmatpush1.msra.mxu0 0.0
    %1632 = vmatprep.subr.mxu0 0.0
    %1633 = vmatpush1.msra.mxu0 0.0
    %1634 = vmatprep.subr.mxu0 0.0
    %1635 = vmatpush1.msra.mxu0 0.0
    %1636 = vmatprep.subr.mxu0 0.0
    %1637 = vmatpush1.msra.mxu0 0.0
    %1638 = vmatprep.subr.mxu0 0.0
    %1639 = vmatpush1.msra.mxu0 0.0
    %1640 = vmatprep.subr.mxu0 0.0
    %1641 = vmatpush1.msra.mxu0 0.0
    %1642 = vmatprep.subr.mxu0 0.0
    %1643 = vmatpush1.msra.mxu0 0.0
    %1644 = vmatprep.subr.mxu0 0.0
    %1645 = vmatpush1.msra.mxu0 0.0
    %1646 = vmatprep.subr.mxu0 0.0
    %1647 = vmatpush1.msra.mxu0 0.0
    %1648 = vmatprep.subr.mxu0 0.0
    %1649 = vmatpush1.msra.mxu0 0.0
    %1650 = vmatprep.mubr.f32.mxu0 0.0
    %1651 = vmatmul.mubr.f32.gmra.mrb[0].mxu0 %v1424
    %v1652 = vpop.f32.mrb[0].mxu0
    %v1653 = vadd.f32 %v328, %v1652
    %v1654 = vpop.f32.mrb[0].mxu0
    %1655 = vdwg.mxu0
    %v1657 = vsel %vm250, %v1515, 0
    %1659 = vmatprep.subr.mxu0 0.0
    %1660 = vmatpush1.msra.mxu0 %v234
    %1661 = vmatprep.subr.mxu0 0.0
    %1662 = vmatpush1.msra.mxu0 %v235
    %1663 = vmatprep.subr.mxu0 0.0
    %1664 = vmatpush1.msra.mxu0 %v236
    %1665 = vmatprep.subr.mxu0 0.0
    %1666 = vmatpush1.msra.mxu0 %v237
    %1667 = vmatprep.subr.mxu0 0.0
    %1668 = vmatpush1.msra.mxu0 0.0
    %1669 = vmatprep.subr.mxu0 0.0
    %1670 = vmatpush1.msra.mxu0 0.0
    %1671 = vmatprep.subr.mxu0 0.0
    %1672 = vmatpush1.msra.mxu0 0.0
    %1673 = vmatprep.subr.mxu0 0.0
    %1674 = vmatpush1.msra.mxu0 0.0
    %1675 = vmatprep.subr.mxu0 0.0
    %1676 = vmatpush1.msra.mxu0 0.0
    %1677 = vmatprep.subr.mxu0 0.0
    %1678 = vmatpush1.msra.mxu0 0.0
    %1679 = vmatprep.subr.mxu0 0.0
    %1680 = vmatpush1.msra.mxu0 0.0
    %1681 = vmatprep.subr.mxu0 0.0
    %1682 = vmatpush1.msra.mxu0 0.0
    %1683 = vmatprep.subr.mxu0 0.0
    %1684 = vmatpush1.msra.mxu0 0.0
    %1685 = vmatprep.subr.mxu0 0.0
    %1686 = vmatpush1.msra.mxu0 0.0
    %1687 = vmatprep.subr.mxu0 0.0
    %1688 = vmatpush1.msra.mxu0 0.0
    %1689 = vmatprep.subr.mxu0 0.0
    %1690 = vmatpush1.msra.mxu0 0.0
    %1691 = vmatprep.subr.mxu0 0.0
    %1692 = vmatpush1.msra.mxu0 0.0
    %1693 = vmatprep.subr.mxu0 0.0
    %1694 = vmatpush1.msra.mxu0 0.0
    %1695 = vmatprep.subr.mxu0 0.0
    %1696 = vmatpush1.msra.mxu0 0.0
    %1697 = vmatprep.subr.mxu0 0.0
    %1698 = vmatpush1.msra.mxu0 0.0
    %1699 = vmatprep.subr.mxu0 0.0
    %1700 = vmatpush1.msra.mxu0 0.0
    %1701 = vmatprep.subr.mxu0 0.0
    %1702 = vmatpush1.msra.mxu0 0.0
    %1703 = vmatprep.subr.mxu0 0.0
    %1704 = vmatpush1.msra.mxu0 0.0
    %1705 = vmatprep.subr.mxu0 0.0
    %1706 = vmatpush1.msra.mxu0 0.0
    %1707 = vmatprep.subr.mxu0 0.0
    %1708 = vmatpush1.msra.mxu0 0.0
    %1709 = vmatprep.subr.mxu0 0.0
    %1710 = vmatpush1.msra.mxu0 0.0
    %1711 = vmatprep.subr.mxu0 0.0
    %1712 = vmatpush1.msra.mxu0 0.0
    %1713 = vmatprep.subr.mxu0 0.0
    %1714 = vmatpush1.msra.mxu0 0.0
    %1715 = vmatprep.subr.mxu0 0.0
    %1716 = vmatpush1.msra.mxu0 0.0
    %1717 = vmatprep.subr.mxu0 0.0
    %1718 = vmatpush1.msra.mxu0 0.0
    %1719 = vmatprep.subr.mxu0 0.0
    %1720 = vmatpush1.msra.mxu0 0.0
    %1721 = vmatprep.subr.mxu0 0.0
    %1722 = vmatpush1.msra.mxu0 0.0
    %1723 = vmatprep.mubr.f32.mxu0 0.0
    %1724 = vmatmul.mubr.f32.gmra.mrb[0].mxu0 %v1657
    %v1725 = vpop.f32.mrb[0].mxu0
    %v1726 = vadd.f32 %v404, %v1725
    %v1727 = vpop.f32.mrb[0].mxu0
    %1728 = vdwg.mxu0
    %1729 = vset.pattern.permute.xlu0 3
    %1730 = vperm.xlu0 %1729, %v249
    %v1731 = vpop.permute.xlu0 %1730
    %v1733 = vmul.f32 %v1731, %v190
    %v1734 = vadd.f32 %v1733, %v204
    %v1735 = vadd.f32 %v1734, %v1583
    %v1736 = vmul.f32 %v1731, %v197
    %v1737 = vadd.f32 %v1736, %v211
    %v1738 = vxor.u32 %v1735, 2147483648
    %v1739 = vmul.f32 %v1738, 1.442695
    %v1740 = vpow.pop %v1739
    %v1741 = vadd.f32 %v1740, 1.0
    %v1742 = vrcp.pop %v1741
    %v1743 = vmul.f32 1.0, %v1742
    %v1744 = vmul.f32 %v1743, %v1653
    %v1745 = vadd.f32 %v1737, %v1744
    %v1746 = vtanh.pop %v1745
    %v1747 = vsub.f32 %v1345, %v1746
    %1749 = vrot.lane.b32.xlu0 %v1747, 32
    %v1750 = vpop.permute.xlu0 %1749
    %v1752 = vmul.f32 %v1743, %v1750
    %1754 = vrot.lane.b32.xlu0 %v1752, 96
    %v1755 = vpop.permute.xlu0 %1754
    %v1757 = vadd.f32 %v1746, %v1755
    %1758 = vrot.lane.b32.xlu0 %v1515, 32
    %v1759 = vpop.permute.xlu0 %1758
    %v1761 = vsel %vm250, %v1757, %v1759
    %v1763 = vsel %vm519, %v1761, 0
    %1765 = vmatprep.subr.mxu0 0.0
    %1766 = vmatpush1.msra.mxu0 %v222
    %1767 = vmatprep.subr.mxu0 0.0
    %1768 = vmatpush1.msra.mxu0 %v223
    %1769 = vmatprep.subr.mxu0 0.0
    %1770 = vmatpush1.msra.mxu0 %v224
    %1771 = vmatprep.subr.mxu0 0.0
    %1772 = vmatpush1.msra.mxu0 %v225
    %1773 = vmatprep.subr.mxu0 0.0
    %1774 = vmatpush1.msra.mxu0 %v226
    %1775 = vmatprep.subr.mxu0 0.0
    %1776 = vmatpush1.msra.mxu0 %v227
    %1777 = vmatprep.subr.mxu0 0.0
    %1778 = vmatpush1.msra.mxu0 %v228
    %1779 = vmatprep.subr.mxu0 0.0
    %1780 = vmatpush1.msra.mxu0 %v229
    %1781 = vmatprep.subr.mxu0 0.0
    %1782 = vmatpush1.msra.mxu0 0.0
    %1783 = vmatprep.subr.mxu0 0.0
    %1784 = vmatpush1.msra.mxu0 0.0
    %1785 = vmatprep.subr.mxu0 0.0
    %1786 = vmatpush1.msra.mxu0 0.0
    %1787 = vmatprep.subr.mxu0 0.0
    %1788 = vmatpush1.msra.mxu0 0.0
    %1789 = vmatprep.subr.mxu0 0.0
    %1790 = vmatpush1.msra.mxu0 0.0
    %1791 = vmatprep.subr.mxu0 0.0
    %1792 = vmatpush1.msra.mxu0 0.0
    %1793 = vmatprep.subr.mxu0 0.0
    %1794 = vmatpush1.msra.mxu0 0.0
    %1795 = vmatprep.subr.mxu0 0.0
    %1796 = vmatpush1.msra.mxu0 0.0
    %1797 = vmatprep.subr.mxu0 0.0
    %1798 = vmatpush1.msra.mxu0 0.0
    %1799 = vmatprep.subr.mxu0 0.0
    %1800 = vmatpush1.msra.mxu0 0.0
    %1801 = vmatprep.subr.mxu0 0.0
    %1802 = vmatpush1.msra.mxu0 0.0
    %1803 = vmatprep.subr.mxu0 0.0
    %1804 = vmatpush1.msra.mxu0 0.0
    %1805 = vmatprep.subr.mxu0 0.0
    %1806 = vmatpush1.msra.mxu0 0.0
    %1807 = vmatprep.subr.mxu0 0.0
    %1808 = vmatpush1.msra.mxu0 0.0
    %1809 = vmatprep.subr.mxu0 0.0
    %1810 = vmatpush1.msra.mxu0 0.0
    %1811 = vmatprep.subr.mxu0 0.0
    %1812 = vmatpush1.msra.mxu0 0.0
    %1813 = vmatprep.subr.mxu0 0.0
    %1814 = vmatpush1.msra.mxu0 0.0
    %1815 = vmatprep.subr.mxu0 0.0
    %1816 = vmatpush1.msra.mxu0 0.0
    %1817 = vmatprep.subr.mxu0 0.0
    %1818 = vmatpush1.msra.mxu0 0.0
    %1819 = vmatprep.subr.mxu0 0.0
    %1820 = vmatpush1.msra.mxu0 0.0
    %1821 = vmatprep.subr.mxu0 0.0
    %1822 = vmatpush1.msra.mxu0 0.0
    %1823 = vmatprep.subr.mxu0 0.0
    %1824 = vmatpush1.msra.mxu0 0.0
    %1825 = vmatprep.subr.mxu0 0.0
    %1826 = vmatpush1.msra.mxu0 0.0
    %1827 = vmatprep.subr.mxu0 0.0
    %1828 = vmatpush1.msra.mxu0 0.0
    %1829 = vmatprep.mubr.f32.mxu0 0.0
    %1830 = vmatmul.mubr.f32.gmra.mrb[0].mxu0 %v1763
    %v1831 = vpop.f32.mrb[0].mxu0
    %v1832 = vadd.f32 %v517, %v1831
    %v1833 = vpop.f32.mrb[0].mxu0
    %1834 = vdwg.mxu0
    %v1836 = vsel %vm250, %v1757, 0
    %1838 = vmatprep.subr.mxu0 0.0
    %1839 = vmatpush1.msra.mxu0 %v230
    %1840 = vmatprep.subr.mxu0 0.0
    %1841 = vmatpush1.msra.mxu0 %v231
    %1842 = vmatprep.subr.mxu0 0.0
    %1843 = vmatpush1.msra.mxu0 %v232
    %1844 = vmatprep.subr.mxu0 0.0
    %1845 = vmatpush1.msra.mxu0 %v233
    %1846 = vmatprep.subr.mxu0 0.0
    %1847 = vmatpush1.msra.mxu0 0.0
    %1848 = vmatprep.subr.mxu0 0.0
    %1849 = vmatpush1.msra.mxu0 0.0
    %1850 = vmatprep.subr.mxu0 0.0
    %1851 = vmatpush1.msra.mxu0 0.0
    %1852 = vmatprep.subr.mxu0 0.0
    %1853 = vmatpush1.msra.mxu0 0.0
    %1854 = vmatprep.subr.mxu0 0.0
    %1855 = vmatpush1.msra.mxu0 0.0
    %1856 = vmatprep.subr.mxu0 0.0
    %1857 = vmatpush1.msra.mxu0 0.0
    %1858 = vmatprep.subr.mxu0 0.0
    %1859 = vmatpush1.msra.mxu0 0.0
    %1860 = vmatprep.subr.mxu0 0.0
    %1861 = vmatpush1.msra.mxu0 0.0
    %1862 = vmatprep.subr.mxu0 0.0
    %1863 = vmatpush1.msra.mxu0 0.0
    %1864 = vmatprep.subr.mxu0 0.0
    %1865 = vmatpush1.msra.mxu0 0.0
    %1866 = vmatprep.subr.mxu0 0.0
    %1867 = vmatpush1.msra.mxu0 0.0
    %1868 = vmatprep.subr.mxu0 0.0
    %1869 = vmatpush1.msra.mxu0 0.0
    %1870 = vmatprep.subr.mxu0 0.0
    %1871 = vmatpush1.msra.mxu0 0.0
    %1872 = vmatprep.subr.mxu0 0.0
    %1873 = vmatpush1.msra.mxu0 0.0
    %1874 = vmatprep.subr.mxu0 0.0
    %1875 = vmatpush1.msra.mxu0 0.0
    %1876 = vmatprep.subr.mxu0 0.0
    %1877 = vmatpush1.msra.mxu0 0.0
    %1878 = vmatprep.subr.mxu0 0.0
    %1879 = vmatpush1.msra.mxu0 0.0
    %1880 = vmatprep.subr.mxu0 0.0
    %1881 = vmatpush1.msra.mxu0 0.0
    %1882 = vmatprep.subr.mxu0 0.0
    %1883 = vmatpush1.msra.mxu0 0.0
    %1884 = vmatprep.subr.mxu0 0.0
    %1885 = vmatpush1.msra.mxu0 0.0
    %1886 = vmatprep.subr.mxu0 0.0
    %1887 = vmatpush1.msra.mxu0 0.0
    %1888 = vmatprep.subr.mxu0 0.0
    %1889 = vmatpush1.msra.mxu0 0.0
    %1890 = vmatprep.subr.mxu0 0.0
    %1891 = vmatpush1.msra.mxu0 0.0
    %1892 = vmatprep.subr.mxu0 0.0
    %1893 = vmatpush1.msra.mxu0 0.0
    %1894 = vmatprep.subr.mxu0 0.0
    %1895 = vmatpush1.msra.mxu0 0.0
    %1896 = vmatprep.subr.mxu0 0.0
    %1897 = vmatpush1.msra.mxu0 0.0
    %1898 = vmatprep.subr.mxu0 0.0
    %1899 = vmatpush1.msra.mxu0 0.0
    %1900 = vmatprep.subr.mxu0 0.0
    %1901 = vmatpush1.msra.mxu0 0.0
    %1902 = vmatprep.mubr.f32.mxu0 0.0
    %1903 = vmatmul.mubr.f32.gmra.mrb[0].mxu0 %v1836
    %v1904 = vpop.f32.mrb[0].mxu0
    %v1905 = vadd.f32 %v597, %v1904
    %v1906 = vpop.f32.mrb[0].mxu0
    %1907 = vdwg.mxu0
    %v1908 = vxor.u32 %v1832, 2147483648
    %v1909 = vmul.f32 %v1908, 1.442695
    %v1910 = vpow.pop %v1909
    %v1911 = vadd.f32 %v1910, 1.0
    %v1912 = vrcp.pop %v1911
    %v1913 = vmul.f32 1.0, %v1912
    %v1914 = vmul.f32 %v1913, %v1726
    %v1915 = vadd.f32 %v1905, %v1914
    %v1916 = vtanh.pop %v1915
    %v1917 = vsub.f32 %v1515, %v1916
    %1919 = vrot.lane.b32.xlu0 %v1917, 32
    %v1920 = vpop.permute.xlu0 %1919
    %v1922 = vmul.f32 %v1913, %v1920
    %1924 = vrot.lane.b32.xlu0 %v1922, 96
    %v1925 = vpop.permute.xlu0 %1924
    %v1927 = vadd.f32 %v1916, %v1925
    %1928 = vmatprep.subr.mxu0 0.0
    %1929 = vmatpush1.msra.mxu0 %v213
    %1930 = vmatprep.subr.mxu0 0.0
    %1931 = vmatpush1.msra.mxu0 %v214
    %1932 = vmatprep.subr.mxu0 0.0
    %1933 = vmatpush1.msra.mxu0 %v215
    %1934 = vmatprep.subr.mxu0 0.0
    %1935 = vmatpush1.msra.mxu0 %v216
    %1936 = vmatprep.subr.mxu0 0.0
    %1937 = vmatpush1.msra.mxu0 0.0
    %1938 = vmatprep.subr.mxu0 0.0
    %1939 = vmatpush1.msra.mxu0 0.0
    %1940 = vmatprep.subr.mxu0 0.0
    %1941 = vmatpush1.msra.mxu0 0.0
    %1942 = vmatprep.subr.mxu0 0.0
    %1943 = vmatpush1.msra.mxu0 0.0
    %1944 = vmatprep.subr.mxu0 0.0
    %1945 = vmatpush1.msra.mxu0 0.0
    %1946 = vmatprep.subr.mxu0 0.0
    %1947 = vmatpush1.msra.mxu0 0.0
    %1948 = vmatprep.subr.mxu0 0.0
    %1949 = vmatpush1.msra.mxu0 0.0
    %1950 = vmatprep.subr.mxu0 0.0
    %1951 = vmatpush1.msra.mxu0 0.0
    %1952 = vmatprep.subr.mxu0 0.0
    %1953 = vmatpush1.msra.mxu0 0.0
    %1954 = vmatprep.subr.mxu0 0.0
    %1955 = vmatpush1.msra.mxu0 0.0
    %1956 = vmatprep.subr.mxu0 0.0
    %1957 = vmatpush1.msra.mxu0 0.0
    %1958 = vmatprep.subr.mxu0 0.0
    %1959 = vmatpush1.msra.mxu0 0.0
    %1960 = vmatprep.subr.mxu0 0.0
    %1961 = vmatpush1.msra.mxu0 0.0
    %1962 = vmatprep.subr.mxu0 0.0
    %1963 = vmatpush1.msra.mxu0 0.0
    %1964 = vmatprep.subr.mxu0 0.0
    %1965 = vmatpush1.msra.mxu0 0.0
    %1966 = vmatprep.subr.mxu0 0.0
    %1967 = vmatpush1.msra.mxu0 0.0
    %1968 = vmatprep.subr.mxu0 0.0
    %1969 = vmatpush1.msra.mxu0 0.0
    %1970 = vmatprep.subr.mxu0 0.0
    %1971 = vmatpush1.msra.mxu0 0.0
    %1972 = vmatprep.subr.mxu0 0.0
    %1973 = vmatpush1.msra.mxu0 0.0
    %1974 = vmatprep.subr.mxu0 0.0
    %1975 = vmatpush1.msra.mxu0 0.0
    %1976 = vmatprep.subr.mxu0 0.0
    %1977 = vmatpush1.msra.mxu0 0.0
    %1978 = vmatprep.subr.mxu0 0.0
    %1979 = vmatpush1.msra.mxu0 0.0
    %1980 = vmatprep.subr.mxu0 0.0
    %1981 = vmatpush1.msra.mxu0 0.0
    %1982 = vmatprep.subr.mxu0 0.0
    %1983 = vmatpush1.msra.mxu0 0.0
    %1984 = vmatprep.subr.mxu0 0.0
    %1985 = vmatpush1.msra.mxu0 0.0
    %1986 = vmatprep.subr.mxu0 0.0
    %1987 = vmatpush1.msra.mxu0 0.0
    %1988 = vmatprep.subr.mxu0 0.0
    %1989 = vmatpush1.msra.mxu0 0.0
    %1990 = vmatprep.subr.mxu0 0.0
    %1991 = vmatpush1.msra.mxu0 0.0
    %1992 = vmatprep.mubr.f32.mxu0 0.0
    %1993 = vmatmul.mubr.f32.gmra.mrb[0].mxu0 %v1836
    %v1994 = vpop.f32.mrb[0].mxu0
    %v1995 = vadd.f32 0.0, %v1994
    %v1996 = vpop.f32.mrb[0].mxu0
    %1997 = vdwg.mxu0
    %1998 = vmatprep.subr.mxu0 0.0
    %1999 = vmatpush1.msra.mxu0 %v217
    %2000 = vmatprep.subr.mxu0 0.0
    %2001 = vmatpush1.msra.mxu0 %v218
    %2002 = vmatprep.subr.mxu0 0.0
    %2003 = vmatpush1.msra.mxu0 %v219
    %2004 = vmatprep.subr.mxu0 0.0
    %2005 = vmatpush1.msra.mxu0 %v220
    %2006 = vmatprep.subr.mxu0 0.0
    %2007 = vmatpush1.msra.mxu0 0.0
    %2008 = vmatprep.subr.mxu0 0.0
    %2009 = vmatpush1.msra.mxu0 0.0
    %2010 = vmatprep.subr.mxu0 0.0
    %2011 = vmatpush1.msra.mxu0 0.0
    %2012 = vmatprep.subr.mxu0 0.0
    %2013 = vmatpush1.msra.mxu0 0.0
    %2014 = vmatprep.subr.mxu0 0.0
    %2015 = vmatpush1.msra.mxu0 0.0
    %2016 = vmatprep.subr.mxu0 0.0
    %2017 = vmatpush1.msra.mxu0 0.0
    %2018 = vmatprep.subr.mxu0 0.0
    %2019 = vmatpush1.msra.mxu0 0.0
    %2020 = vmatprep.subr.mxu0 0.0
    %2021 = vmatpush1.msra.mxu0 0.0
    %2022 = vmatprep.subr.mxu0 0.0
    %2023 = vmatpush1.msra.mxu0 0.0
    %2024 = vmatprep.subr.mxu0 0.0
    %2025 = vmatpush1.msra.mxu0 0.0
    %2026 = vmatprep.subr.mxu0 0.0
    %2027 = vmatpush1.msra.mxu0 0.0
    %2028 = vmatprep.subr.mxu0 0.0
    %2029 = vmatpush1.msra.mxu0 0.0
    %2030 = vmatprep.subr.mxu0 0.0
    %2031 = vmatpush1.msra.mxu0 0.0
    %2032 = vmatprep.subr.mxu0 0.0
    %2033 = vmatpush1.msra.mxu0 0.0
    %2034 = vmatprep.subr.mxu0 0.0
    %2035 = vmatpush1.msra.mxu0 0.0
    %2036 = vmatprep.subr.mxu0 0.0
    %2037 = vmatpush1.msra.mxu0 0.0
    %2038 = vmatprep.subr.mxu0 0.0
    %2039 = vmatpush1.msra.mxu0 0.0
    %2040 = vmatprep.subr.mxu0 0.0
    %2041 = vmatpush1.msra.mxu0 0.0
    %2042 = vmatprep.subr.mxu0 0.0
    %2043 = vmatpush1.msra.mxu0 0.0
    %2044 = vmatprep.subr.mxu0 0.0
    %2045 = vmatpush1.msra.mxu0 0.0
    %2046 = vmatprep.subr.mxu0 0.0
    %2047 = vmatpush1.msra.mxu0 0.0
    %2048 = vmatprep.subr.mxu0 0.0
    %2049 = vmatpush1.msra.mxu0 0.0
    %2050 = vmatprep.subr.mxu0 0.0
    %2051 = vmatpush1.msra.mxu0 0.0
    %2052 = vmatprep.subr.mxu0 0.0
    %2053 = vmatpush1.msra.mxu0 0.0
    %2054 = vmatprep.subr.mxu0 0.0
    %2055 = vmatpush1.msra.mxu0 0.0
    %2056 = vmatprep.subr.mxu0 0.0
    %2057 = vmatpush1.msra.mxu0 0.0
    %2058 = vmatprep.subr.mxu0 0.0
    %2059 = vmatpush1.msra.mxu0 0.0
    %2060 = vmatprep.subr.mxu0 0.0
    %2061 = vmatpush1.msra.mxu0 0.0
    %2062 = vmatprep.mubr.f32.mxu0 0.0
    %2063 = vmatmul.mubr.f32.gmra.mrb[0].mxu0 %v1836
    %v2064 = vpop.f32.mrb[0].mxu0
    %v2065 = vadd.f32 %v328, %v2064
    %v2066 = vpop.f32.mrb[0].mxu0
    %2067 = vdwg.mxu0
    %v2069 = vsel %vm250, %v1927, 0
    %2071 = vmatprep.subr.mxu0 0.0
    %2072 = vmatpush1.msra.mxu0 %v234
    %2073 = vmatprep.subr.mxu0 0.0
    %2074 = vmatpush1.msra.mxu0 %v235
    %2075 = vmatprep.subr.mxu0 0.0
    %2076 = vmatpush1.msra.mxu0 %v236
    %2077 = vmatprep.subr.mxu0 0.0
    %2078 = vmatpush1.msra.mxu0 %v237
    %2079 = vmatprep.subr.mxu0 0.0
    %2080 = vmatpush1.msra.mxu0 0.0
    %2081 = vmatprep.subr.mxu0 0.0
    %2082 = vmatpush1.msra.mxu0 0.0
    %2083 = vmatprep.subr.mxu0 0.0
    %2084 = vmatpush1.msra.mxu0 0.0
    %2085 = vmatprep.subr.mxu0 0.0
    %2086 = vmatpush1.msra.mxu0 0.0
    %2087 = vmatprep.subr.mxu0 0.0
    %2088 = vmatpush1.msra.mxu0 0.0
    %2089 = vmatprep.subr.mxu0 0.0
    %2090 = vmatpush1.msra.mxu0 0.0
    %2091 = vmatprep.subr.mxu0 0.0
    %2092 = vmatpush1.msra.mxu0 0.0
    %2093 = vmatprep.subr.mxu0 0.0
    %2094 = vmatpush1.msra.mxu0 0.0
    %2095 = vmatprep.subr.mxu0 0.0
    %2096 = vmatpush1.msra.mxu0 0.0
    %2097 = vmatprep.subr.mxu0 0.0
    %2098 = vmatpush1.msra.mxu0 0.0
    %2099 = vmatprep.subr.mxu0 0.0
    %2100 = vmatpush1.msra.mxu0 0.0
    %2101 = vmatprep.subr.mxu0 0.0
    %2102 = vmatpush1.msra.mxu0 0.0
    %2103 = vmatprep.subr.mxu0 0.0
    %2104 = vmatpush1.msra.mxu0 0.0
    %2105 = vmatprep.subr.mxu0 0.0
    %2106 = vmatpush1.msra.mxu0 0.0
    %2107 = vmatprep.subr.mxu0 0.0
    %2108 = vmatpush1.msra.mxu0 0.0
    %2109 = vmatprep.subr.mxu0 0.0
    %2110 = vmatpush1.msra.mxu0 0.0
    %2111 = vmatprep.subr.mxu0 0.0
    %2112 = vmatpush1.msra.mxu0 0.0
    %2113 = vmatprep.subr.mxu0 0.0
    %2114 = vmatpush1.msra.mxu0 0.0
    %2115 = vmatprep.subr.mxu0 0.0
    %2116 = vmatpush1.msra.mxu0 0.0
    %2117 = vmatprep.subr.mxu0 0.0
    %2118 = vmatpush1.msra.mxu0 0.0
    %2119 = vmatprep.subr.mxu0 0.0
    %2120 = vmatpush1.msra.mxu0 0.0
    %2121 = vmatprep.subr.mxu0 0.0
    %2122 = vmatpush1.msra.mxu0 0.0
    %2123 = vmatprep.subr.mxu0 0.0
    %2124 = vmatpush1.msra.mxu0 0.0
    %2125 = vmatprep.subr.mxu0 0.0
    %2126 = vmatpush1.msra.mxu0 0.0
    %2127 = vmatprep.subr.mxu0 0.0
    %2128 = vmatpush1.msra.mxu0 0.0
    %2129 = vmatprep.subr.mxu0 0.0
    %2130 = vmatpush1.msra.mxu0 0.0
    %2131 = vmatprep.subr.mxu0 0.0
    %2132 = vmatpush1.msra.mxu0 0.0
    %2133 = vmatprep.subr.mxu0 0.0
    %2134 = vmatpush1.msra.mxu0 0.0
    %2135 = vmatprep.mubr.f32.mxu0 0.0
    %2136 = vmatmul.mubr.f32.gmra.mrb[0].mxu0 %v2069
    %v2137 = vpop.f32.mrb[0].mxu0
    %v2138 = vadd.f32 %v404, %v2137
    %v2139 = vpop.f32.mrb[0].mxu0
    %2140 = vdwg.mxu0
    %2141 = vset.pattern.permute.xlu0 4
    %2142 = vperm.xlu0 %2141, %v249
    %v2143 = vpop.permute.xlu0 %2142
    %v2145 = vmul.f32 %v2143, %v190
    %v2146 = vadd.f32 %v2145, %v204
    %v2147 = vadd.f32 %v2146, %v1995
    %v2148 = vmul.f32 %v2143, %v197
    %v2149 = vadd.f32 %v2148, %v211
    %v2150 = vxor.u32 %v2147, 2147483648
    %v2151 = vmul.f32 %v2150, 1.442695
    %v2152 = vpow.pop %v2151
    %v2153 = vadd.f32 %v2152, 1.0
    %v2154 = vrcp.pop %v2153
    %v2155 = vmul.f32 1.0, %v2154
    %v2156 = vmul.f32 %v2155, %v2065
    %v2157 = vadd.f32 %v2149, %v2156
    %v2158 = vtanh.pop %v2157
    %v2159 = vsub.f32 %v1757, %v2158
    %2161 = vrot.lane.b32.xlu0 %v2159, 32
    %v2162 = vpop.permute.xlu0 %2161
    %v2164 = vmul.f32 %v2155, %v2162
    %2166 = vrot.lane.b32.xlu0 %v2164, 96
    %v2167 = vpop.permute.xlu0 %2166
    %v2169 = vadd.f32 %v2158, %v2167
    %2170 = vrot.lane.b32.xlu0 %v1927, 32
    %v2171 = vpop.permute.xlu0 %2170
    %v2173 = vsel %vm250, %v2169, %v2171
    %v2175 = vsel %vm519, %v2173, 0
    %2177 = vmatprep.subr.mxu0 0.0
    %2178 = vmatpush1.msra.mxu0 %v222
    %2179 = vmatprep.subr.mxu0 0.0
    %2180 = vmatpush1.msra.mxu0 %v223
    %2181 = vmatprep.subr.mxu0 0.0
    %2182 = vmatpush1.msra.mxu0 %v224
    %2183 = vmatprep.subr.mxu0 0.0
    %2184 = vmatpush1.msra.mxu0 %v225
    %2185 = vmatprep.subr.mxu0 0.0
    %2186 = vmatpush1.msra.mxu0 %v226
    %2187 = vmatprep.subr.mxu0 0.0
    %2188 = vmatpush1.msra.mxu0 %v227
    %2189 = vmatprep.subr.mxu0 0.0
    %2190 = vmatpush1.msra.mxu0 %v228
    %2191 = vmatprep.subr.mxu0 0.0
    %2192 = vmatpush1.msra.mxu0 %v229
    %2193 = vmatprep.subr.mxu0 0.0
    %2194 = vmatpush1.msra.mxu0 0.0
    %2195 = vmatprep.subr.mxu0 0.0
    %2196 = vmatpush1.msra.mxu0 0.0
    %2197 = vmatprep.subr.mxu0 0.0
    %2198 = vmatpush1.msra.mxu0 0.0
    %2199 = vmatprep.subr.mxu0 0.0
    %2200 = vmatpush1.msra.mxu0 0.0
    %2201 = vmatprep.subr.mxu0 0.0
    %2202 = vmatpush1.msra.mxu0 0.0
    %2203 = vmatprep.subr.mxu0 0.0
    %2204 = vmatpush1.msra.mxu0 0.0
    %2205 = vmatprep.subr.mxu0 0.0
    %2206 = vmatpush1.msra.mxu0 0.0
    %2207 = vmatprep.subr.mxu0 0.0
    %2208 = vmatpush1.msra.mxu0 0.0
    %2209 = vmatprep.subr.mxu0 0.0
    %2210 = vmatpush1.msra.mxu0 0.0
    %2211 = vmatprep.subr.mxu0 0.0
    %2212 = vmatpush1.msra.mxu0 0.0
    %2213 = vmatprep.subr.mxu0 0.0
    %2214 = vmatpush1.msra.mxu0 0.0
    %2215 = vmatprep.subr.mxu0 0.0
    %2216 = vmatpush1.msra.mxu0 0.0
    %2217 = vmatprep.subr.mxu0 0.0
    %2218 = vmatpush1.msra.mxu0 0.0
    %2219 = vmatprep.subr.mxu0 0.0
    %2220 = vmatpush1.msra.mxu0 0.0
    %2221 = vmatprep.subr.mxu0 0.0
    %2222 = vmatpush1.msra.mxu0 0.0
    %2223 = vmatprep.subr.mxu0 0.0
    %2224 = vmatpush1.msra.mxu0 0.0
    %2225 = vmatprep.subr.mxu0 0.0
    %2226 = vmatpush1.msra.mxu0 0.0
    %2227 = vmatprep.subr.mxu0 0.0
    %2228 = vmatpush1.msra.mxu0 0.0
    %2229 = vmatprep.subr.mxu0 0.0
    %2230 = vmatpush1.msra.mxu0 0.0
    %2231 = vmatprep.subr.mxu0 0.0
    %2232 = vmatpush1.msra.mxu0 0.0
    %2233 = vmatprep.subr.mxu0 0.0
    %2234 = vmatpush1.msra.mxu0 0.0
    %2235 = vmatprep.subr.mxu0 0.0
    %2236 = vmatpush1.msra.mxu0 0.0
    %2237 = vmatprep.subr.mxu0 0.0
    %2238 = vmatpush1.msra.mxu0 0.0
    %2239 = vmatprep.subr.mxu0 0.0
    %2240 = vmatpush1.msra.mxu0 0.0
    %2241 = vmatprep.mubr.f32.mxu0 0.0
    %2242 = vmatmul.mubr.f32.gmra.mrb[0].mxu0 %v2175
    %v2243 = vpop.f32.mrb[0].mxu0
    %v2244 = vadd.f32 %v517, %v2243
    %v2245 = vpop.f32.mrb[0].mxu0
    %2246 = vdwg.mxu0
    %v2248 = vsel %vm250, %v2169, 0
    %2250 = vmatprep.subr.mxu0 0.0
    %2251 = vmatpush1.msra.mxu0 %v230
    %2252 = vmatprep.subr.mxu0 0.0
    %2253 = vmatpush1.msra.mxu0 %v231
    %2254 = vmatprep.subr.mxu0 0.0
    %2255 = vmatpush1.msra.mxu0 %v232
    %2256 = vmatprep.subr.mxu0 0.0
    %2257 = vmatpush1.msra.mxu0 %v233
    %2258 = vmatprep.subr.mxu0 0.0
    %2259 = vmatpush1.msra.mxu0 0.0
    %2260 = vmatprep.subr.mxu0 0.0
    %2261 = vmatpush1.msra.mxu0 0.0
    %2262 = vmatprep.subr.mxu0 0.0
    %2263 = vmatpush1.msra.mxu0 0.0
    %2264 = vmatprep.subr.mxu0 0.0
    %2265 = vmatpush1.msra.mxu0 0.0
    %2266 = vmatprep.subr.mxu0 0.0
    %2267 = vmatpush1.msra.mxu0 0.0
    %2268 = vmatprep.subr.mxu0 0.0
    %2269 = vmatpush1.msra.mxu0 0.0
    %2270 = vmatprep.subr.mxu0 0.0
    %2271 = vmatpush1.msra.mxu0 0.0
    %2272 = vmatprep.subr.mxu0 0.0
    %2273 = vmatpush1.msra.mxu0 0.0
    %2274 = vmatprep.subr.mxu0 0.0
    %2275 = vmatpush1.msra.mxu0 0.0
    %2276 = vmatprep.subr.mxu0 0.0
    %2277 = vmatpush1.msra.mxu0 0.0
    %2278 = vmatprep.subr.mxu0 0.0
    %2279 = vmatpush1.msra.mxu0 0.0
    %2280 = vmatprep.subr.mxu0 0.0
    %2281 = vmatpush1.msra.mxu0 0.0
    %2282 = vmatprep.subr.mxu0 0.0
    %2283 = vmatpush1.msra.mxu0 0.0
    %2284 = vmatprep.subr.mxu0 0.0
    %2285 = vmatpush1.msra.mxu0 0.0
    %2286 = vmatprep.subr.mxu0 0.0
    %2287 = vmatpush1.msra.mxu0 0.0
    %2288 = vmatprep.subr.mxu0 0.0
    %2289 = vmatpush1.msra.mxu0 0.0
    %2290 = vmatprep.subr.mxu0 0.0
    %2291 = vmatpush1.msra.mxu0 0.0
    %2292 = vmatprep.subr.mxu0 0.0
    %2293 = vmatpush1.msra.mxu0 0.0
    %2294 = vmatprep.subr.mxu0 0.0
    %2295 = vmatpush1.msra.mxu0 0.0
    %2296 = vmatprep.subr.mxu0 0.0
    %2297 = vmatpush1.msra.mxu0 0.0
    %2298 = vmatprep.subr.mxu0 0.0
    %2299 = vmatpush1.msra.mxu0 0.0
    %2300 = vmatprep.subr.mxu0 0.0
    %2301 = vmatpush1.msra.mxu0 0.0
    %2302 = vmatprep.subr.mxu0 0.0
    %2303 = vmatpush1.msra.mxu0 0.0
    %2304 = vmatprep.subr.mxu0 0.0
    %2305 = vmatpush1.msra.mxu0 0.0
    %2306 = vmatprep.subr.mxu0 0.0
    %2307 = vmatpush1.msra.mxu0 0.0
    %2308 = vmatprep.subr.mxu0 0.0
    %2309 = vmatpush1.msra.mxu0 0.0
    %2310 = vmatprep.subr.mxu0 0.0
    %2311 = vmatpush1.msra.mxu0 0.0
    %2312 = vmatprep.subr.mxu0 0.0
    %2313 = vmatpush1.msra.mxu0 0.0
    %2314 = vmatprep.mubr.f32.mxu0 0.0
    %2315 = vmatmul.mubr.f32.gmra.mrb[0].mxu0 %v2248
    %v2316 = vpop.f32.mrb[0].mxu0
    %v2317 = vadd.f32 %v597, %v2316
    %v2318 = vpop.f32.mrb[0].mxu0
    %2319 = vdwg.mxu0
    %v2320 = vxor.u32 %v2244, 2147483648
    %v2321 = vmul.f32 %v2320, 1.442695
    %v2322 = vpow.pop %v2321
    %v2323 = vadd.f32 %v2322, 1.0
    %v2324 = vrcp.pop %v2323
    %v2325 = vmul.f32 1.0, %v2324
    %v2326 = vmul.f32 %v2325, %v2138
    %v2327 = vadd.f32 %v2317, %v2326
    %v2328 = vtanh.pop %v2327
    %v2329 = vsub.f32 %v1927, %v2328
    %2331 = vrot.lane.b32.xlu0 %v2329, 32
    %v2332 = vpop.permute.xlu0 %2331
    %v2334 = vmul.f32 %v2325, %v2332
    %2336 = vrot.lane.b32.xlu0 %v2334, 96
    %v2337 = vpop.permute.xlu0 %2336
    %v2339 = vadd.f32 %v2328, %v2337
    %2340 = vmatprep.subr.mxu0 0.0
    %2341 = vmatpush1.msra.mxu0 %v213
    %2342 = vmatprep.subr.mxu0 0.0
    %2343 = vmatpush1.msra.mxu0 %v214
    %2344 = vmatprep.subr.mxu0 0.0
    %2345 = vmatpush1.msra.mxu0 %v215
    %2346 = vmatprep.subr.mxu0 0.0
    %2347 = vmatpush1.msra.mxu0 %v216
    %2348 = vmatprep.subr.mxu0 0.0
    %2349 = vmatpush1.msra.mxu0 0.0
    %2350 = vmatprep.subr.mxu0 0.0
    %2351 = vmatpush1.msra.mxu0 0.0
    %2352 = vmatprep.subr.mxu0 0.0
    %2353 = vmatpush1.msra.mxu0 0.0
    %2354 = vmatprep.subr.mxu0 0.0
    %2355 = vmatpush1.msra.mxu0 0.0
    %2356 = vmatprep.subr.mxu0 0.0
    %2357 = vmatpush1.msra.mxu0 0.0
    %2358 = vmatprep.subr.mxu0 0.0
    %2359 = vmatpush1.msra.mxu0 0.0
    %2360 = vmatprep.subr.mxu0 0.0
    %2361 = vmatpush1.msra.mxu0 0.0
    %2362 = vmatprep.subr.mxu0 0.0
    %2363 = vmatpush1.msra.mxu0 0.0
    %2364 = vmatprep.subr.mxu0 0.0
    %2365 = vmatpush1.msra.mxu0 0.0
    %2366 = vmatprep.subr.mxu0 0.0
    %2367 = vmatpush1.msra.mxu0 0.0
    %2368 = vmatprep.subr.mxu0 0.0
    %2369 = vmatpush1.msra.mxu0 0.0
    %2370 = vmatprep.subr.mxu0 0.0
    %2371 = vmatpush1.msra.mxu0 0.0
    %2372 = vmatprep.subr.mxu0 0.0
    %2373 = vmatpush1.msra.mxu0 0.0
    %2374 = vmatprep.subr.mxu0 0.0
    %2375 = vmatpush1.msra.mxu0 0.0
    %2376 = vmatprep.subr.mxu0 0.0
    %2377 = vmatpush1.msra.mxu0 0.0
    %2378 = vmatprep.subr.mxu0 0.0
    %2379 = vmatpush1.msra.mxu0 0.0
    %2380 = vmatprep.subr.mxu0 0.0
    %2381 = vmatpush1.msra.mxu0 0.0
    %2382 = vmatprep.subr.mxu0 0.0
    %2383 = vmatpush1.msra.mxu0 0.0
    %2384 = vmatprep.subr.mxu0 0.0
    %2385 = vmatpush1.msra.mxu0 0.0
    %2386 = vmatprep.subr.mxu0 0.0
    %2387 = vmatpush1.msra.mxu0 0.0
    %2388 = vmatprep.subr.mxu0 0.0
    %2389 = vmatpush1.msra.mxu0 0.0
    %2390 = vmatprep.subr.mxu0 0.0
    %2391 = vmatpush1.msra.mxu0 0.0
    %2392 = vmatprep.subr.mxu0 0.0
    %2393 = vmatpush1.msra.mxu0 0.0
    %2394 = vmatprep.subr.mxu0 0.0
    %2395 = vmatpush1.msra.mxu0 0.0
    %2396 = vmatprep.subr.mxu0 0.0
    %2397 = vmatpush1.msra.mxu0 0.0
    %2398 = vmatprep.subr.mxu0 0.0
    %2399 = vmatpush1.msra.mxu0 0.0
    %2400 = vmatprep.subr.mxu0 0.0
    %2401 = vmatpush1.msra.mxu0 0.0
    %2402 = vmatprep.subr.mxu0 0.0
    %2403 = vmatpush1.msra.mxu0 0.0
    %2404 = vmatprep.mubr.f32.mxu0 0.0
    %2405 = vmatmul.mubr.f32.gmra.mrb[0].mxu0 %v2248
    %v2406 = vpop.f32.mrb[0].mxu0
    %v2407 = vadd.f32 0.0, %v2406
    %v2408 = vpop.f32.mrb[0].mxu0
    %2409 = vdwg.mxu0
    %2410 = vmatprep.subr.mxu0 0.0
    %2411 = vmatpush1.msra.mxu0 %v217
    %2412 = vmatprep.subr.mxu0 0.0
    %2413 = vmatpush1.msra.mxu0 %v218
    %2414 = vmatprep.subr.mxu0 0.0
    %2415 = vmatpush1.msra.mxu0 %v219
    %2416 = vmatprep.subr.mxu0 0.0
    %2417 = vmatpush1.msra.mxu0 %v220
    %2418 = vmatprep.subr.mxu0 0.0
    %2419 = vmatpush1.msra.mxu0 0.0
    %2420 = vmatprep.subr.mxu0 0.0
    %2421 = vmatpush1.msra.mxu0 0.0
    %2422 = vmatprep.subr.mxu0 0.0
    %2423 = vmatpush1.msra.mxu0 0.0
    %2424 = vmatprep.subr.mxu0 0.0
    %2425 = vmatpush1.msra.mxu0 0.0
    %2426 = vmatprep.subr.mxu0 0.0
    %2427 = vmatpush1.msra.mxu0 0.0
    %2428 = vmatprep.subr.mxu0 0.0
    %2429 = vmatpush1.msra.mxu0 0.0
    %2430 = vmatprep.subr.mxu0 0.0
    %2431 = vmatpush1.msra.mxu0 0.0
    %2432 = vmatprep.subr.mxu0 0.0
    %2433 = vmatpush1.msra.mxu0 0.0
    %2434 = vmatprep.subr.mxu0 0.0
    %2435 = vmatpush1.msra.mxu0 0.0
    %2436 = vmatprep.subr.mxu0 0.0
    %2437 = vmatpush1.msra.mxu0 0.0
    %2438 = vmatprep.subr.mxu0 0.0
    %2439 = vmatpush1.msra.mxu0 0.0
    %2440 = vmatprep.subr.mxu0 0.0
    %2441 = vmatpush1.msra.mxu0 0.0
    %2442 = vmatprep.subr.mxu0 0.0
    %2443 = vmatpush1.msra.mxu0 0.0
    %2444 = vmatprep.subr.mxu0 0.0
    %2445 = vmatpush1.msra.mxu0 0.0
    %2446 = vmatprep.subr.mxu0 0.0
    %2447 = vmatpush1.msra.mxu0 0.0
    %2448 = vmatprep.subr.mxu0 0.0
    %2449 = vmatpush1.msra.mxu0 0.0
    %2450 = vmatprep.subr.mxu0 0.0
    %2451 = vmatpush1.msra.mxu0 0.0
    %2452 = vmatprep.subr.mxu0 0.0
    %2453 = vmatpush1.msra.mxu0 0.0
    %2454 = vmatprep.subr.mxu0 0.0
    %2455 = vmatpush1.msra.mxu0 0.0
    %2456 = vmatprep.subr.mxu0 0.0
    %2457 = vmatpush1.msra.mxu0 0.0
    %2458 = vmatprep.subr.mxu0 0.0
    %2459 = vmatpush1.msra.mxu0 0.0
    %2460 = vmatprep.subr.mxu0 0.0
    %2461 = vmatpush1.msra.mxu0 0.0
    %2462 = vmatprep.subr.mxu0 0.0
    %2463 = vmatpush1.msra.mxu0 0.0
    %2464 = vmatprep.subr.mxu0 0.0
    %2465 = vmatpush1.msra.mxu0 0.0
    %2466 = vmatprep.subr.mxu0 0.0
    %2467 = vmatpush1.msra.mxu0 0.0
    %2468 = vmatprep.subr.mxu0 0.0
    %2469 = vmatpush1.msra.mxu0 0.0
    %2470 = vmatprep.subr.mxu0 0.0
    %2471 = vmatpush1.msra.mxu0 0.0
    %2472 = vmatprep.subr.mxu0 0.0
    %2473 = vmatpush1.msra.mxu0 0.0
    %2474 = vmatprep.mubr.f32.mxu0 0.0
    %2475 = vmatmul.mubr.f32.gmra.mrb[0].mxu0 %v2248
    %v2476 = vpop.f32.mrb[0].mxu0
    %v2477 = vadd.f32 %v328, %v2476
    %v2478 = vpop.f32.mrb[0].mxu0
    %2479 = vdwg.mxu0
    %v2481 = vsel %vm250, %v2339, 0
    %2483 = vmatprep.subr.mxu0 0.0
    %2484 = vmatpush1.msra.mxu0 %v234
    %2485 = vmatprep.subr.mxu0 0.0
    %2486 = vmatpush1.msra.mxu0 %v235
    %2487 = vmatprep.subr.mxu0 0.0
    %2488 = vmatpush1.msra.mxu0 %v236
    %2489 = vmatprep.subr.mxu0 0.0
    %2490 = vmatpush1.msra.mxu0 %v237
    %2491 = vmatprep.subr.mxu0 0.0
    %2492 = vmatpush1.msra.mxu0 0.0
    %2493 = vmatprep.subr.mxu0 0.0
    %2494 = vmatpush1.msra.mxu0 0.0
    %2495 = vmatprep.subr.mxu0 0.0
    %2496 = vmatpush1.msra.mxu0 0.0
    %2497 = vmatprep.subr.mxu0 0.0
    %2498 = vmatpush1.msra.mxu0 0.0
    %2499 = vmatprep.subr.mxu0 0.0
    %2500 = vmatpush1.msra.mxu0 0.0
    %2501 = vmatprep.subr.mxu0 0.0
    %2502 = vmatpush1.msra.mxu0 0.0
    %2503 = vmatprep.subr.mxu0 0.0
    %2504 = vmatpush1.msra.mxu0 0.0
    %2505 = vmatprep.subr.mxu0 0.0
    %2506 = vmatpush1.msra.mxu0 0.0
    %2507 = vmatprep.subr.mxu0 0.0
    %2508 = vmatpush1.msra.mxu0 0.0
    %2509 = vmatprep.subr.mxu0 0.0
    %2510 = vmatpush1.msra.mxu0 0.0
    %2511 = vmatprep.subr.mxu0 0.0
    %2512 = vmatpush1.msra.mxu0 0.0
    %2513 = vmatprep.subr.mxu0 0.0
    %2514 = vmatpush1.msra.mxu0 0.0
    %2515 = vmatprep.subr.mxu0 0.0
    %2516 = vmatpush1.msra.mxu0 0.0
    %2517 = vmatprep.subr.mxu0 0.0
    %2518 = vmatpush1.msra.mxu0 0.0
    %2519 = vmatprep.subr.mxu0 0.0
    %2520 = vmatpush1.msra.mxu0 0.0
    %2521 = vmatprep.subr.mxu0 0.0
    %2522 = vmatpush1.msra.mxu0 0.0
    %2523 = vmatprep.subr.mxu0 0.0
    %2524 = vmatpush1.msra.mxu0 0.0
    %2525 = vmatprep.subr.mxu0 0.0
    %2526 = vmatpush1.msra.mxu0 0.0
    %2527 = vmatprep.subr.mxu0 0.0
    %2528 = vmatpush1.msra.mxu0 0.0
    %2529 = vmatprep.subr.mxu0 0.0
    %2530 = vmatpush1.msra.mxu0 0.0
    %2531 = vmatprep.subr.mxu0 0.0
    %2532 = vmatpush1.msra.mxu0 0.0
    %2533 = vmatprep.subr.mxu0 0.0
    %2534 = vmatpush1.msra.mxu0 0.0
    %2535 = vmatprep.subr.mxu0 0.0
    %2536 = vmatpush1.msra.mxu0 0.0
    %2537 = vmatprep.subr.mxu0 0.0
    %2538 = vmatpush1.msra.mxu0 0.0
    %2539 = vmatprep.subr.mxu0 0.0
    %2540 = vmatpush1.msra.mxu0 0.0
    %2541 = vmatprep.subr.mxu0 0.0
    %2542 = vmatpush1.msra.mxu0 0.0
    %2543 = vmatprep.subr.mxu0 0.0
    %2544 = vmatpush1.msra.mxu0 0.0
    %2545 = vmatprep.subr.mxu0 0.0
    %2546 = vmatpush1.msra.mxu0 0.0
    %2547 = vmatprep.mubr.f32.mxu0 0.0
    %2548 = vmatmul.mubr.f32.gmra.mrb[0].mxu0 %v2481
    %v2549 = vpop.f32.mrb[0].mxu0
    %v2550 = vadd.f32 %v404, %v2549
    %v2551 = vpop.f32.mrb[0].mxu0
    %2552 = vdwg.mxu0
    %2553 = vset.pattern.permute.xlu0 5
    %2554 = vperm.xlu0 %2553, %v249
    %v2555 = vpop.permute.xlu0 %2554
    %v2557 = vmul.f32 %v2555, %v190
    %v2558 = vadd.f32 %v2557, %v204
    %v2559 = vadd.f32 %v2558, %v2407
    %v2560 = vmul.f32 %v2555, %v197
    %v2561 = vadd.f32 %v2560, %v211
    %v2562 = vxor.u32 %v2559, 2147483648
    %v2563 = vmul.f32 %v2562, 1.442695
    %v2564 = vpow.pop %v2563
    %v2565 = vadd.f32 %v2564, 1.0
    %v2566 = vrcp.pop %v2565
    %v2567 = vmul.f32 1.0, %v2566
    %v2568 = vmul.f32 %v2567, %v2477
    %v2569 = vadd.f32 %v2561, %v2568
    %v2570 = vtanh.pop %v2569
    %v2571 = vsub.f32 %v2169, %v2570
    %2573 = vrot.lane.b32.xlu0 %v2571, 32
    %v2574 = vpop.permute.xlu0 %2573
    %v2576 = vmul.f32 %v2567, %v2574
    %2578 = vrot.lane.b32.xlu0 %v2576, 96
    %v2579 = vpop.permute.xlu0 %2578
    %v2581 = vadd.f32 %v2570, %v2579
    %2582 = vrot.lane.b32.xlu0 %v2339, 32
    %v2583 = vpop.permute.xlu0 %2582
    %v2585 = vsel %vm250, %v2581, %v2583
    %v2587 = vsel %vm519, %v2585, 0
    %2589 = vmatprep.subr.mxu0 0.0
    %2590 = vmatpush1.msra.mxu0 %v222
    %2591 = vmatprep.subr.mxu0 0.0
    %2592 = vmatpush1.msra.mxu0 %v223
    %2593 = vmatprep.subr.mxu0 0.0
    %2594 = vmatpush1.msra.mxu0 %v224
    %2595 = vmatprep.subr.mxu0 0.0
    %2596 = vmatpush1.msra.mxu0 %v225
    %2597 = vmatprep.subr.mxu0 0.0
    %2598 = vmatpush1.msra.mxu0 %v226
    %2599 = vmatprep.subr.mxu0 0.0
    %2600 = vmatpush1.msra.mxu0 %v227
    %2601 = vmatprep.subr.mxu0 0.0
    %2602 = vmatpush1.msra.mxu0 %v228
    %2603 = vmatprep.subr.mxu0 0.0
    %2604 = vmatpush1.msra.mxu0 %v229
    %2605 = vmatprep.subr.mxu0 0.0
    %2606 = vmatpush1.msra.mxu0 0.0
    %2607 = vmatprep.subr.mxu0 0.0
    %2608 = vmatpush1.msra.mxu0 0.0
    %2609 = vmatprep.subr.mxu0 0.0
    %2610 = vmatpush1.msra.mxu0 0.0
    %2611 = vmatprep.subr.mxu0 0.0
    %2612 = vmatpush1.msra.mxu0 0.0
    %2613 = vmatprep.subr.mxu0 0.0
    %2614 = vmatpush1.msra.mxu0 0.0
    %2615 = vmatprep.subr.mxu0 0.0
    %2616 = vmatpush1.msra.mxu0 0.0
    %2617 = vmatprep.subr.mxu0 0.0
    %2618 = vmatpush1.msra.mxu0 0.0
    %2619 = vmatprep.subr.mxu0 0.0
    %2620 = vmatpush1.msra.mxu0 0.0
    %2621 = vmatprep.subr.mxu0 0.0
    %2622 = vmatpush1.msra.mxu0 0.0
    %2623 = vmatprep.subr.mxu0 0.0
    %2624 = vmatpush1.msra.mxu0 0.0
    %2625 = vmatprep.subr.mxu0 0.0
    %2626 = vmatpush1.msra.mxu0 0.0
    %2627 = vmatprep.subr.mxu0 0.0
    %2628 = vmatpush1.msra.mxu0 0.0
    %2629 = vmatprep.subr.mxu0 0.0
    %2630 = vmatpush1.msra.mxu0 0.0
    %2631 = vmatprep.subr.mxu0 0.0
    %2632 = vmatpush1.msra.mxu0 0.0
    %2633 = vmatprep.subr.mxu0 0.0
    %2634 = vmatpush1.msra.mxu0 0.0
    %2635 = vmatprep.subr.mxu0 0.0
    %2636 = vmatpush1.msra.mxu0 0.0
    %2637 = vmatprep.subr.mxu0 0.0
    %2638 = vmatpush1.msra.mxu0 0.0
    %2639 = vmatprep.subr.mxu0 0.0
    %2640 = vmatpush1.msra.mxu0 0.0
    %2641 = vmatprep.subr.mxu0 0.0
    %2642 = vmatpush1.msra.mxu0 0.0
    %2643 = vmatprep.subr.mxu0 0.0
    %2644 = vmatpush1.msra.mxu0 0.0
    %2645 = vmatprep.subr.mxu0 0.0
    %2646 = vmatpush1.msra.mxu0 0.0
    %2647 = vmatprep.subr.mxu0 0.0
    %2648 = vmatpush1.msra.mxu0 0.0
    %2649 = vmatprep.subr.mxu0 0.0
    %2650 = vmatpush1.msra.mxu0 0.0
    %2651 = vmatprep.subr.mxu0 0.0
    %2652 = vmatpush1.msra.mxu0 0.0
    %2653 = vmatprep.mubr.f32.mxu0 0.0
    %2654 = vmatmul.mubr.f32.gmra.mrb[0].mxu0 %v2587
    %v2655 = vpop.f32.mrb[0].mxu0
    %v2656 = vadd.f32 %v517, %v2655
    %v2657 = vpop.f32.mrb[0].mxu0
    %2658 = vdwg.mxu0
    %v2660 = vsel %vm250, %v2581, 0
    %2662 = vmatprep.subr.mxu0 0.0
    %2663 = vmatpush1.msra.mxu0 %v230
    %2664 = vmatprep.subr.mxu0 0.0
    %2665 = vmatpush1.msra.mxu0 %v231
    %2666 = vmatprep.subr.mxu0 0.0
    %2667 = vmatpush1.msra.mxu0 %v232
    %2668 = vmatprep.subr.mxu0 0.0
    %2669 = vmatpush1.msra.mxu0 %v233
    %2670 = vmatprep.subr.mxu0 0.0
    %2671 = vmatpush1.msra.mxu0 0.0
    %2672 = vmatprep.subr.mxu0 0.0
    %2673 = vmatpush1.msra.mxu0 0.0
    %2674 = vmatprep.subr.mxu0 0.0
    %2675 = vmatpush1.msra.mxu0 0.0
    %2676 = vmatprep.subr.mxu0 0.0
    %2677 = vmatpush1.msra.mxu0 0.0
    %2678 = vmatprep.subr.mxu0 0.0
    %2679 = vmatpush1.msra.mxu0 0.0
    %2680 = vmatprep.subr.mxu0 0.0
    %2681 = vmatpush1.msra.mxu0 0.0
    %2682 = vmatprep.subr.mxu0 0.0
    %2683 = vmatpush1.msra.mxu0 0.0
    %2684 = vmatprep.subr.mxu0 0.0
    %2685 = vmatpush1.msra.mxu0 0.0
    %2686 = vmatprep.subr.mxu0 0.0
    %2687 = vmatpush1.msra.mxu0 0.0
    %2688 = vmatprep.subr.mxu0 0.0
    %2689 = vmatpush1.msra.mxu0 0.0
    %2690 = vmatprep.subr.mxu0 0.0
    %2691 = vmatpush1.msra.mxu0 0.0
    %2692 = vmatprep.subr.mxu0 0.0
    %2693 = vmatpush1.msra.mxu0 0.0
    %2694 = vmatprep.subr.mxu0 0.0
    %2695 = vmatpush1.msra.mxu0 0.0
    %2696 = vmatprep.subr.mxu0 0.0
    %2697 = vmatpush1.msra.mxu0 0.0
    %2698 = vmatprep.subr.mxu0 0.0
    %2699 = vmatpush1.msra.mxu0 0.0
    %2700 = vmatprep.subr.mxu0 0.0
    %2701 = vmatpush1.msra.mxu0 0.0
    %2702 = vmatprep.subr.mxu0 0.0
    %2703 = vmatpush1.msra.mxu0 0.0
    %2704 = vmatprep.subr.mxu0 0.0
    %2705 = vmatpush1.msra.mxu0 0.0
    %2706 = vmatprep.subr.mxu0 0.0
    %2707 = vmatpush1.msra.mxu0 0.0
    %2708 = vmatprep.subr.mxu0 0.0
    %2709 = vmatpush1.msra.mxu0 0.0
    %2710 = vmatprep.subr.mxu0 0.0
    %2711 = vmatpush1.msra.mxu0 0.0
    %2712 = vmatprep.subr.mxu0 0.0
    %2713 = vmatpush1.msra.mxu0 0.0
    %2714 = vmatprep.subr.mxu0 0.0
    %2715 = vmatpush1.msra.mxu0 0.0
    %2716 = vmatprep.subr.mxu0 0.0
    %2717 = vmatpush1.msra.mxu0 0.0
    %2718 = vmatprep.subr.mxu0 0.0
    %2719 = vmatpush1.msra.mxu0 0.0
    %2720 = vmatprep.subr.mxu0 0.0
    %2721 = vmatpush1.msra.mxu0 0.0
    %2722 = vmatprep.subr.mxu0 0.0
    %2723 = vmatpush1.msra.mxu0 0.0
    %2724 = vmatprep.subr.mxu0 0.0
    %2725 = vmatpush1.msra.mxu0 0.0
    %2726 = vmatprep.mubr.f32.mxu0 0.0
    %2727 = vmatmul.mubr.f32.gmra.mrb[0].mxu0 %v2660
    %v2728 = vpop.f32.mrb[0].mxu0
    %v2729 = vadd.f32 %v597, %v2728
    %v2730 = vpop.f32.mrb[0].mxu0
    %2731 = vdwg.mxu0
    %v2732 = vxor.u32 %v2656, 2147483648
    %v2733 = vmul.f32 %v2732, 1.442695
    %v2734 = vpow.pop %v2733
    %v2735 = vadd.f32 %v2734, 1.0
    %v2736 = vrcp.pop %v2735
    %v2737 = vmul.f32 1.0, %v2736
    %v2738 = vmul.f32 %v2737, %v2550
    %v2739 = vadd.f32 %v2729, %v2738
    %v2740 = vtanh.pop %v2739
    %v2741 = vsub.f32 %v2339, %v2740
    %2743 = vrot.lane.b32.xlu0 %v2741, 32
    %v2744 = vpop.permute.xlu0 %2743
    %v2746 = vmul.f32 %v2737, %v2744
    %2748 = vrot.lane.b32.xlu0 %v2746, 96
    %v2749 = vpop.permute.xlu0 %2748
    %v2751 = vadd.f32 %v2740, %v2749
    %2752 = vmatprep.subr.mxu0 0.0
    %2753 = vmatpush1.msra.mxu0 %v213
    %2754 = vmatprep.subr.mxu0 0.0
    %2755 = vmatpush1.msra.mxu0 %v214
    %2756 = vmatprep.subr.mxu0 0.0
    %2757 = vmatpush1.msra.mxu0 %v215
    %2758 = vmatprep.subr.mxu0 0.0
    %2759 = vmatpush1.msra.mxu0 %v216
    %2760 = vmatprep.subr.mxu0 0.0
    %2761 = vmatpush1.msra.mxu0 0.0
    %2762 = vmatprep.subr.mxu0 0.0
    %2763 = vmatpush1.msra.mxu0 0.0
    %2764 = vmatprep.subr.mxu0 0.0
    %2765 = vmatpush1.msra.mxu0 0.0
    %2766 = vmatprep.subr.mxu0 0.0
    %2767 = vmatpush1.msra.mxu0 0.0
    %2768 = vmatprep.subr.mxu0 0.0
    %2769 = vmatpush1.msra.mxu0 0.0
    %2770 = vmatprep.subr.mxu0 0.0
    %2771 = vmatpush1.msra.mxu0 0.0
    %2772 = vmatprep.subr.mxu0 0.0
    %2773 = vmatpush1.msra.mxu0 0.0
    %2774 = vmatprep.subr.mxu0 0.0
    %2775 = vmatpush1.msra.mxu0 0.0
    %2776 = vmatprep.subr.mxu0 0.0
    %2777 = vmatpush1.msra.mxu0 0.0
    %2778 = vmatprep.subr.mxu0 0.0
    %2779 = vmatpush1.msra.mxu0 0.0
    %2780 = vmatprep.subr.mxu0 0.0
    %2781 = vmatpush1.msra.mxu0 0.0
    %2782 = vmatprep.subr.mxu0 0.0
    %2783 = vmatpush1.msra.mxu0 0.0
    %2784 = vmatprep.subr.mxu0 0.0
    %2785 = vmatpush1.msra.mxu0 0.0
    %2786 = vmatprep.subr.mxu0 0.0
    %2787 = vmatpush1.msra.mxu0 0.0
    %2788 = vmatprep.subr.mxu0 0.0
    %2789 = vmatpush1.msra.mxu0 0.0
    %2790 = vmatprep.subr.mxu0 0.0
    %2791 = vmatpush1.msra.mxu0 0.0
    %2792 = vmatprep.subr.mxu0 0.0
    %2793 = vmatpush1.msra.mxu0 0.0
    %2794 = vmatprep.subr.mxu0 0.0
    %2795 = vmatpush1.msra.mxu0 0.0
    %2796 = vmatprep.subr.mxu0 0.0
    %2797 = vmatpush1.msra.mxu0 0.0
    %2798 = vmatprep.subr.mxu0 0.0
    %2799 = vmatpush1.msra.mxu0 0.0
    %2800 = vmatprep.subr.mxu0 0.0
    %2801 = vmatpush1.msra.mxu0 0.0
    %2802 = vmatprep.subr.mxu0 0.0
    %2803 = vmatpush1.msra.mxu0 0.0
    %2804 = vmatprep.subr.mxu0 0.0
    %2805 = vmatpush1.msra.mxu0 0.0
    %2806 = vmatprep.subr.mxu0 0.0
    %2807 = vmatpush1.msra.mxu0 0.0
    %2808 = vmatprep.subr.mxu0 0.0
    %2809 = vmatpush1.msra.mxu0 0.0
    %2810 = vmatprep.subr.mxu0 0.0
    %2811 = vmatpush1.msra.mxu0 0.0
    %2812 = vmatprep.subr.mxu0 0.0
    %2813 = vmatpush1.msra.mxu0 0.0
    %2814 = vmatprep.subr.mxu0 0.0
    %2815 = vmatpush1.msra.mxu0 0.0
    %2816 = vmatprep.mubr.f32.mxu0 0.0
    %2817 = vmatmul.mubr.f32.gmra.mrb[0].mxu0 %v2660
    %v2818 = vpop.f32.mrb[0].mxu0
    %v2819 = vadd.f32 0.0, %v2818
    %v2820 = vpop.f32.mrb[0].mxu0
    %2821 = vdwg.mxu0
    %2822 = vmatprep.subr.mxu0 0.0
    %2823 = vmatpush1.msra.mxu0 %v217
    %2824 = vmatprep.subr.mxu0 0.0
    %2825 = vmatpush1.msra.mxu0 %v218
    %2826 = vmatprep.subr.mxu0 0.0
    %2827 = vmatpush1.msra.mxu0 %v219
    %2828 = vmatprep.subr.mxu0 0.0
    %2829 = vmatpush1.msra.mxu0 %v220
    %2830 = vmatprep.subr.mxu0 0.0
    %2831 = vmatpush1.msra.mxu0 0.0
    %2832 = vmatprep.subr.mxu0 0.0
    %2833 = vmatpush1.msra.mxu0 0.0
    %2834 = vmatprep.subr.mxu0 0.0
    %2835 = vmatpush1.msra.mxu0 0.0
    %2836 = vmatprep.subr.mxu0 0.0
    %2837 = vmatpush1.msra.mxu0 0.0
    %2838 = vmatprep.subr.mxu0 0.0
    %2839 = vmatpush1.msra.mxu0 0.0
    %2840 = vmatprep.subr.mxu0 0.0
    %2841 = vmatpush1.msra.mxu0 0.0
    %2842 = vmatprep.subr.mxu0 0.0
    %2843 = vmatpush1.msra.mxu0 0.0
    %2844 = vmatprep.subr.mxu0 0.0
    %2845 = vmatpush1.msra.mxu0 0.0
    %2846 = vmatprep.subr.mxu0 0.0
    %2847 = vmatpush1.msra.mxu0 0.0
    %2848 = vmatprep.subr.mxu0 0.0
    %2849 = vmatpush1.msra.mxu0 0.0
    %2850 = vmatprep.subr.mxu0 0.0
    %2851 = vmatpush1.msra.mxu0 0.0
    %2852 = vmatprep.subr.mxu0 0.0
    %2853 = vmatpush1.msra.mxu0 0.0
    %2854 = vmatprep.subr.mxu0 0.0
    %2855 = vmatpush1.msra.mxu0 0.0
    %2856 = vmatprep.subr.mxu0 0.0
    %2857 = vmatpush1.msra.mxu0 0.0
    %2858 = vmatprep.subr.mxu0 0.0
    %2859 = vmatpush1.msra.mxu0 0.0
    %2860 = vmatprep.subr.mxu0 0.0
    %2861 = vmatpush1.msra.mxu0 0.0
    %2862 = vmatprep.subr.mxu0 0.0
    %2863 = vmatpush1.msra.mxu0 0.0
    %2864 = vmatprep.subr.mxu0 0.0
    %2865 = vmatpush1.msra.mxu0 0.0
    %2866 = vmatprep.subr.mxu0 0.0
    %2867 = vmatpush1.msra.mxu0 0.0
    %2868 = vmatprep.subr.mxu0 0.0
    %2869 = vmatpush1.msra.mxu0 0.0
    %2870 = vmatprep.subr.mxu0 0.0
    %2871 = vmatpush1.msra.mxu0 0.0
    %2872 = vmatprep.subr.mxu0 0.0
    %2873 = vmatpush1.msra.mxu0 0.0
    %2874 = vmatprep.subr.mxu0 0.0
    %2875 = vmatpush1.msra.mxu0 0.0
    %2876 = vmatprep.subr.mxu0 0.0
    %2877 = vmatpush1.msra.mxu0 0.0
    %2878 = vmatprep.subr.mxu0 0.0
    %2879 = vmatpush1.msra.mxu0 0.0
    %2880 = vmatprep.subr.mxu0 0.0
    %2881 = vmatpush1.msra.mxu0 0.0
    %2882 = vmatprep.subr.mxu0 0.0
    %2883 = vmatpush1.msra.mxu0 0.0
    %2884 = vmatprep.subr.mxu0 0.0
    %2885 = vmatpush1.msra.mxu0 0.0
    %2886 = vmatprep.mubr.f32.mxu0 0.0
    %2887 = vmatmul.mubr.f32.gmra.mrb[0].mxu0 %v2660
    %v2888 = vpop.f32.mrb[0].mxu0
    %v2889 = vadd.f32 %v328, %v2888
    %v2890 = vpop.f32.mrb[0].mxu0
    %2891 = vdwg.mxu0
    %v2893 = vsel %vm250, %v2751, 0
    %2895 = vmatprep.subr.mxu0 0.0
    %2896 = vmatpush1.msra.mxu0 %v234
    %2897 = vmatprep.subr.mxu0 0.0
    %2898 = vmatpush1.msra.mxu0 %v235
    %2899 = vmatprep.subr.mxu0 0.0
    %2900 = vmatpush1.msra.mxu0 %v236
    %2901 = vmatprep.subr.mxu0 0.0
    %2902 = vmatpush1.msra.mxu0 %v237
    %2903 = vmatprep.subr.mxu0 0.0
    %2904 = vmatpush1.msra.mxu0 0.0
    %2905 = vmatprep.subr.mxu0 0.0
    %2906 = vmatpush1.msra.mxu0 0.0
    %2907 = vmatprep.subr.mxu0 0.0
    %2908 = vmatpush1.msra.mxu0 0.0
    %2909 = vmatprep.subr.mxu0 0.0
    %2910 = vmatpush1.msra.mxu0 0.0
    %2911 = vmatprep.subr.mxu0 0.0
    %2912 = vmatpush1.msra.mxu0 0.0
    %2913 = vmatprep.subr.mxu0 0.0
    %2914 = vmatpush1.msra.mxu0 0.0
    %2915 = vmatprep.subr.mxu0 0.0
    %2916 = vmatpush1.msra.mxu0 0.0
    %2917 = vmatprep.subr.mxu0 0.0
    %2918 = vmatpush1.msra.mxu0 0.0
    %2919 = vmatprep.subr.mxu0 0.0
    %2920 = vmatpush1.msra.mxu0 0.0
    %2921 = vmatprep.subr.mxu0 0.0
    %2922 = vmatpush1.msra.mxu0 0.0
    %2923 = vmatprep.subr.mxu0 0.0
    %2924 = vmatpush1.msra.mxu0 0.0
    %2925 = vmatprep.subr.mxu0 0.0
    %2926 = vmatpush1.msra.mxu0 0.0
    %2927 = vmatprep.subr.mxu0 0.0
    %2928 = vmatpush1.msra.mxu0 0.0
    %2929 = vmatprep.subr.mxu0 0.0
    %2930 = vmatpush1.msra.mxu0 0.0
    %2931 = vmatprep.subr.mxu0 0.0
    %2932 = vmatpush1.msra.mxu0 0.0
    %2933 = vmatprep.subr.mxu0 0.0
    %2934 = vmatpush1.msra.mxu0 0.0
    %2935 = vmatprep.subr.mxu0 0.0
    %2936 = vmatpush1.msra.mxu0 0.0
    %2937 = vmatprep.subr.mxu0 0.0
    %2938 = vmatpush1.msra.mxu0 0.0
    %2939 = vmatprep.subr.mxu0 0.0
    %2940 = vmatpush1.msra.mxu0 0.0
    %2941 = vmatprep.subr.mxu0 0.0
    %2942 = vmatpush1.msra.mxu0 0.0
    %2943 = vmatprep.subr.mxu0 0.0
    %2944 = vmatpush1.msra.mxu0 0.0
    %2945 = vmatprep.subr.mxu0 0.0
    %2946 = vmatpush1.msra.mxu0 0.0
    %2947 = vmatprep.subr.mxu0 0.0
    %2948 = vmatpush1.msra.mxu0 0.0
    %2949 = vmatprep.subr.mxu0 0.0
    %2950 = vmatpush1.msra.mxu0 0.0
    %2951 = vmatprep.subr.mxu0 0.0
    %2952 = vmatpush1.msra.mxu0 0.0
    %2953 = vmatprep.subr.mxu0 0.0
    %2954 = vmatpush1.msra.mxu0 0.0
    %2955 = vmatprep.subr.mxu0 0.0
    %2956 = vmatpush1.msra.mxu0 0.0
    %2957 = vmatprep.subr.mxu0 0.0
    %2958 = vmatpush1.msra.mxu0 0.0
    %2959 = vmatprep.mubr.f32.mxu0 0.0
    %2960 = vmatmul.mubr.f32.gmra.mrb[0].mxu0 %v2893
    %v2961 = vpop.f32.mrb[0].mxu0
    %v2962 = vadd.f32 %v404, %v2961
    %v2963 = vpop.f32.mrb[0].mxu0
    %2964 = vdwg.mxu0
    %2965 = vset.pattern.permute.xlu0 6
    %2966 = vperm.xlu0 %2965, %v249
    %v2967 = vpop.permute.xlu0 %2966
    %v2969 = vmul.f32 %v2967, %v190
    %v2970 = vadd.f32 %v2969, %v204
    %v2971 = vadd.f32 %v2970, %v2819
    %v2972 = vmul.f32 %v2967, %v197
    %v2973 = vadd.f32 %v2972, %v211
    %v2974 = vxor.u32 %v2971, 2147483648
    %v2975 = vmul.f32 %v2974, 1.442695
    %v2976 = vpow.pop %v2975
    %v2977 = vadd.f32 %v2976, 1.0
    %v2978 = vrcp.pop %v2977
    %v2979 = vmul.f32 1.0, %v2978
    %v2980 = vmul.f32 %v2979, %v2889
    %v2981 = vadd.f32 %v2973, %v2980
    %v2982 = vtanh.pop %v2981
    %v2983 = vsub.f32 %v2581, %v2982
    %2985 = vrot.lane.b32.xlu0 %v2983, 32
    %v2986 = vpop.permute.xlu0 %2985
    %v2988 = vmul.f32 %v2979, %v2986
    %2990 = vrot.lane.b32.xlu0 %v2988, 96
    %v2991 = vpop.permute.xlu0 %2990
    %v2993 = vadd.f32 %v2982, %v2991
    %2994 = vrot.lane.b32.xlu0 %v2751, 32
    %v2995 = vpop.permute.xlu0 %2994
    %v2997 = vsel %vm250, %v2993, %v2995
    %v2999 = vsel %vm519, %v2997, 0
    %3001 = vmatprep.subr.mxu0 0.0
    %3002 = vmatpush1.msra.mxu0 %v222
    %3003 = vmatprep.subr.mxu0 0.0
    %3004 = vmatpush1.msra.mxu0 %v223
    %3005 = vmatprep.subr.mxu0 0.0
    %3006 = vmatpush1.msra.mxu0 %v224
    %3007 = vmatprep.subr.mxu0 0.0
    %3008 = vmatpush1.msra.mxu0 %v225
    %3009 = vmatprep.subr.mxu0 0.0
    %3010 = vmatpush1.msra.mxu0 %v226
    %3011 = vmatprep.subr.mxu0 0.0
    %3012 = vmatpush1.msra.mxu0 %v227
    %3013 = vmatprep.subr.mxu0 0.0
    %3014 = vmatpush1.msra.mxu0 %v228
    %3015 = vmatprep.subr.mxu0 0.0
    %3016 = vmatpush1.msra.mxu0 %v229
    %3017 = vmatprep.subr.mxu0 0.0
    %3018 = vmatpush1.msra.mxu0 0.0
    %3019 = vmatprep.subr.mxu0 0.0
    %3020 = vmatpush1.msra.mxu0 0.0
    %3021 = vmatprep.subr.mxu0 0.0
    %3022 = vmatpush1.msra.mxu0 0.0
    %3023 = vmatprep.subr.mxu0 0.0
    %3024 = vmatpush1.msra.mxu0 0.0
    %3025 = vmatprep.subr.mxu0 0.0
    %3026 = vmatpush1.msra.mxu0 0.0
    %3027 = vmatprep.subr.mxu0 0.0
    %3028 = vmatpush1.msra.mxu0 0.0
    %3029 = vmatprep.subr.mxu0 0.0
    %3030 = vmatpush1.msra.mxu0 0.0
    %3031 = vmatprep.subr.mxu0 0.0
    %3032 = vmatpush1.msra.mxu0 0.0
    %3033 = vmatprep.subr.mxu0 0.0
    %3034 = vmatpush1.msra.mxu0 0.0
    %3035 = vmatprep.subr.mxu0 0.0
    %3036 = vmatpush1.msra.mxu0 0.0
    %3037 = vmatprep.subr.mxu0 0.0
    %3038 = vmatpush1.msra.mxu0 0.0
    %3039 = vmatprep.subr.mxu0 0.0
    %3040 = vmatpush1.msra.mxu0 0.0
    %3041 = vmatprep.subr.mxu0 0.0
    %3042 = vmatpush1.msra.mxu0 0.0
    %3043 = vmatprep.subr.mxu0 0.0
    %3044 = vmatpush1.msra.mxu0 0.0
    %3045 = vmatprep.subr.mxu0 0.0
    %3046 = vmatpush1.msra.mxu0 0.0
    %3047 = vmatprep.subr.mxu0 0.0
    %3048 = vmatpush1.msra.mxu0 0.0
    %3049 = vmatprep.subr.mxu0 0.0
    %3050 = vmatpush1.msra.mxu0 0.0
    %3051 = vmatprep.subr.mxu0 0.0
    %3052 = vmatpush1.msra.mxu0 0.0
    %3053 = vmatprep.subr.mxu0 0.0
    %3054 = vmatpush1.msra.mxu0 0.0
    %3055 = vmatprep.subr.mxu0 0.0
    %3056 = vmatpush1.msra.mxu0 0.0
    %3057 = vmatprep.subr.mxu0 0.0
    %3058 = vmatpush1.msra.mxu0 0.0
    %3059 = vmatprep.subr.mxu0 0.0
    %3060 = vmatpush1.msra.mxu0 0.0
    %3061 = vmatprep.subr.mxu0 0.0
    %3062 = vmatpush1.msra.mxu0 0.0
    %3063 = vmatprep.subr.mxu0 0.0
    %3064 = vmatpush1.msra.mxu0 0.0
    %3065 = vmatprep.mubr.f32.mxu0 0.0
    %3066 = vmatmul.mubr.f32.gmra.mrb[0].mxu0 %v2999
    %v3067 = vpop.f32.mrb[0].mxu0
    %v3068 = vadd.f32 %v517, %v3067
    %v3069 = vpop.f32.mrb[0].mxu0
    %3070 = vdwg.mxu0
    %v3072 = vsel %vm250, %v2993, 0
    %3074 = vmatprep.subr.mxu0 0.0
    %3075 = vmatpush1.msra.mxu0 %v230
    %3076 = vmatprep.subr.mxu0 0.0
    %3077 = vmatpush1.msra.mxu0 %v231
    %3078 = vmatprep.subr.mxu0 0.0
    %3079 = vmatpush1.msra.mxu0 %v232
    %3080 = vmatprep.subr.mxu0 0.0
    %3081 = vmatpush1.msra.mxu0 %v233
    %3082 = vmatprep.subr.mxu0 0.0
    %3083 = vmatpush1.msra.mxu0 0.0
    %3084 = vmatprep.subr.mxu0 0.0
    %3085 = vmatpush1.msra.mxu0 0.0
    %3086 = vmatprep.subr.mxu0 0.0
    %3087 = vmatpush1.msra.mxu0 0.0
    %3088 = vmatprep.subr.mxu0 0.0
    %3089 = vmatpush1.msra.mxu0 0.0
    %3090 = vmatprep.subr.mxu0 0.0
    %3091 = vmatpush1.msra.mxu0 0.0
    %3092 = vmatprep.subr.mxu0 0.0
    %3093 = vmatpush1.msra.mxu0 0.0
    %3094 = vmatprep.subr.mxu0 0.0
    %3095 = vmatpush1.msra.mxu0 0.0
    %3096 = vmatprep.subr.mxu0 0.0
    %3097 = vmatpush1.msra.mxu0 0.0
    %3098 = vmatprep.subr.mxu0 0.0
    %3099 = vmatpush1.msra.mxu0 0.0
    %3100 = vmatprep.subr.mxu0 0.0
    %3101 = vmatpush1.msra.mxu0 0.0
    %3102 = vmatprep.subr.mxu0 0.0
    %3103 = vmatpush1.msra.mxu0 0.0
    %3104 = vmatprep.subr.mxu0 0.0
    %3105 = vmatpush1.msra.mxu0 0.0
    %3106 = vmatprep.subr.mxu0 0.0
    %3107 = vmatpush1.msra.mxu0 0.0
    %3108 = vmatprep.subr.mxu0 0.0
    %3109 = vmatpush1.msra.mxu0 0.0
    %3110 = vmatprep.subr.mxu0 0.0
    %3111 = vmatpush1.msra.mxu0 0.0
    %3112 = vmatprep.subr.mxu0 0.0
    %3113 = vmatpush1.msra.mxu0 0.0
    %3114 = vmatprep.subr.mxu0 0.0
    %3115 = vmatpush1.msra.mxu0 0.0
    %3116 = vmatprep.subr.mxu0 0.0
    %3117 = vmatpush1.msra.mxu0 0.0
    %3118 = vmatprep.subr.mxu0 0.0
    %3119 = vmatpush1.msra.mxu0 0.0
    %3120 = vmatprep.subr.mxu0 0.0
    %3121 = vmatpush1.msra.mxu0 0.0
    %3122 = vmatprep.subr.mxu0 0.0
    %3123 = vmatpush1.msra.mxu0 0.0
    %3124 = vmatprep.subr.mxu0 0.0
    %3125 = vmatpush1.msra.mxu0 0.0
    %3126 = vmatprep.subr.mxu0 0.0
    %3127 = vmatpush1.msra.mxu0 0.0
    %3128 = vmatprep.subr.mxu0 0.0
    %3129 = vmatpush1.msra.mxu0 0.0
    %3130 = vmatprep.subr.mxu0 0.0
    %3131 = vmatpush1.msra.mxu0 0.0
    %3132 = vmatprep.subr.mxu0 0.0
    %3133 = vmatpush1.msra.mxu0 0.0
    %3134 = vmatprep.subr.mxu0 0.0
    %3135 = vmatpush1.msra.mxu0 0.0
    %3136 = vmatprep.subr.mxu0 0.0
    %3137 = vmatpush1.msra.mxu0 0.0
    %3138 = vmatprep.mubr.f32.mxu0 0.0
    %3139 = vmatmul.mubr.f32.gmra.mrb[0].mxu0 %v3072
    %v3140 = vpop.f32.mrb[0].mxu0
    %v3141 = vadd.f32 %v597, %v3140
    %v3142 = vpop.f32.mrb[0].mxu0
    %3143 = vdwg.mxu0
    %v3144 = vxor.u32 %v3068, 2147483648
    %v3145 = vmul.f32 %v3144, 1.442695
    %v3146 = vpow.pop %v3145
    %v3147 = vadd.f32 %v3146, 1.0
    %v3148 = vrcp.pop %v3147
    %v3149 = vmul.f32 1.0, %v3148
    %v3150 = vmul.f32 %v3149, %v2962
    %v3151 = vadd.f32 %v3141, %v3150
    %v3152 = vtanh.pop %v3151
    %v3153 = vsub.f32 %v2751, %v3152
    %3155 = vrot.lane.b32.xlu0 %v3153, 32
    %v3156 = vpop.permute.xlu0 %3155
    %v3158 = vmul.f32 %v3149, %v3156
    %3160 = vrot.lane.b32.xlu0 %v3158, 96
    %v3161 = vpop.permute.xlu0 %3160
    %v3163 = vadd.f32 %v3152, %v3161
    %3164 = vmatprep.subr.mxu0 0.0
    %3165 = vmatpush1.msra.mxu0 %v213
    %3166 = vmatprep.subr.mxu0 0.0
    %3167 = vmatpush1.msra.mxu0 %v214
    %3168 = vmatprep.subr.mxu0 0.0
    %3169 = vmatpush1.msra.mxu0 %v215
    %3170 = vmatprep.subr.mxu0 0.0
    %3171 = vmatpush1.msra.mxu0 %v216
    %3172 = vmatprep.subr.mxu0 0.0
    %3173 = vmatpush1.msra.mxu0 0.0
    %3174 = vmatprep.subr.mxu0 0.0
    %3175 = vmatpush1.msra.mxu0 0.0
    %3176 = vmatprep.subr.mxu0 0.0
    %3177 = vmatpush1.msra.mxu0 0.0
    %3178 = vmatprep.subr.mxu0 0.0
    %3179 = vmatpush1.msra.mxu0 0.0
    %3180 = vmatprep.subr.mxu0 0.0
    %3181 = vmatpush1.msra.mxu0 0.0
    %3182 = vmatprep.subr.mxu0 0.0
    %3183 = vmatpush1.msra.mxu0 0.0
    %3184 = vmatprep.subr.mxu0 0.0
    %3185 = vmatpush1.msra.mxu0 0.0
    %3186 = vmatprep.subr.mxu0 0.0
    %3187 = vmatpush1.msra.mxu0 0.0
    %3188 = vmatprep.subr.mxu0 0.0
    %3189 = vmatpush1.msra.mxu0 0.0
    %3190 = vmatprep.subr.mxu0 0.0
    %3191 = vmatpush1.msra.mxu0 0.0
    %3192 = vmatprep.subr.mxu0 0.0
    %3193 = vmatpush1.msra.mxu0 0.0
    %3194 = vmatprep.subr.mxu0 0.0
    %3195 = vmatpush1.msra.mxu0 0.0
    %3196 = vmatprep.subr.mxu0 0.0
    %3197 = vmatpush1.msra.mxu0 0.0
    %3198 = vmatprep.subr.mxu0 0.0
    %3199 = vmatpush1.msra.mxu0 0.0
    %3200 = vmatprep.subr.mxu0 0.0
    %3201 = vmatpush1.msra.mxu0 0.0
    %3202 = vmatprep.subr.mxu0 0.0
    %3203 = vmatpush1.msra.mxu0 0.0
    %3204 = vmatprep.subr.mxu0 0.0
    %3205 = vmatpush1.msra.mxu0 0.0
    %3206 = vmatprep.subr.mxu0 0.0
    %3207 = vmatpush1.msra.mxu0 0.0
    %3208 = vmatprep.subr.mxu0 0.0
    %3209 = vmatpush1.msra.mxu0 0.0
    %3210 = vmatprep.subr.mxu0 0.0
    %3211 = vmatpush1.msra.mxu0 0.0
    %3212 = vmatprep.subr.mxu0 0.0
    %3213 = vmatpush1.msra.mxu0 0.0
    %3214 = vmatprep.subr.mxu0 0.0
    %3215 = vmatpush1.msra.mxu0 0.0
    %3216 = vmatprep.subr.mxu0 0.0
    %3217 = vmatpush1.msra.mxu0 0.0
    %3218 = vmatprep.subr.mxu0 0.0
    %3219 = vmatpush1.msra.mxu0 0.0
    %3220 = vmatprep.subr.mxu0 0.0
    %3221 = vmatpush1.msra.mxu0 0.0
    %3222 = vmatprep.subr.mxu0 0.0
    %3223 = vmatpush1.msra.mxu0 0.0
    %3224 = vmatprep.subr.mxu0 0.0
    %3225 = vmatpush1.msra.mxu0 0.0
    %3226 = vmatprep.subr.mxu0 0.0
    %3227 = vmatpush1.msra.mxu0 0.0
    %3228 = vmatprep.mubr.f32.mxu0 0.0
    %3229 = vmatmul.mubr.f32.gmra.mrb[0].mxu0 %v3072
    %v3230 = vpop.f32.mrb[0].mxu0
    %v3231 = vadd.f32 0.0, %v3230
    %v3232 = vpop.f32.mrb[0].mxu0
    %3233 = vdwg.mxu0
    %3234 = vmatprep.subr.mxu0 0.0
    %3235 = vmatpush1.msra.mxu0 %v217
    %3236 = vmatprep.subr.mxu0 0.0
    %3237 = vmatpush1.msra.mxu0 %v218
    %3238 = vmatprep.subr.mxu0 0.0
    %3239 = vmatpush1.msra.mxu0 %v219
    %3240 = vmatprep.subr.mxu0 0.0
    %3241 = vmatpush1.msra.mxu0 %v220
    %3242 = vmatprep.subr.mxu0 0.0
    %3243 = vmatpush1.msra.mxu0 0.0
    %3244 = vmatprep.subr.mxu0 0.0
    %3245 = vmatpush1.msra.mxu0 0.0
    %3246 = vmatprep.subr.mxu0 0.0
    %3247 = vmatpush1.msra.mxu0 0.0
    %3248 = vmatprep.subr.mxu0 0.0
    %3249 = vmatpush1.msra.mxu0 0.0
    %3250 = vmatprep.subr.mxu0 0.0
    %3251 = vmatpush1.msra.mxu0 0.0
    %3252 = vmatprep.subr.mxu0 0.0
    %3253 = vmatpush1.msra.mxu0 0.0
    %3254 = vmatprep.subr.mxu0 0.0
    %3255 = vmatpush1.msra.mxu0 0.0
    %3256 = vmatprep.subr.mxu0 0.0
    %3257 = vmatpush1.msra.mxu0 0.0
    %3258 = vmatprep.subr.mxu0 0.0
    %3259 = vmatpush1.msra.mxu0 0.0
    %3260 = vmatprep.subr.mxu0 0.0
    %3261 = vmatpush1.msra.mxu0 0.0
    %3262 = vmatprep.subr.mxu0 0.0
    %3263 = vmatpush1.msra.mxu0 0.0
    %3264 = vmatprep.subr.mxu0 0.0
    %3265 = vmatpush1.msra.mxu0 0.0
    %3266 = vmatprep.subr.mxu0 0.0
    %3267 = vmatpush1.msra.mxu0 0.0
    %3268 = vmatprep.subr.mxu0 0.0
    %3269 = vmatpush1.msra.mxu0 0.0
    %3270 = vmatprep.subr.mxu0 0.0
    %3271 = vmatpush1.msra.mxu0 0.0
    %3272 = vmatprep.subr.mxu0 0.0
    %3273 = vmatpush1.msra.mxu0 0.0
    %3274 = vmatprep.subr.mxu0 0.0
    %3275 = vmatpush1.msra.mxu0 0.0
    %3276 = vmatprep.subr.mxu0 0.0
    %3277 = vmatpush1.msra.mxu0 0.0
    %3278 = vmatprep.subr.mxu0 0.0
    %3279 = vmatpush1.msra.mxu0 0.0
    %3280 = vmatprep.subr.mxu0 0.0
    %3281 = vmatpush1.msra.mxu0 0.0
    %3282 = vmatprep.subr.mxu0 0.0
    %3283 = vmatpush1.msra.mxu0 0.0
    %3284 = vmatprep.subr.mxu0 0.0
    %3285 = vmatpush1.msra.mxu0 0.0
    %3286 = vmatprep.subr.mxu0 0.0
    %3287 = vmatpush1.msra.mxu0 0.0
    %3288 = vmatprep.subr.mxu0 0.0
    %3289 = vmatpush1.msra.mxu0 0.0
    %3290 = vmatprep.subr.mxu0 0.0
    %3291 = vmatpush1.msra.mxu0 0.0
    %3292 = vmatprep.subr.mxu0 0.0
    %3293 = vmatpush1.msra.mxu0 0.0
    %3294 = vmatprep.subr.mxu0 0.0
    %3295 = vmatpush1.msra.mxu0 0.0
    %3296 = vmatprep.subr.mxu0 0.0
    %3297 = vmatpush1.msra.mxu0 0.0
    %3298 = vmatprep.mubr.f32.mxu0 0.0
    %3299 = vmatmul.mubr.f32.gmra.mrb[0].mxu0 %v3072
    %v3300 = vpop.f32.mrb[0].mxu0
    %v3301 = vadd.f32 %v328, %v3300
    %v3302 = vpop.f32.mrb[0].mxu0
    %3303 = vdwg.mxu0
    %v3305 = vsel %vm250, %v3163, 0
    %3307 = vmatprep.subr.mxu0 0.0
    %3308 = vmatpush1.msra.mxu0 %v234
    %3309 = vmatprep.subr.mxu0 0.0
    %3310 = vmatpush1.msra.mxu0 %v235
    %3311 = vmatprep.subr.mxu0 0.0
    %3312 = vmatpush1.msra.mxu0 %v236
    %3313 = vmatprep.subr.mxu0 0.0
    %3314 = vmatpush1.msra.mxu0 %v237
    %3315 = vmatprep.subr.mxu0 0.0
    %3316 = vmatpush1.msra.mxu0 0.0
    %3317 = vmatprep.subr.mxu0 0.0
    %3318 = vmatpush1.msra.mxu0 0.0
    %3319 = vmatprep.subr.mxu0 0.0
    %3320 = vmatpush1.msra.mxu0 0.0
    %3321 = vmatprep.subr.mxu0 0.0
    %3322 = vmatpush1.msra.mxu0 0.0
    %3323 = vmatprep.subr.mxu0 0.0
    %3324 = vmatpush1.msra.mxu0 0.0
    %3325 = vmatprep.subr.mxu0 0.0
    %3326 = vmatpush1.msra.mxu0 0.0
    %3327 = vmatprep.subr.mxu0 0.0
    %3328 = vmatpush1.msra.mxu0 0.0
    %3329 = vmatprep.subr.mxu0 0.0
    %3330 = vmatpush1.msra.mxu0 0.0
    %3331 = vmatprep.subr.mxu0 0.0
    %3332 = vmatpush1.msra.mxu0 0.0
    %3333 = vmatprep.subr.mxu0 0.0
    %3334 = vmatpush1.msra.mxu0 0.0
    %3335 = vmatprep.subr.mxu0 0.0
    %3336 = vmatpush1.msra.mxu0 0.0
    %3337 = vmatprep.subr.mxu0 0.0
    %3338 = vmatpush1.msra.mxu0 0.0
    %3339 = vmatprep.subr.mxu0 0.0
    %3340 = vmatpush1.msra.mxu0 0.0
    %3341 = vmatprep.subr.mxu0 0.0
    %3342 = vmatpush1.msra.mxu0 0.0
    %3343 = vmatprep.subr.mxu0 0.0
    %3344 = vmatpush1.msra.mxu0 0.0
    %3345 = vmatprep.subr.mxu0 0.0
    %3346 = vmatpush1.msra.mxu0 0.0
    %3347 = vmatprep.subr.mxu0 0.0
    %3348 = vmatpush1.msra.mxu0 0.0
    %3349 = vmatprep.subr.mxu0 0.0
    %3350 = vmatpush1.msra.mxu0 0.0
    %3351 = vmatprep.subr.mxu0 0.0
    %3352 = vmatpush1.msra.mxu0 0.0
    %3353 = vmatprep.subr.mxu0 0.0
    %3354 = vmatpush1.msra.mxu0 0.0
    %3355 = vmatprep.subr.mxu0 0.0
    %3356 = vmatpush1.msra.mxu0 0.0
    %3357 = vmatprep.subr.mxu0 0.0
    %3358 = vmatpush1.msra.mxu0 0.0
    %3359 = vmatprep.subr.mxu0 0.0
    %3360 = vmatpush1.msra.mxu0 0.0
    %3361 = vmatprep.subr.mxu0 0.0
    %3362 = vmatpush1.msra.mxu0 0.0
    %3363 = vmatprep.subr.mxu0 0.0
    %3364 = vmatpush1.msra.mxu0 0.0
    %3365 = vmatprep.subr.mxu0 0.0
    %3366 = vmatpush1.msra.mxu0 0.0
    %3367 = vmatprep.subr.mxu0 0.0
    %3368 = vmatpush1.msra.mxu0 0.0
    %3369 = vmatprep.subr.mxu0 0.0
    %3370 = vmatpush1.msra.mxu0 0.0
    %3371 = vmatprep.mubr.f32.mxu0 0.0
    %3372 = vmatmul.mubr.f32.gmra.mrb[0].mxu0 %v3305
    %v3373 = vpop.f32.mrb[0].mxu0
    %v3374 = vadd.f32 %v404, %v3373
    %v3375 = vpop.f32.mrb[0].mxu0
    %3376 = vdwg.mxu0
    %3377 = vset.pattern.permute.xlu0 7
    %3378 = vperm.xlu0 %3377, %v249
    %v3379 = vpop.permute.xlu0 %3378
    %v3381 = vmul.f32 %v3379, %v190
    %v3382 = vadd.f32 %v3381, %v204
    %v3383 = vadd.f32 %v3382, %v3231
    %v3384 = vmul.f32 %v3379, %v197
    %v3385 = vadd.f32 %v3384, %v211
    %v3386 = vxor.u32 %v3383, 2147483648
    %v3387 = vmul.f32 %v3386, 1.442695
    %v3388 = vpow.pop %v3387
    %v3389 = vadd.f32 %v3388, 1.0
    %v3390 = vrcp.pop %v3389
    %v3391 = vmul.f32 1.0, %v3390
    %v3392 = vmul.f32 %v3391, %v3301
    %v3393 = vadd.f32 %v3385, %v3392
    %v3394 = vtanh.pop %v3393
    %v3395 = vsub.f32 %v2993, %v3394
    %3397 = vrot.lane.b32.xlu0 %v3395, 32
    %v3398 = vpop.permute.xlu0 %3397
    %v3400 = vmul.f32 %v3391, %v3398
    %3402 = vrot.lane.b32.xlu0 %v3400, 96
    %v3403 = vpop.permute.xlu0 %3402
    %v3405 = vadd.f32 %v3394, %v3403
    %3406 = vrot.lane.b32.xlu0 %v3163, 32
    %v3407 = vpop.permute.xlu0 %3406
    %v3409 = vsel %vm250, %v3405, %v3407
    %v3411 = vsel %vm519, %v3409, 0
    %3413 = vmatprep.subr.mxu0 0.0
    %3414 = vmatpush1.msra.mxu0 %v222
    %3415 = vmatprep.subr.mxu0 0.0
    %3416 = vmatpush1.msra.mxu0 %v223
    %3417 = vmatprep.subr.mxu0 0.0
    %3418 = vmatpush1.msra.mxu0 %v224
    %3419 = vmatprep.subr.mxu0 0.0
    %3420 = vmatpush1.msra.mxu0 %v225
    %3421 = vmatprep.subr.mxu0 0.0
    %3422 = vmatpush1.msra.mxu0 %v226
    %3423 = vmatprep.subr.mxu0 0.0
    %3424 = vmatpush1.msra.mxu0 %v227
    %3425 = vmatprep.subr.mxu0 0.0
    %3426 = vmatpush1.msra.mxu0 %v228
    %3427 = vmatprep.subr.mxu0 0.0
    %3428 = vmatpush1.msra.mxu0 %v229
    %3429 = vmatprep.subr.mxu0 0.0
    %3430 = vmatpush1.msra.mxu0 0.0
    %3431 = vmatprep.subr.mxu0 0.0
    %3432 = vmatpush1.msra.mxu0 0.0
    %3433 = vmatprep.subr.mxu0 0.0
    %3434 = vmatpush1.msra.mxu0 0.0
    %3435 = vmatprep.subr.mxu0 0.0
    %3436 = vmatpush1.msra.mxu0 0.0
    %3437 = vmatprep.subr.mxu0 0.0
    %3438 = vmatpush1.msra.mxu0 0.0
    %3439 = vmatprep.subr.mxu0 0.0
    %3440 = vmatpush1.msra.mxu0 0.0
    %3441 = vmatprep.subr.mxu0 0.0
    %3442 = vmatpush1.msra.mxu0 0.0
    %3443 = vmatprep.subr.mxu0 0.0
    %3444 = vmatpush1.msra.mxu0 0.0
    %3445 = vmatprep.subr.mxu0 0.0
    %3446 = vmatpush1.msra.mxu0 0.0
    %3447 = vmatprep.subr.mxu0 0.0
    %3448 = vmatpush1.msra.mxu0 0.0
    %3449 = vmatprep.subr.mxu0 0.0
    %3450 = vmatpush1.msra.mxu0 0.0
    %3451 = vmatprep.subr.mxu0 0.0
    %3452 = vmatpush1.msra.mxu0 0.0
    %3453 = vmatprep.subr.mxu0 0.0
    %3454 = vmatpush1.msra.mxu0 0.0
    %3455 = vmatprep.subr.mxu0 0.0
    %3456 = vmatpush1.msra.mxu0 0.0
    %3457 = vmatprep.subr.mxu0 0.0
    %3458 = vmatpush1.msra.mxu0 0.0
    %3459 = vmatprep.subr.mxu0 0.0
    %3460 = vmatpush1.msra.mxu0 0.0
    %3461 = vmatprep.subr.mxu0 0.0
    %3462 = vmatpush1.msra.mxu0 0.0
    %3463 = vmatprep.subr.mxu0 0.0
    %3464 = vmatpush1.msra.mxu0 0.0
    %3465 = vmatprep.subr.mxu0 0.0
    %3466 = vmatpush1.msra.mxu0 0.0
    %3467 = vmatprep.subr.mxu0 0.0
    %3468 = vmatpush1.msra.mxu0 0.0
    %3469 = vmatprep.subr.mxu0 0.0
    %3470 = vmatpush1.msra.mxu0 0.0
    %3471 = vmatprep.subr.mxu0 0.0
    %3472 = vmatpush1.msra.mxu0 0.0
    %3473 = vmatprep.subr.mxu0 0.0
    %3474 = vmatpush1.msra.mxu0 0.0
    %3475 = vmatprep.subr.mxu0 0.0
    %3476 = vmatpush1.msra.mxu0 0.0
    %3477 = vmatprep.mubr.f32.mxu0 0.0
    %3478 = vmatmul.mubr.f32.gmra.mrb[0].mxu0 %v3411
    %v3479 = vpop.f32.mrb[0].mxu0
    %v3480 = vadd.f32 %v517, %v3479
    %v3481 = vpop.f32.mrb[0].mxu0
    %3482 = vdwg.mxu0
    %v3484 = vsel %vm250, %v3405, 0
    %3486 = vmatprep.subr.mxu0 0.0
    %3487 = vmatpush1.msra.mxu0 %v230
    %3488 = vmatprep.subr.mxu0 0.0
    %3489 = vmatpush1.msra.mxu0 %v231
    %3490 = vmatprep.subr.mxu0 0.0
    %3491 = vmatpush1.msra.mxu0 %v232
    %3492 = vmatprep.subr.mxu0 0.0
    %3493 = vmatpush1.msra.mxu0 %v233
    %3494 = vmatprep.subr.mxu0 0.0
    %3495 = vmatpush1.msra.mxu0 0.0
    %3496 = vmatprep.subr.mxu0 0.0
    %3497 = vmatpush1.msra.mxu0 0.0
    %3498 = vmatprep.subr.mxu0 0.0
    %3499 = vmatpush1.msra.mxu0 0.0
    %3500 = vmatprep.subr.mxu0 0.0
    %3501 = vmatpush1.msra.mxu0 0.0
    %3502 = vmatprep.subr.mxu0 0.0
    %3503 = vmatpush1.msra.mxu0 0.0
    %3504 = vmatprep.subr.mxu0 0.0
    %3505 = vmatpush1.msra.mxu0 0.0
    %3506 = vmatprep.subr.mxu0 0.0
    %3507 = vmatpush1.msra.mxu0 0.0
    %3508 = vmatprep.subr.mxu0 0.0
    %3509 = vmatpush1.msra.mxu0 0.0
    %3510 = vmatprep.subr.mxu0 0.0
    %3511 = vmatpush1.msra.mxu0 0.0
    %3512 = vmatprep.subr.mxu0 0.0
    %3513 = vmatpush1.msra.mxu0 0.0
    %3514 = vmatprep.subr.mxu0 0.0
    %3515 = vmatpush1.msra.mxu0 0.0
    %3516 = vmatprep.subr.mxu0 0.0
    %3517 = vmatpush1.msra.mxu0 0.0
    %3518 = vmatprep.subr.mxu0 0.0
    %3519 = vmatpush1.msra.mxu0 0.0
    %3520 = vmatprep.subr.mxu0 0.0
    %3521 = vmatpush1.msra.mxu0 0.0
    %3522 = vmatprep.subr.mxu0 0.0
    %3523 = vmatpush1.msra.mxu0 0.0
    %3524 = vmatprep.subr.mxu0 0.0
    %3525 = vmatpush1.msra.mxu0 0.0
    %3526 = vmatprep.subr.mxu0 0.0
    %3527 = vmatpush1.msra.mxu0 0.0
    %3528 = vmatprep.subr.mxu0 0.0
    %3529 = vmatpush1.msra.mxu0 0.0
    %3530 = vmatprep.subr.mxu0 0.0
    %3531 = vmatpush1.msra.mxu0 0.0
    %3532 = vmatprep.subr.mxu0 0.0
    %3533 = vmatpush1.msra.mxu0 0.0
    %3534 = vmatprep.subr.mxu0 0.0
    %3535 = vmatpush1.msra.mxu0 0.0
    %3536 = vmatprep.subr.mxu0 0.0
    %3537 = vmatpush1.msra.mxu0 0.0
    %3538 = vmatprep.subr.mxu0 0.0
    %3539 = vmatpush1.msra.mxu0 0.0
    %3540 = vmatprep.subr.mxu0 0.0
    %3541 = vmatpush1.msra.mxu0 0.0
    %3542 = vmatprep.subr.mxu0 0.0
    %3543 = vmatpush1.msra.mxu0 0.0
    %3544 = vmatprep.subr.mxu0 0.0
    %3545 = vmatpush1.msra.mxu0 0.0
    %3546 = vmatprep.subr.mxu0 0.0
    %3547 = vmatpush1.msra.mxu0 0.0
    %3548 = vmatprep.subr.mxu0 0.0
    %3549 = vmatpush1.msra.mxu0 0.0
    %3550 = vmatprep.mubr.f32.mxu0 0.0
    %3551 = vmatmul.mubr.f32.gmra.mrb[0].mxu0 %v3484
    %v3552 = vpop.f32.mrb[0].mxu0
    %v3553 = vadd.f32 %v597, %v3552
    %v3554 = vpop.f32.mrb[0].mxu0
    %3555 = vdwg.mxu0
    %v3556 = vxor.u32 %v3480, 2147483648
    %v3557 = vmul.f32 %v3556, 1.442695
    %v3558 = vpow.pop %v3557
    %v3559 = vadd.f32 %v3558, 1.0
    %v3560 = vrcp.pop %v3559
    %v3561 = vmul.f32 1.0, %v3560
    %v3562 = vmul.f32 %v3561, %v3374
    %v3563 = vadd.f32 %v3553, %v3562
    %v3564 = vtanh.pop %v3563
    %v3565 = vsub.f32 %v3163, %v3564
    %3567 = vrot.lane.b32.xlu0 %v3565, 32
    %v3568 = vpop.permute.xlu0 %3567
    %v3570 = vmul.f32 %v3561, %v3568
    %3572 = vrot.lane.b32.xlu0 %v3570, 96
    %v3573 = vpop.permute.xlu0 %3572
    %v3575 = vadd.f32 %v3564, %v3573
    %vm3576 = vcmask 254976
    %3577 = vst.msk [vmem:[#allocation2] sm:$0x3] %vm3576, %v3575
    %s3578 = scalar_lea.vmem %s0, 2
    %v3579 = vld [vmem:[%s3578] sm:$0x3]
    %3580 = vmatprep.subr.mxu0 0.0
    %3581 = vmatpush1.msra.mxu0 %v213
    %3582 = vmatprep.subr.mxu0 0.0
    %3583 = vmatpush1.msra.mxu0 %v214
    %3584 = vmatprep.subr.mxu0 0.0
    %3585 = vmatpush1.msra.mxu0 %v215
    %3586 = vmatprep.subr.mxu0 0.0
    %3587 = vmatpush1.msra.mxu0 %v216
    %3588 = vmatprep.subr.mxu0 0.0
    %3589 = vmatpush1.msra.mxu0 0.0
    %3590 = vmatprep.subr.mxu0 0.0
    %3591 = vmatpush1.msra.mxu0 0.0
    %3592 = vmatprep.subr.mxu0 0.0
    %3593 = vmatpush1.msra.mxu0 0.0
    %3594 = vmatprep.subr.mxu0 0.0
    %3595 = vmatpush1.msra.mxu0 0.0
    %3596 = vmatprep.subr.mxu0 0.0
    %3597 = vmatpush1.msra.mxu0 0.0
    %3598 = vmatprep.subr.mxu0 0.0
    %3599 = vmatpush1.msra.mxu0 0.0
    %3600 = vmatprep.subr.mxu0 0.0
    %3601 = vmatpush1.msra.mxu0 0.0
    %3602 = vmatprep.subr.mxu0 0.0
    %3603 = vmatpush1.msra.mxu0 0.0
    %3604 = vmatprep.subr.mxu0 0.0
    %3605 = vmatpush1.msra.mxu0 0.0
    %3606 = vmatprep.subr.mxu0 0.0
    %3607 = vmatpush1.msra.mxu0 0.0
    %3608 = vmatprep.subr.mxu0 0.0
    %3609 = vmatpush1.msra.mxu0 0.0
    %3610 = vmatprep.subr.mxu0 0.0
    %3611 = vmatpush1.msra.mxu0 0.0
    %3612 = vmatprep.subr.mxu0 0.0
    %3613 = vmatpush1.msra.mxu0 0.0
    %3614 = vmatprep.subr.mxu0 0.0
    %3615 = vmatpush1.msra.mxu0 0.0
    %3616 = vmatprep.subr.mxu0 0.0
    %3617 = vmatpush1.msra.mxu0 0.0
    %3618 = vmatprep.subr.mxu0 0.0
    %3619 = vmatpush1.msra.mxu0 0.0
    %3620 = vmatprep.subr.mxu0 0.0
    %3621 = vmatpush1.msra.mxu0 0.0
    %3622 = vmatprep.subr.mxu0 0.0
    %3623 = vmatpush1.msra.mxu0 0.0
    %3624 = vmatprep.subr.mxu0 0.0
    %3625 = vmatpush1.msra.mxu0 0.0
    %3626 = vmatprep.subr.mxu0 0.0
    %3627 = vmatpush1.msra.mxu0 0.0
    %3628 = vmatprep.subr.mxu0 0.0
    %3629 = vmatpush1.msra.mxu0 0.0
    %3630 = vmatprep.subr.mxu0 0.0
    %3631 = vmatpush1.msra.mxu0 0.0
    %3632 = vmatprep.subr.mxu0 0.0
    %3633 = vmatpush1.msra.mxu0 0.0
    %3634 = vmatprep.subr.mxu0 0.0
    %3635 = vmatpush1.msra.mxu0 0.0
    %3636 = vmatprep.subr.mxu0 0.0
    %3637 = vmatpush1.msra.mxu0 0.0
    %3638 = vmatprep.subr.mxu0 0.0
    %3639 = vmatpush1.msra.mxu0 0.0
    %3640 = vmatprep.subr.mxu0 0.0
    %3641 = vmatpush1.msra.mxu0 0.0
    %3642 = vmatprep.subr.mxu0 0.0
    %3643 = vmatpush1.msra.mxu0 0.0
    %3644 = vmatprep.mubr.f32.mxu0 0.0
    %3645 = vmatmul.mubr.f32.gmra.mrb[0].mxu0 %v3484
    %v3646 = vpop.f32.mrb[0].mxu0
    %v3647 = vadd.f32 0.0, %v3646
    %v3648 = vpop.f32.mrb[0].mxu0
    %3649 = vdwg.mxu0
    %3650 = vmatprep.subr.mxu0 0.0
    %3651 = vmatpush1.msra.mxu0 %v217
    %3652 = vmatprep.subr.mxu0 0.0
    %3653 = vmatpush1.msra.mxu0 %v218
    %3654 = vmatprep.subr.mxu0 0.0
    %3655 = vmatpush1.msra.mxu0 %v219
    %3656 = vmatprep.subr.mxu0 0.0
    %3657 = vmatpush1.msra.mxu0 %v220
    %3658 = vmatprep.subr.mxu0 0.0
    %3659 = vmatpush1.msra.mxu0 0.0
    %3660 = vmatprep.subr.mxu0 0.0
    %3661 = vmatpush1.msra.mxu0 0.0
    %3662 = vmatprep.subr.mxu0 0.0
    %3663 = vmatpush1.msra.mxu0 0.0
    %3664 = vmatprep.subr.mxu0 0.0
    %3665 = vmatpush1.msra.mxu0 0.0
    %3666 = vmatprep.subr.mxu0 0.0
    %3667 = vmatpush1.msra.mxu0 0.0
    %3668 = vmatprep.subr.mxu0 0.0
    %3669 = vmatpush1.msra.mxu0 0.0
    %3670 = vmatprep.subr.mxu0 0.0
    %3671 = vmatpush1.msra.mxu0 0.0
    %3672 = vmatprep.subr.mxu0 0.0
    %3673 = vmatpush1.msra.mxu0 0.0
    %3674 = vmatprep.subr.mxu0 0.0
    %3675 = vmatpush1.msra.mxu0 0.0
    %3676 = vmatprep.subr.mxu0 0.0
    %3677 = vmatpush1.msra.mxu0 0.0
    %3678 = vmatprep.subr.mxu0 0.0
    %3679 = vmatpush1.msra.mxu0 0.0
    %3680 = vmatprep.subr.mxu0 0.0
    %3681 = vmatpush1.msra.mxu0 0.0
    %3682 = vmatprep.subr.mxu0 0.0
    %3683 = vmatpush1.msra.mxu0 0.0
    %3684 = vmatprep.subr.mxu0 0.0
    %3685 = vmatpush1.msra.mxu0 0.0
    %3686 = vmatprep.subr.mxu0 0.0
    %3687 = vmatpush1.msra.mxu0 0.0
    %3688 = vmatprep.subr.mxu0 0.0
    %3689 = vmatpush1.msra.mxu0 0.0
    %3690 = vmatprep.subr.mxu0 0.0
    %3691 = vmatpush1.msra.mxu0 0.0
    %3692 = vmatprep.subr.mxu0 0.0
    %3693 = vmatpush1.msra.mxu0 0.0
    %3694 = vmatprep.subr.mxu0 0.0
    %3695 = vmatpush1.msra.mxu0 0.0
    %3696 = vmatprep.subr.mxu0 0.0
    %3697 = vmatpush1.msra.mxu0 0.0
    %3698 = vmatprep.subr.mxu0 0.0
    %3699 = vmatpush1.msra.mxu0 0.0
    %3700 = vmatprep.subr.mxu0 0.0
    %3701 = vmatpush1.msra.mxu0 0.0
    %3702 = vmatprep.subr.mxu0 0.0
    %3703 = vmatpush1.msra.mxu0 0.0
    %3704 = vmatprep.subr.mxu0 0.0
    %3705 = vmatpush1.msra.mxu0 0.0
    %3706 = vmatprep.subr.mxu0 0.0
    %3707 = vmatpush1.msra.mxu0 0.0
    %3708 = vmatprep.subr.mxu0 0.0
    %3709 = vmatpush1.msra.mxu0 0.0
    %3710 = vmatprep.subr.mxu0 0.0
    %3711 = vmatpush1.msra.mxu0 0.0
    %3712 = vmatprep.subr.mxu0 0.0
    %3713 = vmatpush1.msra.mxu0 0.0
    %3714 = vmatprep.mubr.f32.mxu0 0.0
    %3715 = vmatmul.mubr.f32.gmra.mrb[0].mxu0 %v3484
    %v3716 = vpop.f32.mrb[0].mxu0
    %v3717 = vadd.f32 %v328, %v3716
    %v3718 = vpop.f32.mrb[0].mxu0
    %3719 = vdwg.mxu0
    %v3721 = vsel %vm250, %v3575, 0
    %3723 = vmatprep.subr.mxu0 0.0
    %3724 = vmatpush1.msra.mxu0 %v234
    %3725 = vmatprep.subr.mxu0 0.0
    %3726 = vmatpush1.msra.mxu0 %v235
    %3727 = vmatprep.subr.mxu0 0.0
    %3728 = vmatpush1.msra.mxu0 %v236
    %3729 = vmatprep.subr.mxu0 0.0
    %3730 = vmatpush1.msra.mxu0 %v237
    %3731 = vmatprep.subr.mxu0 0.0
    %3732 = vmatpush1.msra.mxu0 0.0
    %3733 = vmatprep.subr.mxu0 0.0
    %3734 = vmatpush1.msra.mxu0 0.0
    %3735 = vmatprep.subr.mxu0 0.0
    %3736 = vmatpush1.msra.mxu0 0.0
    %3737 = vmatprep.subr.mxu0 0.0
    %3738 = vmatpush1.msra.mxu0 0.0
    %3739 = vmatprep.subr.mxu0 0.0
    %3740 = vmatpush1.msra.mxu0 0.0
    %3741 = vmatprep.subr.mxu0 0.0
    %3742 = vmatpush1.msra.mxu0 0.0
    %3743 = vmatprep.subr.mxu0 0.0
    %3744 = vmatpush1.msra.mxu0 0.0
    %3745 = vmatprep.subr.mxu0 0.0
    %3746 = vmatpush1.msra.mxu0 0.0
    %3747 = vmatprep.subr.mxu0 0.0
    %3748 = vmatpush1.msra.mxu0 0.0
    %3749 = vmatprep.subr.mxu0 0.0
    %3750 = vmatpush1.msra.mxu0 0.0
    %3751 = vmatprep.subr.mxu0 0.0
    %3752 = vmatpush1.msra.mxu0 0.0
    %3753 = vmatprep.subr.mxu0 0.0
    %3754 = vmatpush1.msra.mxu0 0.0
    %3755 = vmatprep.subr.mxu0 0.0
    %3756 = vmatpush1.msra.mxu0 0.0
    %3757 = vmatprep.subr.mxu0 0.0
    %3758 = vmatpush1.msra.mxu0 0.0
    %3759 = vmatprep.subr.mxu0 0.0
    %3760 = vmatpush1.msra.mxu0 0.0
    %3761 = vmatprep.subr.mxu0 0.0
    %3762 = vmatpush1.msra.mxu0 0.0
    %3763 = vmatprep.subr.mxu0 0.0
    %3764 = vmatpush1.msra.mxu0 0.0
    %3765 = vmatprep.subr.mxu0 0.0
    %3766 = vmatpush1.msra.mxu0 0.0
    %3767 = vmatprep.subr.mxu0 0.0
    %3768 = vmatpush1.msra.mxu0 0.0
    %3769 = vmatprep.subr.mxu0 0.0
    %3770 = vmatpush1.msra.mxu0 0.0
    %3771 = vmatprep.subr.mxu0 0.0
    %3772 = vmatpush1.msra.mxu0 0.0
    %3773 = vmatprep.subr.mxu0 0.0
    %3774 = vmatpush1.msra.mxu0 0.0
    %3775 = vmatprep.subr.mxu0 0.0
    %3776 = vmatpush1.msra.mxu0 0.0
    %3777 = vmatprep.subr.mxu0 0.0
    %3778 = vmatpush1.msra.mxu0 0.0
    %3779 = vmatprep.subr.mxu0 0.0
    %3780 = vmatpush1.msra.mxu0 0.0
    %3781 = vmatprep.subr.mxu0 0.0
    %3782 = vmatpush1.msra.mxu0 0.0
    %3783 = vmatprep.subr.mxu0 0.0
    %3784 = vmatpush1.msra.mxu0 0.0
    %3785 = vmatprep.subr.mxu0 0.0
    %3786 = vmatpush1.msra.mxu0 0.0
    %3787 = vmatprep.mubr.f32.mxu0 0.0
    %3788 = vmatmul.mubr.f32.gmra.mrb[0].mxu0 %v3721
    %v3789 = vpop.f32.mrb[0].mxu0
    %v3790 = vadd.f32 %v404, %v3789
    %v3791 = vpop.f32.mrb[0].mxu0
    %3792 = vdwg.mxu0
    %3794 = vset.pattern.permute.xlu0 0
    %3795 = vperm.xlu0 %3794, %v3579
    %v3796 = vpop.permute.xlu0 %3795
    %v3798 = vmul.f32 %v3796, %v190
    %v3799 = vadd.f32 %v3798, %v204
    %v3800 = vadd.f32 %v3799, %v3647
    %v3801 = vmul.f32 %v3796, %v197
    %v3802 = vadd.f32 %v3801, %v211
    %v3803 = vxor.u32 %v3800, 2147483648
    %v3804 = vmul.f32 %v3803, 1.442695
    %v3805 = vpow.pop %v3804
    %v3806 = vadd.f32 %v3805, 1.0
    %v3807 = vrcp.pop %v3806
    %v3808 = vmul.f32 1.0, %v3807
    %v3809 = vmul.f32 %v3808, %v3717
    %v3810 = vadd.f32 %v3802, %v3809
    %v3811 = vtanh.pop %v3810
    %v3812 = vsub.f32 %v3405, %v3811
    %3814 = vrot.lane.b32.xlu0 %v3812, 32
    %v3815 = vpop.permute.xlu0 %3814
    %v3817 = vmul.f32 %v3808, %v3815
    %3819 = vrot.lane.b32.xlu0 %v3817, 96
    %v3820 = vpop.permute.xlu0 %3819
    %v3822 = vadd.f32 %v3811, %v3820
    %3823 = vrot.lane.b32.xlu0 %v3575, 32
    %v3824 = vpop.permute.xlu0 %3823
    %v3826 = vsel %vm250, %v3822, %v3824
    %v3828 = vsel %vm519, %v3826, 0
    %3830 = vmatprep.subr.mxu0 0.0
    %3831 = vmatpush1.msra.mxu0 %v222
    %3832 = vmatprep.subr.mxu0 0.0
    %3833 = vmatpush1.msra.mxu0 %v223
    %3834 = vmatprep.subr.mxu0 0.0
    %3835 = vmatpush1.msra.mxu0 %v224
    %3836 = vmatprep.subr.mxu0 0.0
    %3837 = vmatpush1.msra.mxu0 %v225
    %3838 = vmatprep.subr.mxu0 0.0
    %3839 = vmatpush1.msra.mxu0 %v226
    %3840 = vmatprep.subr.mxu0 0.0
    %3841 = vmatpush1.msra.mxu0 %v227
    %3842 = vmatprep.subr.mxu0 0.0
    %3843 = vmatpush1.msra.mxu0 %v228
    %3844 = vmatprep.subr.mxu0 0.0
    %3845 = vmatpush1.msra.mxu0 %v229
    %3846 = vmatprep.subr.mxu0 0.0
    %3847 = vmatpush1.msra.mxu0 0.0
    %3848 = vmatprep.subr.mxu0 0.0
    %3849 = vmatpush1.msra.mxu0 0.0
    %3850 = vmatprep.subr.mxu0 0.0
    %3851 = vmatpush1.msra.mxu0 0.0
    %3852 = vmatprep.subr.mxu0 0.0
    %3853 = vmatpush1.msra.mxu0 0.0
    %3854 = vmatprep.subr.mxu0 0.0
    %3855 = vmatpush1.msra.mxu0 0.0
    %3856 = vmatprep.subr.mxu0 0.0
    %3857 = vmatpush1.msra.mxu0 0.0
    %3858 = vmatprep.subr.mxu0 0.0
    %3859 = vmatpush1.msra.mxu0 0.0
    %3860 = vmatprep.subr.mxu0 0.0
    %3861 = vmatpush1.msra.mxu0 0.0
    %3862 = vmatprep.subr.mxu0 0.0
    %3863 = vmatpush1.msra.mxu0 0.0
    %3864 = vmatprep.subr.mxu0 0.0
    %3865 = vmatpush1.msra.mxu0 0.0
    %3866 = vmatprep.subr.mxu0 0.0
    %3867 = vmatpush1.msra.mxu0 0.0
    %3868 = vmatprep.subr.mxu0 0.0
    %3869 = vmatpush1.msra.mxu0 0.0
    %3870 = vmatprep.subr.mxu0 0.0
    %3871 = vmatpush1.msra.mxu0 0.0
    %3872 = vmatprep.subr.mxu0 0.0
    %3873 = vmatpush1.msra.mxu0 0.0
    %3874 = vmatprep.subr.mxu0 0.0
    %3875 = vmatpush1.msra.mxu0 0.0
    %3876 = vmatprep.subr.mxu0 0.0
    %3877 = vmatpush1.msra.mxu0 0.0
    %3878 = vmatprep.subr.mxu0 0.0
    %3879 = vmatpush1.msra.mxu0 0.0
    %3880 = vmatprep.subr.mxu0 0.0
    %3881 = vmatpush1.msra.mxu0 0.0
    %3882 = vmatprep.subr.mxu0 0.0
    %3883 = vmatpush1.msra.mxu0 0.0
    %3884 = vmatprep.subr.mxu0 0.0
    %3885 = vmatpush1.msra.mxu0 0.0
    %3886 = vmatprep.subr.mxu0 0.0
    %3887 = vmatpush1.msra.mxu0 0.0
    %3888 = vmatprep.subr.mxu0 0.0
    %3889 = vmatpush1.msra.mxu0 0.0
    %3890 = vmatprep.subr.mxu0 0.0
    %3891 = vmatpush1.msra.mxu0 0.0
    %3892 = vmatprep.subr.mxu0 0.0
    %3893 = vmatpush1.msra.mxu0 0.0
    %3894 = vmatprep.mubr.f32.mxu0 0.0
    %3895 = vmatmul.mubr.f32.gmra.mrb[0].mxu0 %v3828
    %v3896 = vpop.f32.mrb[0].mxu0
    %v3897 = vadd.f32 %v517, %v3896
    %v3898 = vpop.f32.mrb[0].mxu0
    %3899 = vdwg.mxu0
    %v3901 = vsel %vm250, %v3822, 0
    %3903 = vmatprep.subr.mxu0 0.0
    %3904 = vmatpush1.msra.mxu0 %v230
    %3905 = vmatprep.subr.mxu0 0.0
    %3906 = vmatpush1.msra.mxu0 %v231
    %3907 = vmatprep.subr.mxu0 0.0
    %3908 = vmatpush1.msra.mxu0 %v232
    %3909 = vmatprep.subr.mxu0 0.0
    %3910 = vmatpush1.msra.mxu0 %v233
    %3911 = vmatprep.subr.mxu0 0.0
    %3912 = vmatpush1.msra.mxu0 0.0
    %3913 = vmatprep.subr.mxu0 0.0
    %3914 = vmatpush1.msra.mxu0 0.0
    %3915 = vmatprep.subr.mxu0 0.0
    %3916 = vmatpush1.msra.mxu0 0.0
    %3917 = vmatprep.subr.mxu0 0.0
    %3918 = vmatpush1.msra.mxu0 0.0
    %3919 = vmatprep.subr.mxu0 0.0
    %3920 = vmatpush1.msra.mxu0 0.0
    %3921 = vmatprep.subr.mxu0 0.0
    %3922 = vmatpush1.msra.mxu0 0.0
    %3923 = vmatprep.subr.mxu0 0.0
    %3924 = vmatpush1.msra.mxu0 0.0
    %3925 = vmatprep.subr.mxu0 0.0
    %3926 = vmatpush1.msra.mxu0 0.0
    %3927 = vmatprep.subr.mxu0 0.0
    %3928 = vmatpush1.msra.mxu0 0.0
    %3929 = vmatprep.subr.mxu0 0.0
    %3930 = vmatpush1.msra.mxu0 0.0
    %3931 = vmatprep.subr.mxu0 0.0
    %3932 = vmatpush1.msra.mxu0 0.0
    %3933 = vmatprep.subr.mxu0 0.0
    %3934 = vmatpush1.msra.mxu0 0.0
    %3935 = vmatprep.subr.mxu0 0.0
    %3936 = vmatpush1.msra.mxu0 0.0
    %3937 = vmatprep.subr.mxu0 0.0
    %3938 = vmatpush1.msra.mxu0 0.0
    %3939 = vmatprep.subr.mxu0 0.0
    %3940 = vmatpush1.msra.mxu0 0.0
    %3941 = vmatprep.subr.mxu0 0.0
    %3942 = vmatpush1.msra.mxu0 0.0
    %3943 = vmatprep.subr.mxu0 0.0
    %3944 = vmatpush1.msra.mxu0 0.0
    %3945 = vmatprep.subr.mxu0 0.0
    %3946 = vmatpush1.msra.mxu0 0.0
    %3947 = vmatprep.subr.mxu0 0.0
    %3948 = vmatpush1.msra.mxu0 0.0
    %3949 = vmatprep.subr.mxu0 0.0
    %3950 = vmatpush1.msra.mxu0 0.0
    %3951 = vmatprep.subr.mxu0 0.0
    %3952 = vmatpush1.msra.mxu0 0.0
    %3953 = vmatprep.subr.mxu0 0.0
    %3954 = vmatpush1.msra.mxu0 0.0
    %3955 = vmatprep.subr.mxu0 0.0
    %3956 = vmatpush1.msra.mxu0 0.0
    %3957 = vmatprep.subr.mxu0 0.0
    %3958 = vmatpush1.msra.mxu0 0.0
    %3959 = vmatprep.subr.mxu0 0.0
    %3960 = vmatpush1.msra.mxu0 0.0
    %3961 = vmatprep.subr.mxu0 0.0
    %3962 = vmatpush1.msra.mxu0 0.0
    %3963 = vmatprep.subr.mxu0 0.0
    %3964 = vmatpush1.msra.mxu0 0.0
    %3965 = vmatprep.subr.mxu0 0.0
    %3966 = vmatpush1.msra.mxu0 0.0
    %3967 = vmatprep.mubr.f32.mxu0 0.0
    %3968 = vmatmul.mubr.f32.gmra.mrb[0].mxu0 %v3901
    %v3969 = vpop.f32.mrb[0].mxu0
    %v3970 = vadd.f32 %v597, %v3969
    %v3971 = vpop.f32.mrb[0].mxu0
    %3972 = vdwg.mxu0
    %v3973 = vxor.u32 %v3897, 2147483648
    %v3974 = vmul.f32 %v3973, 1.442695
    %v3975 = vpow.pop %v3974
    %v3976 = vadd.f32 %v3975, 1.0
    %v3977 = vrcp.pop %v3976
    %v3978 = vmul.f32 1.0, %v3977
    %v3979 = vmul.f32 %v3978, %v3790
    %v3980 = vadd.f32 %v3970, %v3979
    %v3981 = vtanh.pop %v3980
    %v3982 = vsub.f32 %v3575, %v3981
    %3984 = vrot.lane.b32.xlu0 %v3982, 32
    %v3985 = vpop.permute.xlu0 %3984
    %v3987 = vmul.f32 %v3978, %v3985
    %3989 = vrot.lane.b32.xlu0 %v3987, 96
    %v3990 = vpop.permute.xlu0 %3989
    %v3992 = vadd.f32 %v3981, %v3990
    %3993 = vmatprep.subr.mxu0 0.0
    %3994 = vmatpush1.msra.mxu0 %v213
    %3995 = vmatprep.subr.mxu0 0.0
    %3996 = vmatpush1.msra.mxu0 %v214
    %3997 = vmatprep.subr.mxu0 0.0
    %3998 = vmatpush1.msra.mxu0 %v215
    %3999 = vmatprep.subr.mxu0 0.0
    %4000 = vmatpush1.msra.mxu0 %v216
    %4001 = vmatprep.subr.mxu0 0.0
    %4002 = vmatpush1.msra.mxu0 0.0
    %4003 = vmatprep.subr.mxu0 0.0
    %4004 = vmatpush1.msra.mxu0 0.0
    %4005 = vmatprep.subr.mxu0 0.0
    %4006 = vmatpush1.msra.mxu0 0.0
    %4007 = vmatprep.subr.mxu0 0.0
    %4008 = vmatpush1.msra.mxu0 0.0
    %4009 = vmatprep.subr.mxu0 0.0
    %4010 = vmatpush1.msra.mxu0 0.0
    %4011 = vmatprep.subr.mxu0 0.0
    %4012 = vmatpush1.msra.mxu0 0.0
    %4013 = vmatprep.subr.mxu0 0.0
    %4014 = vmatpush1.msra.mxu0 0.0
    %4015 = vmatprep.subr.mxu0 0.0
    %4016 = vmatpush1.msra.mxu0 0.0
    %4017 = vmatprep.subr.mxu0 0.0
    %4018 = vmatpush1.msra.mxu0 0.0
    %4019 = vmatprep.subr.mxu0 0.0
    %4020 = vmatpush1.msra.mxu0 0.0
    %4021 = vmatprep.subr.mxu0 0.0
    %4022 = vmatpush1.msra.mxu0 0.0
    %4023 = vmatprep.subr.mxu0 0.0
    %4024 = vmatpush1.msra.mxu0 0.0
    %4025 = vmatprep.subr.mxu0 0.0
    %4026 = vmatpush1.msra.mxu0 0.0
    %4027 = vmatprep.subr.mxu0 0.0
    %4028 = vmatpush1.msra.mxu0 0.0
    %4029 = vmatprep.subr.mxu0 0.0
    %4030 = vmatpush1.msra.mxu0 0.0
    %4031 = vmatprep.subr.mxu0 0.0
    %4032 = vmatpush1.msra.mxu0 0.0
    %4033 = vmatprep.subr.mxu0 0.0
    %4034 = vmatpush1.msra.mxu0 0.0
    %4035 = vmatprep.subr.mxu0 0.0
    %4036 = vmatpush1.msra.mxu0 0.0
    %4037 = vmatprep.subr.mxu0 0.0
    %4038 = vmatpush1.msra.mxu0 0.0
    %4039 = vmatprep.subr.mxu0 0.0
    %4040 = vmatpush1.msra.mxu0 0.0
    %4041 = vmatprep.subr.mxu0 0.0
    %4042 = vmatpush1.msra.mxu0 0.0
    %4043 = vmatprep.subr.mxu0 0.0
    %4044 = vmatpush1.msra.mxu0 0.0
    %4045 = vmatprep.subr.mxu0 0.0
    %4046 = vmatpush1.msra.mxu0 0.0
    %4047 = vmatprep.subr.mxu0 0.0
    %4048 = vmatpush1.msra.mxu0 0.0
    %4049 = vmatprep.subr.mxu0 0.0
    %4050 = vmatpush1.msra.mxu0 0.0
    %4051 = vmatprep.subr.mxu0 0.0
    %4052 = vmatpush1.msra.mxu0 0.0
    %4053 = vmatprep.subr.mxu0 0.0
    %4054 = vmatpush1.msra.mxu0 0.0
    %4055 = vmatprep.subr.mxu0 0.0
    %4056 = vmatpush1.msra.mxu0 0.0
    %4057 = vmatprep.mubr.f32.mxu0 0.0
    %4058 = vmatmul.mubr.f32.gmra.mrb[0].mxu0 %v3901
    %v4059 = vpop.f32.mrb[0].mxu0
    %v4060 = vadd.f32 0.0, %v4059
    %v4061 = vpop.f32.mrb[0].mxu0
    %4062 = vdwg.mxu0
    %4063 = vmatprep.subr.mxu0 0.0
    %4064 = vmatpush1.msra.mxu0 %v217
    %4065 = vmatprep.subr.mxu0 0.0
    %4066 = vmatpush1.msra.mxu0 %v218
    %4067 = vmatprep.subr.mxu0 0.0
    %4068 = vmatpush1.msra.mxu0 %v219
    %4069 = vmatprep.subr.mxu0 0.0
    %4070 = vmatpush1.msra.mxu0 %v220
    %4071 = vmatprep.subr.mxu0 0.0
    %4072 = vmatpush1.msra.mxu0 0.0
    %4073 = vmatprep.subr.mxu0 0.0
    %4074 = vmatpush1.msra.mxu0 0.0
    %4075 = vmatprep.subr.mxu0 0.0
    %4076 = vmatpush1.msra.mxu0 0.0
    %4077 = vmatprep.subr.mxu0 0.0
    %4078 = vmatpush1.msra.mxu0 0.0
    %4079 = vmatprep.subr.mxu0 0.0
    %4080 = vmatpush1.msra.mxu0 0.0
    %4081 = vmatprep.subr.mxu0 0.0
    %4082 = vmatpush1.msra.mxu0 0.0
    %4083 = vmatprep.subr.mxu0 0.0
    %4084 = vmatpush1.msra.mxu0 0.0
    %4085 = vmatprep.subr.mxu0 0.0
    %4086 = vmatpush1.msra.mxu0 0.0
    %4087 = vmatprep.subr.mxu0 0.0
    %4088 = vmatpush1.msra.mxu0 0.0
    %4089 = vmatprep.subr.mxu0 0.0
    %4090 = vmatpush1.msra.mxu0 0.0
    %4091 = vmatprep.subr.mxu0 0.0
    %4092 = vmatpush1.msra.mxu0 0.0
    %4093 = vmatprep.subr.mxu0 0.0
    %4094 = vmatpush1.msra.mxu0 0.0
    %4095 = vmatprep.subr.mxu0 0.0
    %4096 = vmatpush1.msra.mxu0 0.0
    %4097 = vmatprep.subr.mxu0 0.0
    %4098 = vmatpush1.msra.mxu0 0.0
    %4099 = vmatprep.subr.mxu0 0.0
    %4100 = vmatpush1.msra.mxu0 0.0
    %4101 = vmatprep.subr.mxu0 0.0
    %4102 = vmatpush1.msra.mxu0 0.0
    %4103 = vmatprep.subr.mxu0 0.0
    %4104 = vmatpush1.msra.mxu0 0.0
    %4105 = vmatprep.subr.mxu0 0.0
    %4106 = vmatpush1.msra.mxu0 0.0
    %4107 = vmatprep.subr.mxu0 0.0
    %4108 = vmatpush1.msra.mxu0 0.0
    %4109 = vmatprep.subr.mxu0 0.0
    %4110 = vmatpush1.msra.mxu0 0.0
    %4111 = vmatprep.subr.mxu0 0.0
    %4112 = vmatpush1.msra.mxu0 0.0
    %4113 = vmatprep.subr.mxu0 0.0
    %4114 = vmatpush1.msra.mxu0 0.0
    %4115 = vmatprep.subr.mxu0 0.0
    %4116 = vmatpush1.msra.mxu0 0.0
    %4117 = vmatprep.subr.mxu0 0.0
    %4118 = vmatpush1.msra.mxu0 0.0
    %4119 = vmatprep.subr.mxu0 0.0
    %4120 = vmatpush1.msra.mxu0 0.0
    %4121 = vmatprep.subr.mxu0 0.0
    %4122 = vmatpush1.msra.mxu0 0.0
    %4123 = vmatprep.subr.mxu0 0.0
    %4124 = vmatpush1.msra.mxu0 0.0
    %4125 = vmatprep.subr.mxu0 0.0
    %4126 = vmatpush1.msra.mxu0 0.0
    %4127 = vmatprep.mubr.f32.mxu0 0.0
    %4128 = vmatmul.mubr.f32.gmra.mrb[0].mxu0 %v3901
    %v4129 = vpop.f32.mrb[0].mxu0
    %v4130 = vadd.f32 %v328, %v4129
    %v4131 = vpop.f32.mrb[0].mxu0
    %4132 = vdwg.mxu0
    %v4134 = vsel %vm250, %v3992, 0
    %4136 = vmatprep.subr.mxu0 0.0
    %4137 = vmatpush1.msra.mxu0 %v234
    %4138 = vmatprep.subr.mxu0 0.0
    %4139 = vmatpush1.msra.mxu0 %v235
    %4140 = vmatprep.subr.mxu0 0.0
    %4141 = vmatpush1.msra.mxu0 %v236
    %4142 = vmatprep.subr.mxu0 0.0
    %4143 = vmatpush1.msra.mxu0 %v237
    %4144 = vmatprep.subr.mxu0 0.0
    %4145 = vmatpush1.msra.mxu0 0.0
    %4146 = vmatprep.subr.mxu0 0.0
    %4147 = vmatpush1.msra.mxu0 0.0
    %4148 = vmatprep.subr.mxu0 0.0
    %4149 = vmatpush1.msra.mxu0 0.0
    %4150 = vmatprep.subr.mxu0 0.0
    %4151 = vmatpush1.msra.mxu0 0.0
    %4152 = vmatprep.subr.mxu0 0.0
    %4153 = vmatpush1.msra.mxu0 0.0
    %4154 = vmatprep.subr.mxu0 0.0
    %4155 = vmatpush1.msra.mxu0 0.0
    %4156 = vmatprep.subr.mxu0 0.0
    %4157 = vmatpush1.msra.mxu0 0.0
    %4158 = vmatprep.subr.mxu0 0.0
    %4159 = vmatpush1.msra.mxu0 0.0
    %4160 = vmatprep.subr.mxu0 0.0
    %4161 = vmatpush1.msra.mxu0 0.0
    %4162 = vmatprep.subr.mxu0 0.0
    %4163 = vmatpush1.msra.mxu0 0.0
    %4164 = vmatprep.subr.mxu0 0.0
    %4165 = vmatpush1.msra.mxu0 0.0
    %4166 = vmatprep.subr.mxu0 0.0
    %4167 = vmatpush1.msra.mxu0 0.0
    %4168 = vmatprep.subr.mxu0 0.0
    %4169 = vmatpush1.msra.mxu0 0.0
    %4170 = vmatprep.subr.mxu0 0.0
    %4171 = vmatpush1.msra.mxu0 0.0
    %4172 = vmatprep.subr.mxu0 0.0
    %4173 = vmatpush1.msra.mxu0 0.0
    %4174 = vmatprep.subr.mxu0 0.0
    %4175 = vmatpush1.msra.mxu0 0.0
    %4176 = vmatprep.subr.mxu0 0.0
    %4177 = vmatpush1.msra.mxu0 0.0
    %4178 = vmatprep.subr.mxu0 0.0
    %4179 = vmatpush1.msra.mxu0 0.0
    %4180 = vmatprep.subr.mxu0 0.0
    %4181 = vmatpush1.msra.mxu0 0.0
    %4182 = vmatprep.subr.mxu0 0.0
    %4183 = vmatpush1.msra.mxu0 0.0
    %4184 = vmatprep.subr.mxu0 0.0
    %4185 = vmatpush1.msra.mxu0 0.0
    %4186 = vmatprep.subr.mxu0 0.0
    %4187 = vmatpush1.msra.mxu0 0.0
    %4188 = vmatprep.subr.mxu0 0.0
    %4189 = vmatpush1.msra.mxu0 0.0
    %4190 = vmatprep.subr.mxu0 0.0
    %4191 = vmatpush1.msra.mxu0 0.0
    %4192 = vmatprep.subr.mxu0 0.0
    %4193 = vmatpush1.msra.mxu0 0.0
    %4194 = vmatprep.subr.mxu0 0.0
    %4195 = vmatpush1.msra.mxu0 0.0
    %4196 = vmatprep.subr.mxu0 0.0
    %4197 = vmatpush1.msra.mxu0 0.0
    %4198 = vmatprep.subr.mxu0 0.0
    %4199 = vmatpush1.msra.mxu0 0.0
    %4200 = vmatprep.mubr.f32.mxu0 0.0
    %4201 = vmatmul.mubr.f32.gmra.mrb[0].mxu0 %v4134
    %v4202 = vpop.f32.mrb[0].mxu0
    %v4203 = vadd.f32 %v404, %v4202
    %v4204 = vpop.f32.mrb[0].mxu0
    %4205 = vdwg.mxu0
    %4206 = vset.pattern.permute.xlu0 1
    %4207 = vperm.xlu0 %4206, %v3579
    %v4208 = vpop.permute.xlu0 %4207
    %v4210 = vmul.f32 %v4208, %v190
    %v4211 = vadd.f32 %v4210, %v204
    %v4212 = vadd.f32 %v4211, %v4060
    %v4213 = vmul.f32 %v4208, %v197
    %v4214 = vadd.f32 %v4213, %v211
    %v4215 = vxor.u32 %v4212, 2147483648
    %v4216 = vmul.f32 %v4215, 1.442695
    %v4217 = vpow.pop %v4216
    %v4218 = vadd.f32 %v4217, 1.0
    %v4219 = vrcp.pop %v4218
    %v4220 = vmul.f32 1.0, %v4219
    %v4221 = vmul.f32 %v4220, %v4130
    %v4222 = vadd.f32 %v4214, %v4221
    %v4223 = vtanh.pop %v4222
    %v4224 = vsub.f32 %v3822, %v4223
    %4226 = vrot.lane.b32.xlu0 %v4224, 32
    %v4227 = vpop.permute.xlu0 %4226
    %v4229 = vmul.f32 %v4220, %v4227
    %4231 = vrot.lane.b32.xlu0 %v4229, 96
    %v4232 = vpop.permute.xlu0 %4231
    %v4234 = vadd.f32 %v4223, %v4232
    %4235 = vrot.lane.b32.xlu0 %v3992, 32
    %v4236 = vpop.permute.xlu0 %4235
    %v4238 = vsel %vm250, %v4234, %v4236
    %v4240 = vsel %vm519, %v4238, 0
    %4242 = vmatprep.subr.mxu0 0.0
    %4243 = vmatpush1.msra.mxu0 %v222
    %4244 = vmatprep.subr.mxu0 0.0
    %4245 = vmatpush1.msra.mxu0 %v223
    %4246 = vmatprep.subr.mxu0 0.0
    %4247 = vmatpush1.msra.mxu0 %v224
    %4248 = vmatprep.subr.mxu0 0.0
    %4249 = vmatpush1.msra.mxu0 %v225
    %4250 = vmatprep.subr.mxu0 0.0
    %4251 = vmatpush1.msra.mxu0 %v226
    %4252 = vmatprep.subr.mxu0 0.0
    %4253 = vmatpush1.msra.mxu0 %v227
    %4254 = vmatprep.subr.mxu0 0.0
    %4255 = vmatpush1.msra.mxu0 %v228
    %4256 = vmatprep.subr.mxu0 0.0
    %4257 = vmatpush1.msra.mxu0 %v229
    %4258 = vmatprep.subr.mxu0 0.0
    %4259 = vmatpush1.msra.mxu0 0.0
    %4260 = vmatprep.subr.mxu0 0.0
    %4261 = vmatpush1.msra.mxu0 0.0
    %4262 = vmatprep.subr.mxu0 0.0
    %4263 = vmatpush1.msra.mxu0 0.0
    %4264 = vmatprep.subr.mxu0 0.0
    %4265 = vmatpush1.msra.mxu0 0.0
    %4266 = vmatprep.subr.mxu0 0.0
    %4267 = vmatpush1.msra.mxu0 0.0
    %4268 = vmatprep.subr.mxu0 0.0
    %4269 = vmatpush1.msra.mxu0 0.0
    %4270 = vmatprep.subr.mxu0 0.0
    %4271 = vmatpush1.msra.mxu0 0.0
    %4272 = vmatprep.subr.mxu0 0.0
    %4273 = vmatpush1.msra.mxu0 0.0
    %4274 = vmatprep.subr.mxu0 0.0
    %4275 = vmatpush1.msra.mxu0 0.0
    %4276 = vmatprep.subr.mxu0 0.0
    %4277 = vmatpush1.msra.mxu0 0.0
    %4278 = vmatprep.subr.mxu0 0.0
    %4279 = vmatpush1.msra.mxu0 0.0
    %4280 = vmatprep.subr.mxu0 0.0
    %4281 = vmatpush1.msra.mxu0 0.0
    %4282 = vmatprep.subr.mxu0 0.0
    %4283 = vmatpush1.msra.mxu0 0.0
    %4284 = vmatprep.subr.mxu0 0.0
    %4285 = vmatpush1.msra.mxu0 0.0
    %4286 = vmatprep.subr.mxu0 0.0
    %4287 = vmatpush1.msra.mxu0 0.0
    %4288 = vmatprep.subr.mxu0 0.0
    %4289 = vmatpush1.msra.mxu0 0.0
    %4290 = vmatprep.subr.mxu0 0.0
    %4291 = vmatpush1.msra.mxu0 0.0
    %4292 = vmatprep.subr.mxu0 0.0
    %4293 = vmatpush1.msra.mxu0 0.0
    %4294 = vmatprep.subr.mxu0 0.0
    %4295 = vmatpush1.msra.mxu0 0.0
    %4296 = vmatprep.subr.mxu0 0.0
    %4297 = vmatpush1.msra.mxu0 0.0
    %4298 = vmatprep.subr.mxu0 0.0
    %4299 = vmatpush1.msra.mxu0 0.0
    %4300 = vmatprep.subr.mxu0 0.0
    %4301 = vmatpush1.msra.mxu0 0.0
    %4302 = vmatprep.subr.mxu0 0.0
    %4303 = vmatpush1.msra.mxu0 0.0
    %4304 = vmatprep.subr.mxu0 0.0
    %4305 = vmatpush1.msra.mxu0 0.0
    %4306 = vmatprep.mubr.f32.mxu0 0.0
    %4307 = vmatmul.mubr.f32.gmra.mrb[0].mxu0 %v4240
    %v4308 = vpop.f32.mrb[0].mxu0
    %v4309 = vadd.f32 %v517, %v4308
    %v4310 = vpop.f32.mrb[0].mxu0
    %4311 = vdwg.mxu0
    %v4313 = vsel %vm250, %v4234, 0
    %4315 = vmatprep.subr.mxu0 0.0
    %4316 = vmatpush1.msra.mxu0 %v230
    %4317 = vmatprep.subr.mxu0 0.0
    %4318 = vmatpush1.msra.mxu0 %v231
    %4319 = vmatprep.subr.mxu0 0.0
    %4320 = vmatpush1.msra.mxu0 %v232
    %4321 = vmatprep.subr.mxu0 0.0
    %4322 = vmatpush1.msra.mxu0 %v233
    %4323 = vmatprep.subr.mxu0 0.0
    %4324 = vmatpush1.msra.mxu0 0.0
    %4325 = vmatprep.subr.mxu0 0.0
    %4326 = vmatpush1.msra.mxu0 0.0
    %4327 = vmatprep.subr.mxu0 0.0
    %4328 = vmatpush1.msra.mxu0 0.0
    %4329 = vmatprep.subr.mxu0 0.0
    %4330 = vmatpush1.msra.mxu0 0.0
    %4331 = vmatprep.subr.mxu0 0.0
    %4332 = vmatpush1.msra.mxu0 0.0
    %4333 = vmatprep.subr.mxu0 0.0
    %4334 = vmatpush1.msra.mxu0 0.0
    %4335 = vmatprep.subr.mxu0 0.0
    %4336 = vmatpush1.msra.mxu0 0.0
    %4337 = vmatprep.subr.mxu0 0.0
    %4338 = vmatpush1.msra.mxu0 0.0
    %4339 = vmatprep.subr.mxu0 0.0
    %4340 = vmatpush1.msra.mxu0 0.0
    %4341 = vmatprep.subr.mxu0 0.0
    %4342 = vmatpush1.msra.mxu0 0.0
    %4343 = vmatprep.subr.mxu0 0.0
    %4344 = vmatpush1.msra.mxu0 0.0
    %4345 = vmatprep.subr.mxu0 0.0
    %4346 = vmatpush1.msra.mxu0 0.0
    %4347 = vmatprep.subr.mxu0 0.0
    %4348 = vmatpush1.msra.mxu0 0.0
    %4349 = vmatprep.subr.mxu0 0.0
    %4350 = vmatpush1.msra.mxu0 0.0
    %4351 = vmatprep.subr.mxu0 0.0
    %4352 = vmatpush1.msra.mxu0 0.0
    %4353 = vmatprep.subr.mxu0 0.0
    %4354 = vmatpush1.msra.mxu0 0.0
    %4355 = vmatprep.subr.mxu0 0.0
    %4356 = vmatpush1.msra.mxu0 0.0
    %4357 = vmatprep.subr.mxu0 0.0
    %4358 = vmatpush1.msra.mxu0 0.0
    %4359 = vmatprep.subr.mxu0 0.0
    %4360 = vmatpush1.msra.mxu0 0.0
    %4361 = vmatprep.subr.mxu0 0.0
    %4362 = vmatpush1.msra.mxu0 0.0
    %4363 = vmatprep.subr.mxu0 0.0
    %4364 = vmatpush1.msra.mxu0 0.0
    %4365 = vmatprep.subr.mxu0 0.0
    %4366 = vmatpush1.msra.mxu0 0.0
    %4367 = vmatprep.subr.mxu0 0.0
    %4368 = vmatpush1.msra.mxu0 0.0
    %4369 = vmatprep.subr.mxu0 0.0
    %4370 = vmatpush1.msra.mxu0 0.0
    %4371 = vmatprep.subr.mxu0 0.0
    %4372 = vmatpush1.msra.mxu0 0.0
    %4373 = vmatprep.subr.mxu0 0.0
    %4374 = vmatpush1.msra.mxu0 0.0
    %4375 = vmatprep.subr.mxu0 0.0
    %4376 = vmatpush1.msra.mxu0 0.0
    %4377 = vmatprep.subr.mxu0 0.0
    %4378 = vmatpush1.msra.mxu0 0.0
    %4379 = vmatprep.mubr.f32.mxu0 0.0
    %4380 = vmatmul.mubr.f32.gmra.mrb[0].mxu0 %v4313
    %v4381 = vpop.f32.mrb[0].mxu0
    %v4382 = vadd.f32 %v597, %v4381
    %v4383 = vpop.f32.mrb[0].mxu0
    %4384 = vdwg.mxu0
    %v4385 = vxor.u32 %v4309, 2147483648
    %v4386 = vmul.f32 %v4385, 1.442695
    %v4387 = vpow.pop %v4386
    %v4388 = vadd.f32 %v4387, 1.0
    %v4389 = vrcp.pop %v4388
    %v4390 = vmul.f32 1.0, %v4389
    %v4391 = vmul.f32 %v4390, %v4203
    %v4392 = vadd.f32 %v4382, %v4391
    %v4393 = vtanh.pop %v4392
    %v4394 = vsub.f32 %v3992, %v4393
    %4396 = vrot.lane.b32.xlu0 %v4394, 32
    %v4397 = vpop.permute.xlu0 %4396
    %v4399 = vmul.f32 %v4390, %v4397
    %4401 = vrot.lane.b32.xlu0 %v4399, 96
    %v4402 = vpop.permute.xlu0 %4401
    %v4404 = vadd.f32 %v4393, %v4402
    %4405 = vmatprep.subr.mxu0 0.0
    %4406 = vmatpush1.msra.mxu0 %v213
    %4407 = vmatprep.subr.mxu0 0.0
    %4408 = vmatpush1.msra.mxu0 %v214
    %4409 = vmatprep.subr.mxu0 0.0
    %4410 = vmatpush1.msra.mxu0 %v215
    %4411 = vmatprep.subr.mxu0 0.0
    %4412 = vmatpush1.msra.mxu0 %v216
    %4413 = vmatprep.subr.mxu0 0.0
    %4414 = vmatpush1.msra.mxu0 0.0
    %4415 = vmatprep.subr.mxu0 0.0
    %4416 = vmatpush1.msra.mxu0 0.0
    %4417 = vmatprep.subr.mxu0 0.0
    %4418 = vmatpush1.msra.mxu0 0.0
    %4419 = vmatprep.subr.mxu0 0.0
    %4420 = vmatpush1.msra.mxu0 0.0
    %4421 = vmatprep.subr.mxu0 0.0
    %4422 = vmatpush1.msra.mxu0 0.0
    %4423 = vmatprep.subr.mxu0 0.0
    %4424 = vmatpush1.msra.mxu0 0.0
    %4425 = vmatprep.subr.mxu0 0.0
    %4426 = vmatpush1.msra.mxu0 0.0
    %4427 = vmatprep.subr.mxu0 0.0
    %4428 = vmatpush1.msra.mxu0 0.0
    %4429 = vmatprep.subr.mxu0 0.0
    %4430 = vmatpush1.msra.mxu0 0.0
    %4431 = vmatprep.subr.mxu0 0.0
    %4432 = vmatpush1.msra.mxu0 0.0
    %4433 = vmatprep.subr.mxu0 0.0
    %4434 = vmatpush1.msra.mxu0 0.0
    %4435 = vmatprep.subr.mxu0 0.0
    %4436 = vmatpush1.msra.mxu0 0.0
    %4437 = vmatprep.subr.mxu0 0.0
    %4438 = vmatpush1.msra.mxu0 0.0
    %4439 = vmatprep.subr.mxu0 0.0
    %4440 = vmatpush1.msra.mxu0 0.0
    %4441 = vmatprep.subr.mxu0 0.0
    %4442 = vmatpush1.msra.mxu0 0.0
    %4443 = vmatprep.subr.mxu0 0.0
    %4444 = vmatpush1.msra.mxu0 0.0
    %4445 = vmatprep.subr.mxu0 0.0
    %4446 = vmatpush1.msra.mxu0 0.0
    %4447 = vmatprep.subr.mxu0 0.0
    %4448 = vmatpush1.msra.mxu0 0.0
    %4449 = vmatprep.subr.mxu0 0.0
    %4450 = vmatpush1.msra.mxu0 0.0
    %4451 = vmatprep.subr.mxu0 0.0
    %4452 = vmatpush1.msra.mxu0 0.0
    %4453 = vmatprep.subr.mxu0 0.0
    %4454 = vmatpush1.msra.mxu0 0.0
    %4455 = vmatprep.subr.mxu0 0.0
    %4456 = vmatpush1.msra.mxu0 0.0
    %4457 = vmatprep.subr.mxu0 0.0
    %4458 = vmatpush1.msra.mxu0 0.0
    %4459 = vmatprep.subr.mxu0 0.0
    %4460 = vmatpush1.msra.mxu0 0.0
    %4461 = vmatprep.subr.mxu0 0.0
    %4462 = vmatpush1.msra.mxu0 0.0
    %4463 = vmatprep.subr.mxu0 0.0
    %4464 = vmatpush1.msra.mxu0 0.0
    %4465 = vmatprep.subr.mxu0 0.0
    %4466 = vmatpush1.msra.mxu0 0.0
    %4467 = vmatprep.subr.mxu0 0.0
    %4468 = vmatpush1.msra.mxu0 0.0
    %4469 = vmatprep.mubr.f32.mxu0 0.0
    %4470 = vmatmul.mubr.f32.gmra.mrb[0].mxu0 %v4313
    %v4471 = vpop.f32.mrb[0].mxu0
    %v4472 = vadd.f32 0.0, %v4471
    %v4473 = vpop.f32.mrb[0].mxu0
    %4474 = vdwg.mxu0
    %4475 = vmatprep.subr.mxu0 0.0
    %4476 = vmatpush1.msra.mxu0 %v217
    %4477 = vmatprep.subr.mxu0 0.0
    %4478 = vmatpush1.msra.mxu0 %v218
    %4479 = vmatprep.subr.mxu0 0.0
    %4480 = vmatpush1.msra.mxu0 %v219
    %4481 = vmatprep.subr.mxu0 0.0
    %4482 = vmatpush1.msra.mxu0 %v220
    %4483 = vmatprep.subr.mxu0 0.0
    %4484 = vmatpush1.msra.mxu0 0.0
    %4485 = vmatprep.subr.mxu0 0.0
    %4486 = vmatpush1.msra.mxu0 0.0
    %4487 = vmatprep.subr.mxu0 0.0
    %4488 = vmatpush1.msra.mxu0 0.0
    %4489 = vmatprep.subr.mxu0 0.0
    %4490 = vmatpush1.msra.mxu0 0.0
    %4491 = vmatprep.subr.mxu0 0.0
    %4492 = vmatpush1.msra.mxu0 0.0
    %4493 = vmatprep.subr.mxu0 0.0
    %4494 = vmatpush1.msra.mxu0 0.0
    %4495 = vmatprep.subr.mxu0 0.0
    %4496 = vmatpush1.msra.mxu0 0.0
    %4497 = vmatprep.subr.mxu0 0.0
    %4498 = vmatpush1.msra.mxu0 0.0
    %4499 = vmatprep.subr.mxu0 0.0
    %4500 = vmatpush1.msra.mxu0 0.0
    %4501 = vmatprep.subr.mxu0 0.0
    %4502 = vmatpush1.msra.mxu0 0.0
    %4503 = vmatprep.subr.mxu0 0.0
    %4504 = vmatpush1.msra.mxu0 0.0
    %4505 = vmatprep.subr.mxu0 0.0
    %4506 = vmatpush1.msra.mxu0 0.0
    %4507 = vmatprep.subr.mxu0 0.0
    %4508 = vmatpush1.msra.mxu0 0.0
    %4509 = vmatprep.subr.mxu0 0.0
    %4510 = vmatpush1.msra.mxu0 0.0
    %4511 = vmatprep.subr.mxu0 0.0
    %4512 = vmatpush1.msra.mxu0 0.0
    %4513 = vmatprep.subr.mxu0 0.0
    %4514 = vmatpush1.msra.mxu0 0.0
    %4515 = vmatprep.subr.mxu0 0.0
    %4516 = vmatpush1.msra.mxu0 0.0
    %4517 = vmatprep.subr.mxu0 0.0
    %4518 = vmatpush1.msra.mxu0 0.0
    %4519 = vmatprep.subr.mxu0 0.0
    %4520 = vmatpush1.msra.mxu0 0.0
    %4521 = vmatprep.subr.mxu0 0.0
    %4522 = vmatpush1.msra.mxu0 0.0
    %4523 = vmatprep.subr.mxu0 0.0
    %4524 = vmatpush1.msra.mxu0 0.0
    %4525 = vmatprep.subr.mxu0 0.0
    %4526 = vmatpush1.msra.mxu0 0.0
    %4527 = vmatprep.subr.mxu0 0.0
    %4528 = vmatpush1.msra.mxu0 0.0
    %4529 = vmatprep.subr.mxu0 0.0
    %4530 = vmatpush1.msra.mxu0 0.0
    %4531 = vmatprep.subr.mxu0 0.0
    %4532 = vmatpush1.msra.mxu0 0.0
    %4533 = vmatprep.subr.mxu0 0.0
    %4534 = vmatpush1.msra.mxu0 0.0
    %4535 = vmatprep.subr.mxu0 0.0
    %4536 = vmatpush1.msra.mxu0 0.0
    %4537 = vmatprep.subr.mxu0 0.0
    %4538 = vmatpush1.msra.mxu0 0.0
    %4539 = vmatprep.mubr.f32.mxu0 0.0
    %4540 = vmatmul.mubr.f32.gmra.mrb[0].mxu0 %v4313
    %v4541 = vpop.f32.mrb[0].mxu0
    %v4542 = vadd.f32 %v328, %v4541
    %v4543 = vpop.f32.mrb[0].mxu0
    %4544 = vdwg.mxu0
    %v4546 = vsel %vm250, %v4404, 0
    %4548 = vmatprep.subr.mxu0 0.0
    %4549 = vmatpush1.msra.mxu0 %v234
    %4550 = vmatprep.subr.mxu0 0.0
    %4551 = vmatpush1.msra.mxu0 %v235
    %4552 = vmatprep.subr.mxu0 0.0
    %4553 = vmatpush1.msra.mxu0 %v236
    %4554 = vmatprep.subr.mxu0 0.0
    %4555 = vmatpush1.msra.mxu0 %v237
    %4556 = vmatprep.subr.mxu0 0.0
    %4557 = vmatpush1.msra.mxu0 0.0
    %4558 = vmatprep.subr.mxu0 0.0
    %4559 = vmatpush1.msra.mxu0 0.0
    %4560 = vmatprep.subr.mxu0 0.0
    %4561 = vmatpush1.msra.mxu0 0.0
    %4562 = vmatprep.subr.mxu0 0.0
    %4563 = vmatpush1.msra.mxu0 0.0
    %4564 = vmatprep.subr.mxu0 0.0
    %4565 = vmatpush1.msra.mxu0 0.0
    %4566 = vmatprep.subr.mxu0 0.0
    %4567 = vmatpush1.msra.mxu0 0.0
    %4568 = vmatprep.subr.mxu0 0.0
    %4569 = vmatpush1.msra.mxu0 0.0
    %4570 = vmatprep.subr.mxu0 0.0
    %4571 = vmatpush1.msra.mxu0 0.0
    %4572 = vmatprep.subr.mxu0 0.0
    %4573 = vmatpush1.msra.mxu0 0.0
    %4574 = vmatprep.subr.mxu0 0.0
    %4575 = vmatpush1.msra.mxu0 0.0
    %4576 = vmatprep.subr.mxu0 0.0
    %4577 = vmatpush1.msra.mxu0 0.0
    %4578 = vmatprep.subr.mxu0 0.0
    %4579 = vmatpush1.msra.mxu0 0.0
    %4580 = vmatprep.subr.mxu0 0.0
    %4581 = vmatpush1.msra.mxu0 0.0
    %4582 = vmatprep.subr.mxu0 0.0
    %4583 = vmatpush1.msra.mxu0 0.0
    %4584 = vmatprep.subr.mxu0 0.0
    %4585 = vmatpush1.msra.mxu0 0.0
    %4586 = vmatprep.subr.mxu0 0.0
    %4587 = vmatpush1.msra.mxu0 0.0
    %4588 = vmatprep.subr.mxu0 0.0
    %4589 = vmatpush1.msra.mxu0 0.0
    %4590 = vmatprep.subr.mxu0 0.0
    %4591 = vmatpush1.msra.mxu0 0.0
    %4592 = vmatprep.subr.mxu0 0.0
    %4593 = vmatpush1.msra.mxu0 0.0
    %4594 = vmatprep.subr.mxu0 0.0
    %4595 = vmatpush1.msra.mxu0 0.0
    %4596 = vmatprep.subr.mxu0 0.0
    %4597 = vmatpush1.msra.mxu0 0.0
    %4598 = vmatprep.subr.mxu0 0.0
    %4599 = vmatpush1.msra.mxu0 0.0
    %4600 = vmatprep.subr.mxu0 0.0
    %4601 = vmatpush1.msra.mxu0 0.0
    %4602 = vmatprep.subr.mxu0 0.0
    %4603 = vmatpush1.msra.mxu0 0.0
    %4604 = vmatprep.subr.mxu0 0.0
    %4605 = vmatpush1.msra.mxu0 0.0
    %4606 = vmatprep.subr.mxu0 0.0
    %4607 = vmatpush1.msra.mxu0 0.0
    %4608 = vmatprep.subr.mxu0 0.0
    %4609 = vmatpush1.msra.mxu0 0.0
    %4610 = vmatprep.subr.mxu0 0.0
    %4611 = vmatpush1.msra.mxu0 0.0
    %4612 = vmatprep.mubr.f32.mxu0 0.0
    %4613 = vmatmul.mubr.f32.gmra.mrb[0].mxu0 %v4546
    %v4614 = vpop.f32.mrb[0].mxu0
    %v4615 = vadd.f32 %v404, %v4614
    %v4616 = vpop.f32.mrb[0].mxu0
    %4617 = vdwg.mxu0
    %4618 = vset.pattern.permute.xlu0 2
    %4619 = vperm.xlu0 %4618, %v3579
    %v4620 = vpop.permute.xlu0 %4619
    %v4622 = vmul.f32 %v4620, %v190
    %v4623 = vadd.f32 %v4622, %v204
    %v4624 = vadd.f32 %v4623, %v4472
    %v4625 = vmul.f32 %v4620, %v197
    %v4626 = vadd.f32 %v4625, %v211
    %v4627 = vxor.u32 %v4624, 2147483648
    %v4628 = vmul.f32 %v4627, 1.442695
    %v4629 = vpow.pop %v4628
    %v4630 = vadd.f32 %v4629, 1.0
    %v4631 = vrcp.pop %v4630
    %v4632 = vmul.f32 1.0, %v4631
    %v4633 = vmul.f32 %v4632, %v4542
    %v4634 = vadd.f32 %v4626, %v4633
    %v4635 = vtanh.pop %v4634
    %v4636 = vsub.f32 %v4234, %v4635
    %4638 = vrot.lane.b32.xlu0 %v4636, 32
    %v4639 = vpop.permute.xlu0 %4638
    %v4641 = vmul.f32 %v4632, %v4639
    %4643 = vrot.lane.b32.xlu0 %v4641, 96
    %v4644 = vpop.permute.xlu0 %4643
    %v4646 = vadd.f32 %v4635, %v4644
    %4647 = vrot.lane.b32.xlu0 %v4404, 32
    %v4648 = vpop.permute.xlu0 %4647
    %v4650 = vsel %vm250, %v4646, %v4648
    %v4652 = vsel %vm519, %v4650, 0
    %4654 = vmatprep.subr.mxu0 0.0
    %4655 = vmatpush1.msra.mxu0 %v222
    %4656 = vmatprep.subr.mxu0 0.0
    %4657 = vmatpush1.msra.mxu0 %v223
    %4658 = vmatprep.subr.mxu0 0.0
    %4659 = vmatpush1.msra.mxu0 %v224
    %4660 = vmatprep.subr.mxu0 0.0
    %4661 = vmatpush1.msra.mxu0 %v225
    %4662 = vmatprep.subr.mxu0 0.0
    %4663 = vmatpush1.msra.mxu0 %v226
    %4664 = vmatprep.subr.mxu0 0.0
    %4665 = vmatpush1.msra.mxu0 %v227
    %4666 = vmatprep.subr.mxu0 0.0
    %4667 = vmatpush1.msra.mxu0 %v228
    %4668 = vmatprep.subr.mxu0 0.0
    %4669 = vmatpush1.msra.mxu0 %v229
    %4670 = vmatprep.subr.mxu0 0.0
    %4671 = vmatpush1.msra.mxu0 0.0
    %4672 = vmatprep.subr.mxu0 0.0
    %4673 = vmatpush1.msra.mxu0 0.0
    %4674 = vmatprep.subr.mxu0 0.0
    %4675 = vmatpush1.msra.mxu0 0.0
    %4676 = vmatprep.subr.mxu0 0.0
    %4677 = vmatpush1.msra.mxu0 0.0
    %4678 = vmatprep.subr.mxu0 0.0
    %4679 = vmatpush1.msra.mxu0 0.0
    %4680 = vmatprep.subr.mxu0 0.0
    %4681 = vmatpush1.msra.mxu0 0.0
    %4682 = vmatprep.subr.mxu0 0.0
    %4683 = vmatpush1.msra.mxu0 0.0
    %4684 = vmatprep.subr.mxu0 0.0
    %4685 = vmatpush1.msra.mxu0 0.0
    %4686 = vmatprep.subr.mxu0 0.0
    %4687 = vmatpush1.msra.mxu0 0.0
    %4688 = vmatprep.subr.mxu0 0.0
    %4689 = vmatpush1.msra.mxu0 0.0
    %4690 = vmatprep.subr.mxu0 0.0
    %4691 = vmatpush1.msra.mxu0 0.0
    %4692 = vmatprep.subr.mxu0 0.0
    %4693 = vmatpush1.msra.mxu0 0.0
    %4694 = vmatprep.subr.mxu0 0.0
    %4695 = vmatpush1.msra.mxu0 0.0
    %4696 = vmatprep.subr.mxu0 0.0
    %4697 = vmatpush1.msra.mxu0 0.0
    %4698 = vmatprep.subr.mxu0 0.0
    %4699 = vmatpush1.msra.mxu0 0.0
    %4700 = vmatprep.subr.mxu0 0.0
    %4701 = vmatpush1.msra.mxu0 0.0
    %4702 = vmatprep.subr.mxu0 0.0
    %4703 = vmatpush1.msra.mxu0 0.0
    %4704 = vmatprep.subr.mxu0 0.0
    %4705 = vmatpush1.msra.mxu0 0.0
    %4706 = vmatprep.subr.mxu0 0.0
    %4707 = vmatpush1.msra.mxu0 0.0
    %4708 = vmatprep.subr.mxu0 0.0
    %4709 = vmatpush1.msra.mxu0 0.0
    %4710 = vmatprep.subr.mxu0 0.0
    %4711 = vmatpush1.msra.mxu0 0.0
    %4712 = vmatprep.subr.mxu0 0.0
    %4713 = vmatpush1.msra.mxu0 0.0
    %4714 = vmatprep.subr.mxu0 0.0
    %4715 = vmatpush1.msra.mxu0 0.0
    %4716 = vmatprep.subr.mxu0 0.0
    %4717 = vmatpush1.msra.mxu0 0.0
    %4718 = vmatprep.mubr.f32.mxu0 0.0
    %4719 = vmatmul.mubr.f32.gmra.mrb[0].mxu0 %v4652
    %v4720 = vpop.f32.mrb[0].mxu0
    %v4721 = vadd.f32 %v517, %v4720
    %v4722 = vpop.f32.mrb[0].mxu0
    %4723 = vdwg.mxu0
    %v4725 = vsel %vm250, %v4646, 0
    %4727 = vmatprep.subr.mxu0 0.0
    %4728 = vmatpush1.msra.mxu0 %v230
    %4729 = vmatprep.subr.mxu0 0.0
    %4730 = vmatpush1.msra.mxu0 %v231
    %4731 = vmatprep.subr.mxu0 0.0
    %4732 = vmatpush1.msra.mxu0 %v232
    %4733 = vmatprep.subr.mxu0 0.0
    %4734 = vmatpush1.msra.mxu0 %v233
    %4735 = vmatprep.subr.mxu0 0.0
    %4736 = vmatpush1.msra.mxu0 0.0
    %4737 = vmatprep.subr.mxu0 0.0
    %4738 = vmatpush1.msra.mxu0 0.0
    %4739 = vmatprep.subr.mxu0 0.0
    %4740 = vmatpush1.msra.mxu0 0.0
    %4741 = vmatprep.subr.mxu0 0.0
    %4742 = vmatpush1.msra.mxu0 0.0
    %4743 = vmatprep.subr.mxu0 0.0
    %4744 = vmatpush1.msra.mxu0 0.0
    %4745 = vmatprep.subr.mxu0 0.0
    %4746 = vmatpush1.msra.mxu0 0.0
    %4747 = vmatprep.subr.mxu0 0.0
    %4748 = vmatpush1.msra.mxu0 0.0
    %4749 = vmatprep.subr.mxu0 0.0
    %4750 = vmatpush1.msra.mxu0 0.0
    %4751 = vmatprep.subr.mxu0 0.0
    %4752 = vmatpush1.msra.mxu0 0.0
    %4753 = vmatprep.subr.mxu0 0.0
    %4754 = vmatpush1.msra.mxu0 0.0
    %4755 = vmatprep.subr.mxu0 0.0
    %4756 = vmatpush1.msra.mxu0 0.0
    %4757 = vmatprep.subr.mxu0 0.0
    %4758 = vmatpush1.msra.mxu0 0.0
    %4759 = vmatprep.subr.mxu0 0.0
    %4760 = vmatpush1.msra.mxu0 0.0
    %4761 = vmatprep.subr.mxu0 0.0
    %4762 = vmatpush1.msra.mxu0 0.0
    %4763 = vmatprep.subr.mxu0 0.0
    %4764 = vmatpush1.msra.mxu0 0.0
    %4765 = vmatprep.subr.mxu0 0.0
    %4766 = vmatpush1.msra.mxu0 0.0
    %4767 = vmatprep.subr.mxu0 0.0
    %4768 = vmatpush1.msra.mxu0 0.0
    %4769 = vmatprep.subr.mxu0 0.0
    %4770 = vmatpush1.msra.mxu0 0.0
    %4771 = vmatprep.subr.mxu0 0.0
    %4772 = vmatpush1.msra.mxu0 0.0
    %4773 = vmatprep.subr.mxu0 0.0
    %4774 = vmatpush1.msra.mxu0 0.0
    %4775 = vmatprep.subr.mxu0 0.0
    %4776 = vmatpush1.msra.mxu0 0.0
    %4777 = vmatprep.subr.mxu0 0.0
    %4778 = vmatpush1.msra.mxu0 0.0
    %4779 = vmatprep.subr.mxu0 0.0
    %4780 = vmatpush1.msra.mxu0 0.0
    %4781 = vmatprep.subr.mxu0 0.0
    %4782 = vmatpush1.msra.mxu0 0.0
    %4783 = vmatprep.subr.mxu0 0.0
    %4784 = vmatpush1.msra.mxu0 0.0
    %4785 = vmatprep.subr.mxu0 0.0
    %4786 = vmatpush1.msra.mxu0 0.0
    %4787 = vmatprep.subr.mxu0 0.0
    %4788 = vmatpush1.msra.mxu0 0.0
    %4789 = vmatprep.subr.mxu0 0.0
    %4790 = vmatpush1.msra.mxu0 0.0
    %4791 = vmatprep.mubr.f32.mxu0 0.0
    %4792 = vmatmul.mubr.f32.gmra.mrb[0].mxu0 %v4725
    %v4793 = vpop.f32.mrb[0].mxu0
    %v4794 = vadd.f32 %v597, %v4793
    %v4795 = vpop.f32.mrb[0].mxu0
    %4796 = vdwg.mxu0
    %v4797 = vxor.u32 %v4721, 2147483648
    %v4798 = vmul.f32 %v4797, 1.442695
    %v4799 = vpow.pop %v4798
    %v4800 = vadd.f32 %v4799, 1.0
    %v4801 = vrcp.pop %v4800
    %v4802 = vmul.f32 1.0, %v4801
    %v4803 = vmul.f32 %v4802, %v4615
    %v4804 = vadd.f32 %v4794, %v4803
    %v4805 = vtanh.pop %v4804
    %v4806 = vsub.f32 %v4404, %v4805
    %4808 = vrot.lane.b32.xlu0 %v4806, 32
    %v4809 = vpop.permute.xlu0 %4808
    %v4811 = vmul.f32 %v4802, %v4809
    %4813 = vrot.lane.b32.xlu0 %v4811, 96
    %v4814 = vpop.permute.xlu0 %4813
    %v4816 = vadd.f32 %v4805, %v4814
    %4817 = vmatprep.subr.mxu0 0.0
    %4818 = vmatpush1.msra.mxu0 %v213
    %4819 = vmatprep.subr.mxu0 0.0
    %4820 = vmatpush1.msra.mxu0 %v214
    %4821 = vmatprep.subr.mxu0 0.0
    %4822 = vmatpush1.msra.mxu0 %v215
    %4823 = vmatprep.subr.mxu0 0.0
    %4824 = vmatpush1.msra.mxu0 %v216
    %4825 = vmatprep.subr.mxu0 0.0
    %4826 = vmatpush1.msra.mxu0 0.0
    %4827 = vmatprep.subr.mxu0 0.0
    %4828 = vmatpush1.msra.mxu0 0.0
    %4829 = vmatprep.subr.mxu0 0.0
    %4830 = vmatpush1.msra.mxu0 0.0
    %4831 = vmatprep.subr.mxu0 0.0
    %4832 = vmatpush1.msra.mxu0 0.0
    %4833 = vmatprep.subr.mxu0 0.0
    %4834 = vmatpush1.msra.mxu0 0.0
    %4835 = vmatprep.subr.mxu0 0.0
    %4836 = vmatpush1.msra.mxu0 0.0
    %4837 = vmatprep.subr.mxu0 0.0
    %4838 = vmatpush1.msra.mxu0 0.0
    %4839 = vmatprep.subr.mxu0 0.0
    %4840 = vmatpush1.msra.mxu0 0.0
    %4841 = vmatprep.subr.mxu0 0.0
    %4842 = vmatpush1.msra.mxu0 0.0
    %4843 = vmatprep.subr.mxu0 0.0
    %4844 = vmatpush1.msra.mxu0 0.0
    %4845 = vmatprep.subr.mxu0 0.0
    %4846 = vmatpush1.msra.mxu0 0.0
    %4847 = vmatprep.subr.mxu0 0.0
    %4848 = vmatpush1.msra.mxu0 0.0
    %4849 = vmatprep.subr.mxu0 0.0
    %4850 = vmatpush1.msra.mxu0 0.0
    %4851 = vmatprep.subr.mxu0 0.0
    %4852 = vmatpush1.msra.mxu0 0.0
    %4853 = vmatprep.subr.mxu0 0.0
    %4854 = vmatpush1.msra.mxu0 0.0
    %4855 = vmatprep.subr.mxu0 0.0
    %4856 = vmatpush1.msra.mxu0 0.0
    %4857 = vmatprep.subr.mxu0 0.0
    %4858 = vmatpush1.msra.mxu0 0.0
    %4859 = vmatprep.subr.mxu0 0.0
    %4860 = vmatpush1.msra.mxu0 0.0
    %4861 = vmatprep.subr.mxu0 0.0
    %4862 = vmatpush1.msra.mxu0 0.0
    %4863 = vmatprep.subr.mxu0 0.0
    %4864 = vmatpush1.msra.mxu0 0.0
    %4865 = vmatprep.subr.mxu0 0.0
    %4866 = vmatpush1.msra.mxu0 0.0
    %4867 = vmatprep.subr.mxu0 0.0
    %4868 = vmatpush1.msra.mxu0 0.0
    %4869 = vmatprep.subr.mxu0 0.0
    %4870 = vmatpush1.msra.mxu0 0.0
    %4871 = vmatprep.subr.mxu0 0.0
    %4872 = vmatpush1.msra.mxu0 0.0
    %4873 = vmatprep.subr.mxu0 0.0
    %4874 = vmatpush1.msra.mxu0 0.0
    %4875 = vmatprep.subr.mxu0 0.0
    %4876 = vmatpush1.msra.mxu0 0.0
    %4877 = vmatprep.subr.mxu0 0.0
    %4878 = vmatpush1.msra.mxu0 0.0
    %4879 = vmatprep.subr.mxu0 0.0
    %4880 = vmatpush1.msra.mxu0 0.0
    %4881 = vmatprep.mubr.f32.mxu0 0.0
    %4882 = vmatmul.mubr.f32.gmra.mrb[0].mxu0 %v4725
    %v4883 = vpop.f32.mrb[0].mxu0
    %v4884 = vadd.f32 0.0, %v4883
    %v4885 = vpop.f32.mrb[0].mxu0
    %4886 = vdwg.mxu0
    %4887 = vmatprep.subr.mxu0 0.0
    %4888 = vmatpush1.msra.mxu0 %v217
    %4889 = vmatprep.subr.mxu0 0.0
    %4890 = vmatpush1.msra.mxu0 %v218
    %4891 = vmatprep.subr.mxu0 0.0
    %4892 = vmatpush1.msra.mxu0 %v219
    %4893 = vmatprep.subr.mxu0 0.0
    %4894 = vmatpush1.msra.mxu0 %v220
    %4895 = vmatprep.subr.mxu0 0.0
    %4896 = vmatpush1.msra.mxu0 0.0
    %4897 = vmatprep.subr.mxu0 0.0
    %4898 = vmatpush1.msra.mxu0 0.0
    %4899 = vmatprep.subr.mxu0 0.0
    %4900 = vmatpush1.msra.mxu0 0.0
    %4901 = vmatprep.subr.mxu0 0.0
    %4902 = vmatpush1.msra.mxu0 0.0
    %4903 = vmatprep.subr.mxu0 0.0
    %4904 = vmatpush1.msra.mxu0 0.0
    %4905 = vmatprep.subr.mxu0 0.0
    %4906 = vmatpush1.msra.mxu0 0.0
    %4907 = vmatprep.subr.mxu0 0.0
    %4908 = vmatpush1.msra.mxu0 0.0
    %4909 = vmatprep.subr.mxu0 0.0
    %4910 = vmatpush1.msra.mxu0 0.0
    %4911 = vmatprep.subr.mxu0 0.0
    %4912 = vmatpush1.msra.mxu0 0.0
    %4913 = vmatprep.subr.mxu0 0.0
    %4914 = vmatpush1.msra.mxu0 0.0
    %4915 = vmatprep.subr.mxu0 0.0
    %4916 = vmatpush1.msra.mxu0 0.0
    %4917 = vmatprep.subr.mxu0 0.0
    %4918 = vmatpush1.msra.mxu0 0.0
    %4919 = vmatprep.subr.mxu0 0.0
    %4920 = vmatpush1.msra.mxu0 0.0
    %4921 = vmatprep.subr.mxu0 0.0
    %4922 = vmatpush1.msra.mxu0 0.0
    %4923 = vmatprep.subr.mxu0 0.0
    %4924 = vmatpush1.msra.mxu0 0.0
    %4925 = vmatprep.subr.mxu0 0.0
    %4926 = vmatpush1.msra.mxu0 0.0
    %4927 = vmatprep.subr.mxu0 0.0
    %4928 = vmatpush1.msra.mxu0 0.0
    %4929 = vmatprep.subr.mxu0 0.0
    %4930 = vmatpush1.msra.mxu0 0.0
    %4931 = vmatprep.subr.mxu0 0.0
    %4932 = vmatpush1.msra.mxu0 0.0
    %4933 = vmatprep.subr.mxu0 0.0
    %4934 = vmatpush1.msra.mxu0 0.0
    %4935 = vmatprep.subr.mxu0 0.0
    %4936 = vmatpush1.msra.mxu0 0.0
    %4937 = vmatprep.subr.mxu0 0.0
    %4938 = vmatpush1.msra.mxu0 0.0
    %4939 = vmatprep.subr.mxu0 0.0
    %4940 = vmatpush1.msra.mxu0 0.0
    %4941 = vmatprep.subr.mxu0 0.0
    %4942 = vmatpush1.msra.mxu0 0.0
    %4943 = vmatprep.subr.mxu0 0.0
    %4944 = vmatpush1.msra.mxu0 0.0
    %4945 = vmatprep.subr.mxu0 0.0
    %4946 = vmatpush1.msra.mxu0 0.0
    %4947 = vmatprep.subr.mxu0 0.0
    %4948 = vmatpush1.msra.mxu0 0.0
    %4949 = vmatprep.subr.mxu0 0.0
    %4950 = vmatpush1.msra.mxu0 0.0
    %4951 = vmatprep.mubr.f32.mxu0 0.0
    %4952 = vmatmul.mubr.f32.gmra.mrb[0].mxu0 %v4725
    %v4953 = vpop.f32.mrb[0].mxu0
    %v4954 = vadd.f32 %v328, %v4953
    %v4955 = vpop.f32.mrb[0].mxu0
    %4956 = vdwg.mxu0
    %v4958 = vsel %vm250, %v4816, 0
    %4960 = vmatprep.subr.mxu0 0.0
    %4961 = vmatpush1.msra.mxu0 %v234
    %4962 = vmatprep.subr.mxu0 0.0
    %4963 = vmatpush1.msra.mxu0 %v235
    %4964 = vmatprep.subr.mxu0 0.0
    %4965 = vmatpush1.msra.mxu0 %v236
    %4966 = vmatprep.subr.mxu0 0.0
    %4967 = vmatpush1.msra.mxu0 %v237
    %4968 = vmatprep.subr.mxu0 0.0
    %4969 = vmatpush1.msra.mxu0 0.0
    %4970 = vmatprep.subr.mxu0 0.0
    %4971 = vmatpush1.msra.mxu0 0.0
    %4972 = vmatprep.subr.mxu0 0.0
    %4973 = vmatpush1.msra.mxu0 0.0
    %4974 = vmatprep.subr.mxu0 0.0
    %4975 = vmatpush1.msra.mxu0 0.0
    %4976 = vmatprep.subr.mxu0 0.0
    %4977 = vmatpush1.msra.mxu0 0.0
    %4978 = vmatprep.subr.mxu0 0.0
    %4979 = vmatpush1.msra.mxu0 0.0
    %4980 = vmatprep.subr.mxu0 0.0
    %4981 = vmatpush1.msra.mxu0 0.0
    %4982 = vmatprep.subr.mxu0 0.0
    %4983 = vmatpush1.msra.mxu0 0.0
    %4984 = vmatprep.subr.mxu0 0.0
    %4985 = vmatpush1.msra.mxu0 0.0
    %4986 = vmatprep.subr.mxu0 0.0
    %4987 = vmatpush1.msra.mxu0 0.0
    %4988 = vmatprep.subr.mxu0 0.0
    %4989 = vmatpush1.msra.mxu0 0.0
    %4990 = vmatprep.subr.mxu0 0.0
    %4991 = vmatpush1.msra.mxu0 0.0
    %4992 = vmatprep.subr.mxu0 0.0
    %4993 = vmatpush1.msra.mxu0 0.0
    %4994 = vmatprep.subr.mxu0 0.0
    %4995 = vmatpush1.msra.mxu0 0.0
    %4996 = vmatprep.subr.mxu0 0.0
    %4997 = vmatpush1.msra.mxu0 0.0
    %4998 = vmatprep.subr.mxu0 0.0
    %4999 = vmatpush1.msra.mxu0 0.0
    %5000 = vmatprep.subr.mxu0 0.0
    %5001 = vmatpush1.msra.mxu0 0.0
    %5002 = vmatprep.subr.mxu0 0.0
    %5003 = vmatpush1.msra.mxu0 0.0
    %5004 = vmatprep.subr.mxu0 0.0
    %5005 = vmatpush1.msra.mxu0 0.0
    %5006 = vmatprep.subr.mxu0 0.0
    %5007 = vmatpush1.msra.mxu0 0.0
    %5008 = vmatprep.subr.mxu0 0.0
    %5009 = vmatpush1.msra.mxu0 0.0
    %5010 = vmatprep.subr.mxu0 0.0
    %5011 = vmatpush1.msra.mxu0 0.0
    %5012 = vmatprep.subr.mxu0 0.0
    %5013 = vmatpush1.msra.mxu0 0.0
    %5014 = vmatprep.subr.mxu0 0.0
    %5015 = vmatpush1.msra.mxu0 0.0
    %5016 = vmatprep.subr.mxu0 0.0
    %5017 = vmatpush1.msra.mxu0 0.0
    %5018 = vmatprep.subr.mxu0 0.0
    %5019 = vmatpush1.msra.mxu0 0.0
    %5020 = vmatprep.subr.mxu0 0.0
    %5021 = vmatpush1.msra.mxu0 0.0
    %5022 = vmatprep.subr.mxu0 0.0
    %5023 = vmatpush1.msra.mxu0 0.0
    %5024 = vmatprep.mubr.f32.mxu0 0.0
    %5025 = vmatmul.mubr.f32.gmra.mrb[0].mxu0 %v4958
    %v5026 = vpop.f32.mrb[0].mxu0
    %v5027 = vadd.f32 %v404, %v5026
    %v5028 = vpop.f32.mrb[0].mxu0
    %5029 = vdwg.mxu0
    %5030 = vset.pattern.permute.xlu0 3
    %5031 = vperm.xlu0 %5030, %v3579
    %v5032 = vpop.permute.xlu0 %5031
    %v5034 = vmul.f32 %v5032, %v190
    %v5035 = vadd.f32 %v5034, %v204
    %v5036 = vadd.f32 %v5035, %v4884
    %v5037 = vmul.f32 %v5032, %v197
    %v5038 = vadd.f32 %v5037, %v211
    %v5039 = vxor.u32 %v5036, 2147483648
    %v5040 = vmul.f32 %v5039, 1.442695
    %v5041 = vpow.pop %v5040
    %v5042 = vadd.f32 %v5041, 1.0
    %v5043 = vrcp.pop %v5042
    %v5044 = vmul.f32 1.0, %v5043
    %v5045 = vmul.f32 %v5044, %v4954
    %v5046 = vadd.f32 %v5038, %v5045
    %v5047 = vtanh.pop %v5046
    %v5048 = vsub.f32 %v4646, %v5047
    %5050 = vrot.lane.b32.xlu0 %v5048, 32
    %v5051 = vpop.permute.xlu0 %5050
    %v5053 = vmul.f32 %v5044, %v5051
    %5055 = vrot.lane.b32.xlu0 %v5053, 96
    %v5056 = vpop.permute.xlu0 %5055
    %v5058 = vadd.f32 %v5047, %v5056
    %5059 = vrot.lane.b32.xlu0 %v4816, 32
    %v5060 = vpop.permute.xlu0 %5059
    %v5062 = vsel %vm250, %v5058, %v5060
    %v5064 = vsel %vm519, %v5062, 0
    %5066 = vmatprep.subr.mxu0 0.0
    %5067 = vmatpush1.msra.mxu0 %v222
    %5068 = vmatprep.subr.mxu0 0.0
    %5069 = vmatpush1.msra.mxu0 %v223
    %5070 = vmatprep.subr.mxu0 0.0
    %5071 = vmatpush1.msra.mxu0 %v224
    %5072 = vmatprep.subr.mxu0 0.0
    %5073 = vmatpush1.msra.mxu0 %v225
    %5074 = vmatprep.subr.mxu0 0.0
    %5075 = vmatpush1.msra.mxu0 %v226
    %5076 = vmatprep.subr.mxu0 0.0
    %5077 = vmatpush1.msra.mxu0 %v227
    %5078 = vmatprep.subr.mxu0 0.0
    %5079 = vmatpush1.msra.mxu0 %v228
    %5080 = vmatprep.subr.mxu0 0.0
    %5081 = vmatpush1.msra.mxu0 %v229
    %5082 = vmatprep.subr.mxu0 0.0
    %5083 = vmatpush1.msra.mxu0 0.0
    %5084 = vmatprep.subr.mxu0 0.0
    %5085 = vmatpush1.msra.mxu0 0.0
    %5086 = vmatprep.subr.mxu0 0.0
    %5087 = vmatpush1.msra.mxu0 0.0
    %5088 = vmatprep.subr.mxu0 0.0
    %5089 = vmatpush1.msra.mxu0 0.0
    %5090 = vmatprep.subr.mxu0 0.0
    %5091 = vmatpush1.msra.mxu0 0.0
    %5092 = vmatprep.subr.mxu0 0.0
    %5093 = vmatpush1.msra.mxu0 0.0
    %5094 = vmatprep.subr.mxu0 0.0
    %5095 = vmatpush1.msra.mxu0 0.0
    %5096 = vmatprep.subr.mxu0 0.0
    %5097 = vmatpush1.msra.mxu0 0.0
    %5098 = vmatprep.subr.mxu0 0.0
    %5099 = vmatpush1.msra.mxu0 0.0
    %5100 = vmatprep.subr.mxu0 0.0
    %5101 = vmatpush1.msra.mxu0 0.0
    %5102 = vmatprep.subr.mxu0 0.0
    %5103 = vmatpush1.msra.mxu0 0.0
    %5104 = vmatprep.subr.mxu0 0.0
    %5105 = vmatpush1.msra.mxu0 0.0
    %5106 = vmatprep.subr.mxu0 0.0
    %5107 = vmatpush1.msra.mxu0 0.0
    %5108 = vmatprep.subr.mxu0 0.0
    %5109 = vmatpush1.msra.mxu0 0.0
    %5110 = vmatprep.subr.mxu0 0.0
    %5111 = vmatpush1.msra.mxu0 0.0
    %5112 = vmatprep.subr.mxu0 0.0
    %5113 = vmatpush1.msra.mxu0 0.0
    %5114 = vmatprep.subr.mxu0 0.0
    %5115 = vmatpush1.msra.mxu0 0.0
    %5116 = vmatprep.subr.mxu0 0.0
    %5117 = vmatpush1.msra.mxu0 0.0
    %5118 = vmatprep.subr.mxu0 0.0
    %5119 = vmatpush1.msra.mxu0 0.0
    %5120 = vmatprep.subr.mxu0 0.0
    %5121 = vmatpush1.msra.mxu0 0.0
    %5122 = vmatprep.subr.mxu0 0.0
    %5123 = vmatpush1.msra.mxu0 0.0
    %5124 = vmatprep.subr.mxu0 0.0
    %5125 = vmatpush1.msra.mxu0 0.0
    %5126 = vmatprep.subr.mxu0 0.0
    %5127 = vmatpush1.msra.mxu0 0.0
    %5128 = vmatprep.subr.mxu0 0.0
    %5129 = vmatpush1.msra.mxu0 0.0
    %5130 = vmatprep.mubr.f32.mxu0 0.0
    %5131 = vmatmul.mubr.f32.gmra.mrb[0].mxu0 %v5064
    %v5132 = vpop.f32.mrb[0].mxu0
    %v5133 = vadd.f32 %v517, %v5132
    %v5134 = vpop.f32.mrb[0].mxu0
    %5135 = vdwg.mxu0
    %v5137 = vsel %vm250, %v5058, 0
    %5139 = vmatprep.subr.mxu0 0.0
    %5140 = vmatpush1.msra.mxu0 %v230
    %5141 = vmatprep.subr.mxu0 0.0
    %5142 = vmatpush1.msra.mxu0 %v231
    %5143 = vmatprep.subr.mxu0 0.0
    %5144 = vmatpush1.msra.mxu0 %v232
    %5145 = vmatprep.subr.mxu0 0.0
    %5146 = vmatpush1.msra.mxu0 %v233
    %5147 = vmatprep.subr.mxu0 0.0
    %5148 = vmatpush1.msra.mxu0 0.0
    %5149 = vmatprep.subr.mxu0 0.0
    %5150 = vmatpush1.msra.mxu0 0.0
    %5151 = vmatprep.subr.mxu0 0.0
    %5152 = vmatpush1.msra.mxu0 0.0
    %5153 = vmatprep.subr.mxu0 0.0
    %5154 = vmatpush1.msra.mxu0 0.0
    %5155 = vmatprep.subr.mxu0 0.0
    %5156 = vmatpush1.msra.mxu0 0.0
    %5157 = vmatprep.subr.mxu0 0.0
    %5158 = vmatpush1.msra.mxu0 0.0
    %5159 = vmatprep.subr.mxu0 0.0
    %5160 = vmatpush1.msra.mxu0 0.0
    %5161 = vmatprep.subr.mxu0 0.0
    %5162 = vmatpush1.msra.mxu0 0.0
    %5163 = vmatprep.subr.mxu0 0.0
    %5164 = vmatpush1.msra.mxu0 0.0
    %5165 = vmatprep.subr.mxu0 0.0
    %5166 = vmatpush1.msra.mxu0 0.0
    %5167 = vmatprep.subr.mxu0 0.0
    %5168 = vmatpush1.msra.mxu0 0.0
    %5169 = vmatprep.subr.mxu0 0.0
    %5170 = vmatpush1.msra.mxu0 0.0
    %5171 = vmatprep.subr.mxu0 0.0
    %5172 = vmatpush1.msra.mxu0 0.0
    %5173 = vmatprep.subr.mxu0 0.0
    %5174 = vmatpush1.msra.mxu0 0.0
    %5175 = vmatprep.subr.mxu0 0.0
    %5176 = vmatpush1.msra.mxu0 0.0
    %5177 = vmatprep.subr.mxu0 0.0
    %5178 = vmatpush1.msra.mxu0 0.0
    %5179 = vmatprep.subr.mxu0 0.0
    %5180 = vmatpush1.msra.mxu0 0.0
    %5181 = vmatprep.subr.mxu0 0.0
    %5182 = vmatpush1.msra.mxu0 0.0
    %5183 = vmatprep.subr.mxu0 0.0
    %5184 = vmatpush1.msra.mxu0 0.0
    %5185 = vmatprep.subr.mxu0 0.0
    %5186 = vmatpush1.msra.mxu0 0.0
    %5187 = vmatprep.subr.mxu0 0.0
    %5188 = vmatpush1.msra.mxu0 0.0
    %5189 = vmatprep.subr.mxu0 0.0
    %5190 = vmatpush1.msra.mxu0 0.0
    %5191 = vmatprep.subr.mxu0 0.0
    %5192 = vmatpush1.msra.mxu0 0.0
    %5193 = vmatprep.subr.mxu0 0.0
    %5194 = vmatpush1.msra.mxu0 0.0
    %5195 = vmatprep.subr.mxu0 0.0
    %5196 = vmatpush1.msra.mxu0 0.0
    %5197 = vmatprep.subr.mxu0 0.0
    %5198 = vmatpush1.msra.mxu0 0.0
    %5199 = vmatprep.subr.mxu0 0.0
    %5200 = vmatpush1.msra.mxu0 0.0
    %5201 = vmatprep.subr.mxu0 0.0
    %5202 = vmatpush1.msra.mxu0 0.0
    %5203 = vmatprep.mubr.f32.mxu0 0.0
    %5204 = vmatmul.mubr.f32.gmra.mrb[0].mxu0 %v5137
    %v5205 = vpop.f32.mrb[0].mxu0
    %v5206 = vadd.f32 %v597, %v5205
    %v5207 = vpop.f32.mrb[0].mxu0
    %5208 = vdwg.mxu0
    %v5209 = vxor.u32 %v5133, 2147483648
    %v5210 = vmul.f32 %v5209, 1.442695
    %v5211 = vpow.pop %v5210
    %v5212 = vadd.f32 %v5211, 1.0
    %v5213 = vrcp.pop %v5212
    %v5214 = vmul.f32 1.0, %v5213
    %v5215 = vmul.f32 %v5214, %v5027
    %v5216 = vadd.f32 %v5206, %v5215
    %v5217 = vtanh.pop %v5216
    %v5218 = vsub.f32 %v4816, %v5217
    %5220 = vrot.lane.b32.xlu0 %v5218, 32
    %v5221 = vpop.permute.xlu0 %5220
    %v5223 = vmul.f32 %v5214, %v5221
    %5225 = vrot.lane.b32.xlu0 %v5223, 96
    %v5226 = vpop.permute.xlu0 %5225
    %v5228 = vadd.f32 %v5217, %v5226
    %5229 = vmatprep.subr.mxu0 0.0
    %5230 = vmatpush1.msra.mxu0 %v213
    %5231 = vmatprep.subr.mxu0 0.0
    %5232 = vmatpush1.msra.mxu0 %v214
    %5233 = vmatprep.subr.mxu0 0.0
    %5234 = vmatpush1.msra.mxu0 %v215
    %5235 = vmatprep.subr.mxu0 0.0
    %5236 = vmatpush1.msra.mxu0 %v216
    %5237 = vmatprep.subr.mxu0 0.0
    %5238 = vmatpush1.msra.mxu0 0.0
    %5239 = vmatprep.subr.mxu0 0.0
    %5240 = vmatpush1.msra.mxu0 0.0
    %5241 = vmatprep.subr.mxu0 0.0
    %5242 = vmatpush1.msra.mxu0 0.0
    %5243 = vmatprep.subr.mxu0 0.0
    %5244 = vmatpush1.msra.mxu0 0.0
    %5245 = vmatprep.subr.mxu0 0.0
    %5246 = vmatpush1.msra.mxu0 0.0
    %5247 = vmatprep.subr.mxu0 0.0
    %5248 = vmatpush1.msra.mxu0 0.0
    %5249 = vmatprep.subr.mxu0 0.0
    %5250 = vmatpush1.msra.mxu0 0.0
    %5251 = vmatprep.subr.mxu0 0.0
    %5252 = vmatpush1.msra.mxu0 0.0
    %5253 = vmatprep.subr.mxu0 0.0
    %5254 = vmatpush1.msra.mxu0 0.0
    %5255 = vmatprep.subr.mxu0 0.0
    %5256 = vmatpush1.msra.mxu0 0.0
    %5257 = vmatprep.subr.mxu0 0.0
    %5258 = vmatpush1.msra.mxu0 0.0
    %5259 = vmatprep.subr.mxu0 0.0
    %5260 = vmatpush1.msra.mxu0 0.0
    %5261 = vmatprep.subr.mxu0 0.0
    %5262 = vmatpush1.msra.mxu0 0.0
    %5263 = vmatprep.subr.mxu0 0.0
    %5264 = vmatpush1.msra.mxu0 0.0
    %5265 = vmatprep.subr.mxu0 0.0
    %5266 = vmatpush1.msra.mxu0 0.0
    %5267 = vmatprep.subr.mxu0 0.0
    %5268 = vmatpush1.msra.mxu0 0.0
    %5269 = vmatprep.subr.mxu0 0.0
    %5270 = vmatpush1.msra.mxu0 0.0
    %5271 = vmatprep.subr.mxu0 0.0
    %5272 = vmatpush1.msra.mxu0 0.0
    %5273 = vmatprep.subr.mxu0 0.0
    %5274 = vmatpush1.msra.mxu0 0.0
    %5275 = vmatprep.subr.mxu0 0.0
    %5276 = vmatpush1.msra.mxu0 0.0
    %5277 = vmatprep.subr.mxu0 0.0
    %5278 = vmatpush1.msra.mxu0 0.0
    %5279 = vmatprep.subr.mxu0 0.0
    %5280 = vmatpush1.msra.mxu0 0.0
    %5281 = vmatprep.subr.mxu0 0.0
    %5282 = vmatpush1.msra.mxu0 0.0
    %5283 = vmatprep.subr.mxu0 0.0
    %5284 = vmatpush1.msra.mxu0 0.0
    %5285 = vmatprep.subr.mxu0 0.0
    %5286 = vmatpush1.msra.mxu0 0.0
    %5287 = vmatprep.subr.mxu0 0.0
    %5288 = vmatpush1.msra.mxu0 0.0
    %5289 = vmatprep.subr.mxu0 0.0
    %5290 = vmatpush1.msra.mxu0 0.0
    %5291 = vmatprep.subr.mxu0 0.0
    %5292 = vmatpush1.msra.mxu0 0.0
    %5293 = vmatprep.mubr.f32.mxu0 0.0
    %5294 = vmatmul.mubr.f32.gmra.mrb[0].mxu0 %v5137
    %v5295 = vpop.f32.mrb[0].mxu0
    %v5296 = vadd.f32 0.0, %v5295
    %v5297 = vpop.f32.mrb[0].mxu0
    %5298 = vdwg.mxu0
    %5299 = vmatprep.subr.mxu0 0.0
    %5300 = vmatpush1.msra.mxu0 %v217
    %5301 = vmatprep.subr.mxu0 0.0
    %5302 = vmatpush1.msra.mxu0 %v218
    %5303 = vmatprep.subr.mxu0 0.0
    %5304 = vmatpush1.msra.mxu0 %v219
    %5305 = vmatprep.subr.mxu0 0.0
    %5306 = vmatpush1.msra.mxu0 %v220
    %5307 = vmatprep.subr.mxu0 0.0
    %5308 = vmatpush1.msra.mxu0 0.0
    %5309 = vmatprep.subr.mxu0 0.0
    %5310 = vmatpush1.msra.mxu0 0.0
    %5311 = vmatprep.subr.mxu0 0.0
    %5312 = vmatpush1.msra.mxu0 0.0
    %5313 = vmatprep.subr.mxu0 0.0
    %5314 = vmatpush1.msra.mxu0 0.0
    %5315 = vmatprep.subr.mxu0 0.0
    %5316 = vmatpush1.msra.mxu0 0.0
    %5317 = vmatprep.subr.mxu0 0.0
    %5318 = vmatpush1.msra.mxu0 0.0
    %5319 = vmatprep.subr.mxu0 0.0
    %5320 = vmatpush1.msra.mxu0 0.0
    %5321 = vmatprep.subr.mxu0 0.0
    %5322 = vmatpush1.msra.mxu0 0.0
    %5323 = vmatprep.subr.mxu0 0.0
    %5324 = vmatpush1.msra.mxu0 0.0
    %5325 = vmatprep.subr.mxu0 0.0
    %5326 = vmatpush1.msra.mxu0 0.0
    %5327 = vmatprep.subr.mxu0 0.0
    %5328 = vmatpush1.msra.mxu0 0.0
    %5329 = vmatprep.subr.mxu0 0.0
    %5330 = vmatpush1.msra.mxu0 0.0
    %5331 = vmatprep.subr.mxu0 0.0
    %5332 = vmatpush1.msra.mxu0 0.0
    %5333 = vmatprep.subr.mxu0 0.0
    %5334 = vmatpush1.msra.mxu0 0.0
    %5335 = vmatprep.subr.mxu0 0.0
    %5336 = vmatpush1.msra.mxu0 0.0
    %5337 = vmatprep.subr.mxu0 0.0
    %5338 = vmatpush1.msra.mxu0 0.0
    %5339 = vmatprep.subr.mxu0 0.0
    %5340 = vmatpush1.msra.mxu0 0.0
    %5341 = vmatprep.subr.mxu0 0.0
    %5342 = vmatpush1.msra.mxu0 0.0
    %5343 = vmatprep.subr.mxu0 0.0
    %5344 = vmatpush1.msra.mxu0 0.0
    %5345 = vmatprep.subr.mxu0 0.0
    %5346 = vmatpush1.msra.mxu0 0.0
    %5347 = vmatprep.subr.mxu0 0.0
    %5348 = vmatpush1.msra.mxu0 0.0
    %5349 = vmatprep.subr.mxu0 0.0
    %5350 = vmatpush1.msra.mxu0 0.0
    %5351 = vmatprep.subr.mxu0 0.0
    %5352 = vmatpush1.msra.mxu0 0.0
    %5353 = vmatprep.subr.mxu0 0.0
    %5354 = vmatpush1.msra.mxu0 0.0
    %5355 = vmatprep.subr.mxu0 0.0
    %5356 = vmatpush1.msra.mxu0 0.0
    %5357 = vmatprep.subr.mxu0 0.0
    %5358 = vmatpush1.msra.mxu0 0.0
    %5359 = vmatprep.subr.mxu0 0.0
    %5360 = vmatpush1.msra.mxu0 0.0
    %5361 = vmatprep.subr.mxu0 0.0
    %5362 = vmatpush1.msra.mxu0 0.0
    %5363 = vmatprep.mubr.f32.mxu0 0.0
    %5364 = vmatmul.mubr.f32.gmra.mrb[0].mxu0 %v5137
    %v5365 = vpop.f32.mrb[0].mxu0
    %v5366 = vadd.f32 %v328, %v5365
    %v5367 = vpop.f32.mrb[0].mxu0
    %5368 = vdwg.mxu0
    %v5370 = vsel %vm250, %v5228, 0
    %5372 = vmatprep.subr.mxu0 0.0
    %5373 = vmatpush1.msra.mxu0 %v234
    %5374 = vmatprep.subr.mxu0 0.0
    %5375 = vmatpush1.msra.mxu0 %v235
    %5376 = vmatprep.subr.mxu0 0.0
    %5377 = vmatpush1.msra.mxu0 %v236
    %5378 = vmatprep.subr.mxu0 0.0
    %5379 = vmatpush1.msra.mxu0 %v237
    %5380 = vmatprep.subr.mxu0 0.0
    %5381 = vmatpush1.msra.mxu0 0.0
    %5382 = vmatprep.subr.mxu0 0.0
    %5383 = vmatpush1.msra.mxu0 0.0
    %5384 = vmatprep.subr.mxu0 0.0
    %5385 = vmatpush1.msra.mxu0 0.0
    %5386 = vmatprep.subr.mxu0 0.0
    %5387 = vmatpush1.msra.mxu0 0.0
    %5388 = vmatprep.subr.mxu0 0.0
    %5389 = vmatpush1.msra.mxu0 0.0
    %5390 = vmatprep.subr.mxu0 0.0
    %5391 = vmatpush1.msra.mxu0 0.0
    %5392 = vmatprep.subr.mxu0 0.0
    %5393 = vmatpush1.msra.mxu0 0.0
    %5394 = vmatprep.subr.mxu0 0.0
    %5395 = vmatpush1.msra.mxu0 0.0
    %5396 = vmatprep.subr.mxu0 0.0
    %5397 = vmatpush1.msra.mxu0 0.0
    %5398 = vmatprep.subr.mxu0 0.0
    %5399 = vmatpush1.msra.mxu0 0.0
    %5400 = vmatprep.subr.mxu0 0.0
    %5401 = vmatpush1.msra.mxu0 0.0
    %5402 = vmatprep.subr.mxu0 0.0
    %5403 = vmatpush1.msra.mxu0 0.0
    %5404 = vmatprep.subr.mxu0 0.0
    %5405 = vmatpush1.msra.mxu0 0.0
    %5406 = vmatprep.subr.mxu0 0.0
    %5407 = vmatpush1.msra.mxu0 0.0
    %5408 = vmatprep.subr.mxu0 0.0
    %5409 = vmatpush1.msra.mxu0 0.0
    %5410 = vmatprep.subr.mxu0 0.0
    %5411 = vmatpush1.msra.mxu0 0.0
    %5412 = vmatprep.subr.mxu0 0.0
    %5413 = vmatpush1.msra.mxu0 0.0
    %5414 = vmatprep.subr.mxu0 0.0
    %5415 = vmatpush1.msra.mxu0 0.0
    %5416 = vmatprep.subr.mxu0 0.0
    %5417 = vmatpush1.msra.mxu0 0.0
    %5418 = vmatprep.subr.mxu0 0.0
    %5419 = vmatpush1.msra.mxu0 0.0
    %5420 = vmatprep.subr.mxu0 0.0
    %5421 = vmatpush1.msra.mxu0 0.0
    %5422 = vmatprep.subr.mxu0 0.0
    %5423 = vmatpush1.msra.mxu0 0.0
    %5424 = vmatprep.subr.mxu0 0.0
    %5425 = vmatpush1.msra.mxu0 0.0
    %5426 = vmatprep.subr.mxu0 0.0
    %5427 = vmatpush1.msra.mxu0 0.0
    %5428 = vmatprep.subr.mxu0 0.0
    %5429 = vmatpush1.msra.mxu0 0.0
    %5430 = vmatprep.subr.mxu0 0.0
    %5431 = vmatpush1.msra.mxu0 0.0
    %5432 = vmatprep.subr.mxu0 0.0
    %5433 = vmatpush1.msra.mxu0 0.0
    %5434 = vmatprep.subr.mxu0 0.0
    %5435 = vmatpush1.msra.mxu0 0.0
    %5436 = vmatprep.mubr.f32.mxu0 0.0
    %5437 = vmatmul.mubr.f32.gmra.mrb[0].mxu0 %v5370
    %v5438 = vpop.f32.mrb[0].mxu0
    %v5439 = vadd.f32 %v404, %v5438
    %v5440 = vpop.f32.mrb[0].mxu0
    %5441 = vdwg.mxu0
    %5442 = vset.pattern.permute.xlu0 4
    %5443 = vperm.xlu0 %5442, %v3579
    %v5444 = vpop.permute.xlu0 %5443
    %v5446 = vmul.f32 %v5444, %v190
    %v5447 = vadd.f32 %v5446, %v204
    %v5448 = vadd.f32 %v5447, %v5296
    %v5449 = vmul.f32 %v5444, %v197
    %v5450 = vadd.f32 %v5449, %v211
    %v5451 = vxor.u32 %v5448, 2147483648
    %v5452 = vmul.f32 %v5451, 1.442695
    %v5453 = vpow.pop %v5452
    %v5454 = vadd.f32 %v5453, 1.0
    %v5455 = vrcp.pop %v5454
    %v5456 = vmul.f32 1.0, %v5455
    %v5457 = vmul.f32 %v5456, %v5366
    %v5458 = vadd.f32 %v5450, %v5457
    %v5459 = vtanh.pop %v5458
    %v5460 = vsub.f32 %v5058, %v5459
    %5462 = vrot.lane.b32.xlu0 %v5460, 32
    %v5463 = vpop.permute.xlu0 %5462
    %v5465 = vmul.f32 %v5456, %v5463
    %5467 = vrot.lane.b32.xlu0 %v5465, 96
    %v5468 = vpop.permute.xlu0 %5467
    %v5470 = vadd.f32 %v5459, %v5468
    %5471 = vrot.lane.b32.xlu0 %v5228, 32
    %v5472 = vpop.permute.xlu0 %5471
    %v5474 = vsel %vm250, %v5470, %v5472
    %v5476 = vsel %vm519, %v5474, 0
    %5478 = vmatprep.subr.mxu0 0.0
    %5479 = vmatpush1.msra.mxu0 %v222
    %5480 = vmatprep.subr.mxu0 0.0
    %5481 = vmatpush1.msra.mxu0 %v223
    %5482 = vmatprep.subr.mxu0 0.0
    %5483 = vmatpush1.msra.mxu0 %v224
    %5484 = vmatprep.subr.mxu0 0.0
    %5485 = vmatpush1.msra.mxu0 %v225
    %5486 = vmatprep.subr.mxu0 0.0
    %5487 = vmatpush1.msra.mxu0 %v226
    %5488 = vmatprep.subr.mxu0 0.0
    %5489 = vmatpush1.msra.mxu0 %v227
    %5490 = vmatprep.subr.mxu0 0.0
    %5491 = vmatpush1.msra.mxu0 %v228
    %5492 = vmatprep.subr.mxu0 0.0
    %5493 = vmatpush1.msra.mxu0 %v229
    %5494 = vmatprep.subr.mxu0 0.0
    %5495 = vmatpush1.msra.mxu0 0.0
    %5496 = vmatprep.subr.mxu0 0.0
    %5497 = vmatpush1.msra.mxu0 0.0
    %5498 = vmatprep.subr.mxu0 0.0
    %5499 = vmatpush1.msra.mxu0 0.0
    %5500 = vmatprep.subr.mxu0 0.0
    %5501 = vmatpush1.msra.mxu0 0.0
    %5502 = vmatprep.subr.mxu0 0.0
    %5503 = vmatpush1.msra.mxu0 0.0
    %5504 = vmatprep.subr.mxu0 0.0
    %5505 = vmatpush1.msra.mxu0 0.0
    %5506 = vmatprep.subr.mxu0 0.0
    %5507 = vmatpush1.msra.mxu0 0.0
    %5508 = vmatprep.subr.mxu0 0.0
    %5509 = vmatpush1.msra.mxu0 0.0
    %5510 = vmatprep.subr.mxu0 0.0
    %5511 = vmatpush1.msra.mxu0 0.0
    %5512 = vmatprep.subr.mxu0 0.0
    %5513 = vmatpush1.msra.mxu0 0.0
    %5514 = vmatprep.subr.mxu0 0.0
    %5515 = vmatpush1.msra.mxu0 0.0
    %5516 = vmatprep.subr.mxu0 0.0
    %5517 = vmatpush1.msra.mxu0 0.0
    %5518 = vmatprep.subr.mxu0 0.0
    %5519 = vmatpush1.msra.mxu0 0.0
    %5520 = vmatprep.subr.mxu0 0.0
    %5521 = vmatpush1.msra.mxu0 0.0
    %5522 = vmatprep.subr.mxu0 0.0
    %5523 = vmatpush1.msra.mxu0 0.0
    %5524 = vmatprep.subr.mxu0 0.0
    %5525 = vmatpush1.msra.mxu0 0.0
    %5526 = vmatprep.subr.mxu0 0.0
    %5527 = vmatpush1.msra.mxu0 0.0
    %5528 = vmatprep.subr.mxu0 0.0
    %5529 = vmatpush1.msra.mxu0 0.0
    %5530 = vmatprep.subr.mxu0 0.0
    %5531 = vmatpush1.msra.mxu0 0.0
    %5532 = vmatprep.subr.mxu0 0.0
    %5533 = vmatpush1.msra.mxu0 0.0
    %5534 = vmatprep.subr.mxu0 0.0
    %5535 = vmatpush1.msra.mxu0 0.0
    %5536 = vmatprep.subr.mxu0 0.0
    %5537 = vmatpush1.msra.mxu0 0.0
    %5538 = vmatprep.subr.mxu0 0.0
    %5539 = vmatpush1.msra.mxu0 0.0
    %5540 = vmatprep.subr.mxu0 0.0
    %5541 = vmatpush1.msra.mxu0 0.0
    %5542 = vmatprep.mubr.f32.mxu0 0.0
    %5543 = vmatmul.mubr.f32.gmra.mrb[0].mxu0 %v5476
    %v5544 = vpop.f32.mrb[0].mxu0
    %v5545 = vadd.f32 %v517, %v5544
    %v5546 = vpop.f32.mrb[0].mxu0
    %5547 = vdwg.mxu0
    %v5549 = vsel %vm250, %v5470, 0
    %5551 = vmatprep.subr.mxu0 0.0
    %5552 = vmatpush1.msra.mxu0 %v230
    %5553 = vmatprep.subr.mxu0 0.0
    %5554 = vmatpush1.msra.mxu0 %v231
    %5555 = vmatprep.subr.mxu0 0.0
    %5556 = vmatpush1.msra.mxu0 %v232
    %5557 = vmatprep.subr.mxu0 0.0
    %5558 = vmatpush1.msra.mxu0 %v233
    %5559 = vmatprep.subr.mxu0 0.0
    %5560 = vmatpush1.msra.mxu0 0.0
    %5561 = vmatprep.subr.mxu0 0.0
    %5562 = vmatpush1.msra.mxu0 0.0
    %5563 = vmatprep.subr.mxu0 0.0
    %5564 = vmatpush1.msra.mxu0 0.0
    %5565 = vmatprep.subr.mxu0 0.0
    %5566 = vmatpush1.msra.mxu0 0.0
    %5567 = vmatprep.subr.mxu0 0.0
    %5568 = vmatpush1.msra.mxu0 0.0
    %5569 = vmatprep.subr.mxu0 0.0
    %5570 = vmatpush1.msra.mxu0 0.0
    %5571 = vmatprep.subr.mxu0 0.0
    %5572 = vmatpush1.msra.mxu0 0.0
    %5573 = vmatprep.subr.mxu0 0.0
    %5574 = vmatpush1.msra.mxu0 0.0
    %5575 = vmatprep.subr.mxu0 0.0
    %5576 = vmatpush1.msra.mxu0 0.0
    %5577 = vmatprep.subr.mxu0 0.0
    %5578 = vmatpush1.msra.mxu0 0.0
    %5579 = vmatprep.subr.mxu0 0.0
    %5580 = vmatpush1.msra.mxu0 0.0
    %5581 = vmatprep.subr.mxu0 0.0
    %5582 = vmatpush1.msra.mxu0 0.0
    %5583 = vmatprep.subr.mxu0 0.0
    %5584 = vmatpush1.msra.mxu0 0.0
    %5585 = vmatprep.subr.mxu0 0.0
    %5586 = vmatpush1.msra.mxu0 0.0
    %5587 = vmatprep.subr.mxu0 0.0
    %5588 = vmatpush1.msra.mxu0 0.0
    %5589 = vmatprep.subr.mxu0 0.0
    %5590 = vmatpush1.msra.mxu0 0.0
    %5591 = vmatprep.subr.mxu0 0.0
    %5592 = vmatpush1.msra.mxu0 0.0
    %5593 = vmatprep.subr.mxu0 0.0
    %5594 = vmatpush1.msra.mxu0 0.0
    %5595 = vmatprep.subr.mxu0 0.0
    %5596 = vmatpush1.msra.mxu0 0.0
    %5597 = vmatprep.subr.mxu0 0.0
    %5598 = vmatpush1.msra.mxu0 0.0
    %5599 = vmatprep.subr.mxu0 0.0
    %5600 = vmatpush1.msra.mxu0 0.0
    %5601 = vmatprep.subr.mxu0 0.0
    %5602 = vmatpush1.msra.mxu0 0.0
    %5603 = vmatprep.subr.mxu0 0.0
    %5604 = vmatpush1.msra.mxu0 0.0
    %5605 = vmatprep.subr.mxu0 0.0
    %5606 = vmatpush1.msra.mxu0 0.0
    %5607 = vmatprep.subr.mxu0 0.0
    %5608 = vmatpush1.msra.mxu0 0.0
    %5609 = vmatprep.subr.mxu0 0.0
    %5610 = vmatpush1.msra.mxu0 0.0
    %5611 = vmatprep.subr.mxu0 0.0
    %5612 = vmatpush1.msra.mxu0 0.0
    %5613 = vmatprep.subr.mxu0 0.0
    %5614 = vmatpush1.msra.mxu0 0.0
    %5615 = vmatprep.mubr.f32.mxu0 0.0
    %5616 = vmatmul.mubr.f32.gmra.mrb[0].mxu0 %v5549
    %v5617 = vpop.f32.mrb[0].mxu0
    %v5618 = vadd.f32 %v597, %v5617
    %v5619 = vpop.f32.mrb[0].mxu0
    %5620 = vdwg.mxu0
    %v5621 = vxor.u32 %v5545, 2147483648
    %v5622 = vmul.f32 %v5621, 1.442695
    %v5623 = vpow.pop %v5622
    %v5624 = vadd.f32 %v5623, 1.0
    %v5625 = vrcp.pop %v5624
    %v5626 = vmul.f32 1.0, %v5625
    %v5627 = vmul.f32 %v5626, %v5439
    %v5628 = vadd.f32 %v5618, %v5627
    %v5629 = vtanh.pop %v5628
    %v5630 = vsub.f32 %v5228, %v5629
    %5632 = vrot.lane.b32.xlu0 %v5630, 32
    %v5633 = vpop.permute.xlu0 %5632
    %v5635 = vmul.f32 %v5626, %v5633
    %5637 = vrot.lane.b32.xlu0 %v5635, 96
    %v5638 = vpop.permute.xlu0 %5637
    %v5640 = vadd.f32 %v5629, %v5638
    %5641 = vmatprep.subr.mxu0 0.0
    %5642 = vmatpush1.msra.mxu0 %v213
    %5643 = vmatprep.subr.mxu0 0.0
    %5644 = vmatpush1.msra.mxu0 %v214
    %5645 = vmatprep.subr.mxu0 0.0
    %5646 = vmatpush1.msra.mxu0 %v215
    %5647 = vmatprep.subr.mxu0 0.0
    %5648 = vmatpush1.msra.mxu0 %v216
    %5649 = vmatprep.subr.mxu0 0.0
    %5650 = vmatpush1.msra.mxu0 0.0
    %5651 = vmatprep.subr.mxu0 0.0
    %5652 = vmatpush1.msra.mxu0 0.0
    %5653 = vmatprep.subr.mxu0 0.0
    %5654 = vmatpush1.msra.mxu0 0.0
    %5655 = vmatprep.subr.mxu0 0.0
    %5656 = vmatpush1.msra.mxu0 0.0
    %5657 = vmatprep.subr.mxu0 0.0
    %5658 = vmatpush1.msra.mxu0 0.0
    %5659 = vmatprep.subr.mxu0 0.0
    %5660 = vmatpush1.msra.mxu0 0.0
    %5661 = vmatprep.subr.mxu0 0.0
    %5662 = vmatpush1.msra.mxu0 0.0
    %5663 = vmatprep.subr.mxu0 0.0
    %5664 = vmatpush1.msra.mxu0 0.0
    %5665 = vmatprep.subr.mxu0 0.0
    %5666 = vmatpush1.msra.mxu0 0.0
    %5667 = vmatprep.subr.mxu0 0.0
    %5668 = vmatpush1.msra.mxu0 0.0
    %5669 = vmatprep.subr.mxu0 0.0
    %5670 = vmatpush1.msra.mxu0 0.0
    %5671 = vmatprep.subr.mxu0 0.0
    %5672 = vmatpush1.msra.mxu0 0.0
    %5673 = vmatprep.subr.mxu0 0.0
    %5674 = vmatpush1.msra.mxu0 0.0
    %5675 = vmatprep.subr.mxu0 0.0
    %5676 = vmatpush1.msra.mxu0 0.0
    %5677 = vmatprep.subr.mxu0 0.0
    %5678 = vmatpush1.msra.mxu0 0.0
    %5679 = vmatprep.subr.mxu0 0.0
    %5680 = vmatpush1.msra.mxu0 0.0
    %5681 = vmatprep.subr.mxu0 0.0
    %5682 = vmatpush1.msra.mxu0 0.0
    %5683 = vmatprep.subr.mxu0 0.0
    %5684 = vmatpush1.msra.mxu0 0.0
    %5685 = vmatprep.subr.mxu0 0.0
    %5686 = vmatpush1.msra.mxu0 0.0
    %5687 = vmatprep.subr.mxu0 0.0
    %5688 = vmatpush1.msra.mxu0 0.0
    %5689 = vmatprep.subr.mxu0 0.0
    %5690 = vmatpush1.msra.mxu0 0.0
    %5691 = vmatprep.subr.mxu0 0.0
    %5692 = vmatpush1.msra.mxu0 0.0
    %5693 = vmatprep.subr.mxu0 0.0
    %5694 = vmatpush1.msra.mxu0 0.0
    %5695 = vmatprep.subr.mxu0 0.0
    %5696 = vmatpush1.msra.mxu0 0.0
    %5697 = vmatprep.subr.mxu0 0.0
    %5698 = vmatpush1.msra.mxu0 0.0
    %5699 = vmatprep.subr.mxu0 0.0
    %5700 = vmatpush1.msra.mxu0 0.0
    %5701 = vmatprep.subr.mxu0 0.0
    %5702 = vmatpush1.msra.mxu0 0.0
    %5703 = vmatprep.subr.mxu0 0.0
    %5704 = vmatpush1.msra.mxu0 0.0
    %5705 = vmatprep.mubr.f32.mxu0 0.0
    %5706 = vmatmul.mubr.f32.gmra.mrb[0].mxu0 %v5549
    %v5707 = vpop.f32.mrb[0].mxu0
    %v5708 = vadd.f32 0.0, %v5707
    %v5709 = vpop.f32.mrb[0].mxu0
    %5710 = vdwg.mxu0
    %5711 = vmatprep.subr.mxu0 0.0
    %5712 = vmatpush1.msra.mxu0 %v217
    %5713 = vmatprep.subr.mxu0 0.0
    %5714 = vmatpush1.msra.mxu0 %v218
    %5715 = vmatprep.subr.mxu0 0.0
    %5716 = vmatpush1.msra.mxu0 %v219
    %5717 = vmatprep.subr.mxu0 0.0
    %5718 = vmatpush1.msra.mxu0 %v220
    %5719 = vmatprep.subr.mxu0 0.0
    %5720 = vmatpush1.msra.mxu0 0.0
    %5721 = vmatprep.subr.mxu0 0.0
    %5722 = vmatpush1.msra.mxu0 0.0
    %5723 = vmatprep.subr.mxu0 0.0
    %5724 = vmatpush1.msra.mxu0 0.0
    %5725 = vmatprep.subr.mxu0 0.0
    %5726 = vmatpush1.msra.mxu0 0.0
    %5727 = vmatprep.subr.mxu0 0.0
    %5728 = vmatpush1.msra.mxu0 0.0
    %5729 = vmatprep.subr.mxu0 0.0
    %5730 = vmatpush1.msra.mxu0 0.0
    %5731 = vmatprep.subr.mxu0 0.0
    %5732 = vmatpush1.msra.mxu0 0.0
    %5733 = vmatprep.subr.mxu0 0.0
    %5734 = vmatpush1.msra.mxu0 0.0
    %5735 = vmatprep.subr.mxu0 0.0
    %5736 = vmatpush1.msra.mxu0 0.0
    %5737 = vmatprep.subr.mxu0 0.0
    %5738 = vmatpush1.msra.mxu0 0.0
    %5739 = vmatprep.subr.mxu0 0.0
    %5740 = vmatpush1.msra.mxu0 0.0
    %5741 = vmatprep.subr.mxu0 0.0
    %5742 = vmatpush1.msra.mxu0 0.0
    %5743 = vmatprep.subr.mxu0 0.0
    %5744 = vmatpush1.msra.mxu0 0.0
    %5745 = vmatprep.subr.mxu0 0.0
    %5746 = vmatpush1.msra.mxu0 0.0
    %5747 = vmatprep.subr.mxu0 0.0
    %5748 = vmatpush1.msra.mxu0 0.0
    %5749 = vmatprep.subr.mxu0 0.0
    %5750 = vmatpush1.msra.mxu0 0.0
    %5751 = vmatprep.subr.mxu0 0.0
    %5752 = vmatpush1.msra.mxu0 0.0
    %5753 = vmatprep.subr.mxu0 0.0
    %5754 = vmatpush1.msra.mxu0 0.0
    %5755 = vmatprep.subr.mxu0 0.0
    %5756 = vmatpush1.msra.mxu0 0.0
    %5757 = vmatprep.subr.mxu0 0.0
    %5758 = vmatpush1.msra.mxu0 0.0
    %5759 = vmatprep.subr.mxu0 0.0
    %5760 = vmatpush1.msra.mxu0 0.0
    %5761 = vmatprep.subr.mxu0 0.0
    %5762 = vmatpush1.msra.mxu0 0.0
    %5763 = vmatprep.subr.mxu0 0.0
    %5764 = vmatpush1.msra.mxu0 0.0
    %5765 = vmatprep.subr.mxu0 0.0
    %5766 = vmatpush1.msra.mxu0 0.0
    %5767 = vmatprep.subr.mxu0 0.0
    %5768 = vmatpush1.msra.mxu0 0.0
    %5769 = vmatprep.subr.mxu0 0.0
    %5770 = vmatpush1.msra.mxu0 0.0
    %5771 = vmatprep.subr.mxu0 0.0
    %5772 = vmatpush1.msra.mxu0 0.0
    %5773 = vmatprep.subr.mxu0 0.0
    %5774 = vmatpush1.msra.mxu0 0.0
    %5775 = vmatprep.mubr.f32.mxu0 0.0
    %5776 = vmatmul.mubr.f32.gmra.mrb[0].mxu0 %v5549
    %v5777 = vpop.f32.mrb[0].mxu0
    %v5778 = vadd.f32 %v328, %v5777
    %v5779 = vpop.f32.mrb[0].mxu0
    %5780 = vdwg.mxu0
    %v5782 = vsel %vm250, %v5640, 0
    %5784 = vmatprep.subr.mxu0 0.0
    %5785 = vmatpush1.msra.mxu0 %v234
    %5786 = vmatprep.subr.mxu0 0.0
    %5787 = vmatpush1.msra.mxu0 %v235
    %5788 = vmatprep.subr.mxu0 0.0
    %5789 = vmatpush1.msra.mxu0 %v236
    %5790 = vmatprep.subr.mxu0 0.0
    %5791 = vmatpush1.msra.mxu0 %v237
    %5792 = vmatprep.subr.mxu0 0.0
    %5793 = vmatpush1.msra.mxu0 0.0
    %5794 = vmatprep.subr.mxu0 0.0
    %5795 = vmatpush1.msra.mxu0 0.0
    %5796 = vmatprep.subr.mxu0 0.0
    %5797 = vmatpush1.msra.mxu0 0.0
    %5798 = vmatprep.subr.mxu0 0.0
    %5799 = vmatpush1.msra.mxu0 0.0
    %5800 = vmatprep.subr.mxu0 0.0
    %5801 = vmatpush1.msra.mxu0 0.0
    %5802 = vmatprep.subr.mxu0 0.0
    %5803 = vmatpush1.msra.mxu0 0.0
    %5804 = vmatprep.subr.mxu0 0.0
    %5805 = vmatpush1.msra.mxu0 0.0
    %5806 = vmatprep.subr.mxu0 0.0
    %5807 = vmatpush1.msra.mxu0 0.0
    %5808 = vmatprep.subr.mxu0 0.0
    %5809 = vmatpush1.msra.mxu0 0.0
    %5810 = vmatprep.subr.mxu0 0.0
    %5811 = vmatpush1.msra.mxu0 0.0
    %5812 = vmatprep.subr.mxu0 0.0
    %5813 = vmatpush1.msra.mxu0 0.0
    %5814 = vmatprep.subr.mxu0 0.0
    %5815 = vmatpush1.msra.mxu0 0.0
    %5816 = vmatprep.subr.mxu0 0.0
    %5817 = vmatpush1.msra.mxu0 0.0
    %5818 = vmatprep.subr.mxu0 0.0
    %5819 = vmatpush1.msra.mxu0 0.0
    %5820 = vmatprep.subr.mxu0 0.0
    %5821 = vmatpush1.msra.mxu0 0.0
    %5822 = vmatprep.subr.mxu0 0.0
    %5823 = vmatpush1.msra.mxu0 0.0
    %5824 = vmatprep.subr.mxu0 0.0
    %5825 = vmatpush1.msra.mxu0 0.0
    %5826 = vmatprep.subr.mxu0 0.0
    %5827 = vmatpush1.msra.mxu0 0.0
    %5828 = vmatprep.subr.mxu0 0.0
    %5829 = vmatpush1.msra.mxu0 0.0
    %5830 = vmatprep.subr.mxu0 0.0
    %5831 = vmatpush1.msra.mxu0 0.0
    %5832 = vmatprep.subr.mxu0 0.0
    %5833 = vmatpush1.msra.mxu0 0.0
    %5834 = vmatprep.subr.mxu0 0.0
    %5835 = vmatpush1.msra.mxu0 0.0
    %5836 = vmatprep.subr.mxu0 0.0
    %5837 = vmatpush1.msra.mxu0 0.0
    %5838 = vmatprep.subr.mxu0 0.0
    %5839 = vmatpush1.msra.mxu0 0.0
    %5840 = vmatprep.subr.mxu0 0.0
    %5841 = vmatpush1.msra.mxu0 0.0
    %5842 = vmatprep.subr.mxu0 0.0
    %5843 = vmatpush1.msra.mxu0 0.0
    %5844 = vmatprep.subr.mxu0 0.0
    %5845 = vmatpush1.msra.mxu0 0.0
    %5846 = vmatprep.subr.mxu0 0.0
    %5847 = vmatpush1.msra.mxu0 0.0
    %5848 = vmatprep.mubr.f32.mxu0 0.0
    %5849 = vmatmul.mubr.f32.gmra.mrb[0].mxu0 %v5782
    %v5850 = vpop.f32.mrb[0].mxu0
    %v5851 = vadd.f32 %v404, %v5850
    %v5852 = vpop.f32.mrb[0].mxu0
    %5853 = vdwg.mxu0
    %5854 = vset.pattern.permute.xlu0 5
    %5855 = vperm.xlu0 %5854, %v3579
    %v5856 = vpop.permute.xlu0 %5855
    %v5858 = vmul.f32 %v5856, %v190
    %v5859 = vadd.f32 %v5858, %v204
    %v5860 = vadd.f32 %v5859, %v5708
    %v5861 = vmul.f32 %v5856, %v197
    %v5862 = vadd.f32 %v5861, %v211
    %v5863 = vxor.u32 %v5860, 2147483648
    %v5864 = vmul.f32 %v5863, 1.442695
    %v5865 = vpow.pop %v5864
    %v5866 = vadd.f32 %v5865, 1.0
    %v5867 = vrcp.pop %v5866
    %v5868 = vmul.f32 1.0, %v5867
    %v5869 = vmul.f32 %v5868, %v5778
    %v5870 = vadd.f32 %v5862, %v5869
    %v5871 = vtanh.pop %v5870
    %v5872 = vsub.f32 %v5470, %v5871
    %5874 = vrot.lane.b32.xlu0 %v5872, 32
    %v5875 = vpop.permute.xlu0 %5874
    %v5877 = vmul.f32 %v5868, %v5875
    %5879 = vrot.lane.b32.xlu0 %v5877, 96
    %v5880 = vpop.permute.xlu0 %5879
    %v5882 = vadd.f32 %v5871, %v5880
    %5883 = vrot.lane.b32.xlu0 %v5640, 32
    %v5884 = vpop.permute.xlu0 %5883
    %v5886 = vsel %vm250, %v5882, %v5884
    %v5888 = vsel %vm519, %v5886, 0
    %5890 = vmatprep.subr.mxu0 0.0
    %5891 = vmatpush1.msra.mxu0 %v222
    %5892 = vmatprep.subr.mxu0 0.0
    %5893 = vmatpush1.msra.mxu0 %v223
    %5894 = vmatprep.subr.mxu0 0.0
    %5895 = vmatpush1.msra.mxu0 %v224
    %5896 = vmatprep.subr.mxu0 0.0
    %5897 = vmatpush1.msra.mxu0 %v225
    %5898 = vmatprep.subr.mxu0 0.0
    %5899 = vmatpush1.msra.mxu0 %v226
    %5900 = vmatprep.subr.mxu0 0.0
    %5901 = vmatpush1.msra.mxu0 %v227
    %5902 = vmatprep.subr.mxu0 0.0
    %5903 = vmatpush1.msra.mxu0 %v228
    %5904 = vmatprep.subr.mxu0 0.0
    %5905 = vmatpush1.msra.mxu0 %v229
    %5906 = vmatprep.subr.mxu0 0.0
    %5907 = vmatpush1.msra.mxu0 0.0
    %5908 = vmatprep.subr.mxu0 0.0
    %5909 = vmatpush1.msra.mxu0 0.0
    %5910 = vmatprep.subr.mxu0 0.0
    %5911 = vmatpush1.msra.mxu0 0.0
    %5912 = vmatprep.subr.mxu0 0.0
    %5913 = vmatpush1.msra.mxu0 0.0
    %5914 = vmatprep.subr.mxu0 0.0
    %5915 = vmatpush1.msra.mxu0 0.0
    %5916 = vmatprep.subr.mxu0 0.0
    %5917 = vmatpush1.msra.mxu0 0.0
    %5918 = vmatprep.subr.mxu0 0.0
    %5919 = vmatpush1.msra.mxu0 0.0
    %5920 = vmatprep.subr.mxu0 0.0
    %5921 = vmatpush1.msra.mxu0 0.0
    %5922 = vmatprep.subr.mxu0 0.0
    %5923 = vmatpush1.msra.mxu0 0.0
    %5924 = vmatprep.subr.mxu0 0.0
    %5925 = vmatpush1.msra.mxu0 0.0
    %5926 = vmatprep.subr.mxu0 0.0
    %5927 = vmatpush1.msra.mxu0 0.0
    %5928 = vmatprep.subr.mxu0 0.0
    %5929 = vmatpush1.msra.mxu0 0.0
    %5930 = vmatprep.subr.mxu0 0.0
    %5931 = vmatpush1.msra.mxu0 0.0
    %5932 = vmatprep.subr.mxu0 0.0
    %5933 = vmatpush1.msra.mxu0 0.0
    %5934 = vmatprep.subr.mxu0 0.0
    %5935 = vmatpush1.msra.mxu0 0.0
    %5936 = vmatprep.subr.mxu0 0.0
    %5937 = vmatpush1.msra.mxu0 0.0
    %5938 = vmatprep.subr.mxu0 0.0
    %5939 = vmatpush1.msra.mxu0 0.0
    %5940 = vmatprep.subr.mxu0 0.0
    %5941 = vmatpush1.msra.mxu0 0.0
    %5942 = vmatprep.subr.mxu0 0.0
    %5943 = vmatpush1.msra.mxu0 0.0
    %5944 = vmatprep.subr.mxu0 0.0
    %5945 = vmatpush1.msra.mxu0 0.0
    %5946 = vmatprep.subr.mxu0 0.0
    %5947 = vmatpush1.msra.mxu0 0.0
    %5948 = vmatprep.subr.mxu0 0.0
    %5949 = vmatpush1.msra.mxu0 0.0
    %5950 = vmatprep.subr.mxu0 0.0
    %5951 = vmatpush1.msra.mxu0 0.0
    %5952 = vmatprep.subr.mxu0 0.0
    %5953 = vmatpush1.msra.mxu0 0.0
    %5954 = vmatprep.mubr.f32.mxu0 0.0
    %5955 = vmatmul.mubr.f32.gmra.mrb[0].mxu0 %v5888
    %v5956 = vpop.f32.mrb[0].mxu0
    %v5957 = vadd.f32 %v517, %v5956
    %v5958 = vpop.f32.mrb[0].mxu0
    %5959 = vdwg.mxu0
    %v5961 = vsel %vm250, %v5882, 0
    %5963 = vmatprep.subr.mxu0 0.0
    %5964 = vmatpush1.msra.mxu0 %v230
    %5965 = vmatprep.subr.mxu0 0.0
    %5966 = vmatpush1.msra.mxu0 %v231
    %5967 = vmatprep.subr.mxu0 0.0
    %5968 = vmatpush1.msra.mxu0 %v232
    %5969 = vmatprep.subr.mxu0 0.0
    %5970 = vmatpush1.msra.mxu0 %v233
    %5971 = vmatprep.subr.mxu0 0.0
    %5972 = vmatpush1.msra.mxu0 0.0
    %5973 = vmatprep.subr.mxu0 0.0
    %5974 = vmatpush1.msra.mxu0 0.0
    %5975 = vmatprep.subr.mxu0 0.0
    %5976 = vmatpush1.msra.mxu0 0.0
    %5977 = vmatprep.subr.mxu0 0.0
    %5978 = vmatpush1.msra.mxu0 0.0
    %5979 = vmatprep.subr.mxu0 0.0
    %5980 = vmatpush1.msra.mxu0 0.0
    %5981 = vmatprep.subr.mxu0 0.0
    %5982 = vmatpush1.msra.mxu0 0.0
    %5983 = vmatprep.subr.mxu0 0.0
    %5984 = vmatpush1.msra.mxu0 0.0
    %5985 = vmatprep.subr.mxu0 0.0
    %5986 = vmatpush1.msra.mxu0 0.0
    %5987 = vmatprep.subr.mxu0 0.0
    %5988 = vmatpush1.msra.mxu0 0.0
    %5989 = vmatprep.subr.mxu0 0.0
    %5990 = vmatpush1.msra.mxu0 0.0
    %5991 = vmatprep.subr.mxu0 0.0
    %5992 = vmatpush1.msra.mxu0 0.0
    %5993 = vmatprep.subr.mxu0 0.0
    %5994 = vmatpush1.msra.mxu0 0.0
    %5995 = vmatprep.subr.mxu0 0.0
    %5996 = vmatpush1.msra.mxu0 0.0
    %5997 = vmatprep.subr.mxu0 0.0
    %5998 = vmatpush1.msra.mxu0 0.0
    %5999 = vmatprep.subr.mxu0 0.0
    %6000 = vmatpush1.msra.mxu0 0.0
    %6001 = vmatprep.subr.mxu0 0.0
    %6002 = vmatpush1.msra.mxu0 0.0
    %6003 = vmatprep.subr.mxu0 0.0
    %6004 = vmatpush1.msra.mxu0 0.0
    %6005 = vmatprep.subr.mxu0 0.0
    %6006 = vmatpush1.msra.mxu0 0.0
    %6007 = vmatprep.subr.mxu0 0.0
    %6008 = vmatpush1.msra.mxu0 0.0
    %6009 = vmatprep.subr.mxu0 0.0
    %6010 = vmatpush1.msra.mxu0 0.0
    %6011 = vmatprep.subr.mxu0 0.0
    %6012 = vmatpush1.msra.mxu0 0.0
    %6013 = vmatprep.subr.mxu0 0.0
    %6014 = vmatpush1.msra.mxu0 0.0
    %6015 = vmatprep.subr.mxu0 0.0
    %6016 = vmatpush1.msra.mxu0 0.0
    %6017 = vmatprep.subr.mxu0 0.0
    %6018 = vmatpush1.msra.mxu0 0.0
    %6019 = vmatprep.subr.mxu0 0.0
    %6020 = vmatpush1.msra.mxu0 0.0
    %6021 = vmatprep.subr.mxu0 0.0
    %6022 = vmatpush1.msra.mxu0 0.0
    %6023 = vmatprep.subr.mxu0 0.0
    %6024 = vmatpush1.msra.mxu0 0.0
    %6025 = vmatprep.subr.mxu0 0.0
    %6026 = vmatpush1.msra.mxu0 0.0
    %6027 = vmatprep.mubr.f32.mxu0 0.0
    %6028 = vmatmul.mubr.f32.gmra.mrb[0].mxu0 %v5961
    %v6029 = vpop.f32.mrb[0].mxu0
    %v6030 = vadd.f32 %v597, %v6029
    %v6031 = vpop.f32.mrb[0].mxu0
    %6032 = vdwg.mxu0
    %v6033 = vxor.u32 %v5957, 2147483648
    %v6034 = vmul.f32 %v6033, 1.442695
    %v6035 = vpow.pop %v6034
    %v6036 = vadd.f32 %v6035, 1.0
    %v6037 = vrcp.pop %v6036
    %v6038 = vmul.f32 1.0, %v6037
    %v6039 = vmul.f32 %v6038, %v5851
    %v6040 = vadd.f32 %v6030, %v6039
    %v6041 = vtanh.pop %v6040
    %v6042 = vsub.f32 %v5640, %v6041
    %6044 = vrot.lane.b32.xlu0 %v6042, 32
    %v6045 = vpop.permute.xlu0 %6044
    %v6047 = vmul.f32 %v6038, %v6045
    %6049 = vrot.lane.b32.xlu0 %v6047, 96
    %v6050 = vpop.permute.xlu0 %6049
    %v6052 = vadd.f32 %v6041, %v6050
    %6053 = vmatprep.subr.mxu0 0.0
    %6054 = vmatpush1.msra.mxu0 %v213
    %6055 = vmatprep.subr.mxu0 0.0
    %6056 = vmatpush1.msra.mxu0 %v214
    %6057 = vmatprep.subr.mxu0 0.0
    %6058 = vmatpush1.msra.mxu0 %v215
    %6059 = vmatprep.subr.mxu0 0.0
    %6060 = vmatpush1.msra.mxu0 %v216
    %6061 = vmatprep.subr.mxu0 0.0
    %6062 = vmatpush1.msra.mxu0 0.0
    %6063 = vmatprep.subr.mxu0 0.0
    %6064 = vmatpush1.msra.mxu0 0.0
    %6065 = vmatprep.subr.mxu0 0.0
    %6066 = vmatpush1.msra.mxu0 0.0
    %6067 = vmatprep.subr.mxu0 0.0
    %6068 = vmatpush1.msra.mxu0 0.0
    %6069 = vmatprep.subr.mxu0 0.0
    %6070 = vmatpush1.msra.mxu0 0.0
    %6071 = vmatprep.subr.mxu0 0.0
    %6072 = vmatpush1.msra.mxu0 0.0
    %6073 = vmatprep.subr.mxu0 0.0
    %6074 = vmatpush1.msra.mxu0 0.0
    %6075 = vmatprep.subr.mxu0 0.0
    %6076 = vmatpush1.msra.mxu0 0.0
    %6077 = vmatprep.subr.mxu0 0.0
    %6078 = vmatpush1.msra.mxu0 0.0
    %6079 = vmatprep.subr.mxu0 0.0
    %6080 = vmatpush1.msra.mxu0 0.0
    %6081 = vmatprep.subr.mxu0 0.0
    %6082 = vmatpush1.msra.mxu0 0.0
    %6083 = vmatprep.subr.mxu0 0.0
    %6084 = vmatpush1.msra.mxu0 0.0
    %6085 = vmatprep.subr.mxu0 0.0
    %6086 = vmatpush1.msra.mxu0 0.0
    %6087 = vmatprep.subr.mxu0 0.0
    %6088 = vmatpush1.msra.mxu0 0.0
    %6089 = vmatprep.subr.mxu0 0.0
    %6090 = vmatpush1.msra.mxu0 0.0
    %6091 = vmatprep.subr.mxu0 0.0
    %6092 = vmatpush1.msra.mxu0 0.0
    %6093 = vmatprep.subr.mxu0 0.0
    %6094 = vmatpush1.msra.mxu0 0.0
    %6095 = vmatprep.subr.mxu0 0.0
    %6096 = vmatpush1.msra.mxu0 0.0
    %6097 = vmatprep.subr.mxu0 0.0
    %6098 = vmatpush1.msra.mxu0 0.0
    %6099 = vmatprep.subr.mxu0 0.0
    %6100 = vmatpush1.msra.mxu0 0.0
    %6101 = vmatprep.subr.mxu0 0.0
    %6102 = vmatpush1.msra.mxu0 0.0
    %6103 = vmatprep.subr.mxu0 0.0
    %6104 = vmatpush1.msra.mxu0 0.0
    %6105 = vmatprep.subr.mxu0 0.0
    %6106 = vmatpush1.msra.mxu0 0.0
    %6107 = vmatprep.subr.mxu0 0.0
    %6108 = vmatpush1.msra.mxu0 0.0
    %6109 = vmatprep.subr.mxu0 0.0
    %6110 = vmatpush1.msra.mxu0 0.0
    %6111 = vmatprep.subr.mxu0 0.0
    %6112 = vmatpush1.msra.mxu0 0.0
    %6113 = vmatprep.subr.mxu0 0.0
    %6114 = vmatpush1.msra.mxu0 0.0
    %6115 = vmatprep.subr.mxu0 0.0
    %6116 = vmatpush1.msra.mxu0 0.0
    %6117 = vmatprep.mubr.f32.mxu0 0.0
    %6118 = vmatmul.mubr.f32.gmra.mrb[0].mxu0 %v5961
    %v6119 = vpop.f32.mrb[0].mxu0
    %v6120 = vadd.f32 0.0, %v6119
    %v6121 = vpop.f32.mrb[0].mxu0
    %6122 = vdwg.mxu0
    %6123 = vmatprep.subr.mxu0 0.0
    %6124 = vmatpush1.msra.mxu0 %v217
    %6125 = vmatprep.subr.mxu0 0.0
    %6126 = vmatpush1.msra.mxu0 %v218
    %6127 = vmatprep.subr.mxu0 0.0
    %6128 = vmatpush1.msra.mxu0 %v219
    %6129 = vmatprep.subr.mxu0 0.0
    %6130 = vmatpush1.msra.mxu0 %v220
    %6131 = vmatprep.subr.mxu0 0.0
    %6132 = vmatpush1.msra.mxu0 0.0
    %6133 = vmatprep.subr.mxu0 0.0
    %6134 = vmatpush1.msra.mxu0 0.0
    %6135 = vmatprep.subr.mxu0 0.0
    %6136 = vmatpush1.msra.mxu0 0.0
    %6137 = vmatprep.subr.mxu0 0.0
    %6138 = vmatpush1.msra.mxu0 0.0
    %6139 = vmatprep.subr.mxu0 0.0
    %6140 = vmatpush1.msra.mxu0 0.0
    %6141 = vmatprep.subr.mxu0 0.0
    %6142 = vmatpush1.msra.mxu0 0.0
    %6143 = vmatprep.subr.mxu0 0.0
    %6144 = vmatpush1.msra.mxu0 0.0
    %6145 = vmatprep.subr.mxu0 0.0
    %6146 = vmatpush1.msra.mxu0 0.0
    %6147 = vmatprep.subr.mxu0 0.0
    %6148 = vmatpush1.msra.mxu0 0.0
    %6149 = vmatprep.subr.mxu0 0.0
    %6150 = vmatpush1.msra.mxu0 0.0
    %6151 = vmatprep.subr.mxu0 0.0
    %6152 = vmatpush1.msra.mxu0 0.0
    %6153 = vmatprep.subr.mxu0 0.0
    %6154 = vmatpush1.msra.mxu0 0.0
    %6155 = vmatprep.subr.mxu0 0.0
    %6156 = vmatpush1.msra.mxu0 0.0
    %6157 = vmatprep.subr.mxu0 0.0
    %6158 = vmatpush1.msra.mxu0 0.0
    %6159 = vmatprep.subr.mxu0 0.0
    %6160 = vmatpush1.msra.mxu0 0.0
    %6161 = vmatprep.subr.mxu0 0.0
    %6162 = vmatpush1.msra.mxu0 0.0
    %6163 = vmatprep.subr.mxu0 0.0
    %6164 = vmatpush1.msra.mxu0 0.0
    %6165 = vmatprep.subr.mxu0 0.0
    %6166 = vmatpush1.msra.mxu0 0.0
    %6167 = vmatprep.subr.mxu0 0.0
    %6168 = vmatpush1.msra.mxu0 0.0
    %6169 = vmatprep.subr.mxu0 0.0
    %6170 = vmatpush1.msra.mxu0 0.0
    %6171 = vmatprep.subr.mxu0 0.0
    %6172 = vmatpush1.msra.mxu0 0.0
    %6173 = vmatprep.subr.mxu0 0.0
    %6174 = vmatpush1.msra.mxu0 0.0
    %6175 = vmatprep.subr.mxu0 0.0
    %6176 = vmatpush1.msra.mxu0 0.0
    %6177 = vmatprep.subr.mxu0 0.0
    %6178 = vmatpush1.msra.mxu0 0.0
    %6179 = vmatprep.subr.mxu0 0.0
    %6180 = vmatpush1.msra.mxu0 0.0
    %6181 = vmatprep.subr.mxu0 0.0
    %6182 = vmatpush1.msra.mxu0 0.0
    %6183 = vmatprep.subr.mxu0 0.0
    %6184 = vmatpush1.msra.mxu0 0.0
    %6185 = vmatprep.subr.mxu0 0.0
    %6186 = vmatpush1.msra.mxu0 0.0
    %6187 = vmatprep.mubr.f32.mxu0 0.0
    %6188 = vmatmul.mubr.f32.gmra.mrb[0].mxu0 %v5961
    %v6189 = vpop.f32.mrb[0].mxu0
    %v6190 = vadd.f32 %v328, %v6189
    %v6191 = vpop.f32.mrb[0].mxu0
    %6192 = vdwg.mxu0
    %v6194 = vsel %vm250, %v6052, 0
    %6196 = vmatprep.subr.mxu0 0.0
    %6197 = vmatpush1.msra.mxu0 %v234
    %6198 = vmatprep.subr.mxu0 0.0
    %6199 = vmatpush1.msra.mxu0 %v235
    %6200 = vmatprep.subr.mxu0 0.0
    %6201 = vmatpush1.msra.mxu0 %v236
    %6202 = vmatprep.subr.mxu0 0.0
    %6203 = vmatpush1.msra.mxu0 %v237
    %6204 = vmatprep.subr.mxu0 0.0
    %6205 = vmatpush1.msra.mxu0 0.0
    %6206 = vmatprep.subr.mxu0 0.0
    %6207 = vmatpush1.msra.mxu0 0.0
    %6208 = vmatprep.subr.mxu0 0.0
    %6209 = vmatpush1.msra.mxu0 0.0
    %6210 = vmatprep.subr.mxu0 0.0
    %6211 = vmatpush1.msra.mxu0 0.0
    %6212 = vmatprep.subr.mxu0 0.0
    %6213 = vmatpush1.msra.mxu0 0.0
    %6214 = vmatprep.subr.mxu0 0.0
    %6215 = vmatpush1.msra.mxu0 0.0
    %6216 = vmatprep.subr.mxu0 0.0
    %6217 = vmatpush1.msra.mxu0 0.0
    %6218 = vmatprep.subr.mxu0 0.0
    %6219 = vmatpush1.msra.mxu0 0.0
    %6220 = vmatprep.subr.mxu0 0.0
    %6221 = vmatpush1.msra.mxu0 0.0
    %6222 = vmatprep.subr.mxu0 0.0
    %6223 = vmatpush1.msra.mxu0 0.0
    %6224 = vmatprep.subr.mxu0 0.0
    %6225 = vmatpush1.msra.mxu0 0.0
    %6226 = vmatprep.subr.mxu0 0.0
    %6227 = vmatpush1.msra.mxu0 0.0
    %6228 = vmatprep.subr.mxu0 0.0
    %6229 = vmatpush1.msra.mxu0 0.0
    %6230 = vmatprep.subr.mxu0 0.0
    %6231 = vmatpush1.msra.mxu0 0.0
    %6232 = vmatprep.subr.mxu0 0.0
    %6233 = vmatpush1.msra.mxu0 0.0
    %6234 = vmatprep.subr.mxu0 0.0
    %6235 = vmatpush1.msra.mxu0 0.0
    %6236 = vmatprep.subr.mxu0 0.0
    %6237 = vmatpush1.msra.mxu0 0.0
    %6238 = vmatprep.subr.mxu0 0.0
    %6239 = vmatpush1.msra.mxu0 0.0
    %6240 = vmatprep.subr.mxu0 0.0
    %6241 = vmatpush1.msra.mxu0 0.0
    %6242 = vmatprep.subr.mxu0 0.0
    %6243 = vmatpush1.msra.mxu0 0.0
    %6244 = vmatprep.subr.mxu0 0.0
    %6245 = vmatpush1.msra.mxu0 0.0
    %6246 = vmatprep.subr.mxu0 0.0
    %6247 = vmatpush1.msra.mxu0 0.0
    %6248 = vmatprep.subr.mxu0 0.0
    %6249 = vmatpush1.msra.mxu0 0.0
    %6250 = vmatprep.subr.mxu0 0.0
    %6251 = vmatpush1.msra.mxu0 0.0
    %6252 = vmatprep.subr.mxu0 0.0
    %6253 = vmatpush1.msra.mxu0 0.0
    %6254 = vmatprep.subr.mxu0 0.0
    %6255 = vmatpush1.msra.mxu0 0.0
    %6256 = vmatprep.subr.mxu0 0.0
    %6257 = vmatpush1.msra.mxu0 0.0
    %6258 = vmatprep.subr.mxu0 0.0
    %6259 = vmatpush1.msra.mxu0 0.0
    %6260 = vmatprep.mubr.f32.mxu0 0.0
    %6261 = vmatmul.mubr.f32.gmra.mrb[0].mxu0 %v6194
    %v6262 = vpop.f32.mrb[0].mxu0
    %v6263 = vadd.f32 %v404, %v6262
    %v6264 = vpop.f32.mrb[0].mxu0
    %6265 = vdwg.mxu0
    %6266 = vset.pattern.permute.xlu0 6
    %6267 = vperm.xlu0 %6266, %v3579
    %v6268 = vpop.permute.xlu0 %6267
    %v6270 = vmul.f32 %v6268, %v190
    %v6271 = vadd.f32 %v6270, %v204
    %v6272 = vadd.f32 %v6271, %v6120
    %v6273 = vmul.f32 %v6268, %v197
    %v6274 = vadd.f32 %v6273, %v211
    %v6275 = vxor.u32 %v6272, 2147483648
    %v6276 = vmul.f32 %v6275, 1.442695
    %v6277 = vpow.pop %v6276
    %v6278 = vadd.f32 %v6277, 1.0
    %v6279 = vrcp.pop %v6278
    %v6280 = vmul.f32 1.0, %v6279
    %v6281 = vmul.f32 %v6280, %v6190
    %v6282 = vadd.f32 %v6274, %v6281
    %v6283 = vtanh.pop %v6282
    %v6284 = vsub.f32 %v5882, %v6283
    %6286 = vrot.lane.b32.xlu0 %v6284, 32
    %v6287 = vpop.permute.xlu0 %6286
    %v6289 = vmul.f32 %v6280, %v6287
    %6291 = vrot.lane.b32.xlu0 %v6289, 96
    %v6292 = vpop.permute.xlu0 %6291
    %v6294 = vadd.f32 %v6283, %v6292
    %6295 = vrot.lane.b32.xlu0 %v6052, 32
    %v6296 = vpop.permute.xlu0 %6295
    %v6298 = vsel %vm250, %v6294, %v6296
    %v6300 = vsel %vm519, %v6298, 0
    %6302 = vmatprep.subr.mxu0 0.0
    %6303 = vmatpush1.msra.mxu0 %v222
    %6304 = vmatprep.subr.mxu0 0.0
    %6305 = vmatpush1.msra.mxu0 %v223
    %6306 = vmatprep.subr.mxu0 0.0
    %6307 = vmatpush1.msra.mxu0 %v224
    %6308 = vmatprep.subr.mxu0 0.0
    %6309 = vmatpush1.msra.mxu0 %v225
    %6310 = vmatprep.subr.mxu0 0.0
    %6311 = vmatpush1.msra.mxu0 %v226
    %6312 = vmatprep.subr.mxu0 0.0
    %6313 = vmatpush1.msra.mxu0 %v227
    %6314 = vmatprep.subr.mxu0 0.0
    %6315 = vmatpush1.msra.mxu0 %v228
    %6316 = vmatprep.subr.mxu0 0.0
    %6317 = vmatpush1.msra.mxu0 %v229
    %6318 = vmatprep.subr.mxu0 0.0
    %6319 = vmatpush1.msra.mxu0 0.0
    %6320 = vmatprep.subr.mxu0 0.0
    %6321 = vmatpush1.msra.mxu0 0.0
    %6322 = vmatprep.subr.mxu0 0.0
    %6323 = vmatpush1.msra.mxu0 0.0
    %6324 = vmatprep.subr.mxu0 0.0
    %6325 = vmatpush1.msra.mxu0 0.0
    %6326 = vmatprep.subr.mxu0 0.0
    %6327 = vmatpush1.msra.mxu0 0.0
    %6328 = vmatprep.subr.mxu0 0.0
    %6329 = vmatpush1.msra.mxu0 0.0
    %6330 = vmatprep.subr.mxu0 0.0
    %6331 = vmatpush1.msra.mxu0 0.0
    %6332 = vmatprep.subr.mxu0 0.0
    %6333 = vmatpush1.msra.mxu0 0.0
    %6334 = vmatprep.subr.mxu0 0.0
    %6335 = vmatpush1.msra.mxu0 0.0
    %6336 = vmatprep.subr.mxu0 0.0
    %6337 = vmatpush1.msra.mxu0 0.0
    %6338 = vmatprep.subr.mxu0 0.0
    %6339 = vmatpush1.msra.mxu0 0.0
    %6340 = vmatprep.subr.mxu0 0.0
    %6341 = vmatpush1.msra.mxu0 0.0
    %6342 = vmatprep.subr.mxu0 0.0
    %6343 = vmatpush1.msra.mxu0 0.0
    %6344 = vmatprep.subr.mxu0 0.0
    %6345 = vmatpush1.msra.mxu0 0.0
    %6346 = vmatprep.subr.mxu0 0.0
    %6347 = vmatpush1.msra.mxu0 0.0
    %6348 = vmatprep.subr.mxu0 0.0
    %6349 = vmatpush1.msra.mxu0 0.0
    %6350 = vmatprep.subr.mxu0 0.0
    %6351 = vmatpush1.msra.mxu0 0.0
    %6352 = vmatprep.subr.mxu0 0.0
    %6353 = vmatpush1.msra.mxu0 0.0
    %6354 = vmatprep.subr.mxu0 0.0
    %6355 = vmatpush1.msra.mxu0 0.0
    %6356 = vmatprep.subr.mxu0 0.0
    %6357 = vmatpush1.msra.mxu0 0.0
    %6358 = vmatprep.subr.mxu0 0.0
    %6359 = vmatpush1.msra.mxu0 0.0
    %6360 = vmatprep.subr.mxu0 0.0
    %6361 = vmatpush1.msra.mxu0 0.0
    %6362 = vmatprep.subr.mxu0 0.0
    %6363 = vmatpush1.msra.mxu0 0.0
    %6364 = vmatprep.subr.mxu0 0.0
    %6365 = vmatpush1.msra.mxu0 0.0
    %6366 = vmatprep.mubr.f32.mxu0 0.0
    %6367 = vmatmul.mubr.f32.gmra.mrb[0].mxu0 %v6300
    %v6368 = vpop.f32.mrb[0].mxu0
    %v6369 = vadd.f32 %v517, %v6368
    %v6370 = vpop.f32.mrb[0].mxu0
    %6371 = vdwg.mxu0
    %v6373 = vsel %vm250, %v6294, 0
    %6375 = vmatprep.subr.mxu0 0.0
    %6376 = vmatpush1.msra.mxu0 %v230
    %6377 = vmatprep.subr.mxu0 0.0
    %6378 = vmatpush1.msra.mxu0 %v231
    %6379 = vmatprep.subr.mxu0 0.0
    %6380 = vmatpush1.msra.mxu0 %v232
    %6381 = vmatprep.subr.mxu0 0.0
    %6382 = vmatpush1.msra.mxu0 %v233
    %6383 = vmatprep.subr.mxu0 0.0
    %6384 = vmatpush1.msra.mxu0 0.0
    %6385 = vmatprep.subr.mxu0 0.0
    %6386 = vmatpush1.msra.mxu0 0.0
    %6387 = vmatprep.subr.mxu0 0.0
    %6388 = vmatpush1.msra.mxu0 0.0
    %6389 = vmatprep.subr.mxu0 0.0
    %6390 = vmatpush1.msra.mxu0 0.0
    %6391 = vmatprep.subr.mxu0 0.0
    %6392 = vmatpush1.msra.mxu0 0.0
    %6393 = vmatprep.subr.mxu0 0.0
    %6394 = vmatpush1.msra.mxu0 0.0
    %6395 = vmatprep.subr.mxu0 0.0
    %6396 = vmatpush1.msra.mxu0 0.0
    %6397 = vmatprep.subr.mxu0 0.0
    %6398 = vmatpush1.msra.mxu0 0.0
    %6399 = vmatprep.subr.mxu0 0.0
    %6400 = vmatpush1.msra.mxu0 0.0
    %6401 = vmatprep.subr.mxu0 0.0
    %6402 = vmatpush1.msra.mxu0 0.0
    %6403 = vmatprep.subr.mxu0 0.0
    %6404 = vmatpush1.msra.mxu0 0.0
    %6405 = vmatprep.subr.mxu0 0.0
    %6406 = vmatpush1.msra.mxu0 0.0
    %6407 = vmatprep.subr.mxu0 0.0
    %6408 = vmatpush1.msra.mxu0 0.0
    %6409 = vmatprep.subr.mxu0 0.0
    %6410 = vmatpush1.msra.mxu0 0.0
    %6411 = vmatprep.subr.mxu0 0.0
    %6412 = vmatpush1.msra.mxu0 0.0
    %6413 = vmatprep.subr.mxu0 0.0
    %6414 = vmatpush1.msra.mxu0 0.0
    %6415 = vmatprep.subr.mxu0 0.0
    %6416 = vmatpush1.msra.mxu0 0.0
    %6417 = vmatprep.subr.mxu0 0.0
    %6418 = vmatpush1.msra.mxu0 0.0
    %6419 = vmatprep.subr.mxu0 0.0
    %6420 = vmatpush1.msra.mxu0 0.0
    %6421 = vmatprep.subr.mxu0 0.0
    %6422 = vmatpush1.msra.mxu0 0.0
    %6423 = vmatprep.subr.mxu0 0.0
    %6424 = vmatpush1.msra.mxu0 0.0
    %6425 = vmatprep.subr.mxu0 0.0
    %6426 = vmatpush1.msra.mxu0 0.0
    %6427 = vmatprep.subr.mxu0 0.0
    %6428 = vmatpush1.msra.mxu0 0.0
    %6429 = vmatprep.subr.mxu0 0.0
    %6430 = vmatpush1.msra.mxu0 0.0
    %6431 = vmatprep.subr.mxu0 0.0
    %6432 = vmatpush1.msra.mxu0 0.0
    %6433 = vmatprep.subr.mxu0 0.0
    %6434 = vmatpush1.msra.mxu0 0.0
    %6435 = vmatprep.subr.mxu0 0.0
    %6436 = vmatpush1.msra.mxu0 0.0
    %6437 = vmatprep.subr.mxu0 0.0
    %6438 = vmatpush1.msra.mxu0 0.0
    %6439 = vmatprep.mubr.f32.mxu0 0.0
    %6440 = vmatmul.mubr.f32.gmra.mrb[0].mxu0 %v6373
    %v6441 = vpop.f32.mrb[0].mxu0
    %v6442 = vadd.f32 %v597, %v6441
    %v6443 = vpop.f32.mrb[0].mxu0
    %6444 = vdwg.mxu0
    %v6445 = vxor.u32 %v6369, 2147483648
    %v6446 = vmul.f32 %v6445, 1.442695
    %v6447 = vpow.pop %v6446
    %v6448 = vadd.f32 %v6447, 1.0
    %v6449 = vrcp.pop %v6448
    %v6450 = vmul.f32 1.0, %v6449
    %v6451 = vmul.f32 %v6450, %v6263
    %v6452 = vadd.f32 %v6442, %v6451
    %v6453 = vtanh.pop %v6452
    %v6454 = vsub.f32 %v6052, %v6453
    %6456 = vrot.lane.b32.xlu0 %v6454, 32
    %v6457 = vpop.permute.xlu0 %6456
    %v6459 = vmul.f32 %v6450, %v6457
    %6461 = vrot.lane.b32.xlu0 %v6459, 96
    %v6462 = vpop.permute.xlu0 %6461
    %v6464 = vadd.f32 %v6453, %v6462
    %6465 = vmatprep.subr.mxu0 0.0
    %6466 = vmatpush1.msra.mxu0 %v213
    %6467 = vmatprep.subr.mxu0 0.0
    %6468 = vmatpush1.msra.mxu0 %v214
    %6469 = vmatprep.subr.mxu0 0.0
    %6470 = vmatpush1.msra.mxu0 %v215
    %6471 = vmatprep.subr.mxu0 0.0
    %6472 = vmatpush1.msra.mxu0 %v216
    %6473 = vmatprep.subr.mxu0 0.0
    %6474 = vmatpush1.msra.mxu0 0.0
    %6475 = vmatprep.subr.mxu0 0.0
    %6476 = vmatpush1.msra.mxu0 0.0
    %6477 = vmatprep.subr.mxu0 0.0
    %6478 = vmatpush1.msra.mxu0 0.0
    %6479 = vmatprep.subr.mxu0 0.0
    %6480 = vmatpush1.msra.mxu0 0.0
    %6481 = vmatprep.subr.mxu0 0.0
    %6482 = vmatpush1.msra.mxu0 0.0
    %6483 = vmatprep.subr.mxu0 0.0
    %6484 = vmatpush1.msra.mxu0 0.0
    %6485 = vmatprep.subr.mxu0 0.0
    %6486 = vmatpush1.msra.mxu0 0.0
    %6487 = vmatprep.subr.mxu0 0.0
    %6488 = vmatpush1.msra.mxu0 0.0
    %6489 = vmatprep.subr.mxu0 0.0
    %6490 = vmatpush1.msra.mxu0 0.0
    %6491 = vmatprep.subr.mxu0 0.0
    %6492 = vmatpush1.msra.mxu0 0.0
    %6493 = vmatprep.subr.mxu0 0.0
    %6494 = vmatpush1.msra.mxu0 0.0
    %6495 = vmatprep.subr.mxu0 0.0
    %6496 = vmatpush1.msra.mxu0 0.0
    %6497 = vmatprep.subr.mxu0 0.0
    %6498 = vmatpush1.msra.mxu0 0.0
    %6499 = vmatprep.subr.mxu0 0.0
    %6500 = vmatpush1.msra.mxu0 0.0
    %6501 = vmatprep.subr.mxu0 0.0
    %6502 = vmatpush1.msra.mxu0 0.0
    %6503 = vmatprep.subr.mxu0 0.0
    %6504 = vmatpush1.msra.mxu0 0.0
    %6505 = vmatprep.subr.mxu0 0.0
    %6506 = vmatpush1.msra.mxu0 0.0
    %6507 = vmatprep.subr.mxu0 0.0
    %6508 = vmatpush1.msra.mxu0 0.0
    %6509 = vmatprep.subr.mxu0 0.0
    %6510 = vmatpush1.msra.mxu0 0.0
    %6511 = vmatprep.subr.mxu0 0.0
    %6512 = vmatpush1.msra.mxu0 0.0
    %6513 = vmatprep.subr.mxu0 0.0
    %6514 = vmatpush1.msra.mxu0 0.0
    %6515 = vmatprep.subr.mxu0 0.0
    %6516 = vmatpush1.msra.mxu0 0.0
    %6517 = vmatprep.subr.mxu0 0.0
    %6518 = vmatpush1.msra.mxu0 0.0
    %6519 = vmatprep.subr.mxu0 0.0
    %6520 = vmatpush1.msra.mxu0 0.0
    %6521 = vmatprep.subr.mxu0 0.0
    %6522 = vmatpush1.msra.mxu0 0.0
    %6523 = vmatprep.subr.mxu0 0.0
    %6524 = vmatpush1.msra.mxu0 0.0
    %6525 = vmatprep.subr.mxu0 0.0
    %6526 = vmatpush1.msra.mxu0 0.0
    %6527 = vmatprep.subr.mxu0 0.0
    %6528 = vmatpush1.msra.mxu0 0.0
    %6529 = vmatprep.mubr.f32.mxu0 0.0
    %6530 = vmatmul.mubr.f32.gmra.mrb[0].mxu0 %v6373
    %v6531 = vpop.f32.mrb[0].mxu0
    %v6532 = vadd.f32 0.0, %v6531
    %v6533 = vpop.f32.mrb[0].mxu0
    %6534 = vdwg.mxu0
    %6535 = vmatprep.subr.mxu0 0.0
    %6536 = vmatpush1.msra.mxu0 %v217
    %6537 = vmatprep.subr.mxu0 0.0
    %6538 = vmatpush1.msra.mxu0 %v218
    %6539 = vmatprep.subr.mxu0 0.0
    %6540 = vmatpush1.msra.mxu0 %v219
    %6541 = vmatprep.subr.mxu0 0.0
    %6542 = vmatpush1.msra.mxu0 %v220
    %6543 = vmatprep.subr.mxu0 0.0
    %6544 = vmatpush1.msra.mxu0 0.0
    %6545 = vmatprep.subr.mxu0 0.0
    %6546 = vmatpush1.msra.mxu0 0.0
    %6547 = vmatprep.subr.mxu0 0.0
    %6548 = vmatpush1.msra.mxu0 0.0
    %6549 = vmatprep.subr.mxu0 0.0
    %6550 = vmatpush1.msra.mxu0 0.0
    %6551 = vmatprep.subr.mxu0 0.0
    %6552 = vmatpush1.msra.mxu0 0.0
    %6553 = vmatprep.subr.mxu0 0.0
    %6554 = vmatpush1.msra.mxu0 0.0
    %6555 = vmatprep.subr.mxu0 0.0
    %6556 = vmatpush1.msra.mxu0 0.0
    %6557 = vmatprep.subr.mxu0 0.0
    %6558 = vmatpush1.msra.mxu0 0.0
    %6559 = vmatprep.subr.mxu0 0.0
    %6560 = vmatpush1.msra.mxu0 0.0
    %6561 = vmatprep.subr.mxu0 0.0
    %6562 = vmatpush1.msra.mxu0 0.0
    %6563 = vmatprep.subr.mxu0 0.0
    %6564 = vmatpush1.msra.mxu0 0.0
    %6565 = vmatprep.subr.mxu0 0.0
    %6566 = vmatpush1.msra.mxu0 0.0
    %6567 = vmatprep.subr.mxu0 0.0
    %6568 = vmatpush1.msra.mxu0 0.0
    %6569 = vmatprep.subr.mxu0 0.0
    %6570 = vmatpush1.msra.mxu0 0.0
    %6571 = vmatprep.subr.mxu0 0.0
    %6572 = vmatpush1.msra.mxu0 0.0
    %6573 = vmatprep.subr.mxu0 0.0
    %6574 = vmatpush1.msra.mxu0 0.0
    %6575 = vmatprep.subr.mxu0 0.0
    %6576 = vmatpush1.msra.mxu0 0.0
    %6577 = vmatprep.subr.mxu0 0.0
    %6578 = vmatpush1.msra.mxu0 0.0
    %6579 = vmatprep.subr.mxu0 0.0
    %6580 = vmatpush1.msra.mxu0 0.0
    %6581 = vmatprep.subr.mxu0 0.0
    %6582 = vmatpush1.msra.mxu0 0.0
    %6583 = vmatprep.subr.mxu0 0.0
    %6584 = vmatpush1.msra.mxu0 0.0
    %6585 = vmatprep.subr.mxu0 0.0
    %6586 = vmatpush1.msra.mxu0 0.0
    %6587 = vmatprep.subr.mxu0 0.0
    %6588 = vmatpush1.msra.mxu0 0.0
    %6589 = vmatprep.subr.mxu0 0.0
    %6590 = vmatpush1.msra.mxu0 0.0
    %6591 = vmatprep.subr.mxu0 0.0
    %6592 = vmatpush1.msra.mxu0 0.0
    %6593 = vmatprep.subr.mxu0 0.0
    %6594 = vmatpush1.msra.mxu0 0.0
    %6595 = vmatprep.subr.mxu0 0.0
    %6596 = vmatpush1.msra.mxu0 0.0
    %6597 = vmatprep.subr.mxu0 0.0
    %6598 = vmatpush1.msra.mxu0 0.0
    %6599 = vmatprep.mubr.f32.mxu0 0.0
    %6600 = vmatmul.mubr.f32.gmra.mrb[0].mxu0 %v6373
    %v6601 = vpop.f32.mrb[0].mxu0
    %v6602 = vadd.f32 %v328, %v6601
    %v6603 = vpop.f32.mrb[0].mxu0
    %6604 = vdwg.mxu0
    %v6606 = vsel %vm250, %v6464, 0
    %6608 = vmatprep.subr.mxu0 0.0
    %6609 = vmatpush1.msra.mxu0 %v234
    %6610 = vmatprep.subr.mxu0 0.0
    %6611 = vmatpush1.msra.mxu0 %v235
    %6612 = vmatprep.subr.mxu0 0.0
    %6613 = vmatpush1.msra.mxu0 %v236
    %6614 = vmatprep.subr.mxu0 0.0
    %6615 = vmatpush1.msra.mxu0 %v237
    %6616 = vmatprep.subr.mxu0 0.0
    %6617 = vmatpush1.msra.mxu0 0.0
    %6618 = vmatprep.subr.mxu0 0.0
    %6619 = vmatpush1.msra.mxu0 0.0
    %6620 = vmatprep.subr.mxu0 0.0
    %6621 = vmatpush1.msra.mxu0 0.0
    %6622 = vmatprep.subr.mxu0 0.0
    %6623 = vmatpush1.msra.mxu0 0.0
    %6624 = vmatprep.subr.mxu0 0.0
    %6625 = vmatpush1.msra.mxu0 0.0
    %6626 = vmatprep.subr.mxu0 0.0
    %6627 = vmatpush1.msra.mxu0 0.0
    %6628 = vmatprep.subr.mxu0 0.0
    %6629 = vmatpush1.msra.mxu0 0.0
    %6630 = vmatprep.subr.mxu0 0.0
    %6631 = vmatpush1.msra.mxu0 0.0
    %6632 = vmatprep.subr.mxu0 0.0
    %6633 = vmatpush1.msra.mxu0 0.0
    %6634 = vmatprep.subr.mxu0 0.0
    %6635 = vmatpush1.msra.mxu0 0.0
    %6636 = vmatprep.subr.mxu0 0.0
    %6637 = vmatpush1.msra.mxu0 0.0
    %6638 = vmatprep.subr.mxu0 0.0
    %6639 = vmatpush1.msra.mxu0 0.0
    %6640 = vmatprep.subr.mxu0 0.0
    %6641 = vmatpush1.msra.mxu0 0.0
    %6642 = vmatprep.subr.mxu0 0.0
    %6643 = vmatpush1.msra.mxu0 0.0
    %6644 = vmatprep.subr.mxu0 0.0
    %6645 = vmatpush1.msra.mxu0 0.0
    %6646 = vmatprep.subr.mxu0 0.0
    %6647 = vmatpush1.msra.mxu0 0.0
    %6648 = vmatprep.subr.mxu0 0.0
    %6649 = vmatpush1.msra.mxu0 0.0
    %6650 = vmatprep.subr.mxu0 0.0
    %6651 = vmatpush1.msra.mxu0 0.0
    %6652 = vmatprep.subr.mxu0 0.0
    %6653 = vmatpush1.msra.mxu0 0.0
    %6654 = vmatprep.subr.mxu0 0.0
    %6655 = vmatpush1.msra.mxu0 0.0
    %6656 = vmatprep.subr.mxu0 0.0
    %6657 = vmatpush1.msra.mxu0 0.0
    %6658 = vmatprep.subr.mxu0 0.0
    %6659 = vmatpush1.msra.mxu0 0.0
    %6660 = vmatprep.subr.mxu0 0.0
    %6661 = vmatpush1.msra.mxu0 0.0
    %6662 = vmatprep.subr.mxu0 0.0
    %6663 = vmatpush1.msra.mxu0 0.0
    %6664 = vmatprep.subr.mxu0 0.0
    %6665 = vmatpush1.msra.mxu0 0.0
    %6666 = vmatprep.subr.mxu0 0.0
    %6667 = vmatpush1.msra.mxu0 0.0
    %6668 = vmatprep.subr.mxu0 0.0
    %6669 = vmatpush1.msra.mxu0 0.0
    %6670 = vmatprep.subr.mxu0 0.0
    %6671 = vmatpush1.msra.mxu0 0.0
    %6672 = vmatprep.mubr.f32.mxu0 0.0
    %6673 = vmatmul.mubr.f32.gmra.mrb[0].mxu0 %v6606
    %v6674 = vpop.f32.mrb[0].mxu0
    %v6675 = vadd.f32 %v404, %v6674
    %v6676 = vpop.f32.mrb[0].mxu0
    %6677 = vdwg.mxu0
    %6678 = vset.pattern.permute.xlu0 7
    %6679 = vperm.xlu0 %6678, %v3579
    %v6680 = vpop.permute.xlu0 %6679
    %v6682 = vmul.f32 %v6680, %v190
    %v6683 = vadd.f32 %v6682, %v204
    %v6684 = vadd.f32 %v6683, %v6532
    %v6685 = vmul.f32 %v6680, %v197
    %v6686 = vadd.f32 %v6685, %v211
    %v6687 = vxor.u32 %v6684, 2147483648
    %v6688 = vmul.f32 %v6687, 1.442695
    %v6689 = vpow.pop %v6688
    %v6690 = vadd.f32 %v6689, 1.0
    %v6691 = vrcp.pop %v6690
    %v6692 = vmul.f32 1.0, %v6691
    %v6693 = vmul.f32 %v6692, %v6602
    %v6694 = vadd.f32 %v6686, %v6693
    %v6695 = vtanh.pop %v6694
    %v6696 = vsub.f32 %v6294, %v6695
    %6698 = vrot.lane.b32.xlu0 %v6696, 32
    %v6699 = vpop.permute.xlu0 %6698
    %v6701 = vmul.f32 %v6692, %v6699
    %6703 = vrot.lane.b32.xlu0 %v6701, 96
    %v6704 = vpop.permute.xlu0 %6703
    %v6706 = vadd.f32 %v6695, %v6704
    %6707 = vrot.lane.b32.xlu0 %v6464, 32
    %v6708 = vpop.permute.xlu0 %6707
    %v6710 = vsel %vm250, %v6706, %v6708
    %v6712 = vsel %vm519, %v6710, 0
    %6714 = vmatprep.subr.mxu0 0.0
    %6715 = vmatpush1.msra.mxu0 %v222
    %6716 = vmatprep.subr.mxu0 0.0
    %6717 = vmatpush1.msra.mxu0 %v223
    %6718 = vmatprep.subr.mxu0 0.0
    %6719 = vmatpush1.msra.mxu0 %v224
    %6720 = vmatprep.subr.mxu0 0.0
    %6721 = vmatpush1.msra.mxu0 %v225
    %6722 = vmatprep.subr.mxu0 0.0
    %6723 = vmatpush1.msra.mxu0 %v226
    %6724 = vmatprep.subr.mxu0 0.0
    %6725 = vmatpush1.msra.mxu0 %v227
    %6726 = vmatprep.subr.mxu0 0.0
    %6727 = vmatpush1.msra.mxu0 %v228
    %6728 = vmatprep.subr.mxu0 0.0
    %6729 = vmatpush1.msra.mxu0 %v229
    %6730 = vmatprep.subr.mxu0 0.0
    %6731 = vmatpush1.msra.mxu0 0.0
    %6732 = vmatprep.subr.mxu0 0.0
    %6733 = vmatpush1.msra.mxu0 0.0
    %6734 = vmatprep.subr.mxu0 0.0
    %6735 = vmatpush1.msra.mxu0 0.0
    %6736 = vmatprep.subr.mxu0 0.0
    %6737 = vmatpush1.msra.mxu0 0.0
    %6738 = vmatprep.subr.mxu0 0.0
    %6739 = vmatpush1.msra.mxu0 0.0
    %6740 = vmatprep.subr.mxu0 0.0
    %6741 = vmatpush1.msra.mxu0 0.0
    %6742 = vmatprep.subr.mxu0 0.0
    %6743 = vmatpush1.msra.mxu0 0.0
    %6744 = vmatprep.subr.mxu0 0.0
    %6745 = vmatpush1.msra.mxu0 0.0
    %6746 = vmatprep.subr.mxu0 0.0
    %6747 = vmatpush1.msra.mxu0 0.0
    %6748 = vmatprep.subr.mxu0 0.0
    %6749 = vmatpush1.msra.mxu0 0.0
    %6750 = vmatprep.subr.mxu0 0.0
    %6751 = vmatpush1.msra.mxu0 0.0
    %6752 = vmatprep.subr.mxu0 0.0
    %6753 = vmatpush1.msra.mxu0 0.0
    %6754 = vmatprep.subr.mxu0 0.0
    %6755 = vmatpush1.msra.mxu0 0.0
    %6756 = vmatprep.subr.mxu0 0.0
    %6757 = vmatpush1.msra.mxu0 0.0
    %6758 = vmatprep.subr.mxu0 0.0
    %6759 = vmatpush1.msra.mxu0 0.0
    %6760 = vmatprep.subr.mxu0 0.0
    %6761 = vmatpush1.msra.mxu0 0.0
    %6762 = vmatprep.subr.mxu0 0.0
    %6763 = vmatpush1.msra.mxu0 0.0
    %6764 = vmatprep.subr.mxu0 0.0
    %6765 = vmatpush1.msra.mxu0 0.0
    %6766 = vmatprep.subr.mxu0 0.0
    %6767 = vmatpush1.msra.mxu0 0.0
    %6768 = vmatprep.subr.mxu0 0.0
    %6769 = vmatpush1.msra.mxu0 0.0
    %6770 = vmatprep.subr.mxu0 0.0
    %6771 = vmatpush1.msra.mxu0 0.0
    %6772 = vmatprep.subr.mxu0 0.0
    %6773 = vmatpush1.msra.mxu0 0.0
    %6774 = vmatprep.subr.mxu0 0.0
    %6775 = vmatpush1.msra.mxu0 0.0
    %6776 = vmatprep.subr.mxu0 0.0
    %6777 = vmatpush1.msra.mxu0 0.0
    %6778 = vmatprep.mubr.f32.mxu0 0.0
    %6779 = vmatmul.mubr.f32.gmra.mrb[0].mxu0 %v6712
    %v6780 = vpop.f32.mrb[0].mxu0
    %v6781 = vadd.f32 %v517, %v6780
    %v6782 = vpop.f32.mrb[0].mxu0
    %6783 = vdwg.mxu0
    %v6785 = vsel %vm250, %v6706, 0
    %6787 = vmatprep.subr.mxu0 0.0
    %6788 = vmatpush1.msra.mxu0 %v230
    %6789 = vmatprep.subr.mxu0 0.0
    %6790 = vmatpush1.msra.mxu0 %v231
    %6791 = vmatprep.subr.mxu0 0.0
    %6792 = vmatpush1.msra.mxu0 %v232
    %6793 = vmatprep.subr.mxu0 0.0
    %6794 = vmatpush1.msra.mxu0 %v233
    %6795 = vmatprep.subr.mxu0 0.0
    %6796 = vmatpush1.msra.mxu0 0.0
    %6797 = vmatprep.subr.mxu0 0.0
    %6798 = vmatpush1.msra.mxu0 0.0
    %6799 = vmatprep.subr.mxu0 0.0
    %6800 = vmatpush1.msra.mxu0 0.0
    %6801 = vmatprep.subr.mxu0 0.0
    %6802 = vmatpush1.msra.mxu0 0.0
    %6803 = vmatprep.subr.mxu0 0.0
    %6804 = vmatpush1.msra.mxu0 0.0
    %6805 = vmatprep.subr.mxu0 0.0
    %6806 = vmatpush1.msra.mxu0 0.0
    %6807 = vmatprep.subr.mxu0 0.0
    %6808 = vmatpush1.msra.mxu0 0.0
    %6809 = vmatprep.subr.mxu0 0.0
    %6810 = vmatpush1.msra.mxu0 0.0
    %6811 = vmatprep.subr.mxu0 0.0
    %6812 = vmatpush1.msra.mxu0 0.0
    %6813 = vmatprep.subr.mxu0 0.0
    %6814 = vmatpush1.msra.mxu0 0.0
    %6815 = vmatprep.subr.mxu0 0.0
    %6816 = vmatpush1.msra.mxu0 0.0
    %6817 = vmatprep.subr.mxu0 0.0
    %6818 = vmatpush1.msra.mxu0 0.0
    %6819 = vmatprep.subr.mxu0 0.0
    %6820 = vmatpush1.msra.mxu0 0.0
    %6821 = vmatprep.subr.mxu0 0.0
    %6822 = vmatpush1.msra.mxu0 0.0
    %6823 = vmatprep.subr.mxu0 0.0
    %6824 = vmatpush1.msra.mxu0 0.0
    %6825 = vmatprep.subr.mxu0 0.0
    %6826 = vmatpush1.msra.mxu0 0.0
    %6827 = vmatprep.subr.mxu0 0.0
    %6828 = vmatpush1.msra.mxu0 0.0
    %6829 = vmatprep.subr.mxu0 0.0
    %6830 = vmatpush1.msra.mxu0 0.0
    %6831 = vmatprep.subr.mxu0 0.0
    %6832 = vmatpush1.msra.mxu0 0.0
    %6833 = vmatprep.subr.mxu0 0.0
    %6834 = vmatpush1.msra.mxu0 0.0
    %6835 = vmatprep.subr.mxu0 0.0
    %6836 = vmatpush1.msra.mxu0 0.0
    %6837 = vmatprep.subr.mxu0 0.0
    %6838 = vmatpush1.msra.mxu0 0.0
    %6839 = vmatprep.subr.mxu0 0.0
    %6840 = vmatpush1.msra.mxu0 0.0
    %6841 = vmatprep.subr.mxu0 0.0
    %6842 = vmatpush1.msra.mxu0 0.0
    %6843 = vmatprep.subr.mxu0 0.0
    %6844 = vmatpush1.msra.mxu0 0.0
    %6845 = vmatprep.subr.mxu0 0.0
    %6846 = vmatpush1.msra.mxu0 0.0
    %6847 = vmatprep.subr.mxu0 0.0
    %6848 = vmatpush1.msra.mxu0 0.0
    %6849 = vmatprep.subr.mxu0 0.0
    %6850 = vmatpush1.msra.mxu0 0.0
    %6851 = vmatprep.mubr.f32.mxu0 0.0
    %6852 = vmatmul.mubr.f32.gmra.mrb[0].mxu0 %v6785
    %v6853 = vpop.f32.mrb[0].mxu0
    %v6854 = vadd.f32 %v597, %v6853
    %v6855 = vpop.f32.mrb[0].mxu0
    %6856 = vdwg.mxu0
    %v6857 = vxor.u32 %v6781, 2147483648
    %v6858 = vmul.f32 %v6857, 1.442695
    %v6859 = vpow.pop %v6858
    %v6860 = vadd.f32 %v6859, 1.0
    %v6861 = vrcp.pop %v6860
    %v6862 = vmul.f32 1.0, %v6861
    %v6863 = vmul.f32 %v6862, %v6675
    %v6864 = vadd.f32 %v6854, %v6863
    %v6865 = vtanh.pop %v6864
    %v6866 = vsub.f32 %v6464, %v6865
    %6868 = vrot.lane.b32.xlu0 %v6866, 32
    %v6869 = vpop.permute.xlu0 %6868
    %v6871 = vmul.f32 %v6862, %v6869
    %6873 = vrot.lane.b32.xlu0 %v6871, 96
    %v6874 = vpop.permute.xlu0 %6873
    %v6876 = vadd.f32 %v6865, %v6874
    %6877 = vst.msk [vmem:[#allocation2 + $0x2] sm:$0x3] %vm3576, %v6876
    %s6878 = scalar_lea.vmem %s0, 4
    %v6879 = vld [vmem:[%s6878] sm:$0x3]
    %6880 = vmatprep.subr.mxu0 0.0
    %6881 = vmatpush1.msra.mxu0 %v213
    %6882 = vmatprep.subr.mxu0 0.0
    %6883 = vmatpush1.msra.mxu0 %v214
    %6884 = vmatprep.subr.mxu0 0.0
    %6885 = vmatpush1.msra.mxu0 %v215
    %6886 = vmatprep.subr.mxu0 0.0
    %6887 = vmatpush1.msra.mxu0 %v216
    %6888 = vmatprep.subr.mxu0 0.0
    %6889 = vmatpush1.msra.mxu0 0.0
    %6890 = vmatprep.subr.mxu0 0.0
    %6891 = vmatpush1.msra.mxu0 0.0
    %6892 = vmatprep.subr.mxu0 0.0
    %6893 = vmatpush1.msra.mxu0 0.0
    %6894 = vmatprep.subr.mxu0 0.0
    %6895 = vmatpush1.msra.mxu0 0.0
    %6896 = vmatprep.subr.mxu0 0.0
    %6897 = vmatpush1.msra.mxu0 0.0
    %6898 = vmatprep.subr.mxu0 0.0
    %6899 = vmatpush1.msra.mxu0 0.0
    %6900 = vmatprep.subr.mxu0 0.0
    %6901 = vmatpush1.msra.mxu0 0.0
    %6902 = vmatprep.subr.mxu0 0.0
    %6903 = vmatpush1.msra.mxu0 0.0
    %6904 = vmatprep.subr.mxu0 0.0
    %6905 = vmatpush1.msra.mxu0 0.0
    %6906 = vmatprep.subr.mxu0 0.0
    %6907 = vmatpush1.msra.mxu0 0.0
    %6908 = vmatprep.subr.mxu0 0.0
    %6909 = vmatpush1.msra.mxu0 0.0
    %6910 = vmatprep.subr.mxu0 0.0
    %6911 = vmatpush1.msra.mxu0 0.0
    %6912 = vmatprep.subr.mxu0 0.0
    %6913 = vmatpush1.msra.mxu0 0.0
    %6914 = vmatprep.subr.mxu0 0.0
    %6915 = vmatpush1.msra.mxu0 0.0
    %6916 = vmatprep.subr.mxu0 0.0
    %6917 = vmatpush1.msra.mxu0 0.0
    %6918 = vmatprep.subr.mxu0 0.0
    %6919 = vmatpush1.msra.mxu0 0.0
    %6920 = vmatprep.subr.mxu0 0.0
    %6921 = vmatpush1.msra.mxu0 0.0
    %6922 = vmatprep.subr.mxu0 0.0
    %6923 = vmatpush1.msra.mxu0 0.0
    %6924 = vmatprep.subr.mxu0 0.0
    %6925 = vmatpush1.msra.mxu0 0.0
    %6926 = vmatprep.subr.mxu0 0.0
    %6927 = vmatpush1.msra.mxu0 0.0
    %6928 = vmatprep.subr.mxu0 0.0
    %6929 = vmatpush1.msra.mxu0 0.0
    %6930 = vmatprep.subr.mxu0 0.0
    %6931 = vmatpush1.msra.mxu0 0.0
    %6932 = vmatprep.subr.mxu0 0.0
    %6933 = vmatpush1.msra.mxu0 0.0
    %6934 = vmatprep.subr.mxu0 0.0
    %6935 = vmatpush1.msra.mxu0 0.0
    %6936 = vmatprep.subr.mxu0 0.0
    %6937 = vmatpush1.msra.mxu0 0.0
    %6938 = vmatprep.subr.mxu0 0.0
    %6939 = vmatpush1.msra.mxu0 0.0
    %6940 = vmatprep.subr.mxu0 0.0
    %6941 = vmatpush1.msra.mxu0 0.0
    %6942 = vmatprep.subr.mxu0 0.0
    %6943 = vmatpush1.msra.mxu0 0.0
    %6944 = vmatprep.mubr.f32.mxu0 0.0
    %6945 = vmatmul.mubr.f32.gmra.mrb[0].mxu0 %v6785
    %v6946 = vpop.f32.mrb[0].mxu0
    %v6947 = vadd.f32 0.0, %v6946
    %v6948 = vpop.f32.mrb[0].mxu0
    %6949 = vdwg.mxu0
    %6950 = vmatprep.subr.mxu0 0.0
    %6951 = vmatpush1.msra.mxu0 %v217
    %6952 = vmatprep.subr.mxu0 0.0
    %6953 = vmatpush1.msra.mxu0 %v218
    %6954 = vmatprep.subr.mxu0 0.0
    %6955 = vmatpush1.msra.mxu0 %v219
    %6956 = vmatprep.subr.mxu0 0.0
    %6957 = vmatpush1.msra.mxu0 %v220
    %6958 = vmatprep.subr.mxu0 0.0
    %6959 = vmatpush1.msra.mxu0 0.0
    %6960 = vmatprep.subr.mxu0 0.0
    %6961 = vmatpush1.msra.mxu0 0.0
    %6962 = vmatprep.subr.mxu0 0.0
    %6963 = vmatpush1.msra.mxu0 0.0
    %6964 = vmatprep.subr.mxu0 0.0
    %6965 = vmatpush1.msra.mxu0 0.0
    %6966 = vmatprep.subr.mxu0 0.0
    %6967 = vmatpush1.msra.mxu0 0.0
    %6968 = vmatprep.subr.mxu0 0.0
    %6969 = vmatpush1.msra.mxu0 0.0
    %6970 = vmatprep.subr.mxu0 0.0
    %6971 = vmatpush1.msra.mxu0 0.0
    %6972 = vmatprep.subr.mxu0 0.0
    %6973 = vmatpush1.msra.mxu0 0.0
    %6974 = vmatprep.subr.mxu0 0.0
    %6975 = vmatpush1.msra.mxu0 0.0
    %6976 = vmatprep.subr.mxu0 0.0
    %6977 = vmatpush1.msra.mxu0 0.0
    %6978 = vmatprep.subr.mxu0 0.0
    %6979 = vmatpush1.msra.mxu0 0.0
    %6980 = vmatprep.subr.mxu0 0.0
    %6981 = vmatpush1.msra.mxu0 0.0
    %6982 = vmatprep.subr.mxu0 0.0
    %6983 = vmatpush1.msra.mxu0 0.0
    %6984 = vmatprep.subr.mxu0 0.0
    %6985 = vmatpush1.msra.mxu0 0.0
    %6986 = vmatprep.subr.mxu0 0.0
    %6987 = vmatpush1.msra.mxu0 0.0
    %6988 = vmatprep.subr.mxu0 0.0
    %6989 = vmatpush1.msra.mxu0 0.0
    %6990 = vmatprep.subr.mxu0 0.0
    %6991 = vmatpush1.msra.mxu0 0.0
    %6992 = vmatprep.subr.mxu0 0.0
    %6993 = vmatpush1.msra.mxu0 0.0
    %6994 = vmatprep.subr.mxu0 0.0
    %6995 = vmatpush1.msra.mxu0 0.0
    %6996 = vmatprep.subr.mxu0 0.0
    %6997 = vmatpush1.msra.mxu0 0.0
    %6998 = vmatprep.subr.mxu0 0.0
    %6999 = vmatpush1.msra.mxu0 0.0
    %7000 = vmatprep.subr.mxu0 0.0
    %7001 = vmatpush1.msra.mxu0 0.0
    %7002 = vmatprep.subr.mxu0 0.0
    %7003 = vmatpush1.msra.mxu0 0.0
    %7004 = vmatprep.subr.mxu0 0.0
    %7005 = vmatpush1.msra.mxu0 0.0
    %7006 = vmatprep.subr.mxu0 0.0
    %7007 = vmatpush1.msra.mxu0 0.0
    %7008 = vmatprep.subr.mxu0 0.0
    %7009 = vmatpush1.msra.mxu0 0.0
    %7010 = vmatprep.subr.mxu0 0.0
    %7011 = vmatpush1.msra.mxu0 0.0
    %7012 = vmatprep.subr.mxu0 0.0
    %7013 = vmatpush1.msra.mxu0 0.0
    %7014 = vmatprep.mubr.f32.mxu0 0.0
    %7015 = vmatmul.mubr.f32.gmra.mrb[0].mxu0 %v6785
    %v7016 = vpop.f32.mrb[0].mxu0
    %v7017 = vadd.f32 %v328, %v7016
    %v7018 = vpop.f32.mrb[0].mxu0
    %7019 = vdwg.mxu0
    %v7021 = vsel %vm250, %v6876, 0
    %7023 = vmatprep.subr.mxu0 0.0
    %7024 = vmatpush1.msra.mxu0 %v234
    %7025 = vmatprep.subr.mxu0 0.0
    %7026 = vmatpush1.msra.mxu0 %v235
    %7027 = vmatprep.subr.mxu0 0.0
    %7028 = vmatpush1.msra.mxu0 %v236
    %7029 = vmatprep.subr.mxu0 0.0
    %7030 = vmatpush1.msra.mxu0 %v237
    %7031 = vmatprep.subr.mxu0 0.0
    %7032 = vmatpush1.msra.mxu0 0.0
    %7033 = vmatprep.subr.mxu0 0.0
    %7034 = vmatpush1.msra.mxu0 0.0
    %7035 = vmatprep.subr.mxu0 0.0
    %7036 = vmatpush1.msra.mxu0 0.0
    %7037 = vmatprep.subr.mxu0 0.0
    %7038 = vmatpush1.msra.mxu0 0.0
    %7039 = vmatprep.subr.mxu0 0.0
    %7040 = vmatpush1.msra.mxu0 0.0
    %7041 = vmatprep.subr.mxu0 0.0
    %7042 = vmatpush1.msra.mxu0 0.0
    %7043 = vmatprep.subr.mxu0 0.0
    %7044 = vmatpush1.msra.mxu0 0.0
    %7045 = vmatprep.subr.mxu0 0.0
    %7046 = vmatpush1.msra.mxu0 0.0
    %7047 = vmatprep.subr.mxu0 0.0
    %7048 = vmatpush1.msra.mxu0 0.0
    %7049 = vmatprep.subr.mxu0 0.0
    %7050 = vmatpush1.msra.mxu0 0.0
    %7051 = vmatprep.subr.mxu0 0.0
    %7052 = vmatpush1.msra.mxu0 0.0
    %7053 = vmatprep.subr.mxu0 0.0
    %7054 = vmatpush1.msra.mxu0 0.0
    %7055 = vmatprep.subr.mxu0 0.0
    %7056 = vmatpush1.msra.mxu0 0.0
    %7057 = vmatprep.subr.mxu0 0.0
    %7058 = vmatpush1.msra.mxu0 0.0
    %7059 = vmatprep.subr.mxu0 0.0
    %7060 = vmatpush1.msra.mxu0 0.0
    %7061 = vmatprep.subr.mxu0 0.0
    %7062 = vmatpush1.msra.mxu0 0.0
    %7063 = vmatprep.subr.mxu0 0.0
    %7064 = vmatpush1.msra.mxu0 0.0
    %7065 = vmatprep.subr.mxu0 0.0
    %7066 = vmatpush1.msra.mxu0 0.0
    %7067 = vmatprep.subr.mxu0 0.0
    %7068 = vmatpush1.msra.mxu0 0.0
    %7069 = vmatprep.subr.mxu0 0.0
    %7070 = vmatpush1.msra.mxu0 0.0
    %7071 = vmatprep.subr.mxu0 0.0
    %7072 = vmatpush1.msra.mxu0 0.0
    %7073 = vmatprep.subr.mxu0 0.0
    %7074 = vmatpush1.msra.mxu0 0.0
    %7075 = vmatprep.subr.mxu0 0.0
    %7076 = vmatpush1.msra.mxu0 0.0
    %7077 = vmatprep.subr.mxu0 0.0
    %7078 = vmatpush1.msra.mxu0 0.0
    %7079 = vmatprep.subr.mxu0 0.0
    %7080 = vmatpush1.msra.mxu0 0.0
    %7081 = vmatprep.subr.mxu0 0.0
    %7082 = vmatpush1.msra.mxu0 0.0
    %7083 = vmatprep.subr.mxu0 0.0
    %7084 = vmatpush1.msra.mxu0 0.0
    %7085 = vmatprep.subr.mxu0 0.0
    %7086 = vmatpush1.msra.mxu0 0.0
    %7087 = vmatprep.mubr.f32.mxu0 0.0
    %7088 = vmatmul.mubr.f32.gmra.mrb[0].mxu0 %v7021
    %v7089 = vpop.f32.mrb[0].mxu0
    %v7090 = vadd.f32 %v404, %v7089
    %v7091 = vpop.f32.mrb[0].mxu0
    %7092 = vdwg.mxu0
    %7094 = vset.pattern.permute.xlu0 0
    %7095 = vperm.xlu0 %7094, %v6879
    %v7096 = vpop.permute.xlu0 %7095
    %v7098 = vmul.f32 %v7096, %v190
    %v7099 = vadd.f32 %v7098, %v204
    %v7100 = vadd.f32 %v7099, %v6947
    %v7101 = vmul.f32 %v7096, %v197
    %v7102 = vadd.f32 %v7101, %v211
    %v7103 = vxor.u32 %v7100, 2147483648
    %v7104 = vmul.f32 %v7103, 1.442695
    %v7105 = vpow.pop %v7104
    %v7106 = vadd.f32 %v7105, 1.0
    %v7107 = vrcp.pop %v7106
    %v7108 = vmul.f32 1.0, %v7107
    %v7109 = vmul.f32 %v7108, %v7017
    %v7110 = vadd.f32 %v7102, %v7109
    %v7111 = vtanh.pop %v7110
    %v7112 = vsub.f32 %v6706, %v7111
    %7114 = vrot.lane.b32.xlu0 %v7112, 32
    %v7115 = vpop.permute.xlu0 %7114
    %v7117 = vmul.f32 %v7108, %v7115
    %7119 = vrot.lane.b32.xlu0 %v7117, 96
    %v7120 = vpop.permute.xlu0 %7119
    %v7122 = vadd.f32 %v7111, %v7120
    %7123 = vrot.lane.b32.xlu0 %v6876, 32
    %v7124 = vpop.permute.xlu0 %7123
    %v7126 = vsel %vm250, %v7122, %v7124
    %v7128 = vsel %vm519, %v7126, 0
    %7130 = vmatprep.subr.mxu0 0.0
    %7131 = vmatpush1.msra.mxu0 %v222
    %7132 = vmatprep.subr.mxu0 0.0
    %7133 = vmatpush1.msra.mxu0 %v223
    %7134 = vmatprep.subr.mxu0 0.0
    %7135 = vmatpush1.msra.mxu0 %v224
    %7136 = vmatprep.subr.mxu0 0.0
    %7137 = vmatpush1.msra.mxu0 %v225
    %7138 = vmatprep.subr.mxu0 0.0
    %7139 = vmatpush1.msra.mxu0 %v226
    %7140 = vmatprep.subr.mxu0 0.0
    %7141 = vmatpush1.msra.mxu0 %v227
    %7142 = vmatprep.subr.mxu0 0.0
    %7143 = vmatpush1.msra.mxu0 %v228
    %7144 = vmatprep.subr.mxu0 0.0
    %7145 = vmatpush1.msra.mxu0 %v229
    %7146 = vmatprep.subr.mxu0 0.0
    %7147 = vmatpush1.msra.mxu0 0.0
    %7148 = vmatprep.subr.mxu0 0.0
    %7149 = vmatpush1.msra.mxu0 0.0
    %7150 = vmatprep.subr.mxu0 0.0
    %7151 = vmatpush1.msra.mxu0 0.0
    %7152 = vmatprep.subr.mxu0 0.0
    %7153 = vmatpush1.msra.mxu0 0.0
    %7154 = vmatprep.subr.mxu0 0.0
    %7155 = vmatpush1.msra.mxu0 0.0
    %7156 = vmatprep.subr.mxu0 0.0
    %7157 = vmatpush1.msra.mxu0 0.0
    %7158 = vmatprep.subr.mxu0 0.0
    %7159 = vmatpush1.msra.mxu0 0.0
    %7160 = vmatprep.subr.mxu0 0.0
    %7161 = vmatpush1.msra.mxu0 0.0
    %7162 = vmatprep.subr.mxu0 0.0
    %7163 = vmatpush1.msra.mxu0 0.0
    %7164 = vmatprep.subr.mxu0 0.0
    %7165 = vmatpush1.msra.mxu0 0.0
    %7166 = vmatprep.subr.mxu0 0.0
    %7167 = vmatpush1.msra.mxu0 0.0
    %7168 = vmatprep.subr.mxu0 0.0
    %7169 = vmatpush1.msra.mxu0 0.0
    %7170 = vmatprep.subr.mxu0 0.0
    %7171 = vmatpush1.msra.mxu0 0.0
    %7172 = vmatprep.subr.mxu0 0.0
    %7173 = vmatpush1.msra.mxu0 0.0
    %7174 = vmatprep.subr.mxu0 0.0
    %7175 = vmatpush1.msra.mxu0 0.0
    %7176 = vmatprep.subr.mxu0 0.0
    %7177 = vmatpush1.msra.mxu0 0.0
    %7178 = vmatprep.subr.mxu0 0.0
    %7179 = vmatpush1.msra.mxu0 0.0
    %7180 = vmatprep.subr.mxu0 0.0
    %7181 = vmatpush1.msra.mxu0 0.0
    %7182 = vmatprep.subr.mxu0 0.0
    %7183 = vmatpush1.msra.mxu0 0.0
    %7184 = vmatprep.subr.mxu0 0.0
    %7185 = vmatpush1.msra.mxu0 0.0
    %7186 = vmatprep.subr.mxu0 0.0
    %7187 = vmatpush1.msra.mxu0 0.0
    %7188 = vmatprep.subr.mxu0 0.0
    %7189 = vmatpush1.msra.mxu0 0.0
    %7190 = vmatprep.subr.mxu0 0.0
    %7191 = vmatpush1.msra.mxu0 0.0
    %7192 = vmatprep.subr.mxu0 0.0
    %7193 = vmatpush1.msra.mxu0 0.0
    %7194 = vmatprep.mubr.f32.mxu0 0.0
    %7195 = vmatmul.mubr.f32.gmra.mrb[0].mxu0 %v7128
    %v7196 = vpop.f32.mrb[0].mxu0
    %v7197 = vadd.f32 %v517, %v7196
    %v7198 = vpop.f32.mrb[0].mxu0
    %7199 = vdwg.mxu0
    %v7201 = vsel %vm250, %v7122, 0
    %7203 = vmatprep.subr.mxu0 0.0
    %7204 = vmatpush1.msra.mxu0 %v230
    %7205 = vmatprep.subr.mxu0 0.0
    %7206 = vmatpush1.msra.mxu0 %v231
    %7207 = vmatprep.subr.mxu0 0.0
    %7208 = vmatpush1.msra.mxu0 %v232
    %7209 = vmatprep.subr.mxu0 0.0
    %7210 = vmatpush1.msra.mxu0 %v233
    %7211 = vmatprep.subr.mxu0 0.0
    %7212 = vmatpush1.msra.mxu0 0.0
    %7213 = vmatprep.subr.mxu0 0.0
    %7214 = vmatpush1.msra.mxu0 0.0
    %7215 = vmatprep.subr.mxu0 0.0
    %7216 = vmatpush1.msra.mxu0 0.0
    %7217 = vmatprep.subr.mxu0 0.0
    %7218 = vmatpush1.msra.mxu0 0.0
    %7219 = vmatprep.subr.mxu0 0.0
    %7220 = vmatpush1.msra.mxu0 0.0
    %7221 = vmatprep.subr.mxu0 0.0
    %7222 = vmatpush1.msra.mxu0 0.0
    %7223 = vmatprep.subr.mxu0 0.0
    %7224 = vmatpush1.msra.mxu0 0.0
    %7225 = vmatprep.subr.mxu0 0.0
    %7226 = vmatpush1.msra.mxu0 0.0
    %7227 = vmatprep.subr.mxu0 0.0
    %7228 = vmatpush1.msra.mxu0 0.0
    %7229 = vmatprep.subr.mxu0 0.0
    %7230 = vmatpush1.msra.mxu0 0.0
    %7231 = vmatprep.subr.mxu0 0.0
    %7232 = vmatpush1.msra.mxu0 0.0
    %7233 = vmatprep.subr.mxu0 0.0
    %7234 = vmatpush1.msra.mxu0 0.0
    %7235 = vmatprep.subr.mxu0 0.0
    %7236 = vmatpush1.msra.mxu0 0.0
    %7237 = vmatprep.subr.mxu0 0.0
    %7238 = vmatpush1.msra.mxu0 0.0
    %7239 = vmatprep.subr.mxu0 0.0
    %7240 = vmatpush1.msra.mxu0 0.0
    %7241 = vmatprep.subr.mxu0 0.0
    %7242 = vmatpush1.msra.mxu0 0.0
    %7243 = vmatprep.subr.mxu0 0.0
    %7244 = vmatpush1.msra.mxu0 0.0
    %7245 = vmatprep.subr.mxu0 0.0
    %7246 = vmatpush1.msra.mxu0 0.0
    %7247 = vmatprep.subr.mxu0 0.0
    %7248 = vmatpush1.msra.mxu0 0.0
    %7249 = vmatprep.subr.mxu0 0.0
    %7250 = vmatpush1.msra.mxu0 0.0
    %7251 = vmatprep.subr.mxu0 0.0
    %7252 = vmatpush1.msra.mxu0 0.0
    %7253 = vmatprep.subr.mxu0 0.0
    %7254 = vmatpush1.msra.mxu0 0.0
    %7255 = vmatprep.subr.mxu0 0.0
    %7256 = vmatpush1.msra.mxu0 0.0
    %7257 = vmatprep.subr.mxu0 0.0
    %7258 = vmatpush1.msra.mxu0 0.0
    %7259 = vmatprep.subr.mxu0 0.0
    %7260 = vmatpush1.msra.mxu0 0.0
    %7261 = vmatprep.subr.mxu0 0.0
    %7262 = vmatpush1.msra.mxu0 0.0
    %7263 = vmatprep.subr.mxu0 0.0
    %7264 = vmatpush1.msra.mxu0 0.0
    %7265 = vmatprep.subr.mxu0 0.0
    %7266 = vmatpush1.msra.mxu0 0.0
    %7267 = vmatprep.mubr.f32.mxu0 0.0
    %7268 = vmatmul.mubr.f32.gmra.mrb[0].mxu0 %v7201
    %v7269 = vpop.f32.mrb[0].mxu0
    %v7270 = vadd.f32 %v597, %v7269
    %v7271 = vpop.f32.mrb[0].mxu0
    %7272 = vdwg.mxu0
    %v7273 = vxor.u32 %v7197, 2147483648
    %v7274 = vmul.f32 %v7273, 1.442695
    %v7275 = vpow.pop %v7274
    %v7276 = vadd.f32 %v7275, 1.0
    %v7277 = vrcp.pop %v7276
    %v7278 = vmul.f32 1.0, %v7277
    %v7279 = vmul.f32 %v7278, %v7090
    %v7280 = vadd.f32 %v7270, %v7279
    %v7281 = vtanh.pop %v7280
    %v7282 = vsub.f32 %v6876, %v7281
    %7284 = vrot.lane.b32.xlu0 %v7282, 32
    %v7285 = vpop.permute.xlu0 %7284
    %v7287 = vmul.f32 %v7278, %v7285
    %7289 = vrot.lane.b32.xlu0 %v7287, 96
    %v7290 = vpop.permute.xlu0 %7289
    %v7292 = vadd.f32 %v7281, %v7290
    %7293 = vmatprep.subr.mxu0 0.0
    %7294 = vmatpush1.msra.mxu0 %v213
    %7295 = vmatprep.subr.mxu0 0.0
    %7296 = vmatpush1.msra.mxu0 %v214
    %7297 = vmatprep.subr.mxu0 0.0
    %7298 = vmatpush1.msra.mxu0 %v215
    %7299 = vmatprep.subr.mxu0 0.0
    %7300 = vmatpush1.msra.mxu0 %v216
    %7301 = vmatprep.subr.mxu0 0.0
    %7302 = vmatpush1.msra.mxu0 0.0
    %7303 = vmatprep.subr.mxu0 0.0
    %7304 = vmatpush1.msra.mxu0 0.0
    %7305 = vmatprep.subr.mxu0 0.0
    %7306 = vmatpush1.msra.mxu0 0.0
    %7307 = vmatprep.subr.mxu0 0.0
    %7308 = vmatpush1.msra.mxu0 0.0
    %7309 = vmatprep.subr.mxu0 0.0
    %7310 = vmatpush1.msra.mxu0 0.0
    %7311 = vmatprep.subr.mxu0 0.0
    %7312 = vmatpush1.msra.mxu0 0.0
    %7313 = vmatprep.subr.mxu0 0.0
    %7314 = vmatpush1.msra.mxu0 0.0
    %7315 = vmatprep.subr.mxu0 0.0
    %7316 = vmatpush1.msra.mxu0 0.0
    %7317 = vmatprep.subr.mxu0 0.0
    %7318 = vmatpush1.msra.mxu0 0.0
    %7319 = vmatprep.subr.mxu0 0.0
    %7320 = vmatpush1.msra.mxu0 0.0
    %7321 = vmatprep.subr.mxu0 0.0
    %7322 = vmatpush1.msra.mxu0 0.0
    %7323 = vmatprep.subr.mxu0 0.0
    %7324 = vmatpush1.msra.mxu0 0.0
    %7325 = vmatprep.subr.mxu0 0.0
    %7326 = vmatpush1.msra.mxu0 0.0
    %7327 = vmatprep.subr.mxu0 0.0
    %7328 = vmatpush1.msra.mxu0 0.0
    %7329 = vmatprep.subr.mxu0 0.0
    %7330 = vmatpush1.msra.mxu0 0.0
    %7331 = vmatprep.subr.mxu0 0.0
    %7332 = vmatpush1.msra.mxu0 0.0
    %7333 = vmatprep.subr.mxu0 0.0
    %7334 = vmatpush1.msra.mxu0 0.0
    %7335 = vmatprep.subr.mxu0 0.0
    %7336 = vmatpush1.msra.mxu0 0.0
    %7337 = vmatprep.subr.mxu0 0.0
    %7338 = vmatpush1.msra.mxu0 0.0
    %7339 = vmatprep.subr.mxu0 0.0
    %7340 = vmatpush1.msra.mxu0 0.0
    %7341 = vmatprep.subr.mxu0 0.0
    %7342 = vmatpush1.msra.mxu0 0.0
    %7343 = vmatprep.subr.mxu0 0.0
    %7344 = vmatpush1.msra.mxu0 0.0
    %7345 = vmatprep.subr.mxu0 0.0
    %7346 = vmatpush1.msra.mxu0 0.0
    %7347 = vmatprep.subr.mxu0 0.0
    %7348 = vmatpush1.msra.mxu0 0.0
    %7349 = vmatprep.subr.mxu0 0.0
    %7350 = vmatpush1.msra.mxu0 0.0
    %7351 = vmatprep.subr.mxu0 0.0
    %7352 = vmatpush1.msra.mxu0 0.0
    %7353 = vmatprep.subr.mxu0 0.0
    %7354 = vmatpush1.msra.mxu0 0.0
    %7355 = vmatprep.subr.mxu0 0.0
    %7356 = vmatpush1.msra.mxu0 0.0
    %7357 = vmatprep.mubr.f32.mxu0 0.0
    %7358 = vmatmul.mubr.f32.gmra.mrb[0].mxu0 %v7201
    %v7359 = vpop.f32.mrb[0].mxu0
    %v7360 = vadd.f32 0.0, %v7359
    %v7361 = vpop.f32.mrb[0].mxu0
    %7362 = vdwg.mxu0
    %7363 = vmatprep.subr.mxu0 0.0
    %7364 = vmatpush1.msra.mxu0 %v217
    %7365 = vmatprep.subr.mxu0 0.0
    %7366 = vmatpush1.msra.mxu0 %v218
    %7367 = vmatprep.subr.mxu0 0.0
    %7368 = vmatpush1.msra.mxu0 %v219
    %7369 = vmatprep.subr.mxu0 0.0
    %7370 = vmatpush1.msra.mxu0 %v220
    %7371 = vmatprep.subr.mxu0 0.0
    %7372 = vmatpush1.msra.mxu0 0.0
    %7373 = vmatprep.subr.mxu0 0.0
    %7374 = vmatpush1.msra.mxu0 0.0
    %7375 = vmatprep.subr.mxu0 0.0
    %7376 = vmatpush1.msra.mxu0 0.0
    %7377 = vmatprep.subr.mxu0 0.0
    %7378 = vmatpush1.msra.mxu0 0.0
    %7379 = vmatprep.subr.mxu0 0.0
    %7380 = vmatpush1.msra.mxu0 0.0
    %7381 = vmatprep.subr.mxu0 0.0
    %7382 = vmatpush1.msra.mxu0 0.0
    %7383 = vmatprep.subr.mxu0 0.0
    %7384 = vmatpush1.msra.mxu0 0.0
    %7385 = vmatprep.subr.mxu0 0.0
    %7386 = vmatpush1.msra.mxu0 0.0
    %7387 = vmatprep.subr.mxu0 0.0
    %7388 = vmatpush1.msra.mxu0 0.0
    %7389 = vmatprep.subr.mxu0 0.0
    %7390 = vmatpush1.msra.mxu0 0.0
    %7391 = vmatprep.subr.mxu0 0.0
    %7392 = vmatpush1.msra.mxu0 0.0
    %7393 = vmatprep.subr.mxu0 0.0
    %7394 = vmatpush1.msra.mxu0 0.0
    %7395 = vmatprep.subr.mxu0 0.0
    %7396 = vmatpush1.msra.mxu0 0.0
    %7397 = vmatprep.subr.mxu0 0.0
    %7398 = vmatpush1.msra.mxu0 0.0
    %7399 = vmatprep.subr.mxu0 0.0
    %7400 = vmatpush1.msra.mxu0 0.0
    %7401 = vmatprep.subr.mxu0 0.0
    %7402 = vmatpush1.msra.mxu0 0.0
    %7403 = vmatprep.subr.mxu0 0.0
    %7404 = vmatpush1.msra.mxu0 0.0
    %7405 = vmatprep.subr.mxu0 0.0
    %7406 = vmatpush1.msra.mxu0 0.0
    %7407 = vmatprep.subr.mxu0 0.0
    %7408 = vmatpush1.msra.mxu0 0.0
    %7409 = vmatprep.subr.mxu0 0.0
    %7410 = vmatpush1.msra.mxu0 0.0
    %7411 = vmatprep.subr.mxu0 0.0
    %7412 = vmatpush1.msra.mxu0 0.0
    %7413 = vmatprep.subr.mxu0 0.0
    %7414 = vmatpush1.msra.mxu0 0.0
    %7415 = vmatprep.subr.mxu0 0.0
    %7416 = vmatpush1.msra.mxu0 0.0
    %7417 = vmatprep.subr.mxu0 0.0
    %7418 = vmatpush1.msra.mxu0 0.0
    %7419 = vmatprep.subr.mxu0 0.0
    %7420 = vmatpush1.msra.mxu0 0.0
    %7421 = vmatprep.subr.mxu0 0.0
    %7422 = vmatpush1.msra.mxu0 0.0
    %7423 = vmatprep.subr.mxu0 0.0
    %7424 = vmatpush1.msra.mxu0 0.0
    %7425 = vmatprep.subr.mxu0 0.0
    %7426 = vmatpush1.msra.mxu0 0.0
    %7427 = vmatprep.mubr.f32.mxu0 0.0
    %7428 = vmatmul.mubr.f32.gmra.mrb[0].mxu0 %v7201
    %v7429 = vpop.f32.mrb[0].mxu0
    %v7430 = vadd.f32 %v328, %v7429
    %v7431 = vpop.f32.mrb[0].mxu0
    %7432 = vdwg.mxu0
    %v7434 = vsel %vm250, %v7292, 0
    %7436 = vmatprep.subr.mxu0 0.0
    %7437 = vmatpush1.msra.mxu0 %v234
    %7438 = vmatprep.subr.mxu0 0.0
    %7439 = vmatpush1.msra.mxu0 %v235
    %7440 = vmatprep.subr.mxu0 0.0
    %7441 = vmatpush1.msra.mxu0 %v236
    %7442 = vmatprep.subr.mxu0 0.0
    %7443 = vmatpush1.msra.mxu0 %v237
    %7444 = vmatprep.subr.mxu0 0.0
    %7445 = vmatpush1.msra.mxu0 0.0
    %7446 = vmatprep.subr.mxu0 0.0
    %7447 = vmatpush1.msra.mxu0 0.0
    %7448 = vmatprep.subr.mxu0 0.0
    %7449 = vmatpush1.msra.mxu0 0.0
    %7450 = vmatprep.subr.mxu0 0.0
    %7451 = vmatpush1.msra.mxu0 0.0
    %7452 = vmatprep.subr.mxu0 0.0
    %7453 = vmatpush1.msra.mxu0 0.0
    %7454 = vmatprep.subr.mxu0 0.0
    %7455 = vmatpush1.msra.mxu0 0.0
    %7456 = vmatprep.subr.mxu0 0.0
    %7457 = vmatpush1.msra.mxu0 0.0
    %7458 = vmatprep.subr.mxu0 0.0
    %7459 = vmatpush1.msra.mxu0 0.0
    %7460 = vmatprep.subr.mxu0 0.0
    %7461 = vmatpush1.msra.mxu0 0.0
    %7462 = vmatprep.subr.mxu0 0.0
    %7463 = vmatpush1.msra.mxu0 0.0
    %7464 = vmatprep.subr.mxu0 0.0
    %7465 = vmatpush1.msra.mxu0 0.0
    %7466 = vmatprep.subr.mxu0 0.0
    %7467 = vmatpush1.msra.mxu0 0.0
    %7468 = vmatprep.subr.mxu0 0.0
    %7469 = vmatpush1.msra.mxu0 0.0
    %7470 = vmatprep.subr.mxu0 0.0
    %7471 = vmatpush1.msra.mxu0 0.0
    %7472 = vmatprep.subr.mxu0 0.0
    %7473 = vmatpush1.msra.mxu0 0.0
    %7474 = vmatprep.subr.mxu0 0.0
    %7475 = vmatpush1.msra.mxu0 0.0
    %7476 = vmatprep.subr.mxu0 0.0
    %7477 = vmatpush1.msra.mxu0 0.0
    %7478 = vmatprep.subr.mxu0 0.0
    %7479 = vmatpush1.msra.mxu0 0.0
    %7480 = vmatprep.subr.mxu0 0.0
    %7481 = vmatpush1.msra.mxu0 0.0
    %7482 = vmatprep.subr.mxu0 0.0
    %7483 = vmatpush1.msra.mxu0 0.0
    %7484 = vmatprep.subr.mxu0 0.0
    %7485 = vmatpush1.msra.mxu0 0.0
    %7486 = vmatprep.subr.mxu0 0.0
    %7487 = vmatpush1.msra.mxu0 0.0
    %7488 = vmatprep.subr.mxu0 0.0
    %7489 = vmatpush1.msra.mxu0 0.0
    %7490 = vmatprep.subr.mxu0 0.0
    %7491 = vmatpush1.msra.mxu0 0.0
    %7492 = vmatprep.subr.mxu0 0.0
    %7493 = vmatpush1.msra.mxu0 0.0
    %7494 = vmatprep.subr.mxu0 0.0
    %7495 = vmatpush1.msra.mxu0 0.0
    %7496 = vmatprep.subr.mxu0 0.0
    %7497 = vmatpush1.msra.mxu0 0.0
    %7498 = vmatprep.subr.mxu0 0.0
    %7499 = vmatpush1.msra.mxu0 0.0
    %7500 = vmatprep.mubr.f32.mxu0 0.0
    %7501 = vmatmul.mubr.f32.gmra.mrb[0].mxu0 %v7434
    %v7502 = vpop.f32.mrb[0].mxu0
    %v7503 = vadd.f32 %v404, %v7502
    %v7504 = vpop.f32.mrb[0].mxu0
    %7505 = vdwg.mxu0
    %7506 = vset.pattern.permute.xlu0 1
    %7507 = vperm.xlu0 %7506, %v6879
    %v7508 = vpop.permute.xlu0 %7507
    %v7510 = vmul.f32 %v7508, %v190
    %v7511 = vadd.f32 %v7510, %v204
    %v7512 = vadd.f32 %v7511, %v7360
    %v7513 = vmul.f32 %v7508, %v197
    %v7514 = vadd.f32 %v7513, %v211
    %v7515 = vxor.u32 %v7512, 2147483648
    %v7516 = vmul.f32 %v7515, 1.442695
    %v7517 = vpow.pop %v7516
    %v7518 = vadd.f32 %v7517, 1.0
    %v7519 = vrcp.pop %v7518
    %v7520 = vmul.f32 1.0, %v7519
    %v7521 = vmul.f32 %v7520, %v7430
    %v7522 = vadd.f32 %v7514, %v7521
    %v7523 = vtanh.pop %v7522
    %v7524 = vsub.f32 %v7122, %v7523
    %7526 = vrot.lane.b32.xlu0 %v7524, 32
    %v7527 = vpop.permute.xlu0 %7526
    %v7529 = vmul.f32 %v7520, %v7527
    %7531 = vrot.lane.b32.xlu0 %v7529, 96
    %v7532 = vpop.permute.xlu0 %7531
    %v7534 = vadd.f32 %v7523, %v7532
    %7535 = vrot.lane.b32.xlu0 %v7292, 32
    %v7536 = vpop.permute.xlu0 %7535
    %v7538 = vsel %vm250, %v7534, %v7536
    %v7540 = vsel %vm519, %v7538, 0
    %7542 = vmatprep.subr.mxu0 0.0
    %7543 = vmatpush1.msra.mxu0 %v222
    %7544 = vmatprep.subr.mxu0 0.0
    %7545 = vmatpush1.msra.mxu0 %v223
    %7546 = vmatprep.subr.mxu0 0.0
    %7547 = vmatpush1.msra.mxu0 %v224
    %7548 = vmatprep.subr.mxu0 0.0
    %7549 = vmatpush1.msra.mxu0 %v225
    %7550 = vmatprep.subr.mxu0 0.0
    %7551 = vmatpush1.msra.mxu0 %v226
    %7552 = vmatprep.subr.mxu0 0.0
    %7553 = vmatpush1.msra.mxu0 %v227
    %7554 = vmatprep.subr.mxu0 0.0
    %7555 = vmatpush1.msra.mxu0 %v228
    %7556 = vmatprep.subr.mxu0 0.0
    %7557 = vmatpush1.msra.mxu0 %v229
    %7558 = vmatprep.subr.mxu0 0.0
    %7559 = vmatpush1.msra.mxu0 0.0
    %7560 = vmatprep.subr.mxu0 0.0
    %7561 = vmatpush1.msra.mxu0 0.0
    %7562 = vmatprep.subr.mxu0 0.0
    %7563 = vmatpush1.msra.mxu0 0.0
    %7564 = vmatprep.subr.mxu0 0.0
    %7565 = vmatpush1.msra.mxu0 0.0
    %7566 = vmatprep.subr.mxu0 0.0
    %7567 = vmatpush1.msra.mxu0 0.0
    %7568 = vmatprep.subr.mxu0 0.0
    %7569 = vmatpush1.msra.mxu0 0.0
    %7570 = vmatprep.subr.mxu0 0.0
    %7571 = vmatpush1.msra.mxu0 0.0
    %7572 = vmatprep.subr.mxu0 0.0
    %7573 = vmatpush1.msra.mxu0 0.0
    %7574 = vmatprep.subr.mxu0 0.0
    %7575 = vmatpush1.msra.mxu0 0.0
    %7576 = vmatprep.subr.mxu0 0.0
    %7577 = vmatpush1.msra.mxu0 0.0
    %7578 = vmatprep.subr.mxu0 0.0
    %7579 = vmatpush1.msra.mxu0 0.0
    %7580 = vmatprep.subr.mxu0 0.0
    %7581 = vmatpush1.msra.mxu0 0.0
    %7582 = vmatprep.subr.mxu0 0.0
    %7583 = vmatpush1.msra.mxu0 0.0
    %7584 = vmatprep.subr.mxu0 0.0
    %7585 = vmatpush1.msra.mxu0 0.0
    %7586 = vmatprep.subr.mxu0 0.0
    %7587 = vmatpush1.msra.mxu0 0.0
    %7588 = vmatprep.subr.mxu0 0.0
    %7589 = vmatpush1.msra.mxu0 0.0
    %7590 = vmatprep.subr.mxu0 0.0
    %7591 = vmatpush1.msra.mxu0 0.0
    %7592 = vmatprep.subr.mxu0 0.0
    %7593 = vmatpush1.msra.mxu0 0.0
    %7594 = vmatprep.subr.mxu0 0.0
    %7595 = vmatpush1.msra.mxu0 0.0
    %7596 = vmatprep.subr.mxu0 0.0
    %7597 = vmatpush1.msra.mxu0 0.0
    %7598 = vmatprep.subr.mxu0 0.0
    %7599 = vmatpush1.msra.mxu0 0.0
    %7600 = vmatprep.subr.mxu0 0.0
    %7601 = vmatpush1.msra.mxu0 0.0
    %7602 = vmatprep.subr.mxu0 0.0
    %7603 = vmatpush1.msra.mxu0 0.0
    %7604 = vmatprep.subr.mxu0 0.0
    %7605 = vmatpush1.msra.mxu0 0.0
    %7606 = vmatprep.mubr.f32.mxu0 0.0
    %7607 = vmatmul.mubr.f32.gmra.mrb[0].mxu0 %v7540
    %v7608 = vpop.f32.mrb[0].mxu0
    %v7609 = vadd.f32 %v517, %v7608
    %v7610 = vpop.f32.mrb[0].mxu0
    %7611 = vdwg.mxu0
    %v7613 = vsel %vm250, %v7534, 0
    %7615 = vmatprep.subr.mxu0 0.0
    %7616 = vmatpush1.msra.mxu0 %v230
    %7617 = vmatprep.subr.mxu0 0.0
    %7618 = vmatpush1.msra.mxu0 %v231
    %7619 = vmatprep.subr.mxu0 0.0
    %7620 = vmatpush1.msra.mxu0 %v232
    %7621 = vmatprep.subr.mxu0 0.0
    %7622 = vmatpush1.msra.mxu0 %v233
    %7623 = vmatprep.subr.mxu0 0.0
    %7624 = vmatpush1.msra.mxu0 0.0
    %7625 = vmatprep.subr.mxu0 0.0
    %7626 = vmatpush1.msra.mxu0 0.0
    %7627 = vmatprep.subr.mxu0 0.0
    %7628 = vmatpush1.msra.mxu0 0.0
    %7629 = vmatprep.subr.mxu0 0.0
    %7630 = vmatpush1.msra.mxu0 0.0
    %7631 = vmatprep.subr.mxu0 0.0
    %7632 = vmatpush1.msra.mxu0 0.0
    %7633 = vmatprep.subr.mxu0 0.0
    %7634 = vmatpush1.msra.mxu0 0.0
    %7635 = vmatprep.subr.mxu0 0.0
    %7636 = vmatpush1.msra.mxu0 0.0
    %7637 = vmatprep.subr.mxu0 0.0
    %7638 = vmatpush1.msra.mxu0 0.0
    %7639 = vmatprep.subr.mxu0 0.0
    %7640 = vmatpush1.msra.mxu0 0.0
    %7641 = vmatprep.subr.mxu0 0.0
    %7642 = vmatpush1.msra.mxu0 0.0
    %7643 = vmatprep.subr.mxu0 0.0
    %7644 = vmatpush1.msra.mxu0 0.0
    %7645 = vmatprep.subr.mxu0 0.0
    %7646 = vmatpush1.msra.mxu0 0.0
    %7647 = vmatprep.subr.mxu0 0.0
    %7648 = vmatpush1.msra.mxu0 0.0
    %7649 = vmatprep.subr.mxu0 0.0
    %7650 = vmatpush1.msra.mxu0 0.0
    %7651 = vmatprep.subr.mxu0 0.0
    %7652 = vmatpush1.msra.mxu0 0.0
    %7653 = vmatprep.subr.mxu0 0.0
    %7654 = vmatpush1.msra.mxu0 0.0
    %7655 = vmatprep.subr.mxu0 0.0
    %7656 = vmatpush1.msra.mxu0 0.0
    %7657 = vmatprep.subr.mxu0 0.0
    %7658 = vmatpush1.msra.mxu0 0.0
    %7659 = vmatprep.subr.mxu0 0.0
    %7660 = vmatpush1.msra.mxu0 0.0
    %7661 = vmatprep.subr.mxu0 0.0
    %7662 = vmatpush1.msra.mxu0 0.0
    %7663 = vmatprep.subr.mxu0 0.0
    %7664 = vmatpush1.msra.mxu0 0.0
    %7665 = vmatprep.subr.mxu0 0.0
    %7666 = vmatpush1.msra.mxu0 0.0
    %7667 = vmatprep.subr.mxu0 0.0
    %7668 = vmatpush1.msra.mxu0 0.0
    %7669 = vmatprep.subr.mxu0 0.0
    %7670 = vmatpush1.msra.mxu0 0.0
    %7671 = vmatprep.subr.mxu0 0.0
    %7672 = vmatpush1.msra.mxu0 0.0
    %7673 = vmatprep.subr.mxu0 0.0
    %7674 = vmatpush1.msra.mxu0 0.0
    %7675 = vmatprep.subr.mxu0 0.0
    %7676 = vmatpush1.msra.mxu0 0.0
    %7677 = vmatprep.subr.mxu0 0.0
    %7678 = vmatpush1.msra.mxu0 0.0
    %7679 = vmatprep.mubr.f32.mxu0 0.0
    %7680 = vmatmul.mubr.f32.gmra.mrb[0].mxu0 %v7613
    %v7681 = vpop.f32.mrb[0].mxu0
    %v7682 = vadd.f32 %v597, %v7681
    %v7683 = vpop.f32.mrb[0].mxu0
    %7684 = vdwg.mxu0
    %v7685 = vxor.u32 %v7609, 2147483648
    %v7686 = vmul.f32 %v7685, 1.442695
    %v7687 = vpow.pop %v7686
    %v7688 = vadd.f32 %v7687, 1.0
    %v7689 = vrcp.pop %v7688
    %v7690 = vmul.f32 1.0, %v7689
    %v7691 = vmul.f32 %v7690, %v7503
    %v7692 = vadd.f32 %v7682, %v7691
    %v7693 = vtanh.pop %v7692
    %v7694 = vsub.f32 %v7292, %v7693
    %7696 = vrot.lane.b32.xlu0 %v7694, 32
    %v7697 = vpop.permute.xlu0 %7696
    %v7699 = vmul.f32 %v7690, %v7697
    %7701 = vrot.lane.b32.xlu0 %v7699, 96
    %v7702 = vpop.permute.xlu0 %7701
    %v7704 = vadd.f32 %v7693, %v7702
    %7705 = vmatprep.subr.mxu0 0.0
    %7706 = vmatpush1.msra.mxu0 %v213
    %7707 = vmatprep.subr.mxu0 0.0
    %7708 = vmatpush1.msra.mxu0 %v214
    %7709 = vmatprep.subr.mxu0 0.0
    %7710 = vmatpush1.msra.mxu0 %v215
    %7711 = vmatprep.subr.mxu0 0.0
    %7712 = vmatpush1.msra.mxu0 %v216
    %7713 = vmatprep.subr.mxu0 0.0
    %7714 = vmatpush1.msra.mxu0 0.0
    %7715 = vmatprep.subr.mxu0 0.0
    %7716 = vmatpush1.msra.mxu0 0.0
    %7717 = vmatprep.subr.mxu0 0.0
    %7718 = vmatpush1.msra.mxu0 0.0
    %7719 = vmatprep.subr.mxu0 0.0
    %7720 = vmatpush1.msra.mxu0 0.0
    %7721 = vmatprep.subr.mxu0 0.0
    %7722 = vmatpush1.msra.mxu0 0.0
    %7723 = vmatprep.subr.mxu0 0.0
    %7724 = vmatpush1.msra.mxu0 0.0
    %7725 = vmatprep.subr.mxu0 0.0
    %7726 = vmatpush1.msra.mxu0 0.0
    %7727 = vmatprep.subr.mxu0 0.0
    %7728 = vmatpush1.msra.mxu0 0.0
    %7729 = vmatprep.subr.mxu0 0.0
    %7730 = vmatpush1.msra.mxu0 0.0
    %7731 = vmatprep.subr.mxu0 0.0
    %7732 = vmatpush1.msra.mxu0 0.0
    %7733 = vmatprep.subr.mxu0 0.0
    %7734 = vmatpush1.msra.mxu0 0.0
    %7735 = vmatprep.subr.mxu0 0.0
    %7736 = vmatpush1.msra.mxu0 0.0
    %7737 = vmatprep.subr.mxu0 0.0
    %7738 = vmatpush1.msra.mxu0 0.0
    %7739 = vmatprep.subr.mxu0 0.0
    %7740 = vmatpush1.msra.mxu0 0.0
    %7741 = vmatprep.subr.mxu0 0.0
    %7742 = vmatpush1.msra.mxu0 0.0
    %7743 = vmatprep.subr.mxu0 0.0
    %7744 = vmatpush1.msra.mxu0 0.0
    %7745 = vmatprep.subr.mxu0 0.0
    %7746 = vmatpush1.msra.mxu0 0.0
    %7747 = vmatprep.subr.mxu0 0.0
    %7748 = vmatpush1.msra.mxu0 0.0
    %7749 = vmatprep.subr.mxu0 0.0
    %7750 = vmatpush1.msra.mxu0 0.0
    %7751 = vmatprep.subr.mxu0 0.0
    %7752 = vmatpush1.msra.mxu0 0.0
    %7753 = vmatprep.subr.mxu0 0.0
    %7754 = vmatpush1.msra.mxu0 0.0
    %7755 = vmatprep.subr.mxu0 0.0
    %7756 = vmatpush1.msra.mxu0 0.0
    %7757 = vmatprep.subr.mxu0 0.0
    %7758 = vmatpush1.msra.mxu0 0.0
    %7759 = vmatprep.subr.mxu0 0.0
    %7760 = vmatpush1.msra.mxu0 0.0
    %7761 = vmatprep.subr.mxu0 0.0
    %7762 = vmatpush1.msra.mxu0 0.0
    %7763 = vmatprep.subr.mxu0 0.0
    %7764 = vmatpush1.msra.mxu0 0.0
    %7765 = vmatprep.subr.mxu0 0.0
    %7766 = vmatpush1.msra.mxu0 0.0
    %7767 = vmatprep.subr.mxu0 0.0
    %7768 = vmatpush1.msra.mxu0 0.0
    %7769 = vmatprep.mubr.f32.mxu0 0.0
    %7770 = vmatmul.mubr.f32.gmra.mrb[0].mxu0 %v7613
    %v7771 = vpop.f32.mrb[0].mxu0
    %v7772 = vadd.f32 0.0, %v7771
    %v7773 = vpop.f32.mrb[0].mxu0
    %7774 = vdwg.mxu0
    %7775 = vmatprep.subr.mxu0 0.0
    %7776 = vmatpush1.msra.mxu0 %v217
    %7777 = vmatprep.subr.mxu0 0.0
    %7778 = vmatpush1.msra.mxu0 %v218
    %7779 = vmatprep.subr.mxu0 0.0
    %7780 = vmatpush1.msra.mxu0 %v219
    %7781 = vmatprep.subr.mxu0 0.0
    %7782 = vmatpush1.msra.mxu0 %v220
    %7783 = vmatprep.subr.mxu0 0.0
    %7784 = vmatpush1.msra.mxu0 0.0
    %7785 = vmatprep.subr.mxu0 0.0
    %7786 = vmatpush1.msra.mxu0 0.0
    %7787 = vmatprep.subr.mxu0 0.0
    %7788 = vmatpush1.msra.mxu0 0.0
    %7789 = vmatprep.subr.mxu0 0.0
    %7790 = vmatpush1.msra.mxu0 0.0
    %7791 = vmatprep.subr.mxu0 0.0
    %7792 = vmatpush1.msra.mxu0 0.0
    %7793 = vmatprep.subr.mxu0 0.0
    %7794 = vmatpush1.msra.mxu0 0.0
    %7795 = vmatprep.subr.mxu0 0.0
    %7796 = vmatpush1.msra.mxu0 0.0
    %7797 = vmatprep.subr.mxu0 0.0
    %7798 = vmatpush1.msra.mxu0 0.0
    %7799 = vmatprep.subr.mxu0 0.0
    %7800 = vmatpush1.msra.mxu0 0.0
    %7801 = vmatprep.subr.mxu0 0.0
    %7802 = vmatpush1.msra.mxu0 0.0
    %7803 = vmatprep.subr.mxu0 0.0
    %7804 = vmatpush1.msra.mxu0 0.0
    %7805 = vmatprep.subr.mxu0 0.0
    %7806 = vmatpush1.msra.mxu0 0.0
    %7807 = vmatprep.subr.mxu0 0.0
    %7808 = vmatpush1.msra.mxu0 0.0
    %7809 = vmatprep.subr.mxu0 0.0
    %7810 = vmatpush1.msra.mxu0 0.0
    %7811 = vmatprep.subr.mxu0 0.0
    %7812 = vmatpush1.msra.mxu0 0.0
    %7813 = vmatprep.subr.mxu0 0.0
    %7814 = vmatpush1.msra.mxu0 0.0
    %7815 = vmatprep.subr.mxu0 0.0
    %7816 = vmatpush1.msra.mxu0 0.0
    %7817 = vmatprep.subr.mxu0 0.0
    %7818 = vmatpush1.msra.mxu0 0.0
    %7819 = vmatprep.subr.mxu0 0.0
    %7820 = vmatpush1.msra.mxu0 0.0
    %7821 = vmatprep.subr.mxu0 0.0
    %7822 = vmatpush1.msra.mxu0 0.0
    %7823 = vmatprep.subr.mxu0 0.0
    %7824 = vmatpush1.msra.mxu0 0.0
    %7825 = vmatprep.subr.mxu0 0.0
    %7826 = vmatpush1.msra.mxu0 0.0
    %7827 = vmatprep.subr.mxu0 0.0
    %7828 = vmatpush1.msra.mxu0 0.0
    %7829 = vmatprep.subr.mxu0 0.0
    %7830 = vmatpush1.msra.mxu0 0.0
    %7831 = vmatprep.subr.mxu0 0.0
    %7832 = vmatpush1.msra.mxu0 0.0
    %7833 = vmatprep.subr.mxu0 0.0
    %7834 = vmatpush1.msra.mxu0 0.0
    %7835 = vmatprep.subr.mxu0 0.0
    %7836 = vmatpush1.msra.mxu0 0.0
    %7837 = vmatprep.subr.mxu0 0.0
    %7838 = vmatpush1.msra.mxu0 0.0
    %7839 = vmatprep.mubr.f32.mxu0 0.0
    %7840 = vmatmul.mubr.f32.gmra.mrb[0].mxu0 %v7613
    %v7841 = vpop.f32.mrb[0].mxu0
    %v7842 = vadd.f32 %v328, %v7841
    %v7843 = vpop.f32.mrb[0].mxu0
    %7844 = vdwg.mxu0
    %v7846 = vsel %vm250, %v7704, 0
    %7848 = vmatprep.subr.mxu0 0.0
    %7849 = vmatpush1.msra.mxu0 %v234
    %7850 = vmatprep.subr.mxu0 0.0
    %7851 = vmatpush1.msra.mxu0 %v235
    %7852 = vmatprep.subr.mxu0 0.0
    %7853 = vmatpush1.msra.mxu0 %v236
    %7854 = vmatprep.subr.mxu0 0.0
    %7855 = vmatpush1.msra.mxu0 %v237
    %7856 = vmatprep.subr.mxu0 0.0
    %7857 = vmatpush1.msra.mxu0 0.0
    %7858 = vmatprep.subr.mxu0 0.0
    %7859 = vmatpush1.msra.mxu0 0.0
    %7860 = vmatprep.subr.mxu0 0.0
    %7861 = vmatpush1.msra.mxu0 0.0
    %7862 = vmatprep.subr.mxu0 0.0
    %7863 = vmatpush1.msra.mxu0 0.0
    %7864 = vmatprep.subr.mxu0 0.0
    %7865 = vmatpush1.msra.mxu0 0.0
    %7866 = vmatprep.subr.mxu0 0.0
    %7867 = vmatpush1.msra.mxu0 0.0
    %7868 = vmatprep.subr.mxu0 0.0
    %7869 = vmatpush1.msra.mxu0 0.0
    %7870 = vmatprep.subr.mxu0 0.0
    %7871 = vmatpush1.msra.mxu0 0.0
    %7872 = vmatprep.subr.mxu0 0.0
    %7873 = vmatpush1.msra.mxu0 0.0
    %7874 = vmatprep.subr.mxu0 0.0
    %7875 = vmatpush1.msra.mxu0 0.0
    %7876 = vmatprep.subr.mxu0 0.0
    %7877 = vmatpush1.msra.mxu0 0.0
    %7878 = vmatprep.subr.mxu0 0.0
    %7879 = vmatpush1.msra.mxu0 0.0
    %7880 = vmatprep.subr.mxu0 0.0
    %7881 = vmatpush1.msra.mxu0 0.0
    %7882 = vmatprep.subr.mxu0 0.0
    %7883 = vmatpush1.msra.mxu0 0.0
    %7884 = vmatprep.subr.mxu0 0.0
    %7885 = vmatpush1.msra.mxu0 0.0
    %7886 = vmatprep.subr.mxu0 0.0
    %7887 = vmatpush1.msra.mxu0 0.0
    %7888 = vmatprep.subr.mxu0 0.0
    %7889 = vmatpush1.msra.mxu0 0.0
    %7890 = vmatprep.subr.mxu0 0.0
    %7891 = vmatpush1.msra.mxu0 0.0
    %7892 = vmatprep.subr.mxu0 0.0
    %7893 = vmatpush1.msra.mxu0 0.0
    %7894 = vmatprep.subr.mxu0 0.0
    %7895 = vmatpush1.msra.mxu0 0.0
    %7896 = vmatprep.subr.mxu0 0.0
    %7897 = vmatpush1.msra.mxu0 0.0
    %7898 = vmatprep.subr.mxu0 0.0
    %7899 = vmatpush1.msra.mxu0 0.0
    %7900 = vmatprep.subr.mxu0 0.0
    %7901 = vmatpush1.msra.mxu0 0.0
    %7902 = vmatprep.subr.mxu0 0.0
    %7903 = vmatpush1.msra.mxu0 0.0
    %7904 = vmatprep.subr.mxu0 0.0
    %7905 = vmatpush1.msra.mxu0 0.0
    %7906 = vmatprep.subr.mxu0 0.0
    %7907 = vmatpush1.msra.mxu0 0.0
    %7908 = vmatprep.subr.mxu0 0.0
    %7909 = vmatpush1.msra.mxu0 0.0
    %7910 = vmatprep.subr.mxu0 0.0
    %7911 = vmatpush1.msra.mxu0 0.0
    %7912 = vmatprep.mubr.f32.mxu0 0.0
    %7913 = vmatmul.mubr.f32.gmra.mrb[0].mxu0 %v7846
    %v7914 = vpop.f32.mrb[0].mxu0
    %v7915 = vadd.f32 %v404, %v7914
    %v7916 = vpop.f32.mrb[0].mxu0
    %7917 = vdwg.mxu0
    %7918 = vset.pattern.permute.xlu0 2
    %7919 = vperm.xlu0 %7918, %v6879
    %v7920 = vpop.permute.xlu0 %7919
    %v7922 = vmul.f32 %v7920, %v190
    %v7923 = vadd.f32 %v7922, %v204
    %v7924 = vadd.f32 %v7923, %v7772
    %v7925 = vmul.f32 %v7920, %v197
    %v7926 = vadd.f32 %v7925, %v211
    %v7927 = vxor.u32 %v7924, 2147483648
    %v7928 = vmul.f32 %v7927, 1.442695
    %v7929 = vpow.pop %v7928
    %v7930 = vadd.f32 %v7929, 1.0
    %v7931 = vrcp.pop %v7930
    %v7932 = vmul.f32 1.0, %v7931
    %v7933 = vmul.f32 %v7932, %v7842
    %v7934 = vadd.f32 %v7926, %v7933
    %v7935 = vtanh.pop %v7934
    %v7936 = vsub.f32 %v7534, %v7935
    %7938 = vrot.lane.b32.xlu0 %v7936, 32
    %v7939 = vpop.permute.xlu0 %7938
    %v7941 = vmul.f32 %v7932, %v7939
    %7943 = vrot.lane.b32.xlu0 %v7941, 96
    %v7944 = vpop.permute.xlu0 %7943
    %v7946 = vadd.f32 %v7935, %v7944
    %7947 = vrot.lane.b32.xlu0 %v7704, 32
    %v7948 = vpop.permute.xlu0 %7947
    %v7950 = vsel %vm250, %v7946, %v7948
    %v7952 = vsel %vm519, %v7950, 0
    %7954 = vmatprep.subr.mxu0 0.0
    %7955 = vmatpush1.msra.mxu0 %v222
    %7956 = vmatprep.subr.mxu0 0.0
    %7957 = vmatpush1.msra.mxu0 %v223
    %7958 = vmatprep.subr.mxu0 0.0
    %7959 = vmatpush1.msra.mxu0 %v224
    %7960 = vmatprep.subr.mxu0 0.0
    %7961 = vmatpush1.msra.mxu0 %v225
    %7962 = vmatprep.subr.mxu0 0.0
    %7963 = vmatpush1.msra.mxu0 %v226
    %7964 = vmatprep.subr.mxu0 0.0
    %7965 = vmatpush1.msra.mxu0 %v227
    %7966 = vmatprep.subr.mxu0 0.0
    %7967 = vmatpush1.msra.mxu0 %v228
    %7968 = vmatprep.subr.mxu0 0.0
    %7969 = vmatpush1.msra.mxu0 %v229
    %7970 = vmatprep.subr.mxu0 0.0
    %7971 = vmatpush1.msra.mxu0 0.0
    %7972 = vmatprep.subr.mxu0 0.0
    %7973 = vmatpush1.msra.mxu0 0.0
    %7974 = vmatprep.subr.mxu0 0.0
    %7975 = vmatpush1.msra.mxu0 0.0
    %7976 = vmatprep.subr.mxu0 0.0
    %7977 = vmatpush1.msra.mxu0 0.0
    %7978 = vmatprep.subr.mxu0 0.0
    %7979 = vmatpush1.msra.mxu0 0.0
    %7980 = vmatprep.subr.mxu0 0.0
    %7981 = vmatpush1.msra.mxu0 0.0
    %7982 = vmatprep.subr.mxu0 0.0
    %7983 = vmatpush1.msra.mxu0 0.0
    %7984 = vmatprep.subr.mxu0 0.0
    %7985 = vmatpush1.msra.mxu0 0.0
    %7986 = vmatprep.subr.mxu0 0.0
    %7987 = vmatpush1.msra.mxu0 0.0
    %7988 = vmatprep.subr.mxu0 0.0
    %7989 = vmatpush1.msra.mxu0 0.0
    %7990 = vmatprep.subr.mxu0 0.0
    %7991 = vmatpush1.msra.mxu0 0.0
    %7992 = vmatprep.subr.mxu0 0.0
    %7993 = vmatpush1.msra.mxu0 0.0
    %7994 = vmatprep.subr.mxu0 0.0
    %7995 = vmatpush1.msra.mxu0 0.0
    %7996 = vmatprep.subr.mxu0 0.0
    %7997 = vmatpush1.msra.mxu0 0.0
    %7998 = vmatprep.subr.mxu0 0.0
    %7999 = vmatpush1.msra.mxu0 0.0
    %8000 = vmatprep.subr.mxu0 0.0
    %8001 = vmatpush1.msra.mxu0 0.0
    %8002 = vmatprep.subr.mxu0 0.0
    %8003 = vmatpush1.msra.mxu0 0.0
    %8004 = vmatprep.subr.mxu0 0.0
    %8005 = vmatpush1.msra.mxu0 0.0
    %8006 = vmatprep.subr.mxu0 0.0
    %8007 = vmatpush1.msra.mxu0 0.0
    %8008 = vmatprep.subr.mxu0 0.0
    %8009 = vmatpush1.msra.mxu0 0.0
    %8010 = vmatprep.subr.mxu0 0.0
    %8011 = vmatpush1.msra.mxu0 0.0
    %8012 = vmatprep.subr.mxu0 0.0
    %8013 = vmatpush1.msra.mxu0 0.0
    %8014 = vmatprep.subr.mxu0 0.0
    %8015 = vmatpush1.msra.mxu0 0.0
    %8016 = vmatprep.subr.mxu0 0.0
    %8017 = vmatpush1.msra.mxu0 0.0
    %8018 = vmatprep.mubr.f32.mxu0 0.0
    %8019 = vmatmul.mubr.f32.gmra.mrb[0].mxu0 %v7952
    %v8020 = vpop.f32.mrb[0].mxu0
    %v8021 = vadd.f32 %v517, %v8020
    %v8022 = vpop.f32.mrb[0].mxu0
    %8023 = vdwg.mxu0
    %v8025 = vsel %vm250, %v7946, 0
    %8027 = vmatprep.subr.mxu0 0.0
    %8028 = vmatpush1.msra.mxu0 %v230
    %8029 = vmatprep.subr.mxu0 0.0
    %8030 = vmatpush1.msra.mxu0 %v231
    %8031 = vmatprep.subr.mxu0 0.0
    %8032 = vmatpush1.msra.mxu0 %v232
    %8033 = vmatprep.subr.mxu0 0.0
    %8034 = vmatpush1.msra.mxu0 %v233
    %8035 = vmatprep.subr.mxu0 0.0
    %8036 = vmatpush1.msra.mxu0 0.0
    %8037 = vmatprep.subr.mxu0 0.0
    %8038 = vmatpush1.msra.mxu0 0.0
    %8039 = vmatprep.subr.mxu0 0.0
    %8040 = vmatpush1.msra.mxu0 0.0
    %8041 = vmatprep.subr.mxu0 0.0
    %8042 = vmatpush1.msra.mxu0 0.0
    %8043 = vmatprep.subr.mxu0 0.0
    %8044 = vmatpush1.msra.mxu0 0.0
    %8045 = vmatprep.subr.mxu0 0.0
    %8046 = vmatpush1.msra.mxu0 0.0
    %8047 = vmatprep.subr.mxu0 0.0
    %8048 = vmatpush1.msra.mxu0 0.0
    %8049 = vmatprep.subr.mxu0 0.0
    %8050 = vmatpush1.msra.mxu0 0.0
    %8051 = vmatprep.subr.mxu0 0.0
    %8052 = vmatpush1.msra.mxu0 0.0
    %8053 = vmatprep.subr.mxu0 0.0
    %8054 = vmatpush1.msra.mxu0 0.0
    %8055 = vmatprep.subr.mxu0 0.0
    %8056 = vmatpush1.msra.mxu0 0.0
    %8057 = vmatprep.subr.mxu0 0.0
    %8058 = vmatpush1.msra.mxu0 0.0
    %8059 = vmatprep.subr.mxu0 0.0
    %8060 = vmatpush1.msra.mxu0 0.0
    %8061 = vmatprep.subr.mxu0 0.0
    %8062 = vmatpush1.msra.mxu0 0.0
    %8063 = vmatprep.subr.mxu0 0.0
    %8064 = vmatpush1.msra.mxu0 0.0
    %8065 = vmatprep.subr.mxu0 0.0
    %8066 = vmatpush1.msra.mxu0 0.0
    %8067 = vmatprep.subr.mxu0 0.0
    %8068 = vmatpush1.msra.mxu0 0.0
    %8069 = vmatprep.subr.mxu0 0.0
    %8070 = vmatpush1.msra.mxu0 0.0
    %8071 = vmatprep.subr.mxu0 0.0
    %8072 = vmatpush1.msra.mxu0 0.0
    %8073 = vmatprep.subr.mxu0 0.0
    %8074 = vmatpush1.msra.mxu0 0.0
    %8075 = vmatprep.subr.mxu0 0.0
    %8076 = vmatpush1.msra.mxu0 0.0
    %8077 = vmatprep.subr.mxu0 0.0
    %8078 = vmatpush1.msra.mxu0 0.0
    %8079 = vmatprep.subr.mxu0 0.0
    %8080 = vmatpush1.msra.mxu0 0.0
    %8081 = vmatprep.subr.mxu0 0.0
    %8082 = vmatpush1.msra.mxu0 0.0
    %8083 = vmatprep.subr.mxu0 0.0
    %8084 = vmatpush1.msra.mxu0 0.0
    %8085 = vmatprep.subr.mxu0 0.0
    %8086 = vmatpush1.msra.mxu0 0.0
    %8087 = vmatprep.subr.mxu0 0.0
    %8088 = vmatpush1.msra.mxu0 0.0
    %8089 = vmatprep.subr.mxu0 0.0
    %8090 = vmatpush1.msra.mxu0 0.0
    %8091 = vmatprep.mubr.f32.mxu0 0.0
    %8092 = vmatmul.mubr.f32.gmra.mrb[0].mxu0 %v8025
    %v8093 = vpop.f32.mrb[0].mxu0
    %v8094 = vadd.f32 %v597, %v8093
    %v8095 = vpop.f32.mrb[0].mxu0
    %8096 = vdwg.mxu0
    %v8097 = vxor.u32 %v8021, 2147483648
    %v8098 = vmul.f32 %v8097, 1.442695
    %v8099 = vpow.pop %v8098
    %v8100 = vadd.f32 %v8099, 1.0
    %v8101 = vrcp.pop %v8100
    %v8102 = vmul.f32 1.0, %v8101
    %v8103 = vmul.f32 %v8102, %v7915
    %v8104 = vadd.f32 %v8094, %v8103
    %v8105 = vtanh.pop %v8104
    %v8106 = vsub.f32 %v7704, %v8105
    %8108 = vrot.lane.b32.xlu0 %v8106, 32
    %v8109 = vpop.permute.xlu0 %8108
    %v8111 = vmul.f32 %v8102, %v8109
    %8113 = vrot.lane.b32.xlu0 %v8111, 96
    %v8114 = vpop.permute.xlu0 %8113
    %v8116 = vadd.f32 %v8105, %v8114
    %8117 = vmatprep.subr.mxu0 0.0
    %8118 = vmatpush1.msra.mxu0 %v213
    %8119 = vmatprep.subr.mxu0 0.0
    %8120 = vmatpush1.msra.mxu0 %v214
    %8121 = vmatprep.subr.mxu0 0.0
    %8122 = vmatpush1.msra.mxu0 %v215
    %8123 = vmatprep.subr.mxu0 0.0
    %8124 = vmatpush1.msra.mxu0 %v216
    %8125 = vmatprep.subr.mxu0 0.0
    %8126 = vmatpush1.msra.mxu0 0.0
    %8127 = vmatprep.subr.mxu0 0.0
    %8128 = vmatpush1.msra.mxu0 0.0
    %8129 = vmatprep.subr.mxu0 0.0
    %8130 = vmatpush1.msra.mxu0 0.0
    %8131 = vmatprep.subr.mxu0 0.0
    %8132 = vmatpush1.msra.mxu0 0.0
    %8133 = vmatprep.subr.mxu0 0.0
    %8134 = vmatpush1.msra.mxu0 0.0
    %8135 = vmatprep.subr.mxu0 0.0
    %8136 = vmatpush1.msra.mxu0 0.0
    %8137 = vmatprep.subr.mxu0 0.0
    %8138 = vmatpush1.msra.mxu0 0.0
    %8139 = vmatprep.subr.mxu0 0.0
    %8140 = vmatpush1.msra.mxu0 0.0
    %8141 = vmatprep.subr.mxu0 0.0
    %8142 = vmatpush1.msra.mxu0 0.0
    %8143 = vmatprep.subr.mxu0 0.0
    %8144 = vmatpush1.msra.mxu0 0.0
    %8145 = vmatprep.subr.mxu0 0.0
    %8146 = vmatpush1.msra.mxu0 0.0
    %8147 = vmatprep.subr.mxu0 0.0
    %8148 = vmatpush1.msra.mxu0 0.0
    %8149 = vmatprep.subr.mxu0 0.0
    %8150 = vmatpush1.msra.mxu0 0.0
    %8151 = vmatprep.subr.mxu0 0.0
    %8152 = vmatpush1.msra.mxu0 0.0
    %8153 = vmatprep.subr.mxu0 0.0
    %8154 = vmatpush1.msra.mxu0 0.0
    %8155 = vmatprep.subr.mxu0 0.0
    %8156 = vmatpush1.msra.mxu0 0.0
    %8157 = vmatprep.subr.mxu0 0.0
    %8158 = vmatpush1.msra.mxu0 0.0
    %8159 = vmatprep.subr.mxu0 0.0
    %8160 = vmatpush1.msra.mxu0 0.0
    %8161 = vmatprep.subr.mxu0 0.0
    %8162 = vmatpush1.msra.mxu0 0.0
    %8163 = vmatprep.subr.mxu0 0.0
    %8164 = vmatpush1.msra.mxu0 0.0
    %8165 = vmatprep.subr.mxu0 0.0
    %8166 = vmatpush1.msra.mxu0 0.0
    %8167 = vmatprep.subr.mxu0 0.0
    %8168 = vmatpush1.msra.mxu0 0.0
    %8169 = vmatprep.subr.mxu0 0.0
    %8170 = vmatpush1.msra.mxu0 0.0
    %8171 = vmatprep.subr.mxu0 0.0
    %8172 = vmatpush1.msra.mxu0 0.0
    %8173 = vmatprep.subr.mxu0 0.0
    %8174 = vmatpush1.msra.mxu0 0.0
    %8175 = vmatprep.subr.mxu0 0.0
    %8176 = vmatpush1.msra.mxu0 0.0
    %8177 = vmatprep.subr.mxu0 0.0
    %8178 = vmatpush1.msra.mxu0 0.0
    %8179 = vmatprep.subr.mxu0 0.0
    %8180 = vmatpush1.msra.mxu0 0.0
    %8181 = vmatprep.mubr.f32.mxu0 0.0
    %8182 = vmatmul.mubr.f32.gmra.mrb[0].mxu0 %v8025
    %v8183 = vpop.f32.mrb[0].mxu0
    %v8184 = vadd.f32 0.0, %v8183
    %v8185 = vpop.f32.mrb[0].mxu0
    %8186 = vdwg.mxu0
    %8187 = vmatprep.subr.mxu0 0.0
    %8188 = vmatpush1.msra.mxu0 %v217
    %8189 = vmatprep.subr.mxu0 0.0
    %8190 = vmatpush1.msra.mxu0 %v218
    %8191 = vmatprep.subr.mxu0 0.0
    %8192 = vmatpush1.msra.mxu0 %v219
    %8193 = vmatprep.subr.mxu0 0.0
    %8194 = vmatpush1.msra.mxu0 %v220
    %8195 = vmatprep.subr.mxu0 0.0
    %8196 = vmatpush1.msra.mxu0 0.0
    %8197 = vmatprep.subr.mxu0 0.0
    %8198 = vmatpush1.msra.mxu0 0.0
    %8199 = vmatprep.subr.mxu0 0.0
    %8200 = vmatpush1.msra.mxu0 0.0
    %8201 = vmatprep.subr.mxu0 0.0
    %8202 = vmatpush1.msra.mxu0 0.0
    %8203 = vmatprep.subr.mxu0 0.0
    %8204 = vmatpush1.msra.mxu0 0.0
    %8205 = vmatprep.subr.mxu0 0.0
    %8206 = vmatpush1.msra.mxu0 0.0
    %8207 = vmatprep.subr.mxu0 0.0
    %8208 = vmatpush1.msra.mxu0 0.0
    %8209 = vmatprep.subr.mxu0 0.0
    %8210 = vmatpush1.msra.mxu0 0.0
    %8211 = vmatprep.subr.mxu0 0.0
    %8212 = vmatpush1.msra.mxu0 0.0
    %8213 = vmatprep.subr.mxu0 0.0
    %8214 = vmatpush1.msra.mxu0 0.0
    %8215 = vmatprep.subr.mxu0 0.0
    %8216 = vmatpush1.msra.mxu0 0.0
    %8217 = vmatprep.subr.mxu0 0.0
    %8218 = vmatpush1.msra.mxu0 0.0
    %8219 = vmatprep.subr.mxu0 0.0
    %8220 = vmatpush1.msra.mxu0 0.0
    %8221 = vmatprep.subr.mxu0 0.0
    %8222 = vmatpush1.msra.mxu0 0.0
    %8223 = vmatprep.subr.mxu0 0.0
    %8224 = vmatpush1.msra.mxu0 0.0
    %8225 = vmatprep.subr.mxu0 0.0
    %8226 = vmatpush1.msra.mxu0 0.0
    %8227 = vmatprep.subr.mxu0 0.0
    %8228 = vmatpush1.msra.mxu0 0.0
    %8229 = vmatprep.subr.mxu0 0.0
    %8230 = vmatpush1.msra.mxu0 0.0
    %8231 = vmatprep.subr.mxu0 0.0
    %8232 = vmatpush1.msra.mxu0 0.0
    %8233 = vmatprep.subr.mxu0 0.0
    %8234 = vmatpush1.msra.mxu0 0.0
    %8235 = vmatprep.subr.mxu0 0.0
    %8236 = vmatpush1.msra.mxu0 0.0
    %8237 = vmatprep.subr.mxu0 0.0
    %8238 = vmatpush1.msra.mxu0 0.0
    %8239 = vmatprep.subr.mxu0 0.0
    %8240 = vmatpush1.msra.mxu0 0.0
    %8241 = vmatprep.subr.mxu0 0.0
    %8242 = vmatpush1.msra.mxu0 0.0
    %8243 = vmatprep.subr.mxu0 0.0
    %8244 = vmatpush1.msra.mxu0 0.0
    %8245 = vmatprep.subr.mxu0 0.0
    %8246 = vmatpush1.msra.mxu0 0.0
    %8247 = vmatprep.subr.mxu0 0.0
    %8248 = vmatpush1.msra.mxu0 0.0
    %8249 = vmatprep.subr.mxu0 0.0
    %8250 = vmatpush1.msra.mxu0 0.0
    %8251 = vmatprep.mubr.f32.mxu0 0.0
    %8252 = vmatmul.mubr.f32.gmra.mrb[0].mxu0 %v8025
    %v8253 = vpop.f32.mrb[0].mxu0
    %v8254 = vadd.f32 %v328, %v8253
    %v8255 = vpop.f32.mrb[0].mxu0
    %8256 = vdwg.mxu0
    %v8258 = vsel %vm250, %v8116, 0
    %8260 = vmatprep.subr.mxu0 0.0
    %8261 = vmatpush1.msra.mxu0 %v234
    %8262 = vmatprep.subr.mxu0 0.0
    %8263 = vmatpush1.msra.mxu0 %v235
    %8264 = vmatprep.subr.mxu0 0.0
    %8265 = vmatpush1.msra.mxu0 %v236
    %8266 = vmatprep.subr.mxu0 0.0
    %8267 = vmatpush1.msra.mxu0 %v237
    %8268 = vmatprep.subr.mxu0 0.0
    %8269 = vmatpush1.msra.mxu0 0.0
    %8270 = vmatprep.subr.mxu0 0.0
    %8271 = vmatpush1.msra.mxu0 0.0
    %8272 = vmatprep.subr.mxu0 0.0
    %8273 = vmatpush1.msra.mxu0 0.0
    %8274 = vmatprep.subr.mxu0 0.0
    %8275 = vmatpush1.msra.mxu0 0.0
    %8276 = vmatprep.subr.mxu0 0.0
    %8277 = vmatpush1.msra.mxu0 0.0
    %8278 = vmatprep.subr.mxu0 0.0
    %8279 = vmatpush1.msra.mxu0 0.0
    %8280 = vmatprep.subr.mxu0 0.0
    %8281 = vmatpush1.msra.mxu0 0.0
    %8282 = vmatprep.subr.mxu0 0.0
    %8283 = vmatpush1.msra.mxu0 0.0
    %8284 = vmatprep.subr.mxu0 0.0
    %8285 = vmatpush1.msra.mxu0 0.0
    %8286 = vmatprep.subr.mxu0 0.0
    %8287 = vmatpush1.msra.mxu0 0.0
    %8288 = vmatprep.subr.mxu0 0.0
    %8289 = vmatpush1.msra.mxu0 0.0
    %8290 = vmatprep.subr.mxu0 0.0
    %8291 = vmatpush1.msra.mxu0 0.0
    %8292 = vmatprep.subr.mxu0 0.0
    %8293 = vmatpush1.msra.mxu0 0.0
    %8294 = vmatprep.subr.mxu0 0.0
    %8295 = vmatpush1.msra.mxu0 0.0
    %8296 = vmatprep.subr.mxu0 0.0
    %8297 = vmatpush1.msra.mxu0 0.0
    %8298 = vmatprep.subr.mxu0 0.0
    %8299 = vmatpush1.msra.mxu0 0.0
    %8300 = vmatprep.subr.mxu0 0.0
    %8301 = vmatpush1.msra.mxu0 0.0
    %8302 = vmatprep.subr.mxu0 0.0
    %8303 = vmatpush1.msra.mxu0 0.0
    %8304 = vmatprep.subr.mxu0 0.0
    %8305 = vmatpush1.msra.mxu0 0.0
    %8306 = vmatprep.subr.mxu0 0.0
    %8307 = vmatpush1.msra.mxu0 0.0
    %8308 = vmatprep.subr.mxu0 0.0
    %8309 = vmatpush1.msra.mxu0 0.0
    %8310 = vmatprep.subr.mxu0 0.0
    %8311 = vmatpush1.msra.mxu0 0.0
    %8312 = vmatprep.subr.mxu0 0.0
    %8313 = vmatpush1.msra.mxu0 0.0
    %8314 = vmatprep.subr.mxu0 0.0
    %8315 = vmatpush1.msra.mxu0 0.0
    %8316 = vmatprep.subr.mxu0 0.0
    %8317 = vmatpush1.msra.mxu0 0.0
    %8318 = vmatprep.subr.mxu0 0.0
    %8319 = vmatpush1.msra.mxu0 0.0
    %8320 = vmatprep.subr.mxu0 0.0
    %8321 = vmatpush1.msra.mxu0 0.0
    %8322 = vmatprep.subr.mxu0 0.0
    %8323 = vmatpush1.msra.mxu0 0.0
    %8324 = vmatprep.mubr.f32.mxu0 0.0
    %8325 = vmatmul.mubr.f32.gmra.mrb[0].mxu0 %v8258
    %v8326 = vpop.f32.mrb[0].mxu0
    %v8327 = vadd.f32 %v404, %v8326
    %v8328 = vpop.f32.mrb[0].mxu0
    %8329 = vdwg.mxu0
    %8330 = vset.pattern.permute.xlu0 3
    %8331 = vperm.xlu0 %8330, %v6879
    %v8332 = vpop.permute.xlu0 %8331
    %v8334 = vmul.f32 %v8332, %v190
    %v8335 = vadd.f32 %v8334, %v204
    %v8336 = vadd.f32 %v8335, %v8184
    %v8337 = vmul.f32 %v8332, %v197
    %v8338 = vadd.f32 %v8337, %v211
    %v8339 = vxor.u32 %v8336, 2147483648
    %v8340 = vmul.f32 %v8339, 1.442695
    %v8341 = vpow.pop %v8340
    %v8342 = vadd.f32 %v8341, 1.0
    %v8343 = vrcp.pop %v8342
    %v8344 = vmul.f32 1.0, %v8343
    %v8345 = vmul.f32 %v8344, %v8254
    %v8346 = vadd.f32 %v8338, %v8345
    %v8347 = vtanh.pop %v8346
    %v8348 = vsub.f32 %v7946, %v8347
    %8350 = vrot.lane.b32.xlu0 %v8348, 32
    %v8351 = vpop.permute.xlu0 %8350
    %v8353 = vmul.f32 %v8344, %v8351
    %8355 = vrot.lane.b32.xlu0 %v8353, 96
    %v8356 = vpop.permute.xlu0 %8355
    %v8358 = vadd.f32 %v8347, %v8356
    %8359 = vrot.lane.b32.xlu0 %v8116, 32
    %v8360 = vpop.permute.xlu0 %8359
    %v8362 = vsel %vm250, %v8358, %v8360
    %v8364 = vsel %vm519, %v8362, 0
    %8366 = vmatprep.subr.mxu0 0.0
    %8367 = vmatpush1.msra.mxu0 %v222
    %8368 = vmatprep.subr.mxu0 0.0
    %8369 = vmatpush1.msra.mxu0 %v223
    %8370 = vmatprep.subr.mxu0 0.0
    %8371 = vmatpush1.msra.mxu0 %v224
    %8372 = vmatprep.subr.mxu0 0.0
    %8373 = vmatpush1.msra.mxu0 %v225
    %8374 = vmatprep.subr.mxu0 0.0
    %8375 = vmatpush1.msra.mxu0 %v226
    %8376 = vmatprep.subr.mxu0 0.0
    %8377 = vmatpush1.msra.mxu0 %v227
    %8378 = vmatprep.subr.mxu0 0.0
    %8379 = vmatpush1.msra.mxu0 %v228
    %8380 = vmatprep.subr.mxu0 0.0
    %8381 = vmatpush1.msra.mxu0 %v229
    %8382 = vmatprep.subr.mxu0 0.0
    %8383 = vmatpush1.msra.mxu0 0.0
    %8384 = vmatprep.subr.mxu0 0.0
    %8385 = vmatpush1.msra.mxu0 0.0
    %8386 = vmatprep.subr.mxu0 0.0
    %8387 = vmatpush1.msra.mxu0 0.0
    %8388 = vmatprep.subr.mxu0 0.0
    %8389 = vmatpush1.msra.mxu0 0.0
    %8390 = vmatprep.subr.mxu0 0.0
    %8391 = vmatpush1.msra.mxu0 0.0
    %8392 = vmatprep.subr.mxu0 0.0
    %8393 = vmatpush1.msra.mxu0 0.0
    %8394 = vmatprep.subr.mxu0 0.0
    %8395 = vmatpush1.msra.mxu0 0.0
    %8396 = vmatprep.subr.mxu0 0.0
    %8397 = vmatpush1.msra.mxu0 0.0
    %8398 = vmatprep.subr.mxu0 0.0
    %8399 = vmatpush1.msra.mxu0 0.0
    %8400 = vmatprep.subr.mxu0 0.0
    %8401 = vmatpush1.msra.mxu0 0.0
    %8402 = vmatprep.subr.mxu0 0.0
    %8403 = vmatpush1.msra.mxu0 0.0
    %8404 = vmatprep.subr.mxu0 0.0
    %8405 = vmatpush1.msra.mxu0 0.0
    %8406 = vmatprep.subr.mxu0 0.0
    %8407 = vmatpush1.msra.mxu0 0.0
    %8408 = vmatprep.subr.mxu0 0.0
    %8409 = vmatpush1.msra.mxu0 0.0
    %8410 = vmatprep.subr.mxu0 0.0
    %8411 = vmatpush1.msra.mxu0 0.0
    %8412 = vmatprep.subr.mxu0 0.0
    %8413 = vmatpush1.msra.mxu0 0.0
    %8414 = vmatprep.subr.mxu0 0.0
    %8415 = vmatpush1.msra.mxu0 0.0
    %8416 = vmatprep.subr.mxu0 0.0
    %8417 = vmatpush1.msra.mxu0 0.0
    %8418 = vmatprep.subr.mxu0 0.0
    %8419 = vmatpush1.msra.mxu0 0.0
    %8420 = vmatprep.subr.mxu0 0.0
    %8421 = vmatpush1.msra.mxu0 0.0
    %8422 = vmatprep.subr.mxu0 0.0
    %8423 = vmatpush1.msra.mxu0 0.0
    %8424 = vmatprep.subr.mxu0 0.0
    %8425 = vmatpush1.msra.mxu0 0.0
    %8426 = vmatprep.subr.mxu0 0.0
    %8427 = vmatpush1.msra.mxu0 0.0
    %8428 = vmatprep.subr.mxu0 0.0
    %8429 = vmatpush1.msra.mxu0 0.0
    %8430 = vmatprep.mubr.f32.mxu0 0.0
    %8431 = vmatmul.mubr.f32.gmra.mrb[0].mxu0 %v8364
    %v8432 = vpop.f32.mrb[0].mxu0
    %v8433 = vadd.f32 %v517, %v8432
    %v8434 = vpop.f32.mrb[0].mxu0
    %8435 = vdwg.mxu0
    %v8437 = vsel %vm250, %v8358, 0
    %8439 = vmatprep.subr.mxu0 0.0
    %8440 = vmatpush1.msra.mxu0 %v230
    %8441 = vmatprep.subr.mxu0 0.0
    %8442 = vmatpush1.msra.mxu0 %v231
    %8443 = vmatprep.subr.mxu0 0.0
    %8444 = vmatpush1.msra.mxu0 %v232
    %8445 = vmatprep.subr.mxu0 0.0
    %8446 = vmatpush1.msra.mxu0 %v233
    %8447 = vmatprep.subr.mxu0 0.0
    %8448 = vmatpush1.msra.mxu0 0.0
    %8449 = vmatprep.subr.mxu0 0.0
    %8450 = vmatpush1.msra.mxu0 0.0
    %8451 = vmatprep.subr.mxu0 0.0
    %8452 = vmatpush1.msra.mxu0 0.0
    %8453 = vmatprep.subr.mxu0 0.0
    %8454 = vmatpush1.msra.mxu0 0.0
    %8455 = vmatprep.subr.mxu0 0.0
    %8456 = vmatpush1.msra.mxu0 0.0
    %8457 = vmatprep.subr.mxu0 0.0
    %8458 = vmatpush1.msra.mxu0 0.0
    %8459 = vmatprep.subr.mxu0 0.0
    %8460 = vmatpush1.msra.mxu0 0.0
    %8461 = vmatprep.subr.mxu0 0.0
    %8462 = vmatpush1.msra.mxu0 0.0
    %8463 = vmatprep.subr.mxu0 0.0
    %8464 = vmatpush1.msra.mxu0 0.0
    %8465 = vmatprep.subr.mxu0 0.0
    %8466 = vmatpush1.msra.mxu0 0.0
    %8467 = vmatprep.subr.mxu0 0.0
    %8468 = vmatpush1.msra.mxu0 0.0
    %8469 = vmatprep.subr.mxu0 0.0
    %8470 = vmatpush1.msra.mxu0 0.0
    %8471 = vmatprep.subr.mxu0 0.0
    %8472 = vmatpush1.msra.mxu0 0.0
    %8473 = vmatprep.subr.mxu0 0.0
    %8474 = vmatpush1.msra.mxu0 0.0
    %8475 = vmatprep.subr.mxu0 0.0
    %8476 = vmatpush1.msra.mxu0 0.0
    %8477 = vmatprep.subr.mxu0 0.0
    %8478 = vmatpush1.msra.mxu0 0.0
    %8479 = vmatprep.subr.mxu0 0.0
    %8480 = vmatpush1.msra.mxu0 0.0
    %8481 = vmatprep.subr.mxu0 0.0
    %8482 = vmatpush1.msra.mxu0 0.0
    %8483 = vmatprep.subr.mxu0 0.0
    %8484 = vmatpush1.msra.mxu0 0.0
    %8485 = vmatprep.subr.mxu0 0.0
    %8486 = vmatpush1.msra.mxu0 0.0
    %8487 = vmatprep.subr.mxu0 0.0
    %8488 = vmatpush1.msra.mxu0 0.0
    %8489 = vmatprep.subr.mxu0 0.0
    %8490 = vmatpush1.msra.mxu0 0.0
    %8491 = vmatprep.subr.mxu0 0.0
    %8492 = vmatpush1.msra.mxu0 0.0
    %8493 = vmatprep.subr.mxu0 0.0
    %8494 = vmatpush1.msra.mxu0 0.0
    %8495 = vmatprep.subr.mxu0 0.0
    %8496 = vmatpush1.msra.mxu0 0.0
    %8497 = vmatprep.subr.mxu0 0.0
    %8498 = vmatpush1.msra.mxu0 0.0
    %8499 = vmatprep.subr.mxu0 0.0
    %8500 = vmatpush1.msra.mxu0 0.0
    %8501 = vmatprep.subr.mxu0 0.0
    %8502 = vmatpush1.msra.mxu0 0.0
    %8503 = vmatprep.mubr.f32.mxu0 0.0
    %8504 = vmatmul.mubr.f32.gmra.mrb[0].mxu0 %v8437
    %v8505 = vpop.f32.mrb[0].mxu0
    %v8506 = vadd.f32 %v597, %v8505
    %v8507 = vpop.f32.mrb[0].mxu0
    %8508 = vdwg.mxu0
    %v8509 = vxor.u32 %v8433, 2147483648
    %v8510 = vmul.f32 %v8509, 1.442695
    %v8511 = vpow.pop %v8510
    %v8512 = vadd.f32 %v8511, 1.0
    %v8513 = vrcp.pop %v8512
    %v8514 = vmul.f32 1.0, %v8513
    %v8515 = vmul.f32 %v8514, %v8327
    %v8516 = vadd.f32 %v8506, %v8515
    %v8517 = vtanh.pop %v8516
    %v8518 = vsub.f32 %v8116, %v8517
    %8520 = vrot.lane.b32.xlu0 %v8518, 32
    %v8521 = vpop.permute.xlu0 %8520
    %v8523 = vmul.f32 %v8514, %v8521
    %8525 = vrot.lane.b32.xlu0 %v8523, 96
    %v8526 = vpop.permute.xlu0 %8525
    %v8528 = vadd.f32 %v8517, %v8526
    %8529 = vmatprep.subr.mxu0 0.0
    %8530 = vmatpush1.msra.mxu0 %v213
    %8531 = vmatprep.subr.mxu0 0.0
    %8532 = vmatpush1.msra.mxu0 %v214
    %8533 = vmatprep.subr.mxu0 0.0
    %8534 = vmatpush1.msra.mxu0 %v215
    %8535 = vmatprep.subr.mxu0 0.0
    %8536 = vmatpush1.msra.mxu0 %v216
    %8537 = vmatprep.subr.mxu0 0.0
    %8538 = vmatpush1.msra.mxu0 0.0
    %8539 = vmatprep.subr.mxu0 0.0
    %8540 = vmatpush1.msra.mxu0 0.0
    %8541 = vmatprep.subr.mxu0 0.0
    %8542 = vmatpush1.msra.mxu0 0.0
    %8543 = vmatprep.subr.mxu0 0.0
    %8544 = vmatpush1.msra.mxu0 0.0
    %8545 = vmatprep.subr.mxu0 0.0
    %8546 = vmatpush1.msra.mxu0 0.0
    %8547 = vmatprep.subr.mxu0 0.0
    %8548 = vmatpush1.msra.mxu0 0.0
    %8549 = vmatprep.subr.mxu0 0.0
    %8550 = vmatpush1.msra.mxu0 0.0
    %8551 = vmatprep.subr.mxu0 0.0
    %8552 = vmatpush1.msra.mxu0 0.0
    %8553 = vmatprep.subr.mxu0 0.0
    %8554 = vmatpush1.msra.mxu0 0.0
    %8555 = vmatprep.subr.mxu0 0.0
    %8556 = vmatpush1.msra.mxu0 0.0
    %8557 = vmatprep.subr.mxu0 0.0
    %8558 = vmatpush1.msra.mxu0 0.0
    %8559 = vmatprep.subr.mxu0 0.0
    %8560 = vmatpush1.msra.mxu0 0.0
    %8561 = vmatprep.subr.mxu0 0.0
    %8562 = vmatpush1.msra.mxu0 0.0
    %8563 = vmatprep.subr.mxu0 0.0
    %8564 = vmatpush1.msra.mxu0 0.0
    %8565 = vmatprep.subr.mxu0 0.0
    %8566 = vmatpush1.msra.mxu0 0.0
    %8567 = vmatprep.subr.mxu0 0.0
    %8568 = vmatpush1.msra.mxu0 0.0
    %8569 = vmatprep.subr.mxu0 0.0
    %8570 = vmatpush1.msra.mxu0 0.0
    %8571 = vmatprep.subr.mxu0 0.0
    %8572 = vmatpush1.msra.mxu0 0.0
    %8573 = vmatprep.subr.mxu0 0.0
    %8574 = vmatpush1.msra.mxu0 0.0
    %8575 = vmatprep.subr.mxu0 0.0
    %8576 = vmatpush1.msra.mxu0 0.0
    %8577 = vmatprep.subr.mxu0 0.0
    %8578 = vmatpush1.msra.mxu0 0.0
    %8579 = vmatprep.subr.mxu0 0.0
    %8580 = vmatpush1.msra.mxu0 0.0
    %8581 = vmatprep.subr.mxu0 0.0
    %8582 = vmatpush1.msra.mxu0 0.0
    %8583 = vmatprep.subr.mxu0 0.0
    %8584 = vmatpush1.msra.mxu0 0.0
    %8585 = vmatprep.subr.mxu0 0.0
    %8586 = vmatpush1.msra.mxu0 0.0
    %8587 = vmatprep.subr.mxu0 0.0
    %8588 = vmatpush1.msra.mxu0 0.0
    %8589 = vmatprep.subr.mxu0 0.0
    %8590 = vmatpush1.msra.mxu0 0.0
    %8591 = vmatprep.subr.mxu0 0.0
    %8592 = vmatpush1.msra.mxu0 0.0
    %8593 = vmatprep.mubr.f32.mxu0 0.0
    %8594 = vmatmul.mubr.f32.gmra.mrb[0].mxu0 %v8437
    %v8595 = vpop.f32.mrb[0].mxu0
    %v8596 = vadd.f32 0.0, %v8595
    %v8597 = vpop.f32.mrb[0].mxu0
    %8598 = vdwg.mxu0
    %8599 = vmatprep.subr.mxu0 0.0
    %8600 = vmatpush1.msra.mxu0 %v217
    %8601 = vmatprep.subr.mxu0 0.0
    %8602 = vmatpush1.msra.mxu0 %v218
    %8603 = vmatprep.subr.mxu0 0.0
    %8604 = vmatpush1.msra.mxu0 %v219
    %8605 = vmatprep.subr.mxu0 0.0
    %8606 = vmatpush1.msra.mxu0 %v220
    %8607 = vmatprep.subr.mxu0 0.0
    %8608 = vmatpush1.msra.mxu0 0.0
    %8609 = vmatprep.subr.mxu0 0.0
    %8610 = vmatpush1.msra.mxu0 0.0
    %8611 = vmatprep.subr.mxu0 0.0
    %8612 = vmatpush1.msra.mxu0 0.0
    %8613 = vmatprep.subr.mxu0 0.0
    %8614 = vmatpush1.msra.mxu0 0.0
    %8615 = vmatprep.subr.mxu0 0.0
    %8616 = vmatpush1.msra.mxu0 0.0
    %8617 = vmatprep.subr.mxu0 0.0
    %8618 = vmatpush1.msra.mxu0 0.0
    %8619 = vmatprep.subr.mxu0 0.0
    %8620 = vmatpush1.msra.mxu0 0.0
    %8621 = vmatprep.subr.mxu0 0.0
    %8622 = vmatpush1.msra.mxu0 0.0
    %8623 = vmatprep.subr.mxu0 0.0
    %8624 = vmatpush1.msra.mxu0 0.0
    %8625 = vmatprep.subr.mxu0 0.0
    %8626 = vmatpush1.msra.mxu0 0.0
    %8627 = vmatprep.subr.mxu0 0.0
    %8628 = vmatpush1.msra.mxu0 0.0
    %8629 = vmatprep.subr.mxu0 0.0
    %8630 = vmatpush1.msra.mxu0 0.0
    %8631 = vmatprep.subr.mxu0 0.0
    %8632 = vmatpush1.msra.mxu0 0.0
    %8633 = vmatprep.subr.mxu0 0.0
    %8634 = vmatpush1.msra.mxu0 0.0
    %8635 = vmatprep.subr.mxu0 0.0
    %8636 = vmatpush1.msra.mxu0 0.0
    %8637 = vmatprep.subr.mxu0 0.0
    %8638 = vmatpush1.msra.mxu0 0.0
    %8639 = vmatprep.subr.mxu0 0.0
    %8640 = vmatpush1.msra.mxu0 0.0
    %8641 = vmatprep.subr.mxu0 0.0
    %8642 = vmatpush1.msra.mxu0 0.0
    %8643 = vmatprep.subr.mxu0 0.0
    %8644 = vmatpush1.msra.mxu0 0.0
    %8645 = vmatprep.subr.mxu0 0.0
    %8646 = vmatpush1.msra.mxu0 0.0
    %8647 = vmatprep.subr.mxu0 0.0
    %8648 = vmatpush1.msra.mxu0 0.0
    %8649 = vmatprep.subr.mxu0 0.0
    %8650 = vmatpush1.msra.mxu0 0.0
    %8651 = vmatprep.subr.mxu0 0.0
    %8652 = vmatpush1.msra.mxu0 0.0
    %8653 = vmatprep.subr.mxu0 0.0
    %8654 = vmatpush1.msra.mxu0 0.0
    %8655 = vmatprep.subr.mxu0 0.0
    %8656 = vmatpush1.msra.mxu0 0.0
    %8657 = vmatprep.subr.mxu0 0.0
    %8658 = vmatpush1.msra.mxu0 0.0
    %8659 = vmatprep.subr.mxu0 0.0
    %8660 = vmatpush1.msra.mxu0 0.0
    %8661 = vmatprep.subr.mxu0 0.0
    %8662 = vmatpush1.msra.mxu0 0.0
    %8663 = vmatprep.mubr.f32.mxu0 0.0
    %8664 = vmatmul.mubr.f32.gmra.mrb[0].mxu0 %v8437
    %v8665 = vpop.f32.mrb[0].mxu0
    %v8666 = vadd.f32 %v328, %v8665
    %v8667 = vpop.f32.mrb[0].mxu0
    %8668 = vdwg.mxu0
    %v8670 = vsel %vm250, %v8528, 0
    %8672 = vmatprep.subr.mxu0 0.0
    %8673 = vmatpush1.msra.mxu0 %v234
    %8674 = vmatprep.subr.mxu0 0.0
    %8675 = vmatpush1.msra.mxu0 %v235
    %8676 = vmatprep.subr.mxu0 0.0
    %8677 = vmatpush1.msra.mxu0 %v236
    %8678 = vmatprep.subr.mxu0 0.0
    %8679 = vmatpush1.msra.mxu0 %v237
    %8680 = vmatprep.subr.mxu0 0.0
    %8681 = vmatpush1.msra.mxu0 0.0
    %8682 = vmatprep.subr.mxu0 0.0
    %8683 = vmatpush1.msra.mxu0 0.0
    %8684 = vmatprep.subr.mxu0 0.0
    %8685 = vmatpush1.msra.mxu0 0.0
    %8686 = vmatprep.subr.mxu0 0.0
    %8687 = vmatpush1.msra.mxu0 0.0
    %8688 = vmatprep.subr.mxu0 0.0
    %8689 = vmatpush1.msra.mxu0 0.0
    %8690 = vmatprep.subr.mxu0 0.0
    %8691 = vmatpush1.msra.mxu0 0.0
    %8692 = vmatprep.subr.mxu0 0.0
    %8693 = vmatpush1.msra.mxu0 0.0
    %8694 = vmatprep.subr.mxu0 0.0
    %8695 = vmatpush1.msra.mxu0 0.0
    %8696 = vmatprep.subr.mxu0 0.0
    %8697 = vmatpush1.msra.mxu0 0.0
    %8698 = vmatprep.subr.mxu0 0.0
    %8699 = vmatpush1.msra.mxu0 0.0
    %8700 = vmatprep.subr.mxu0 0.0
    %8701 = vmatpush1.msra.mxu0 0.0
    %8702 = vmatprep.subr.mxu0 0.0
    %8703 = vmatpush1.msra.mxu0 0.0
    %8704 = vmatprep.subr.mxu0 0.0
    %8705 = vmatpush1.msra.mxu0 0.0
    %8706 = vmatprep.subr.mxu0 0.0
    %8707 = vmatpush1.msra.mxu0 0.0
    %8708 = vmatprep.subr.mxu0 0.0
    %8709 = vmatpush1.msra.mxu0 0.0
    %8710 = vmatprep.subr.mxu0 0.0
    %8711 = vmatpush1.msra.mxu0 0.0
    %8712 = vmatprep.subr.mxu0 0.0
    %8713 = vmatpush1.msra.mxu0 0.0
    %8714 = vmatprep.subr.mxu0 0.0
    %8715 = vmatpush1.msra.mxu0 0.0
    %8716 = vmatprep.subr.mxu0 0.0
    %8717 = vmatpush1.msra.mxu0 0.0
    %8718 = vmatprep.subr.mxu0 0.0
    %8719 = vmatpush1.msra.mxu0 0.0
    %8720 = vmatprep.subr.mxu0 0.0
    %8721 = vmatpush1.msra.mxu0 0.0
    %8722 = vmatprep.subr.mxu0 0.0
    %8723 = vmatpush1.msra.mxu0 0.0
    %8724 = vmatprep.subr.mxu0 0.0
    %8725 = vmatpush1.msra.mxu0 0.0
    %8726 = vmatprep.subr.mxu0 0.0
    %8727 = vmatpush1.msra.mxu0 0.0
    %8728 = vmatprep.subr.mxu0 0.0
    %8729 = vmatpush1.msra.mxu0 0.0
    %8730 = vmatprep.subr.mxu0 0.0
    %8731 = vmatpush1.msra.mxu0 0.0
    %8732 = vmatprep.subr.mxu0 0.0
    %8733 = vmatpush1.msra.mxu0 0.0
    %8734 = vmatprep.subr.mxu0 0.0
    %8735 = vmatpush1.msra.mxu0 0.0
    %8736 = vmatprep.mubr.f32.mxu0 0.0
    %8737 = vmatmul.mubr.f32.gmra.mrb[0].mxu0 %v8670
    %v8738 = vpop.f32.mrb[0].mxu0
    %v8739 = vadd.f32 %v404, %v8738
    %v8740 = vpop.f32.mrb[0].mxu0
    %8741 = vdwg.mxu0
    %8742 = vset.pattern.permute.xlu0 4
    %8743 = vperm.xlu0 %8742, %v6879
    %v8744 = vpop.permute.xlu0 %8743
    %v8746 = vmul.f32 %v8744, %v190
    %v8747 = vadd.f32 %v8746, %v204
    %v8748 = vadd.f32 %v8747, %v8596
    %v8749 = vmul.f32 %v8744, %v197
    %v8750 = vadd.f32 %v8749, %v211
    %v8751 = vxor.u32 %v8748, 2147483648
    %v8752 = vmul.f32 %v8751, 1.442695
    %v8753 = vpow.pop %v8752
    %v8754 = vadd.f32 %v8753, 1.0
    %v8755 = vrcp.pop %v8754
    %v8756 = vmul.f32 1.0, %v8755
    %v8757 = vmul.f32 %v8756, %v8666
    %v8758 = vadd.f32 %v8750, %v8757
    %v8759 = vtanh.pop %v8758
    %v8760 = vsub.f32 %v8358, %v8759
    %8762 = vrot.lane.b32.xlu0 %v8760, 32
    %v8763 = vpop.permute.xlu0 %8762
    %v8765 = vmul.f32 %v8756, %v8763
    %8767 = vrot.lane.b32.xlu0 %v8765, 96
    %v8768 = vpop.permute.xlu0 %8767
    %v8770 = vadd.f32 %v8759, %v8768
    %8771 = vrot.lane.b32.xlu0 %v8528, 32
    %v8772 = vpop.permute.xlu0 %8771
    %v8774 = vsel %vm250, %v8770, %v8772
    %v8776 = vsel %vm519, %v8774, 0
    %8778 = vmatprep.subr.mxu0 0.0
    %8779 = vmatpush1.msra.mxu0 %v222
    %8780 = vmatprep.subr.mxu0 0.0
    %8781 = vmatpush1.msra.mxu0 %v223
    %8782 = vmatprep.subr.mxu0 0.0
    %8783 = vmatpush1.msra.mxu0 %v224
    %8784 = vmatprep.subr.mxu0 0.0
    %8785 = vmatpush1.msra.mxu0 %v225
    %8786 = vmatprep.subr.mxu0 0.0
    %8787 = vmatpush1.msra.mxu0 %v226
    %8788 = vmatprep.subr.mxu0 0.0
    %8789 = vmatpush1.msra.mxu0 %v227
    %8790 = vmatprep.subr.mxu0 0.0
    %8791 = vmatpush1.msra.mxu0 %v228
    %8792 = vmatprep.subr.mxu0 0.0
    %8793 = vmatpush1.msra.mxu0 %v229
    %8794 = vmatprep.subr.mxu0 0.0
    %8795 = vmatpush1.msra.mxu0 0.0
    %8796 = vmatprep.subr.mxu0 0.0
    %8797 = vmatpush1.msra.mxu0 0.0
    %8798 = vmatprep.subr.mxu0 0.0
    %8799 = vmatpush1.msra.mxu0 0.0
    %8800 = vmatprep.subr.mxu0 0.0
    %8801 = vmatpush1.msra.mxu0 0.0
    %8802 = vmatprep.subr.mxu0 0.0
    %8803 = vmatpush1.msra.mxu0 0.0
    %8804 = vmatprep.subr.mxu0 0.0
    %8805 = vmatpush1.msra.mxu0 0.0
    %8806 = vmatprep.subr.mxu0 0.0
    %8807 = vmatpush1.msra.mxu0 0.0
    %8808 = vmatprep.subr.mxu0 0.0
    %8809 = vmatpush1.msra.mxu0 0.0
    %8810 = vmatprep.subr.mxu0 0.0
    %8811 = vmatpush1.msra.mxu0 0.0
    %8812 = vmatprep.subr.mxu0 0.0
    %8813 = vmatpush1.msra.mxu0 0.0
    %8814 = vmatprep.subr.mxu0 0.0
    %8815 = vmatpush1.msra.mxu0 0.0
    %8816 = vmatprep.subr.mxu0 0.0
    %8817 = vmatpush1.msra.mxu0 0.0
    %8818 = vmatprep.subr.mxu0 0.0
    %8819 = vmatpush1.msra.mxu0 0.0
    %8820 = vmatprep.subr.mxu0 0.0
    %8821 = vmatpush1.msra.mxu0 0.0
    %8822 = vmatprep.subr.mxu0 0.0
    %8823 = vmatpush1.msra.mxu0 0.0
    %8824 = vmatprep.subr.mxu0 0.0
    %8825 = vmatpush1.msra.mxu0 0.0
    %8826 = vmatprep.subr.mxu0 0.0
    %8827 = vmatpush1.msra.mxu0 0.0
    %8828 = vmatprep.subr.mxu0 0.0
    %8829 = vmatpush1.msra.mxu0 0.0
    %8830 = vmatprep.subr.mxu0 0.0
    %8831 = vmatpush1.msra.mxu0 0.0
    %8832 = vmatprep.subr.mxu0 0.0
    %8833 = vmatpush1.msra.mxu0 0.0
    %8834 = vmatprep.subr.mxu0 0.0
    %8835 = vmatpush1.msra.mxu0 0.0
    %8836 = vmatprep.subr.mxu0 0.0
    %8837 = vmatpush1.msra.mxu0 0.0
    %8838 = vmatprep.subr.mxu0 0.0
    %8839 = vmatpush1.msra.mxu0 0.0
    %8840 = vmatprep.subr.mxu0 0.0
    %8841 = vmatpush1.msra.mxu0 0.0
    %8842 = vmatprep.mubr.f32.mxu0 0.0
    %8843 = vmatmul.mubr.f32.gmra.mrb[0].mxu0 %v8776
    %v8844 = vpop.f32.mrb[0].mxu0
    %v8845 = vadd.f32 %v517, %v8844
    %v8846 = vpop.f32.mrb[0].mxu0
    %8847 = vdwg.mxu0
    %v8849 = vsel %vm250, %v8770, 0
    %8851 = vmatprep.subr.mxu0 0.0
    %8852 = vmatpush1.msra.mxu0 %v230
    %8853 = vmatprep.subr.mxu0 0.0
    %8854 = vmatpush1.msra.mxu0 %v231
    %8855 = vmatprep.subr.mxu0 0.0
    %8856 = vmatpush1.msra.mxu0 %v232
    %8857 = vmatprep.subr.mxu0 0.0
    %8858 = vmatpush1.msra.mxu0 %v233
    %8859 = vmatprep.subr.mxu0 0.0
    %8860 = vmatpush1.msra.mxu0 0.0
    %8861 = vmatprep.subr.mxu0 0.0
    %8862 = vmatpush1.msra.mxu0 0.0
    %8863 = vmatprep.subr.mxu0 0.0
    %8864 = vmatpush1.msra.mxu0 0.0
    %8865 = vmatprep.subr.mxu0 0.0
    %8866 = vmatpush1.msra.mxu0 0.0
    %8867 = vmatprep.subr.mxu0 0.0
    %8868 = vmatpush1.msra.mxu0 0.0
    %8869 = vmatprep.subr.mxu0 0.0
    %8870 = vmatpush1.msra.mxu0 0.0
    %8871 = vmatprep.subr.mxu0 0.0
    %8872 = vmatpush1.msra.mxu0 0.0
    %8873 = vmatprep.subr.mxu0 0.0
    %8874 = vmatpush1.msra.mxu0 0.0
    %8875 = vmatprep.subr.mxu0 0.0
    %8876 = vmatpush1.msra.mxu0 0.0
    %8877 = vmatprep.subr.mxu0 0.0
    %8878 = vmatpush1.msra.mxu0 0.0
    %8879 = vmatprep.subr.mxu0 0.0
    %8880 = vmatpush1.msra.mxu0 0.0
    %8881 = vmatprep.subr.mxu0 0.0
    %8882 = vmatpush1.msra.mxu0 0.0
    %8883 = vmatprep.subr.mxu0 0.0
    %8884 = vmatpush1.msra.mxu0 0.0
    %8885 = vmatprep.subr.mxu0 0.0
    %8886 = vmatpush1.msra.mxu0 0.0
    %8887 = vmatprep.subr.mxu0 0.0
    %8888 = vmatpush1.msra.mxu0 0.0
    %8889 = vmatprep.subr.mxu0 0.0
    %8890 = vmatpush1.msra.mxu0 0.0
    %8891 = vmatprep.subr.mxu0 0.0
    %8892 = vmatpush1.msra.mxu0 0.0
    %8893 = vmatprep.subr.mxu0 0.0
    %8894 = vmatpush1.msra.mxu0 0.0
    %8895 = vmatprep.subr.mxu0 0.0
    %8896 = vmatpush1.msra.mxu0 0.0
    %8897 = vmatprep.subr.mxu0 0.0
    %8898 = vmatpush1.msra.mxu0 0.0
    %8899 = vmatprep.subr.mxu0 0.0
    %8900 = vmatpush1.msra.mxu0 0.0
    %8901 = vmatprep.subr.mxu0 0.0
    %8902 = vmatpush1.msra.mxu0 0.0
    %8903 = vmatprep.subr.mxu0 0.0
    %8904 = vmatpush1.msra.mxu0 0.0
    %8905 = vmatprep.subr.mxu0 0.0
    %8906 = vmatpush1.msra.mxu0 0.0
    %8907 = vmatprep.subr.mxu0 0.0
    %8908 = vmatpush1.msra.mxu0 0.0
    %8909 = vmatprep.subr.mxu0 0.0
    %8910 = vmatpush1.msra.mxu0 0.0
    %8911 = vmatprep.subr.mxu0 0.0
    %8912 = vmatpush1.msra.mxu0 0.0
    %8913 = vmatprep.subr.mxu0 0.0
    %8914 = vmatpush1.msra.mxu0 0.0
    %8915 = vmatprep.mubr.f32.mxu0 0.0
    %8916 = vmatmul.mubr.f32.gmra.mrb[0].mxu0 %v8849
    %v8917 = vpop.f32.mrb[0].mxu0
    %v8918 = vadd.f32 %v597, %v8917
    %v8919 = vpop.f32.mrb[0].mxu0
    %8920 = vdwg.mxu0
    %v8921 = vxor.u32 %v8845, 2147483648
    %v8922 = vmul.f32 %v8921, 1.442695
    %v8923 = vpow.pop %v8922
    %v8924 = vadd.f32 %v8923, 1.0
    %v8925 = vrcp.pop %v8924
    %v8926 = vmul.f32 1.0, %v8925
    %v8927 = vmul.f32 %v8926, %v8739
    %v8928 = vadd.f32 %v8918, %v8927
    %v8929 = vtanh.pop %v8928
    %v8930 = vsub.f32 %v8528, %v8929
    %8932 = vrot.lane.b32.xlu0 %v8930, 32
    %v8933 = vpop.permute.xlu0 %8932
    %v8935 = vmul.f32 %v8926, %v8933
    %8937 = vrot.lane.b32.xlu0 %v8935, 96
    %v8938 = vpop.permute.xlu0 %8937
    %v8940 = vadd.f32 %v8929, %v8938
    %8941 = vmatprep.subr.mxu0 0.0
    %8942 = vmatpush1.msra.mxu0 %v213
    %8943 = vmatprep.subr.mxu0 0.0
    %8944 = vmatpush1.msra.mxu0 %v214
    %8945 = vmatprep.subr.mxu0 0.0
    %8946 = vmatpush1.msra.mxu0 %v215
    %8947 = vmatprep.subr.mxu0 0.0
    %8948 = vmatpush1.msra.mxu0 %v216
    %8949 = vmatprep.subr.mxu0 0.0
    %8950 = vmatpush1.msra.mxu0 0.0
    %8951 = vmatprep.subr.mxu0 0.0
    %8952 = vmatpush1.msra.mxu0 0.0
    %8953 = vmatprep.subr.mxu0 0.0
    %8954 = vmatpush1.msra.mxu0 0.0
    %8955 = vmatprep.subr.mxu0 0.0
    %8956 = vmatpush1.msra.mxu0 0.0
    %8957 = vmatprep.subr.mxu0 0.0
    %8958 = vmatpush1.msra.mxu0 0.0
    %8959 = vmatprep.subr.mxu0 0.0
    %8960 = vmatpush1.msra.mxu0 0.0
    %8961 = vmatprep.subr.mxu0 0.0
    %8962 = vmatpush1.msra.mxu0 0.0
    %8963 = vmatprep.subr.mxu0 0.0
    %8964 = vmatpush1.msra.mxu0 0.0
    %8965 = vmatprep.subr.mxu0 0.0
    %8966 = vmatpush1.msra.mxu0 0.0
    %8967 = vmatprep.subr.mxu0 0.0
    %8968 = vmatpush1.msra.mxu0 0.0
    %8969 = vmatprep.subr.mxu0 0.0
    %8970 = vmatpush1.msra.mxu0 0.0
    %8971 = vmatprep.subr.mxu0 0.0
    %8972 = vmatpush1.msra.mxu0 0.0
    %8973 = vmatprep.subr.mxu0 0.0
    %8974 = vmatpush1.msra.mxu0 0.0
    %8975 = vmatprep.subr.mxu0 0.0
    %8976 = vmatpush1.msra.mxu0 0.0
    %8977 = vmatprep.subr.mxu0 0.0
    %8978 = vmatpush1.msra.mxu0 0.0
    %8979 = vmatprep.subr.mxu0 0.0
    %8980 = vmatpush1.msra.mxu0 0.0
    %8981 = vmatprep.subr.mxu0 0.0
    %8982 = vmatpush1.msra.mxu0 0.0
    %8983 = vmatprep.subr.mxu0 0.0
    %8984 = vmatpush1.msra.mxu0 0.0
    %8985 = vmatprep.subr.mxu0 0.0
    %8986 = vmatpush1.msra.mxu0 0.0
    %8987 = vmatprep.subr.mxu0 0.0
    %8988 = vmatpush1.msra.mxu0 0.0
    %8989 = vmatprep.subr.mxu0 0.0
    %8990 = vmatpush1.msra.mxu0 0.0
    %8991 = vmatprep.subr.mxu0 0.0
    %8992 = vmatpush1.msra.mxu0 0.0
    %8993 = vmatprep.subr.mxu0 0.0
    %8994 = vmatpush1.msra.mxu0 0.0
    %8995 = vmatprep.subr.mxu0 0.0
    %8996 = vmatpush1.msra.mxu0 0.0
    %8997 = vmatprep.subr.mxu0 0.0
    %8998 = vmatpush1.msra.mxu0 0.0
    %8999 = vmatprep.subr.mxu0 0.0
    %9000 = vmatpush1.msra.mxu0 0.0
    %9001 = vmatprep.subr.mxu0 0.0
    %9002 = vmatpush1.msra.mxu0 0.0
    %9003 = vmatprep.subr.mxu0 0.0
    %9004 = vmatpush1.msra.mxu0 0.0
    %9005 = vmatprep.mubr.f32.mxu0 0.0
    %9006 = vmatmul.mubr.f32.gmra.mrb[0].mxu0 %v8849
    %v9007 = vpop.f32.mrb[0].mxu0
    %v9008 = vadd.f32 0.0, %v9007
    %v9009 = vpop.f32.mrb[0].mxu0
    %9010 = vdwg.mxu0
    %9011 = vmatprep.subr.mxu0 0.0
    %9012 = vmatpush1.msra.mxu0 %v217
    %9013 = vmatprep.subr.mxu0 0.0
    %9014 = vmatpush1.msra.mxu0 %v218
    %9015 = vmatprep.subr.mxu0 0.0
    %9016 = vmatpush1.msra.mxu0 %v219
    %9017 = vmatprep.subr.mxu0 0.0
    %9018 = vmatpush1.msra.mxu0 %v220
    %9019 = vmatprep.subr.mxu0 0.0
    %9020 = vmatpush1.msra.mxu0 0.0
    %9021 = vmatprep.subr.mxu0 0.0
    %9022 = vmatpush1.msra.mxu0 0.0
    %9023 = vmatprep.subr.mxu0 0.0
    %9024 = vmatpush1.msra.mxu0 0.0
    %9025 = vmatprep.subr.mxu0 0.0
    %9026 = vmatpush1.msra.mxu0 0.0
    %9027 = vmatprep.subr.mxu0 0.0
    %9028 = vmatpush1.msra.mxu0 0.0
    %9029 = vmatprep.subr.mxu0 0.0
    %9030 = vmatpush1.msra.mxu0 0.0
    %9031 = vmatprep.subr.mxu0 0.0
    %9032 = vmatpush1.msra.mxu0 0.0
    %9033 = vmatprep.subr.mxu0 0.0
    %9034 = vmatpush1.msra.mxu0 0.0
    %9035 = vmatprep.subr.mxu0 0.0
    %9036 = vmatpush1.msra.mxu0 0.0
    %9037 = vmatprep.subr.mxu0 0.0
    %9038 = vmatpush1.msra.mxu0 0.0
    %9039 = vmatprep.subr.mxu0 0.0
    %9040 = vmatpush1.msra.mxu0 0.0
    %9041 = vmatprep.subr.mxu0 0.0
    %9042 = vmatpush1.msra.mxu0 0.0
    %9043 = vmatprep.subr.mxu0 0.0
    %9044 = vmatpush1.msra.mxu0 0.0
    %9045 = vmatprep.subr.mxu0 0.0
    %9046 = vmatpush1.msra.mxu0 0.0
    %9047 = vmatprep.subr.mxu0 0.0
    %9048 = vmatpush1.msra.mxu0 0.0
    %9049 = vmatprep.subr.mxu0 0.0
    %9050 = vmatpush1.msra.mxu0 0.0
    %9051 = vmatprep.subr.mxu0 0.0
    %9052 = vmatpush1.msra.mxu0 0.0
    %9053 = vmatprep.subr.mxu0 0.0
    %9054 = vmatpush1.msra.mxu0 0.0
    %9055 = vmatprep.subr.mxu0 0.0
    %9056 = vmatpush1.msra.mxu0 0.0
    %9057 = vmatprep.subr.mxu0 0.0
    %9058 = vmatpush1.msra.mxu0 0.0
    %9059 = vmatprep.subr.mxu0 0.0
    %9060 = vmatpush1.msra.mxu0 0.0
    %9061 = vmatprep.subr.mxu0 0.0
    %9062 = vmatpush1.msra.mxu0 0.0
    %9063 = vmatprep.subr.mxu0 0.0
    %9064 = vmatpush1.msra.mxu0 0.0
    %9065 = vmatprep.subr.mxu0 0.0
    %9066 = vmatpush1.msra.mxu0 0.0
    %9067 = vmatprep.subr.mxu0 0.0
    %9068 = vmatpush1.msra.mxu0 0.0
    %9069 = vmatprep.subr.mxu0 0.0
    %9070 = vmatpush1.msra.mxu0 0.0
    %9071 = vmatprep.subr.mxu0 0.0
    %9072 = vmatpush1.msra.mxu0 0.0
    %9073 = vmatprep.subr.mxu0 0.0
    %9074 = vmatpush1.msra.mxu0 0.0
    %9075 = vmatprep.mubr.f32.mxu0 0.0
    %9076 = vmatmul.mubr.f32.gmra.mrb[0].mxu0 %v8849
    %v9077 = vpop.f32.mrb[0].mxu0
    %v9078 = vadd.f32 %v328, %v9077
    %v9079 = vpop.f32.mrb[0].mxu0
    %9080 = vdwg.mxu0
    %v9082 = vsel %vm250, %v8940, 0
    %9084 = vmatprep.subr.mxu0 0.0
    %9085 = vmatpush1.msra.mxu0 %v234
    %9086 = vmatprep.subr.mxu0 0.0
    %9087 = vmatpush1.msra.mxu0 %v235
    %9088 = vmatprep.subr.mxu0 0.0
    %9089 = vmatpush1.msra.mxu0 %v236
    %9090 = vmatprep.subr.mxu0 0.0
    %9091 = vmatpush1.msra.mxu0 %v237
    %9092 = vmatprep.subr.mxu0 0.0
    %9093 = vmatpush1.msra.mxu0 0.0
    %9094 = vmatprep.subr.mxu0 0.0
    %9095 = vmatpush1.msra.mxu0 0.0
    %9096 = vmatprep.subr.mxu0 0.0
    %9097 = vmatpush1.msra.mxu0 0.0
    %9098 = vmatprep.subr.mxu0 0.0
    %9099 = vmatpush1.msra.mxu0 0.0
    %9100 = vmatprep.subr.mxu0 0.0
    %9101 = vmatpush1.msra.mxu0 0.0
    %9102 = vmatprep.subr.mxu0 0.0
    %9103 = vmatpush1.msra.mxu0 0.0
    %9104 = vmatprep.subr.mxu0 0.0
    %9105 = vmatpush1.msra.mxu0 0.0
    %9106 = vmatprep.subr.mxu0 0.0
    %9107 = vmatpush1.msra.mxu0 0.0
    %9108 = vmatprep.subr.mxu0 0.0
    %9109 = vmatpush1.msra.mxu0 0.0
    %9110 = vmatprep.subr.mxu0 0.0
    %9111 = vmatpush1.msra.mxu0 0.0
    %9112 = vmatprep.subr.mxu0 0.0
    %9113 = vmatpush1.msra.mxu0 0.0
    %9114 = vmatprep.subr.mxu0 0.0
    %9115 = vmatpush1.msra.mxu0 0.0
    %9116 = vmatprep.subr.mxu0 0.0
    %9117 = vmatpush1.msra.mxu0 0.0
    %9118 = vmatprep.subr.mxu0 0.0
    %9119 = vmatpush1.msra.mxu0 0.0
    %9120 = vmatprep.subr.mxu0 0.0
    %9121 = vmatpush1.msra.mxu0 0.0
    %9122 = vmatprep.subr.mxu0 0.0
    %9123 = vmatpush1.msra.mxu0 0.0
    %9124 = vmatprep.subr.mxu0 0.0
    %9125 = vmatpush1.msra.mxu0 0.0
    %9126 = vmatprep.subr.mxu0 0.0
    %9127 = vmatpush1.msra.mxu0 0.0
    %9128 = vmatprep.subr.mxu0 0.0
    %9129 = vmatpush1.msra.mxu0 0.0
    %9130 = vmatprep.subr.mxu0 0.0
    %9131 = vmatpush1.msra.mxu0 0.0
    %9132 = vmatprep.subr.mxu0 0.0
    %9133 = vmatpush1.msra.mxu0 0.0
    %9134 = vmatprep.subr.mxu0 0.0
    %9135 = vmatpush1.msra.mxu0 0.0
    %9136 = vmatprep.subr.mxu0 0.0
    %9137 = vmatpush1.msra.mxu0 0.0
    %9138 = vmatprep.subr.mxu0 0.0
    %9139 = vmatpush1.msra.mxu0 0.0
    %9140 = vmatprep.subr.mxu0 0.0
    %9141 = vmatpush1.msra.mxu0 0.0
    %9142 = vmatprep.subr.mxu0 0.0
    %9143 = vmatpush1.msra.mxu0 0.0
    %9144 = vmatprep.subr.mxu0 0.0
    %9145 = vmatpush1.msra.mxu0 0.0
    %9146 = vmatprep.subr.mxu0 0.0
    %9147 = vmatpush1.msra.mxu0 0.0
    %9148 = vmatprep.mubr.f32.mxu0 0.0
    %9149 = vmatmul.mubr.f32.gmra.mrb[0].mxu0 %v9082
    %v9150 = vpop.f32.mrb[0].mxu0
    %v9151 = vadd.f32 %v404, %v9150
    %v9152 = vpop.f32.mrb[0].mxu0
    %9153 = vdwg.mxu0
    %9154 = vset.pattern.permute.xlu0 5
    %9155 = vperm.xlu0 %9154, %v6879
    %v9156 = vpop.permute.xlu0 %9155
    %v9158 = vmul.f32 %v9156, %v190
    %v9159 = vadd.f32 %v9158, %v204
    %v9160 = vadd.f32 %v9159, %v9008
    %v9161 = vmul.f32 %v9156, %v197
    %v9162 = vadd.f32 %v9161, %v211
    %v9163 = vxor.u32 %v9160, 2147483648
    %v9164 = vmul.f32 %v9163, 1.442695
    %v9165 = vpow.pop %v9164
    %v9166 = vadd.f32 %v9165, 1.0
    %v9167 = vrcp.pop %v9166
    %v9168 = vmul.f32 1.0, %v9167
    %v9169 = vmul.f32 %v9168, %v9078
    %v9170 = vadd.f32 %v9162, %v9169
    %v9171 = vtanh.pop %v9170
    %v9172 = vsub.f32 %v8770, %v9171
    %9174 = vrot.lane.b32.xlu0 %v9172, 32
    %v9175 = vpop.permute.xlu0 %9174
    %v9177 = vmul.f32 %v9168, %v9175
    %9179 = vrot.lane.b32.xlu0 %v9177, 96
    %v9180 = vpop.permute.xlu0 %9179
    %v9182 = vadd.f32 %v9171, %v9180
    %9183 = vrot.lane.b32.xlu0 %v8940, 32
    %v9184 = vpop.permute.xlu0 %9183
    %v9186 = vsel %vm250, %v9182, %v9184
    %v9188 = vsel %vm519, %v9186, 0
    %9190 = vmatprep.subr.mxu0 0.0
    %9191 = vmatpush1.msra.mxu0 %v222
    %9192 = vmatprep.subr.mxu0 0.0
    %9193 = vmatpush1.msra.mxu0 %v223
    %9194 = vmatprep.subr.mxu0 0.0
    %9195 = vmatpush1.msra.mxu0 %v224
    %9196 = vmatprep.subr.mxu0 0.0
    %9197 = vmatpush1.msra.mxu0 %v225
    %9198 = vmatprep.subr.mxu0 0.0
    %9199 = vmatpush1.msra.mxu0 %v226
    %9200 = vmatprep.subr.mxu0 0.0
    %9201 = vmatpush1.msra.mxu0 %v227
    %9202 = vmatprep.subr.mxu0 0.0
    %9203 = vmatpush1.msra.mxu0 %v228
    %9204 = vmatprep.subr.mxu0 0.0
    %9205 = vmatpush1.msra.mxu0 %v229
    %9206 = vmatprep.subr.mxu0 0.0
    %9207 = vmatpush1.msra.mxu0 0.0
    %9208 = vmatprep.subr.mxu0 0.0
    %9209 = vmatpush1.msra.mxu0 0.0
    %9210 = vmatprep.subr.mxu0 0.0
    %9211 = vmatpush1.msra.mxu0 0.0
    %9212 = vmatprep.subr.mxu0 0.0
    %9213 = vmatpush1.msra.mxu0 0.0
    %9214 = vmatprep.subr.mxu0 0.0
    %9215 = vmatpush1.msra.mxu0 0.0
    %9216 = vmatprep.subr.mxu0 0.0
    %9217 = vmatpush1.msra.mxu0 0.0
    %9218 = vmatprep.subr.mxu0 0.0
    %9219 = vmatpush1.msra.mxu0 0.0
    %9220 = vmatprep.subr.mxu0 0.0
    %9221 = vmatpush1.msra.mxu0 0.0
    %9222 = vmatprep.subr.mxu0 0.0
    %9223 = vmatpush1.msra.mxu0 0.0
    %9224 = vmatprep.subr.mxu0 0.0
    %9225 = vmatpush1.msra.mxu0 0.0
    %9226 = vmatprep.subr.mxu0 0.0
    %9227 = vmatpush1.msra.mxu0 0.0
    %9228 = vmatprep.subr.mxu0 0.0
    %9229 = vmatpush1.msra.mxu0 0.0
    %9230 = vmatprep.subr.mxu0 0.0
    %9231 = vmatpush1.msra.mxu0 0.0
    %9232 = vmatprep.subr.mxu0 0.0
    %9233 = vmatpush1.msra.mxu0 0.0
    %9234 = vmatprep.subr.mxu0 0.0
    %9235 = vmatpush1.msra.mxu0 0.0
    %9236 = vmatprep.subr.mxu0 0.0
    %9237 = vmatpush1.msra.mxu0 0.0
    %9238 = vmatprep.subr.mxu0 0.0
    %9239 = vmatpush1.msra.mxu0 0.0
    %9240 = vmatprep.subr.mxu0 0.0
    %9241 = vmatpush1.msra.mxu0 0.0
    %9242 = vmatprep.subr.mxu0 0.0
    %9243 = vmatpush1.msra.mxu0 0.0
    %9244 = vmatprep.subr.mxu0 0.0
    %9245 = vmatpush1.msra.mxu0 0.0
    %9246 = vmatprep.subr.mxu0 0.0
    %9247 = vmatpush1.msra.mxu0 0.0
    %9248 = vmatprep.subr.mxu0 0.0
    %9249 = vmatpush1.msra.mxu0 0.0
    %9250 = vmatprep.subr.mxu0 0.0
    %9251 = vmatpush1.msra.mxu0 0.0
    %9252 = vmatprep.subr.mxu0 0.0
    %9253 = vmatpush1.msra.mxu0 0.0
    %9254 = vmatprep.mubr.f32.mxu0 0.0
    %9255 = vmatmul.mubr.f32.gmra.mrb[0].mxu0 %v9188
    %v9256 = vpop.f32.mrb[0].mxu0
    %v9257 = vadd.f32 %v517, %v9256
    %v9258 = vpop.f32.mrb[0].mxu0
    %9259 = vdwg.mxu0
    %v9261 = vsel %vm250, %v9182, 0
    %9263 = vmatprep.subr.mxu0 0.0
    %9264 = vmatpush1.msra.mxu0 %v230
    %9265 = vmatprep.subr.mxu0 0.0
    %9266 = vmatpush1.msra.mxu0 %v231
    %9267 = vmatprep.subr.mxu0 0.0
    %9268 = vmatpush1.msra.mxu0 %v232
    %9269 = vmatprep.subr.mxu0 0.0
    %9270 = vmatpush1.msra.mxu0 %v233
    %9271 = vmatprep.subr.mxu0 0.0
    %9272 = vmatpush1.msra.mxu0 0.0
    %9273 = vmatprep.subr.mxu0 0.0
    %9274 = vmatpush1.msra.mxu0 0.0
    %9275 = vmatprep.subr.mxu0 0.0
    %9276 = vmatpush1.msra.mxu0 0.0
    %9277 = vmatprep.subr.mxu0 0.0
    %9278 = vmatpush1.msra.mxu0 0.0
    %9279 = vmatprep.subr.mxu0 0.0
    %9280 = vmatpush1.msra.mxu0 0.0
    %9281 = vmatprep.subr.mxu0 0.0
    %9282 = vmatpush1.msra.mxu0 0.0
    %9283 = vmatprep.subr.mxu0 0.0
    %9284 = vmatpush1.msra.mxu0 0.0
    %9285 = vmatprep.subr.mxu0 0.0
    %9286 = vmatpush1.msra.mxu0 0.0
    %9287 = vmatprep.subr.mxu0 0.0
    %9288 = vmatpush1.msra.mxu0 0.0
    %9289 = vmatprep.subr.mxu0 0.0
    %9290 = vmatpush1.msra.mxu0 0.0
    %9291 = vmatprep.subr.mxu0 0.0
    %9292 = vmatpush1.msra.mxu0 0.0
    %9293 = vmatprep.subr.mxu0 0.0
    %9294 = vmatpush1.msra.mxu0 0.0
    %9295 = vmatprep.subr.mxu0 0.0
    %9296 = vmatpush1.msra.mxu0 0.0
    %9297 = vmatprep.subr.mxu0 0.0
    %9298 = vmatpush1.msra.mxu0 0.0
    %9299 = vmatprep.subr.mxu0 0.0
    %9300 = vmatpush1.msra.mxu0 0.0
    %9301 = vmatprep.subr.mxu0 0.0
    %9302 = vmatpush1.msra.mxu0 0.0
    %9303 = vmatprep.subr.mxu0 0.0
    %9304 = vmatpush1.msra.mxu0 0.0
    %9305 = vmatprep.subr.mxu0 0.0
    %9306 = vmatpush1.msra.mxu0 0.0
    %9307 = vmatprep.subr.mxu0 0.0
    %9308 = vmatpush1.msra.mxu0 0.0
    %9309 = vmatprep.subr.mxu0 0.0
    %9310 = vmatpush1.msra.mxu0 0.0
    %9311 = vmatprep.subr.mxu0 0.0
    %9312 = vmatpush1.msra.mxu0 0.0
    %9313 = vmatprep.subr.mxu0 0.0
    %9314 = vmatpush1.msra.mxu0 0.0
    %9315 = vmatprep.subr.mxu0 0.0
    %9316 = vmatpush1.msra.mxu0 0.0
    %9317 = vmatprep.subr.mxu0 0.0
    %9318 = vmatpush1.msra.mxu0 0.0
    %9319 = vmatprep.subr.mxu0 0.0
    %9320 = vmatpush1.msra.mxu0 0.0
    %9321 = vmatprep.subr.mxu0 0.0
    %9322 = vmatpush1.msra.mxu0 0.0
    %9323 = vmatprep.subr.mxu0 0.0
    %9324 = vmatpush1.msra.mxu0 0.0
    %9325 = vmatprep.subr.mxu0 0.0
    %9326 = vmatpush1.msra.mxu0 0.0
    %9327 = vmatprep.mubr.f32.mxu0 0.0
    %9328 = vmatmul.mubr.f32.gmra.mrb[0].mxu0 %v9261
    %v9329 = vpop.f32.mrb[0].mxu0
    %v9330 = vadd.f32 %v597, %v9329
    %v9331 = vpop.f32.mrb[0].mxu0
    %9332 = vdwg.mxu0
    %v9333 = vxor.u32 %v9257, 2147483648
    %v9334 = vmul.f32 %v9333, 1.442695
    %v9335 = vpow.pop %v9334
    %v9336 = vadd.f32 %v9335, 1.0
    %v9337 = vrcp.pop %v9336
    %v9338 = vmul.f32 1.0, %v9337
    %v9339 = vmul.f32 %v9338, %v9151
    %v9340 = vadd.f32 %v9330, %v9339
    %v9341 = vtanh.pop %v9340
    %v9342 = vsub.f32 %v8940, %v9341
    %9344 = vrot.lane.b32.xlu0 %v9342, 32
    %v9345 = vpop.permute.xlu0 %9344
    %v9347 = vmul.f32 %v9338, %v9345
    %9349 = vrot.lane.b32.xlu0 %v9347, 96
    %v9350 = vpop.permute.xlu0 %9349
    %v9352 = vadd.f32 %v9341, %v9350
    %9353 = vmatprep.subr.mxu0 0.0
    %9354 = vmatpush1.msra.mxu0 %v213
    %9355 = vmatprep.subr.mxu0 0.0
    %9356 = vmatpush1.msra.mxu0 %v214
    %9357 = vmatprep.subr.mxu0 0.0
    %9358 = vmatpush1.msra.mxu0 %v215
    %9359 = vmatprep.subr.mxu0 0.0
    %9360 = vmatpush1.msra.mxu0 %v216
    %9361 = vmatprep.subr.mxu0 0.0
    %9362 = vmatpush1.msra.mxu0 0.0
    %9363 = vmatprep.subr.mxu0 0.0
    %9364 = vmatpush1.msra.mxu0 0.0
    %9365 = vmatprep.subr.mxu0 0.0
    %9366 = vmatpush1.msra.mxu0 0.0
    %9367 = vmatprep.subr.mxu0 0.0
    %9368 = vmatpush1.msra.mxu0 0.0
    %9369 = vmatprep.subr.mxu0 0.0
    %9370 = vmatpush1.msra.mxu0 0.0
    %9371 = vmatprep.subr.mxu0 0.0
    %9372 = vmatpush1.msra.mxu0 0.0
    %9373 = vmatprep.subr.mxu0 0.0
    %9374 = vmatpush1.msra.mxu0 0.0
    %9375 = vmatprep.subr.mxu0 0.0
    %9376 = vmatpush1.msra.mxu0 0.0
    %9377 = vmatprep.subr.mxu0 0.0
    %9378 = vmatpush1.msra.mxu0 0.0
    %9379 = vmatprep.subr.mxu0 0.0
    %9380 = vmatpush1.msra.mxu0 0.0
    %9381 = vmatprep.subr.mxu0 0.0
    %9382 = vmatpush1.msra.mxu0 0.0
    %9383 = vmatprep.subr.mxu0 0.0
    %9384 = vmatpush1.msra.mxu0 0.0
    %9385 = vmatprep.subr.mxu0 0.0
    %9386 = vmatpush1.msra.mxu0 0.0
    %9387 = vmatprep.subr.mxu0 0.0
    %9388 = vmatpush1.msra.mxu0 0.0
    %9389 = vmatprep.subr.mxu0 0.0
    %9390 = vmatpush1.msra.mxu0 0.0
    %9391 = vmatprep.subr.mxu0 0.0
    %9392 = vmatpush1.msra.mxu0 0.0
    %9393 = vmatprep.subr.mxu0 0.0
    %9394 = vmatpush1.msra.mxu0 0.0
    %9395 = vmatprep.subr.mxu0 0.0
    %9396 = vmatpush1.msra.mxu0 0.0
    %9397 = vmatprep.subr.mxu0 0.0
    %9398 = vmatpush1.msra.mxu0 0.0
    %9399 = vmatprep.subr.mxu0 0.0
    %9400 = vmatpush1.msra.mxu0 0.0
    %9401 = vmatprep.subr.mxu0 0.0
    %9402 = vmatpush1.msra.mxu0 0.0
    %9403 = vmatprep.subr.mxu0 0.0
    %9404 = vmatpush1.msra.mxu0 0.0
    %9405 = vmatprep.subr.mxu0 0.0
    %9406 = vmatpush1.msra.mxu0 0.0
    %9407 = vmatprep.subr.mxu0 0.0
    %9408 = vmatpush1.msra.mxu0 0.0
    %9409 = vmatprep.subr.mxu0 0.0
    %9410 = vmatpush1.msra.mxu0 0.0
    %9411 = vmatprep.subr.mxu0 0.0
    %9412 = vmatpush1.msra.mxu0 0.0
    %9413 = vmatprep.subr.mxu0 0.0
    %9414 = vmatpush1.msra.mxu0 0.0
    %9415 = vmatprep.subr.mxu0 0.0
    %9416 = vmatpush1.msra.mxu0 0.0
    %9417 = vmatprep.mubr.f32.mxu0 0.0
    %9418 = vmatmul.mubr.f32.gmra.mrb[0].mxu0 %v9261
    %v9419 = vpop.f32.mrb[0].mxu0
    %v9420 = vadd.f32 0.0, %v9419
    %v9421 = vpop.f32.mrb[0].mxu0
    %9422 = vdwg.mxu0
    %9423 = vmatprep.subr.mxu0 0.0
    %9424 = vmatpush1.msra.mxu0 %v217
    %9425 = vmatprep.subr.mxu0 0.0
    %9426 = vmatpush1.msra.mxu0 %v218
    %9427 = vmatprep.subr.mxu0 0.0
    %9428 = vmatpush1.msra.mxu0 %v219
    %9429 = vmatprep.subr.mxu0 0.0
    %9430 = vmatpush1.msra.mxu0 %v220
    %9431 = vmatprep.subr.mxu0 0.0
    %9432 = vmatpush1.msra.mxu0 0.0
    %9433 = vmatprep.subr.mxu0 0.0
    %9434 = vmatpush1.msra.mxu0 0.0
    %9435 = vmatprep.subr.mxu0 0.0
    %9436 = vmatpush1.msra.mxu0 0.0
    %9437 = vmatprep.subr.mxu0 0.0
    %9438 = vmatpush1.msra.mxu0 0.0
    %9439 = vmatprep.subr.mxu0 0.0
    %9440 = vmatpush1.msra.mxu0 0.0
    %9441 = vmatprep.subr.mxu0 0.0
    %9442 = vmatpush1.msra.mxu0 0.0
    %9443 = vmatprep.subr.mxu0 0.0
    %9444 = vmatpush1.msra.mxu0 0.0
    %9445 = vmatprep.subr.mxu0 0.0
    %9446 = vmatpush1.msra.mxu0 0.0
    %9447 = vmatprep.subr.mxu0 0.0
    %9448 = vmatpush1.msra.mxu0 0.0
    %9449 = vmatprep.subr.mxu0 0.0
    %9450 = vmatpush1.msra.mxu0 0.0
    %9451 = vmatprep.subr.mxu0 0.0
    %9452 = vmatpush1.msra.mxu0 0.0
    %9453 = vmatprep.subr.mxu0 0.0
    %9454 = vmatpush1.msra.mxu0 0.0
    %9455 = vmatprep.subr.mxu0 0.0
    %9456 = vmatpush1.msra.mxu0 0.0
    %9457 = vmatprep.subr.mxu0 0.0
    %9458 = vmatpush1.msra.mxu0 0.0
    %9459 = vmatprep.subr.mxu0 0.0
    %9460 = vmatpush1.msra.mxu0 0.0
    %9461 = vmatprep.subr.mxu0 0.0
    %9462 = vmatpush1.msra.mxu0 0.0
    %9463 = vmatprep.subr.mxu0 0.0
    %9464 = vmatpush1.msra.mxu0 0.0
    %9465 = vmatprep.subr.mxu0 0.0
    %9466 = vmatpush1.msra.mxu0 0.0
    %9467 = vmatprep.subr.mxu0 0.0
    %9468 = vmatpush1.msra.mxu0 0.0
    %9469 = vmatprep.subr.mxu0 0.0
    %9470 = vmatpush1.msra.mxu0 0.0
    %9471 = vmatprep.subr.mxu0 0.0
    %9472 = vmatpush1.msra.mxu0 0.0
    %9473 = vmatprep.subr.mxu0 0.0
    %9474 = vmatpush1.msra.mxu0 0.0
    %9475 = vmatprep.subr.mxu0 0.0
    %9476 = vmatpush1.msra.mxu0 0.0
    %9477 = vmatprep.subr.mxu0 0.0
    %9478 = vmatpush1.msra.mxu0 0.0
    %9479 = vmatprep.subr.mxu0 0.0
    %9480 = vmatpush1.msra.mxu0 0.0
    %9481 = vmatprep.subr.mxu0 0.0
    %9482 = vmatpush1.msra.mxu0 0.0
    %9483 = vmatprep.subr.mxu0 0.0
    %9484 = vmatpush1.msra.mxu0 0.0
    %9485 = vmatprep.subr.mxu0 0.0
    %9486 = vmatpush1.msra.mxu0 0.0
    %9487 = vmatprep.mubr.f32.mxu0 0.0
    %9488 = vmatmul.mubr.f32.gmra.mrb[0].mxu0 %v9261
    %v9489 = vpop.f32.mrb[0].mxu0
    %v9490 = vadd.f32 %v328, %v9489
    %v9491 = vpop.f32.mrb[0].mxu0
    %9492 = vdwg.mxu0
    %v9494 = vsel %vm250, %v9352, 0
    %9496 = vmatprep.subr.mxu0 0.0
    %9497 = vmatpush1.msra.mxu0 %v234
    %9498 = vmatprep.subr.mxu0 0.0
    %9499 = vmatpush1.msra.mxu0 %v235
    %9500 = vmatprep.subr.mxu0 0.0
    %9501 = vmatpush1.msra.mxu0 %v236
    %9502 = vmatprep.subr.mxu0 0.0
    %9503 = vmatpush1.msra.mxu0 %v237
    %9504 = vmatprep.subr.mxu0 0.0
    %9505 = vmatpush1.msra.mxu0 0.0
    %9506 = vmatprep.subr.mxu0 0.0
    %9507 = vmatpush1.msra.mxu0 0.0
    %9508 = vmatprep.subr.mxu0 0.0
    %9509 = vmatpush1.msra.mxu0 0.0
    %9510 = vmatprep.subr.mxu0 0.0
    %9511 = vmatpush1.msra.mxu0 0.0
    %9512 = vmatprep.subr.mxu0 0.0
    %9513 = vmatpush1.msra.mxu0 0.0
    %9514 = vmatprep.subr.mxu0 0.0
    %9515 = vmatpush1.msra.mxu0 0.0
    %9516 = vmatprep.subr.mxu0 0.0
    %9517 = vmatpush1.msra.mxu0 0.0
    %9518 = vmatprep.subr.mxu0 0.0
    %9519 = vmatpush1.msra.mxu0 0.0
    %9520 = vmatprep.subr.mxu0 0.0
    %9521 = vmatpush1.msra.mxu0 0.0
    %9522 = vmatprep.subr.mxu0 0.0
    %9523 = vmatpush1.msra.mxu0 0.0
    %9524 = vmatprep.subr.mxu0 0.0
    %9525 = vmatpush1.msra.mxu0 0.0
    %9526 = vmatprep.subr.mxu0 0.0
    %9527 = vmatpush1.msra.mxu0 0.0
    %9528 = vmatprep.subr.mxu0 0.0
    %9529 = vmatpush1.msra.mxu0 0.0
    %9530 = vmatprep.subr.mxu0 0.0
    %9531 = vmatpush1.msra.mxu0 0.0
    %9532 = vmatprep.subr.mxu0 0.0
    %9533 = vmatpush1.msra.mxu0 0.0
    %9534 = vmatprep.subr.mxu0 0.0
    %9535 = vmatpush1.msra.mxu0 0.0
    %9536 = vmatprep.subr.mxu0 0.0
    %9537 = vmatpush1.msra.mxu0 0.0
    %9538 = vmatprep.subr.mxu0 0.0
    %9539 = vmatpush1.msra.mxu0 0.0
    %9540 = vmatprep.subr.mxu0 0.0
    %9541 = vmatpush1.msra.mxu0 0.0
    %9542 = vmatprep.subr.mxu0 0.0
    %9543 = vmatpush1.msra.mxu0 0.0
    %9544 = vmatprep.subr.mxu0 0.0
    %9545 = vmatpush1.msra.mxu0 0.0
    %9546 = vmatprep.subr.mxu0 0.0
    %9547 = vmatpush1.msra.mxu0 0.0
    %9548 = vmatprep.subr.mxu0 0.0
    %9549 = vmatpush1.msra.mxu0 0.0
    %9550 = vmatprep.subr.mxu0 0.0
    %9551 = vmatpush1.msra.mxu0 0.0
    %9552 = vmatprep.subr.mxu0 0.0
    %9553 = vmatpush1.msra.mxu0 0.0
    %9554 = vmatprep.subr.mxu0 0.0
    %9555 = vmatpush1.msra.mxu0 0.0
    %9556 = vmatprep.subr.mxu0 0.0
    %9557 = vmatpush1.msra.mxu0 0.0
    %9558 = vmatprep.subr.mxu0 0.0
    %9559 = vmatpush1.msra.mxu0 0.0
    %9560 = vmatprep.mubr.f32.mxu0 0.0
    %9561 = vmatmul.mubr.f32.gmra.mrb[0].mxu0 %v9494
    %v9562 = vpop.f32.mrb[0].mxu0
    %v9563 = vadd.f32 %v404, %v9562
    %v9564 = vpop.f32.mrb[0].mxu0
    %9565 = vdwg.mxu0
    %9566 = vset.pattern.permute.xlu0 6
    %9567 = vperm.xlu0 %9566, %v6879
    %v9568 = vpop.permute.xlu0 %9567
    %v9570 = vmul.f32 %v9568, %v190
    %v9571 = vadd.f32 %v9570, %v204
    %v9572 = vadd.f32 %v9571, %v9420
    %v9573 = vmul.f32 %v9568, %v197
    %v9574 = vadd.f32 %v9573, %v211
    %v9575 = vxor.u32 %v9572, 2147483648
    %v9576 = vmul.f32 %v9575, 1.442695
    %v9577 = vpow.pop %v9576
    %v9578 = vadd.f32 %v9577, 1.0
    %v9579 = vrcp.pop %v9578
    %v9580 = vmul.f32 1.0, %v9579
    %v9581 = vmul.f32 %v9580, %v9490
    %v9582 = vadd.f32 %v9574, %v9581
    %v9583 = vtanh.pop %v9582
    %v9584 = vsub.f32 %v9182, %v9583
    %9586 = vrot.lane.b32.xlu0 %v9584, 32
    %v9587 = vpop.permute.xlu0 %9586
    %v9589 = vmul.f32 %v9580, %v9587
    %9591 = vrot.lane.b32.xlu0 %v9589, 96
    %v9592 = vpop.permute.xlu0 %9591
    %v9594 = vadd.f32 %v9583, %v9592
    %9595 = vrot.lane.b32.xlu0 %v9352, 32
    %v9596 = vpop.permute.xlu0 %9595
    %v9598 = vsel %vm250, %v9594, %v9596
    %v9600 = vsel %vm519, %v9598, 0
    %9602 = vmatprep.subr.mxu0 0.0
    %9603 = vmatpush1.msra.mxu0 %v222
    %9604 = vmatprep.subr.mxu0 0.0
    %9605 = vmatpush1.msra.mxu0 %v223
    %9606 = vmatprep.subr.mxu0 0.0
    %9607 = vmatpush1.msra.mxu0 %v224
    %9608 = vmatprep.subr.mxu0 0.0
    %9609 = vmatpush1.msra.mxu0 %v225
    %9610 = vmatprep.subr.mxu0 0.0
    %9611 = vmatpush1.msra.mxu0 %v226
    %9612 = vmatprep.subr.mxu0 0.0
    %9613 = vmatpush1.msra.mxu0 %v227
    %9614 = vmatprep.subr.mxu0 0.0
    %9615 = vmatpush1.msra.mxu0 %v228
    %9616 = vmatprep.subr.mxu0 0.0
    %9617 = vmatpush1.msra.mxu0 %v229
    %9618 = vmatprep.subr.mxu0 0.0
    %9619 = vmatpush1.msra.mxu0 0.0
    %9620 = vmatprep.subr.mxu0 0.0
    %9621 = vmatpush1.msra.mxu0 0.0
    %9622 = vmatprep.subr.mxu0 0.0
    %9623 = vmatpush1.msra.mxu0 0.0
    %9624 = vmatprep.subr.mxu0 0.0
    %9625 = vmatpush1.msra.mxu0 0.0
    %9626 = vmatprep.subr.mxu0 0.0
    %9627 = vmatpush1.msra.mxu0 0.0
    %9628 = vmatprep.subr.mxu0 0.0
    %9629 = vmatpush1.msra.mxu0 0.0
    %9630 = vmatprep.subr.mxu0 0.0
    %9631 = vmatpush1.msra.mxu0 0.0
    %9632 = vmatprep.subr.mxu0 0.0
    %9633 = vmatpush1.msra.mxu0 0.0
    %9634 = vmatprep.subr.mxu0 0.0
    %9635 = vmatpush1.msra.mxu0 0.0
    %9636 = vmatprep.subr.mxu0 0.0
    %9637 = vmatpush1.msra.mxu0 0.0
    %9638 = vmatprep.subr.mxu0 0.0
    %9639 = vmatpush1.msra.mxu0 0.0
    %9640 = vmatprep.subr.mxu0 0.0
    %9641 = vmatpush1.msra.mxu0 0.0
    %9642 = vmatprep.subr.mxu0 0.0
    %9643 = vmatpush1.msra.mxu0 0.0
    %9644 = vmatprep.subr.mxu0 0.0
    %9645 = vmatpush1.msra.mxu0 0.0
    %9646 = vmatprep.subr.mxu0 0.0
    %9647 = vmatpush1.msra.mxu0 0.0
    %9648 = vmatprep.subr.mxu0 0.0
    %9649 = vmatpush1.msra.mxu0 0.0
    %9650 = vmatprep.subr.mxu0 0.0
    %9651 = vmatpush1.msra.mxu0 0.0
    %9652 = vmatprep.subr.mxu0 0.0
    %9653 = vmatpush1.msra.mxu0 0.0
    %9654 = vmatprep.subr.mxu0 0.0
    %9655 = vmatpush1.msra.mxu0 0.0
    %9656 = vmatprep.subr.mxu0 0.0
    %9657 = vmatpush1.msra.mxu0 0.0
    %9658 = vmatprep.subr.mxu0 0.0
    %9659 = vmatpush1.msra.mxu0 0.0
    %9660 = vmatprep.subr.mxu0 0.0
    %9661 = vmatpush1.msra.mxu0 0.0
    %9662 = vmatprep.subr.mxu0 0.0
    %9663 = vmatpush1.msra.mxu0 0.0
    %9664 = vmatprep.subr.mxu0 0.0
    %9665 = vmatpush1.msra.mxu0 0.0
    %9666 = vmatprep.mubr.f32.mxu0 0.0
    %9667 = vmatmul.mubr.f32.gmra.mrb[0].mxu0 %v9600
    %v9668 = vpop.f32.mrb[0].mxu0
    %v9669 = vadd.f32 %v517, %v9668
    %v9670 = vpop.f32.mrb[0].mxu0
    %9671 = vdwg.mxu0
    %v9673 = vsel %vm250, %v9594, 0
    %9675 = vmatprep.subr.mxu0 0.0
    %9676 = vmatpush1.msra.mxu0 %v230
    %9677 = vmatprep.subr.mxu0 0.0
    %9678 = vmatpush1.msra.mxu0 %v231
    %9679 = vmatprep.subr.mxu0 0.0
    %9680 = vmatpush1.msra.mxu0 %v232
    %9681 = vmatprep.subr.mxu0 0.0
    %9682 = vmatpush1.msra.mxu0 %v233
    %9683 = vmatprep.subr.mxu0 0.0
    %9684 = vmatpush1.msra.mxu0 0.0
    %9685 = vmatprep.subr.mxu0 0.0
    %9686 = vmatpush1.msra.mxu0 0.0
    %9687 = vmatprep.subr.mxu0 0.0
    %9688 = vmatpush1.msra.mxu0 0.0
    %9689 = vmatprep.subr.mxu0 0.0
    %9690 = vmatpush1.msra.mxu0 0.0
    %9691 = vmatprep.subr.mxu0 0.0
    %9692 = vmatpush1.msra.mxu0 0.0
    %9693 = vmatprep.subr.mxu0 0.0
    %9694 = vmatpush1.msra.mxu0 0.0
    %9695 = vmatprep.subr.mxu0 0.0
    %9696 = vmatpush1.msra.mxu0 0.0
    %9697 = vmatprep.subr.mxu0 0.0
    %9698 = vmatpush1.msra.mxu0 0.0
    %9699 = vmatprep.subr.mxu0 0.0
    %9700 = vmatpush1.msra.mxu0 0.0
    %9701 = vmatprep.subr.mxu0 0.0
    %9702 = vmatpush1.msra.mxu0 0.0
    %9703 = vmatprep.subr.mxu0 0.0
    %9704 = vmatpush1.msra.mxu0 0.0
    %9705 = vmatprep.subr.mxu0 0.0
    %9706 = vmatpush1.msra.mxu0 0.0
    %9707 = vmatprep.subr.mxu0 0.0
    %9708 = vmatpush1.msra.mxu0 0.0
    %9709 = vmatprep.subr.mxu0 0.0
    %9710 = vmatpush1.msra.mxu0 0.0
    %9711 = vmatprep.subr.mxu0 0.0
    %9712 = vmatpush1.msra.mxu0 0.0
    %9713 = vmatprep.subr.mxu0 0.0
    %9714 = vmatpush1.msra.mxu0 0.0
    %9715 = vmatprep.subr.mxu0 0.0
    %9716 = vmatpush1.msra.mxu0 0.0
    %9717 = vmatprep.subr.mxu0 0.0
    %9718 = vmatpush1.msra.mxu0 0.0
    %9719 = vmatprep.subr.mxu0 0.0
    %9720 = vmatpush1.msra.mxu0 0.0
    %9721 = vmatprep.subr.mxu0 0.0
    %9722 = vmatpush1.msra.mxu0 0.0
    %9723 = vmatprep.subr.mxu0 0.0
    %9724 = vmatpush1.msra.mxu0 0.0
    %9725 = vmatprep.subr.mxu0 0.0
    %9726 = vmatpush1.msra.mxu0 0.0
    %9727 = vmatprep.subr.mxu0 0.0
    %9728 = vmatpush1.msra.mxu0 0.0
    %9729 = vmatprep.subr.mxu0 0.0
    %9730 = vmatpush1.msra.mxu0 0.0
    %9731 = vmatprep.subr.mxu0 0.0
    %9732 = vmatpush1.msra.mxu0 0.0
    %9733 = vmatprep.subr.mxu0 0.0
    %9734 = vmatpush1.msra.mxu0 0.0
    %9735 = vmatprep.subr.mxu0 0.0
    %9736 = vmatpush1.msra.mxu0 0.0
    %9737 = vmatprep.subr.mxu0 0.0
    %9738 = vmatpush1.msra.mxu0 0.0
    %9739 = vmatprep.mubr.f32.mxu0 0.0
    %9740 = vmatmul.mubr.f32.gmra.mrb[0].mxu0 %v9673
    %v9741 = vpop.f32.mrb[0].mxu0
    %v9742 = vadd.f32 %v597, %v9741
    %v9743 = vpop.f32.mrb[0].mxu0
    %9744 = vdwg.mxu0
    %v9745 = vxor.u32 %v9669, 2147483648
    %v9746 = vmul.f32 %v9745, 1.442695
    %v9747 = vpow.pop %v9746
    %v9748 = vadd.f32 %v9747, 1.0
    %v9749 = vrcp.pop %v9748
    %v9750 = vmul.f32 1.0, %v9749
    %v9751 = vmul.f32 %v9750, %v9563
    %v9752 = vadd.f32 %v9742, %v9751
    %v9753 = vtanh.pop %v9752
    %v9754 = vsub.f32 %v9352, %v9753
    %9756 = vrot.lane.b32.xlu0 %v9754, 32
    %v9757 = vpop.permute.xlu0 %9756
    %v9759 = vmul.f32 %v9750, %v9757
    %9761 = vrot.lane.b32.xlu0 %v9759, 96
    %v9762 = vpop.permute.xlu0 %9761
    %v9764 = vadd.f32 %v9753, %v9762
    %9765 = vmatprep.subr.mxu0 0.0
    %9766 = vmatpush1.msra.mxu0 %v213
    %9767 = vmatprep.subr.mxu0 0.0
    %9768 = vmatpush1.msra.mxu0 %v214
    %9769 = vmatprep.subr.mxu0 0.0
    %9770 = vmatpush1.msra.mxu0 %v215
    %9771 = vmatprep.subr.mxu0 0.0
    %9772 = vmatpush1.msra.mxu0 %v216
    %9773 = vmatprep.subr.mxu0 0.0
    %9774 = vmatpush1.msra.mxu0 0.0
    %9775 = vmatprep.subr.mxu0 0.0
    %9776 = vmatpush1.msra.mxu0 0.0
    %9777 = vmatprep.subr.mxu0 0.0
    %9778 = vmatpush1.msra.mxu0 0.0
    %9779 = vmatprep.subr.mxu0 0.0
    %9780 = vmatpush1.msra.mxu0 0.0
    %9781 = vmatprep.subr.mxu0 0.0
    %9782 = vmatpush1.msra.mxu0 0.0
    %9783 = vmatprep.subr.mxu0 0.0
    %9784 = vmatpush1.msra.mxu0 0.0
    %9785 = vmatprep.subr.mxu0 0.0
    %9786 = vmatpush1.msra.mxu0 0.0
    %9787 = vmatprep.subr.mxu0 0.0
    %9788 = vmatpush1.msra.mxu0 0.0
    %9789 = vmatprep.subr.mxu0 0.0
    %9790 = vmatpush1.msra.mxu0 0.0
    %9791 = vmatprep.subr.mxu0 0.0
    %9792 = vmatpush1.msra.mxu0 0.0
    %9793 = vmatprep.subr.mxu0 0.0
    %9794 = vmatpush1.msra.mxu0 0.0
    %9795 = vmatprep.subr.mxu0 0.0
    %9796 = vmatpush1.msra.mxu0 0.0
    %9797 = vmatprep.subr.mxu0 0.0
    %9798 = vmatpush1.msra.mxu0 0.0
    %9799 = vmatprep.subr.mxu0 0.0
    %9800 = vmatpush1.msra.mxu0 0.0
    %9801 = vmatprep.subr.mxu0 0.0
    %9802 = vmatpush1.msra.mxu0 0.0
    %9803 = vmatprep.subr.mxu0 0.0
    %9804 = vmatpush1.msra.mxu0 0.0
    %9805 = vmatprep.subr.mxu0 0.0
    %9806 = vmatpush1.msra.mxu0 0.0
    %9807 = vmatprep.subr.mxu0 0.0
    %9808 = vmatpush1.msra.mxu0 0.0
    %9809 = vmatprep.subr.mxu0 0.0
    %9810 = vmatpush1.msra.mxu0 0.0
    %9811 = vmatprep.subr.mxu0 0.0
    %9812 = vmatpush1.msra.mxu0 0.0
    %9813 = vmatprep.subr.mxu0 0.0
    %9814 = vmatpush1.msra.mxu0 0.0
    %9815 = vmatprep.subr.mxu0 0.0
    %9816 = vmatpush1.msra.mxu0 0.0
    %9817 = vmatprep.subr.mxu0 0.0
    %9818 = vmatpush1.msra.mxu0 0.0
    %9819 = vmatprep.subr.mxu0 0.0
    %9820 = vmatpush1.msra.mxu0 0.0
    %9821 = vmatprep.subr.mxu0 0.0
    %9822 = vmatpush1.msra.mxu0 0.0
    %9823 = vmatprep.subr.mxu0 0.0
    %9824 = vmatpush1.msra.mxu0 0.0
    %9825 = vmatprep.subr.mxu0 0.0
    %9826 = vmatpush1.msra.mxu0 0.0
    %9827 = vmatprep.subr.mxu0 0.0
    %9828 = vmatpush1.msra.mxu0 0.0
    %9829 = vmatprep.mubr.f32.mxu0 0.0
    %9830 = vmatmul.mubr.f32.gmra.mrb[0].mxu0 %v9673
    %v9831 = vpop.f32.mrb[0].mxu0
    %v9832 = vadd.f32 0.0, %v9831
    %v9833 = vpop.f32.mrb[0].mxu0
    %9834 = vdwg.mxu0
    %9835 = vmatprep.subr.mxu0 0.0
    %9836 = vmatpush1.msra.mxu0 %v217
    %9837 = vmatprep.subr.mxu0 0.0
    %9838 = vmatpush1.msra.mxu0 %v218
    %9839 = vmatprep.subr.mxu0 0.0
    %9840 = vmatpush1.msra.mxu0 %v219
    %9841 = vmatprep.subr.mxu0 0.0
    %9842 = vmatpush1.msra.mxu0 %v220
    %9843 = vmatprep.subr.mxu0 0.0
    %9844 = vmatpush1.msra.mxu0 0.0
    %9845 = vmatprep.subr.mxu0 0.0
    %9846 = vmatpush1.msra.mxu0 0.0
    %9847 = vmatprep.subr.mxu0 0.0
    %9848 = vmatpush1.msra.mxu0 0.0
    %9849 = vmatprep.subr.mxu0 0.0
    %9850 = vmatpush1.msra.mxu0 0.0
    %9851 = vmatprep.subr.mxu0 0.0
    %9852 = vmatpush1.msra.mxu0 0.0
    %9853 = vmatprep.subr.mxu0 0.0
    %9854 = vmatpush1.msra.mxu0 0.0
    %9855 = vmatprep.subr.mxu0 0.0
    %9856 = vmatpush1.msra.mxu0 0.0
    %9857 = vmatprep.subr.mxu0 0.0
    %9858 = vmatpush1.msra.mxu0 0.0
    %9859 = vmatprep.subr.mxu0 0.0
    %9860 = vmatpush1.msra.mxu0 0.0
    %9861 = vmatprep.subr.mxu0 0.0
    %9862 = vmatpush1.msra.mxu0 0.0
    %9863 = vmatprep.subr.mxu0 0.0
    %9864 = vmatpush1.msra.mxu0 0.0
    %9865 = vmatprep.subr.mxu0 0.0
    %9866 = vmatpush1.msra.mxu0 0.0
    %9867 = vmatprep.subr.mxu0 0.0
    %9868 = vmatpush1.msra.mxu0 0.0
    %9869 = vmatprep.subr.mxu0 0.0
    %9870 = vmatpush1.msra.mxu0 0.0
    %9871 = vmatprep.subr.mxu0 0.0
    %9872 = vmatpush1.msra.mxu0 0.0
    %9873 = vmatprep.subr.mxu0 0.0
    %9874 = vmatpush1.msra.mxu0 0.0
    %9875 = vmatprep.subr.mxu0 0.0
    %9876 = vmatpush1.msra.mxu0 0.0
    %9877 = vmatprep.subr.mxu0 0.0
    %9878 = vmatpush1.msra.mxu0 0.0
    %9879 = vmatprep.subr.mxu0 0.0
    %9880 = vmatpush1.msra.mxu0 0.0
    %9881 = vmatprep.subr.mxu0 0.0
    %9882 = vmatpush1.msra.mxu0 0.0
    %9883 = vmatprep.subr.mxu0 0.0
    %9884 = vmatpush1.msra.mxu0 0.0
    %9885 = vmatprep.subr.mxu0 0.0
    %9886 = vmatpush1.msra.mxu0 0.0
    %9887 = vmatprep.subr.mxu0 0.0
    %9888 = vmatpush1.msra.mxu0 0.0
    %9889 = vmatprep.subr.mxu0 0.0
    %9890 = vmatpush1.msra.mxu0 0.0
    %9891 = vmatprep.subr.mxu0 0.0
    %9892 = vmatpush1.msra.mxu0 0.0
    %9893 = vmatprep.subr.mxu0 0.0
    %9894 = vmatpush1.msra.mxu0 0.0
    %9895 = vmatprep.subr.mxu0 0.0
    %9896 = vmatpush1.msra.mxu0 0.0
    %9897 = vmatprep.subr.mxu0 0.0
    %9898 = vmatpush1.msra.mxu0 0.0
    %9899 = vmatprep.mubr.f32.mxu0 0.0
    %9900 = vmatmul.mubr.f32.gmra.mrb[0].mxu0 %v9673
    %v9901 = vpop.f32.mrb[0].mxu0
    %v9902 = vadd.f32 %v328, %v9901
    %v9903 = vpop.f32.mrb[0].mxu0
    %9904 = vdwg.mxu0
    %v9906 = vsel %vm250, %v9764, 0
    %9908 = vmatprep.subr.mxu0 0.0
    %9909 = vmatpush1.msra.mxu0 %v234
    %9910 = vmatprep.subr.mxu0 0.0
    %9911 = vmatpush1.msra.mxu0 %v235
    %9912 = vmatprep.subr.mxu0 0.0
    %9913 = vmatpush1.msra.mxu0 %v236
    %9914 = vmatprep.subr.mxu0 0.0
    %9915 = vmatpush1.msra.mxu0 %v237
    %9916 = vmatprep.subr.mxu0 0.0
    %9917 = vmatpush1.msra.mxu0 0.0
    %9918 = vmatprep.subr.mxu0 0.0
    %9919 = vmatpush1.msra.mxu0 0.0
    %9920 = vmatprep.subr.mxu0 0.0
    %9921 = vmatpush1.msra.mxu0 0.0
    %9922 = vmatprep.subr.mxu0 0.0
    %9923 = vmatpush1.msra.mxu0 0.0
    %9924 = vmatprep.subr.mxu0 0.0
    %9925 = vmatpush1.msra.mxu0 0.0
    %9926 = vmatprep.subr.mxu0 0.0
    %9927 = vmatpush1.msra.mxu0 0.0
    %9928 = vmatprep.subr.mxu0 0.0
    %9929 = vmatpush1.msra.mxu0 0.0
    %9930 = vmatprep.subr.mxu0 0.0
    %9931 = vmatpush1.msra.mxu0 0.0
    %9932 = vmatprep.subr.mxu0 0.0
    %9933 = vmatpush1.msra.mxu0 0.0
    %9934 = vmatprep.subr.mxu0 0.0
    %9935 = vmatpush1.msra.mxu0 0.0
    %9936 = vmatprep.subr.mxu0 0.0
    %9937 = vmatpush1.msra.mxu0 0.0
    %9938 = vmatprep.subr.mxu0 0.0
    %9939 = vmatpush1.msra.mxu0 0.0
    %9940 = vmatprep.subr.mxu0 0.0
    %9941 = vmatpush1.msra.mxu0 0.0
    %9942 = vmatprep.subr.mxu0 0.0
    %9943 = vmatpush1.msra.mxu0 0.0
    %9944 = vmatprep.subr.mxu0 0.0
    %9945 = vmatpush1.msra.mxu0 0.0
    %9946 = vmatprep.subr.mxu0 0.0
    %9947 = vmatpush1.msra.mxu0 0.0
    %9948 = vmatprep.subr.mxu0 0.0
    %9949 = vmatpush1.msra.mxu0 0.0
    %9950 = vmatprep.subr.mxu0 0.0
    %9951 = vmatpush1.msra.mxu0 0.0
    %9952 = vmatprep.subr.mxu0 0.0
    %9953 = vmatpush1.msra.mxu0 0.0
    %9954 = vmatprep.subr.mxu0 0.0
    %9955 = vmatpush1.msra.mxu0 0.0
    %9956 = vmatprep.subr.mxu0 0.0
    %9957 = vmatpush1.msra.mxu0 0.0
    %9958 = vmatprep.subr.mxu0 0.0
    %9959 = vmatpush1.msra.mxu0 0.0
    %9960 = vmatprep.subr.mxu0 0.0
    %9961 = vmatpush1.msra.mxu0 0.0
    %9962 = vmatprep.subr.mxu0 0.0
    %9963 = vmatpush1.msra.mxu0 0.0
    %9964 = vmatprep.subr.mxu0 0.0
    %9965 = vmatpush1.msra.mxu0 0.0
    %9966 = vmatprep.subr.mxu0 0.0
    %9967 = vmatpush1.msra.mxu0 0.0
    %9968 = vmatprep.subr.mxu0 0.0
    %9969 = vmatpush1.msra.mxu0 0.0
    %9970 = vmatprep.subr.mxu0 0.0
    %9971 = vmatpush1.msra.mxu0 0.0
    %9972 = vmatprep.mubr.f32.mxu0 0.0
    %9973 = vmatmul.mubr.f32.gmra.mrb[0].mxu0 %v9906
    %v9974 = vpop.f32.mrb[0].mxu0
    %v9975 = vadd.f32 %v404, %v9974
    %v9976 = vpop.f32.mrb[0].mxu0
    %9977 = vdwg.mxu0
    %9978 = vset.pattern.permute.xlu0 7
    %9979 = vperm.xlu0 %9978, %v6879
    %v9980 = vpop.permute.xlu0 %9979
    %v9982 = vmul.f32 %v9980, %v190
    %v9983 = vadd.f32 %v9982, %v204
    %v9984 = vadd.f32 %v9983, %v9832
    %v9985 = vmul.f32 %v9980, %v197
    %v9986 = vadd.f32 %v9985, %v211
    %v9987 = vxor.u32 %v9984, 2147483648
    %v9988 = vmul.f32 %v9987, 1.442695
    %v9989 = vpow.pop %v9988
    %v9990 = vadd.f32 %v9989, 1.0
    %v9991 = vrcp.pop %v9990
    %v9992 = vmul.f32 1.0, %v9991
    %v9993 = vmul.f32 %v9992, %v9902
    %v9994 = vadd.f32 %v9986, %v9993
    %v9995 = vtanh.pop %v9994
    %v9996 = vsub.f32 %v9594, %v9995
    %9998 = vrot.lane.b32.xlu0 %v9996, 32
    %v9999 = vpop.permute.xlu0 %9998
    %v10001 = vmul.f32 %v9992, %v9999
    %10003 = vrot.lane.b32.xlu0 %v10001, 96
    %v10004 = vpop.permute.xlu0 %10003
    %v10006 = vadd.f32 %v9995, %v10004
    %10007 = vrot.lane.b32.xlu0 %v9764, 32
    %v10008 = vpop.permute.xlu0 %10007
    %v10010 = vsel %vm250, %v10006, %v10008
    %v10012 = vsel %vm519, %v10010, 0
    %10014 = vmatprep.subr.mxu0 0.0
    %10015 = vmatpush1.msra.mxu0 %v222
    %10016 = vmatprep.subr.mxu0 0.0
    %10017 = vmatpush1.msra.mxu0 %v223
    %10018 = vmatprep.subr.mxu0 0.0
    %10019 = vmatpush1.msra.mxu0 %v224
    %10020 = vmatprep.subr.mxu0 0.0
    %10021 = vmatpush1.msra.mxu0 %v225
    %10022 = vmatprep.subr.mxu0 0.0
    %10023 = vmatpush1.msra.mxu0 %v226
    %10024 = vmatprep.subr.mxu0 0.0
    %10025 = vmatpush1.msra.mxu0 %v227
    %10026 = vmatprep.subr.mxu0 0.0
    %10027 = vmatpush1.msra.mxu0 %v228
    %10028 = vmatprep.subr.mxu0 0.0
    %10029 = vmatpush1.msra.mxu0 %v229
    %10030 = vmatprep.subr.mxu0 0.0
    %10031 = vmatpush1.msra.mxu0 0.0
    %10032 = vmatprep.subr.mxu0 0.0
    %10033 = vmatpush1.msra.mxu0 0.0
    %10034 = vmatprep.subr.mxu0 0.0
    %10035 = vmatpush1.msra.mxu0 0.0
    %10036 = vmatprep.subr.mxu0 0.0
    %10037 = vmatpush1.msra.mxu0 0.0
    %10038 = vmatprep.subr.mxu0 0.0
    %10039 = vmatpush1.msra.mxu0 0.0
    %10040 = vmatprep.subr.mxu0 0.0
    %10041 = vmatpush1.msra.mxu0 0.0
    %10042 = vmatprep.subr.mxu0 0.0
    %10043 = vmatpush1.msra.mxu0 0.0
    %10044 = vmatprep.subr.mxu0 0.0
    %10045 = vmatpush1.msra.mxu0 0.0
    %10046 = vmatprep.subr.mxu0 0.0
    %10047 = vmatpush1.msra.mxu0 0.0
    %10048 = vmatprep.subr.mxu0 0.0
    %10049 = vmatpush1.msra.mxu0 0.0
    %10050 = vmatprep.subr.mxu0 0.0
    %10051 = vmatpush1.msra.mxu0 0.0
    %10052 = vmatprep.subr.mxu0 0.0
    %10053 = vmatpush1.msra.mxu0 0.0
    %10054 = vmatprep.subr.mxu0 0.0
    %10055 = vmatpush1.msra.mxu0 0.0
    %10056 = vmatprep.subr.mxu0 0.0
    %10057 = vmatpush1.msra.mxu0 0.0
    %10058 = vmatprep.subr.mxu0 0.0
    %10059 = vmatpush1.msra.mxu0 0.0
    %10060 = vmatprep.subr.mxu0 0.0
    %10061 = vmatpush1.msra.mxu0 0.0
    %10062 = vmatprep.subr.mxu0 0.0
    %10063 = vmatpush1.msra.mxu0 0.0
    %10064 = vmatprep.subr.mxu0 0.0
    %10065 = vmatpush1.msra.mxu0 0.0
    %10066 = vmatprep.subr.mxu0 0.0
    %10067 = vmatpush1.msra.mxu0 0.0
    %10068 = vmatprep.subr.mxu0 0.0
    %10069 = vmatpush1.msra.mxu0 0.0
    %10070 = vmatprep.subr.mxu0 0.0
    %10071 = vmatpush1.msra.mxu0 0.0
    %10072 = vmatprep.subr.mxu0 0.0
    %10073 = vmatpush1.msra.mxu0 0.0
    %10074 = vmatprep.subr.mxu0 0.0
    %10075 = vmatpush1.msra.mxu0 0.0
    %10076 = vmatprep.subr.mxu0 0.0
    %10077 = vmatpush1.msra.mxu0 0.0
    %10078 = vmatprep.mubr.f32.mxu0 0.0
    %10079 = vmatmul.mubr.f32.gmra.mrb[0].mxu0 %v10012
    %v10080 = vpop.f32.mrb[0].mxu0
    %v10081 = vadd.f32 %v517, %v10080
    %v10082 = vpop.f32.mrb[0].mxu0
    %10083 = vdwg.mxu0
    %v10085 = vsel %vm250, %v10006, 0
    %10087 = vmatprep.subr.mxu0 0.0
    %10088 = vmatpush1.msra.mxu0 %v230
    %10089 = vmatprep.subr.mxu0 0.0
    %10090 = vmatpush1.msra.mxu0 %v231
    %10091 = vmatprep.subr.mxu0 0.0
    %10092 = vmatpush1.msra.mxu0 %v232
    %10093 = vmatprep.subr.mxu0 0.0
    %10094 = vmatpush1.msra.mxu0 %v233
    %10095 = vmatprep.subr.mxu0 0.0
    %10096 = vmatpush1.msra.mxu0 0.0
    %10097 = vmatprep.subr.mxu0 0.0
    %10098 = vmatpush1.msra.mxu0 0.0
    %10099 = vmatprep.subr.mxu0 0.0
    %10100 = vmatpush1.msra.mxu0 0.0
    %10101 = vmatprep.subr.mxu0 0.0
    %10102 = vmatpush1.msra.mxu0 0.0
    %10103 = vmatprep.subr.mxu0 0.0
    %10104 = vmatpush1.msra.mxu0 0.0
    %10105 = vmatprep.subr.mxu0 0.0
    %10106 = vmatpush1.msra.mxu0 0.0
    %10107 = vmatprep.subr.mxu0 0.0
    %10108 = vmatpush1.msra.mxu0 0.0
    %10109 = vmatprep.subr.mxu0 0.0
    %10110 = vmatpush1.msra.mxu0 0.0
    %10111 = vmatprep.subr.mxu0 0.0
    %10112 = vmatpush1.msra.mxu0 0.0
    %10113 = vmatprep.subr.mxu0 0.0
    %10114 = vmatpush1.msra.mxu0 0.0
    %10115 = vmatprep.subr.mxu0 0.0
    %10116 = vmatpush1.msra.mxu0 0.0
    %10117 = vmatprep.subr.mxu0 0.0
    %10118 = vmatpush1.msra.mxu0 0.0
    %10119 = vmatprep.subr.mxu0 0.0
    %10120 = vmatpush1.msra.mxu0 0.0
    %10121 = vmatprep.subr.mxu0 0.0
    %10122 = vmatpush1.msra.mxu0 0.0
    %10123 = vmatprep.subr.mxu0 0.0
    %10124 = vmatpush1.msra.mxu0 0.0
    %10125 = vmatprep.subr.mxu0 0.0
    %10126 = vmatpush1.msra.mxu0 0.0
    %10127 = vmatprep.subr.mxu0 0.0
    %10128 = vmatpush1.msra.mxu0 0.0
    %10129 = vmatprep.subr.mxu0 0.0
    %10130 = vmatpush1.msra.mxu0 0.0
    %10131 = vmatprep.subr.mxu0 0.0
    %10132 = vmatpush1.msra.mxu0 0.0
    %10133 = vmatprep.subr.mxu0 0.0
    %10134 = vmatpush1.msra.mxu0 0.0
    %10135 = vmatprep.subr.mxu0 0.0
    %10136 = vmatpush1.msra.mxu0 0.0
    %10137 = vmatprep.subr.mxu0 0.0
    %10138 = vmatpush1.msra.mxu0 0.0
    %10139 = vmatprep.subr.mxu0 0.0
    %10140 = vmatpush1.msra.mxu0 0.0
    %10141 = vmatprep.subr.mxu0 0.0
    %10142 = vmatpush1.msra.mxu0 0.0
    %10143 = vmatprep.subr.mxu0 0.0
    %10144 = vmatpush1.msra.mxu0 0.0
    %10145 = vmatprep.subr.mxu0 0.0
    %10146 = vmatpush1.msra.mxu0 0.0
    %10147 = vmatprep.subr.mxu0 0.0
    %10148 = vmatpush1.msra.mxu0 0.0
    %10149 = vmatprep.subr.mxu0 0.0
    %10150 = vmatpush1.msra.mxu0 0.0
    %10151 = vmatprep.mubr.f32.mxu0 0.0
    %10152 = vmatmul.mubr.f32.gmra.mrb[0].mxu0 %v10085
    %v10153 = vpop.f32.mrb[0].mxu0
    %v10154 = vadd.f32 %v597, %v10153
    %v10155 = vpop.f32.mrb[0].mxu0
    %10156 = vdwg.mxu0
    %v10157 = vxor.u32 %v10081, 2147483648
    %v10158 = vmul.f32 %v10157, 1.442695
    %v10159 = vpow.pop %v10158
    %v10160 = vadd.f32 %v10159, 1.0
    %v10161 = vrcp.pop %v10160
    %v10162 = vmul.f32 1.0, %v10161
    %v10163 = vmul.f32 %v10162, %v9975
    %v10164 = vadd.f32 %v10154, %v10163
    %v10165 = vtanh.pop %v10164
    %v10166 = vsub.f32 %v9764, %v10165
    %10168 = vrot.lane.b32.xlu0 %v10166, 32
    %v10169 = vpop.permute.xlu0 %10168
    %v10171 = vmul.f32 %v10162, %v10169
    %10173 = vrot.lane.b32.xlu0 %v10171, 96
    %v10174 = vpop.permute.xlu0 %10173
    %v10176 = vadd.f32 %v10165, %v10174
    %10177 = vst.msk [vmem:[#allocation2 + $0x4] sm:$0x3] %vm3576, %v10176
    %v10178 = vld [vmem:[#allocation2] sm:$0x3f]
    %v10180 = vlaneseq
    %v10181 = vshrl.u32 %v10180, 7
    %v10182 = vsub.s32 0, %v10181
    %v10183 = vrot.slane %v245, %v10182
    %v10186 = vsel %vm250, %v10178, 0
    %10188 = vmatprep.subr.mxu0 0.0
    %10189 = vmatpush1.msra.mxu0 %v241
    %10190 = vmatprep.subr.mxu0 0.0
    %10191 = vmatpush1.msra.mxu0 %v242
    %10192 = vmatprep.subr.mxu0 0.0
    %10193 = vmatpush1.msra.mxu0 %v243
    %10194 = vmatprep.subr.mxu0 0.0
    %10195 = vmatpush1.msra.mxu0 %v244
    %10196 = vmatprep.subr.mxu0 0.0
    %10197 = vmatpush1.msra.mxu0 0.0
    %10198 = vmatprep.subr.mxu0 0.0
    %10199 = vmatpush1.msra.mxu0 0.0
    %10200 = vmatprep.subr.mxu0 0.0
    %10201 = vmatpush1.msra.mxu0 0.0
    %10202 = vmatprep.subr.mxu0 0.0
    %10203 = vmatpush1.msra.mxu0 0.0
    %10204 = vmatprep.subr.mxu0 0.0
    %10205 = vmatpush1.msra.mxu0 0.0
    %10206 = vmatprep.subr.mxu0 0.0
    %10207 = vmatpush1.msra.mxu0 0.0
    %10208 = vmatprep.subr.mxu0 0.0
    %10209 = vmatpush1.msra.mxu0 0.0
    %10210 = vmatprep.subr.mxu0 0.0
    %10211 = vmatpush1.msra.mxu0 0.0
    %10212 = vmatprep.subr.mxu0 0.0
    %10213 = vmatpush1.msra.mxu0 0.0
    %10214 = vmatprep.subr.mxu0 0.0
    %10215 = vmatpush1.msra.mxu0 0.0
    %10216 = vmatprep.subr.mxu0 0.0
    %10217 = vmatpush1.msra.mxu0 0.0
    %10218 = vmatprep.subr.mxu0 0.0
    %10219 = vmatpush1.msra.mxu0 0.0
    %10220 = vmatprep.subr.mxu0 0.0
    %10221 = vmatpush1.msra.mxu0 0.0
    %10222 = vmatprep.subr.mxu0 0.0
    %10223 = vmatpush1.msra.mxu0 0.0
    %10224 = vmatprep.subr.mxu0 0.0
    %10225 = vmatpush1.msra.mxu0 0.0
    %10226 = vmatprep.subr.mxu0 0.0
    %10227 = vmatpush1.msra.mxu0 0.0
    %10228 = vmatprep.subr.mxu0 0.0
    %10229 = vmatpush1.msra.mxu0 0.0
    %10230 = vmatprep.subr.mxu0 0.0
    %10231 = vmatpush1.msra.mxu0 0.0
    %10232 = vmatprep.subr.mxu0 0.0
    %10233 = vmatpush1.msra.mxu0 0.0
    %10234 = vmatprep.subr.mxu0 0.0
    %10235 = vmatpush1.msra.mxu0 0.0
    %10236 = vmatprep.subr.mxu0 0.0
    %10237 = vmatpush1.msra.mxu0 0.0
    %10238 = vmatprep.subr.mxu0 0.0
    %10239 = vmatpush1.msra.mxu0 0.0
    %10240 = vmatprep.subr.mxu0 0.0
    %10241 = vmatpush1.msra.mxu0 0.0
    %10242 = vmatprep.subr.mxu0 0.0
    %10243 = vmatpush1.msra.mxu0 0.0
    %10244 = vmatprep.subr.mxu0 0.0
    %10245 = vmatpush1.msra.mxu0 0.0
    %10246 = vmatprep.subr.mxu0 0.0
    %10247 = vmatpush1.msra.mxu0 0.0
    %10248 = vmatprep.subr.mxu0 0.0
    %10249 = vmatpush1.msra.mxu0 0.0
    %10250 = vmatprep.subr.mxu0 0.0
    %10251 = vmatpush1.msra.mxu0 0.0
    %10252 = vmatprep.mubr.f32.mxu0 0.0
    %10253 = vmatmul.mubr.f32.gmra.mrb[0].mxu0 %v10186
    %v10254 = vpop.f32.mrb[0].mxu0
    %v10255 = vadd.f32 %v10183, %v10254
    %v10256 = vpop.f32.mrb[0].mxu0
    %10257 = vdwg.mxu0
    %vm10258 = vcmask 29696
    %10259 = vst.msk [vmem:[%s17] sm:$0x3f] %vm10258, %v10255
    %10260 = vst.msk [vmem:[#allocation20] sm:$0x3] %vm3576, %v10006
    %s10261 = scalar_lea.vmem [#allocation20], 2
    %10262 = vst.msk [vmem:[%s10261] sm:$0x3] %vm3576, %v10176
    // Predicated region
    $region110: #{tpu_custom_call.1} parent=1 // pred_check
      _
    $region111: #{tpu_custom_call.1} parent=1 // pred_check_branch
      %10264 = sbr.rel (0) target = $region113
    $region112: #{tpu_custom_call.1} parent=1 // pred_region
      _
    $region113: #{tpu_custom_call.1} parent=1 // pred_fallthru
      _
    // Predicated region
    $region114: #{tpu_custom_call.1} parent=1 // pred_check
      _
    $region115: #{tpu_custom_call.1} parent=1 // pred_check_branch
      %10266 = sbr.rel (0) target = $region117
    $region116: #{tpu_custom_call.1} parent=1 // pred_region
      %s10268 = ssub.s32 64, 64
      %10269 = vsyncadd [#allocation5], %s10268
      %s10270 = sshll.u32 [#allocation20], 4
      %s10271 = int_to_ptr.vmem [resolvable:$true] %s10270
      %10276 = dma.vmem_to_hbm [thread:$0]  %s10271, 64, %s18, [#allocation5], 32, 32, 2
    $region117: #{tpu_custom_call.1} parent=1 // pred_fallthru
      _
    // Predicated region
    $region118: #{tpu_custom_call.1} parent=1 // pred_check
      _
    $region119: #{tpu_custom_call.1} parent=1 // pred_check_branch
      %10278 = sbr.rel (0) target = $region121
    $region120: #{tpu_custom_call.1} parent=1 // pred_region
      _
    $region121: #{tpu_custom_call.1} parent=1 // pred_fallthru
      _
    // Predicated region
    $region122: #{tpu_custom_call.1} parent=1 // pred_check
      _
    $region123: #{tpu_custom_call.1} parent=1 // pred_check_branch
      %10280 = sbr.rel (0) target = $region125
    $region124: #{tpu_custom_call.1} parent=1 // pred_region
      %10281 = dma.done [#allocation5], 64
    $region125: #{tpu_custom_call.1} parent=1 // pred_fallthru
      _
    %10282 = vsyncpa [#allocation4], 1
    %10283 = vsyncpa [#allocation7], 1
    %10284 = vsyncpa [#allocation10], 1
    %10285 = vsyncpa [#allocation13], 1
    %10286 = vsyncpa [#allocation16], 1
    %10287 = vsyncpa [#allocation19], 1
    %10288 = vsyncpa [#allocation5], 1

</llo_original>
